<compile_context>
chip_gen: v5e
topology: v5e:2x2
jax: 0.10.0
libtpu: 0.0.40
codegen_flags: <defaults>
</compile_context>

<pallas_src>
import functools

import jax
import jax.numpy as jnp
from jax.experimental import pallas as pl
from jax.experimental.pallas import tpu as pltpu


# ----------------------------------------------------------------------------
# Pallas kernel: fused (W @ patches) + bias [+ residual] [-> ReLU]
#   W        : (Cout, K)  bf16   (BN scale pre-folded)
#   patches  : (K, tn)    bf16   (im2col, spatial positions on the lane axis)
#   bias     : (Cout, 1)  f32
#   residual : (Cout, tn) f32    (optional)
#   out      : (Cout, tn) f32    lane-dense (tn is a multiple of 128)
# ----------------------------------------------------------------------------
def _make_kernel(apply_relu: bool, has_res: bool):
    if has_res:
        def kernel(w_ref, p_ref, b_ref, r_ref, o_ref):
            acc = jnp.dot(w_ref[...], p_ref[...],
                          preferred_element_type=jnp.float32)
            y = acc + b_ref[...]
            y = y + r_ref[...]
            if apply_relu:
                y = jnp.maximum(y, 0.0)
            o_ref[...] = y.astype(o_ref.dtype)
    else:
        def kernel(w_ref, p_ref, b_ref, o_ref):
            acc = jnp.dot(w_ref[...], p_ref[...],
                          preferred_element_type=jnp.float32)
            y = acc + b_ref[...]
            if apply_relu:
                y = jnp.maximum(y, 0.0)
            o_ref[...] = y.astype(o_ref.dtype)
    return kernel


def _pick_tn(P):
    """Lane tile over the flattened (n, h, w) dim.  Prefer >= 2 grid steps."""
    for tn in (1024, 512, 256, 128):
        if P % tn == 0 and P // tn >= 2:
            return tn
    for tn in (1024, 512, 256, 128):
        if P % tn == 0:
            return tn
    return P  # full dim is always a legal block


def matmul_bias_act(w_mat, patches, bias, residual=None, relu=True):
    """out[Cout, P] = relu?( w_mat @ patches + bias (+ residual) )."""
    Cout, K = w_mat.shape
    P = patches.shape[1]
    tn = _pick_tn(P)
    has_res = residual is not None
    kernel = _make_kernel(relu, has_res)

    in_specs = [
        pl.BlockSpec((Cout, K), lambda j: (0, 0)),     # weights (VMEM resident)
        pl.BlockSpec((K, tn), lambda j: (0, j)),       # patch tile
        pl.BlockSpec((Cout, 1), lambda j: (0, 0)),     # folded BN bias
    ]
    args = [w_mat.astype(jnp.bfloat16),
            patches.astype(jnp.bfloat16),
            bias.reshape(Cout, 1).astype(jnp.float32)]
    if has_res:
        in_specs.append(pl.BlockSpec((Cout, tn), lambda j: (0, j)))
        args.append(residual.astype(jnp.float32))

    return pl.pallas_call(
        kernel,
        out_shape=jax.ShapeDtypeStruct((Cout, P), jnp.float32),
        grid_spec=pltpu.PrefetchScalarGridSpec(
            num_scalar_prefetch=0,
            grid=(P // tn,),
            in_specs=in_specs,
            out_specs=pl.BlockSpec((Cout, tn), lambda j: (0, j)),
        ),
        compiler_params=pltpu.CompilerParams(
            dimension_semantics=("parallel",),
            vmem_limit_bytes=32 * 1024 * 1024),
    )(*args)


# ----------------------------------------------------------------------------
# im2col glue (plain JAX: pad / strided slice / concat).  Produces the
# TRANSPOSED patch matrix (K, P) so spatial positions land on the lane axis.
# ----------------------------------------------------------------------------
def _im2col_T(x_cf, k, stride, padding, dilation):
    # x_cf: (C, N, H, W)
    C, N, H, W = x_cf.shape
    xp = jnp.pad(x_cf, ((0, 0), (0, 0), (padding, padding), (padding, padding)))
    Ho = (H + 2 * padding - dilation * (k - 1) - 1) // stride + 1
    Wo = (W + 2 * padding - dilation * (k - 1) - 1) // stride + 1
    taps = []
    for kh in range(k):
        for kw in range(k):
            h0, w0 = kh * dilation, kw * dilation
            sl = xp[:, :, h0:h0 + stride * (Ho - 1) + 1:stride,
                    w0:w0 + stride * (Wo - 1) + 1:stride]
            taps.append(sl)
    pat = taps[0] if k == 1 else jnp.concatenate(taps, axis=0)
    return pat.reshape(k * k * C, N * Ho * Wo), (N, Ho, Wo)


def convbn_apply(x_cf, p, k, stride, pad, dilation, residual=None, relu=True):
    """Conv2d(bias=False) + folded BN (+ residual) (+ ReLU).

    x_cf: (Cin, N, H, W).  p['w']: PyTorch layout (Cout, Cin, k, k) with the
    BN scale already folded in; p['b']: folded BN bias (Cout,).
    Padding follows convbn: padding = dilation if dilation > 1 else pad.
    """
    Cout = p['w'].shape[0]
    padding = dilation if dilation > 1 else pad
    patches, (N, Ho, Wo) = _im2col_T(x_cf, k, stride, padding, dilation)
    # column order of patches is (kh, kw, cin) -> match with (0, 2, 3, 1)
    w_mat = jnp.transpose(p['w'], (0, 2, 3, 1)).reshape(Cout, -1)
    res = None if residual is None else residual.reshape(residual.shape[0], -1)
    y = matmul_bias_act(w_mat, patches, p['b'], res, relu)
    return y.reshape(Cout, N, Ho, Wo)


# ----------------------------------------------------------------------------
# BasicBlock / layer application (PSMNet-style)
# ----------------------------------------------------------------------------
def basic_block_apply(x, blk, dilation, stride):
    out = convbn_apply(x, blk['conv1'], 3, stride, dilation, dilation, relu=True)
    if 'down' in blk:
        identity = convbn_apply(x, blk['down'], 1, stride, 0, 1, relu=False)
    else:
        identity = x
    # conv2 + BN with the residual add fused into the kernel epilogue; no ReLU
    out = convbn_apply(out, blk['conv2'], 3, 1, dilation, dilation,
                       residual=identity, relu=False)
    return out


def layer_apply(x, layer_params, dilation, first_stride):
    out = basic_block_apply(x, layer_params[0], dilation, first_stride)
    for blk in layer_params[1:]:
        out = basic_block_apply(out, blk, dilation, 1)
    return out


# ----------------------------------------------------------------------------
# Parameter construction (deterministic, synthetic)
# ----------------------------------------------------------------------------
def _bn_fold(C):
    idx = jnp.arange(C, dtype=jnp.float32)
    gamma = 1.0 + 0.01 * idx
    beta = 0.02 * idx - 0.05
    mean = 0.001 * idx
    var = 1.0 + 0.002 * idx
    eps = 1e-5
    scale = gamma / jnp.sqrt(var + eps)
    bias = beta - mean * scale
    return scale, bias


def _convbn_params(key, cin, cout, k):
    w = 0.1 * jax.random.normal(key, (cout, cin, k, k), jnp.float32)
    scale, bias = _bn_fold(cout)
    return {'w': w * scale[:, None, None, None], 'b': bias}   # BN scale folded


def _conv_params(key, cin, cout, k):
    w = 0.1 * jax.random.normal(key, (cout, cin, k, k), jnp.float32)
    return {'w': w, 'b': jnp.zeros((cout,), jnp.float32)}     # plain conv


def _layer_params(keys, inplanes, planes, blocks, stride):
    ks = iter(keys)
    layer = []
    blk = {'conv1': _convbn_params(next(ks), inplanes, planes, 3),
           'conv2': _convbn_params(next(ks), planes, planes, 3)}
    if stride != 1 or inplanes != planes:
        blk['down'] = _convbn_params(next(ks), inplanes, planes, 1)
    layer.append(blk)
    for _ in range(1, blocks):
        layer.append({'conv1': _convbn_params(next(ks), planes, planes, 3),
                      'conv2': _convbn_params(next(ks), planes, planes, 3)})
    return layer


def make_feature_extraction_params(key):
    keys = iter(jax.random.split(key, 64))
    p = {}
    p['first'] = [_convbn_params(next(keys), 3, 32, 3),
                  _convbn_params(next(keys), 32, 32, 3),
                  _convbn_params(next(keys), 32, 32, 3)]
    p['layer0'] = _layer_params([next(keys) for _ in range(9)], 32, 32, 4, 2)
    p['layer1'] = [_convbn_params(next(keys), 32, 64, 1),
                   _convbn_params(next(keys), 64, 64, 1)]
    p['layer2'] = _layer_params([next(keys) for _ in range(9)], 32, 64, 4, 1)
    p['layer3'] = _layer_params([next(keys) for _ in range(9)], 32, 128, 4, 1)
    p['layer4'] = _layer_params([next(keys) for _ in range(9)], 32, 128, 4, 1)
    p['last'] = [_convbn_params(next(keys), 384, 128, 3),
                 _conv_params(next(keys), 128, 32, 1)]
    return p


# ----------------------------------------------------------------------------
# feature_extraction.forward
# ----------------------------------------------------------------------------
def feature_extraction_forward(params, x_nchw):
    """Input/output are PyTorch-style NCHW float32 arrays."""
    x = jnp.transpose(x_nchw, (1, 0, 2, 3))            # carry (C, N, H, W)

    # firstconv: convbn(3,32,3,2,1,1)+ReLU, convbn(32,32,3,1,1,1)+ReLU, x2
    out = convbn_apply(x, params['first'][0], 3, 2, 1, 1, relu=True)
    out = convbn_apply(out, params['first'][1], 3, 1, 1, 1, relu=True)
    out = convbn_apply(out, params['first'][2], 3, 1, 1, 1, relu=True)

    # layer0: 4 BasicBlocks, planes=32, first stride 2, dilation 2
    out = layer_apply(out, params['layer0'], dilation=2, first_stride=2)

    # layer1: two 1x1 convbn+ReLU (32->64->64)
    out1 = convbn_apply(out, params['layer1'][0], 1, 1, 0, 1, relu=True)
    out1 = convbn_apply(out1, params['layer1'][1], 1, 1, 0, 1, relu=True)

    # layer2/3/4: 4 BasicBlocks each, dilations 4/8/16, all fed from layer0 out
    out2 = layer_apply(out, params['layer2'], dilation=4, first_stride=1)
    out3 = layer_apply(out, params['layer3'], dilation=8, first_stride=1)
    out4 = layer_apply(out, params['layer4'], dilation=16, first_stride=1)

    # torch.cat((out1, out2, out3, out4), dim=1) -> channel axis is 0 here
    out_cat = jnp.concatenate([out1, out2, out3, out4], axis=0)   # 384 channels

    # lastconv: convbn(384,128,3,1,1,1)+ReLU, Conv2d(128,32,1,bias=False)
    y = convbn_apply(out_cat, params['last'][0], 3, 1, 1, 1, relu=True)
    y = convbn_apply(y, params['last'][1], 1, 1, 0, 1, relu=False)

    return jnp.transpose(y, (1, 0, 2, 3))               # back to NCHW


if __name__ == "__main__":
    key = jax.random.PRNGKey(0)
    k_x, k_p = jax.random.split(key)

    N, C, H, W = 2, 3, 32, 32                 # NCHW RGB input
    x = jax.random.normal(k_x, (N, C, H, W), jnp.float32)

    params = make_feature_extraction_params(k_p)

    fwd = jax.jit(functools.partial(feature_extraction_forward, params))
    out = fwd(x)
    jax.block_until_ready(out)

    assert out.shape == (N, 32, H // 4, W // 4), out.shape
    print("KERNEL_OK")
</pallas_src>

<mosaic_0001>
module attributes {stable_mosaic.version = 11 : i64} {
  func.func @kernel(%arg0: i32, %arg1: memref<32x27xbf16, #tpu.memory_space<vmem>>, %arg2: memref<27x256xbf16, #tpu.memory_space<vmem>>, %arg3: memref<32x1xf32, #tpu.memory_space<vmem>>, %arg4: memref<32x256xf32, #tpu.memory_space<vmem>>) attributes {dimension_semantics = [#tpu.dimension_semantics<parallel>], iteration_bounds = array<i64: 2>, scalar_prefetch = 0 : i64, scratch_operands = 0 : i64, tpu.core_type = #tpu.core_type<tc>, window_params = [{pipeline_mode = #tpu.pipeline_mode<synchronous>, transform_indices = @transform_0, window_bounds = array<i64: 32, 27>}, {transform_indices = @transform_1, window_bounds = array<i64: 27, 256>}, {pipeline_mode = #tpu.pipeline_mode<synchronous>, transform_indices = @transform_2, window_bounds = array<i64: 32, 1>}, {transform_indices = @transform_3, window_bounds = array<i64: 32, 256>}]} {
    %c0 = arith.constant 0 : index
    %c0_0 = arith.constant 0 : index
    %0 = vector.load %arg1[%c0, %c0_0] : memref<32x27xbf16, #tpu.memory_space<vmem>>, vector<32x27xbf16>
    %c0_1 = arith.constant 0 : index
    %c0_2 = arith.constant 0 : index
    %1 = vector.load %arg2[%c0_1, %c0_2] : memref<27x256xbf16, #tpu.memory_space<vmem>>, vector<27x256xbf16>
    %cst = arith.constant dense<0.000000e+00> : vector<32x256xf32>
    %2 = tpu.matmul %0, %1, %cst {dimension_numbers = #tpu.dot_dimension_numbers<[1], [0], [0], [1], [0, 0, 1, 1], [], []>} : vector<32x27xbf16>, vector<27x256xbf16>, vector<32x256xf32> -> vector<32x256xf32>
    %c0_3 = arith.constant 0 : index
    %c0_4 = arith.constant 0 : index
    %3 = vector.load %arg3[%c0_3, %c0_4] : memref<32x1xf32, #tpu.memory_space<vmem>>, vector<32x1xf32>
    %4 = vector.broadcast %3 : vector<32x1xf32> to vector<32x256xf32>
    %5 = arith.addf %2, %4 : vector<32x256xf32>
    %cst_5 = arith.constant 0.000000e+00 : f32
    %6 = vector.broadcast %cst_5 : f32 to vector<32x256xf32>
    %7 = arith.maximumf %5, %6 : vector<32x256xf32>
    %c0_6 = arith.constant 0 : index
    %c0_7 = arith.constant 0 : index
    %8 = vector.load %arg4[%c0_6, %c0_7] : memref<32x256xf32, #tpu.memory_space<vmem>>, vector<32x256xf32>
    tpu.vector_store %arg4[%c0_6, %c0_7], %7 {strides = array<i32>} : memref<32x256xf32, #tpu.memory_space<vmem>>, vector<32x256xf32>,
    return
  }
  func.func @transform_0(%arg0: i32) -> (i32, i32) {
    %c0_i32 = arith.constant 0 : i32
    %c0_i32_0 = arith.constant 0 : i32
    %c0_i32_1 = arith.constant 0 : i32
    return %c0_i32, %c0_i32_0 : i32, i32
  }
  func.func @transform_1(%arg0: i32) -> (i32, i32) {
    %c0_i32 = arith.constant 0 : i32
    %c0_i32_0 = arith.constant 0 : i32
    return %c0_i32, %arg0 : i32, i32
  }
  func.func @transform_2(%arg0: i32) -> (i32, i32) {
    %c0_i32 = arith.constant 0 : i32
    %c0_i32_0 = arith.constant 0 : i32
    %c0_i32_1 = arith.constant 0 : i32
    return %c0_i32, %c0_i32_0 : i32, i32
  }
  func.func @transform_3(%arg0: i32) -> (i32, i32) {
    %c0_i32 = arith.constant 0 : i32
    %c0_i32_0 = arith.constant 0 : i32
    return %c0_i32, %arg0 : i32, i32
  }
}

module attributes {stable_mosaic.version = 11 : i64} {
  func.func @kernel(%arg0: i32, %arg1: memref<32x288xbf16, #tpu.memory_space<vmem>>, %arg2: memref<288x256xbf16, #tpu.memory_space<vmem>>, %arg3: memref<32x1xf32, #tpu.memory_space<vmem>>, %arg4: memref<32x256xf32, #tpu.memory_space<vmem>>) attributes {dimension_semantics = [#tpu.dimension_semantics<parallel>], iteration_bounds = array<i64: 2>, scalar_prefetch = 0 : i64, scratch_operands = 0 : i64, tpu.core_type = #tpu.core_type<tc>, window_params = [{pipeline_mode = #tpu.pipeline_mode<synchronous>, transform_indices = @transform_0, window_bounds = array<i64: 32, 288>}, {transform_indices = @transform_1, window_bounds = array<i64: 288, 256>}, {pipeline_mode = #tpu.pipeline_mode<synchronous>, transform_indices = @transform_2, window_bounds = array<i64: 32, 1>}, {transform_indices = @transform_3, window_bounds = array<i64: 32, 256>}]} {
    %c0 = arith.constant 0 : index
    %c0_0 = arith.constant 0 : index
    %0 = vector.load %arg1[%c0, %c0_0] : memref<32x288xbf16, #tpu.memory_space<vmem>>, vector<32x288xbf16>
    %c0_1 = arith.constant 0 : index
    %c0_2 = arith.constant 0 : index
    %1 = vector.load %arg2[%c0_1, %c0_2] : memref<288x256xbf16, #tpu.memory_space<vmem>>, vector<288x256xbf16>
    %cst = arith.constant dense<0.000000e+00> : vector<32x256xf32>
    %2 = tpu.matmul %0, %1, %cst {dimension_numbers = #tpu.dot_dimension_numbers<[1], [0], [0], [1], [0, 0, 1, 1], [], []>} : vector<32x288xbf16>, vector<288x256xbf16>, vector<32x256xf32> -> vector<32x256xf32>
    %c0_3 = arith.constant 0 : index
    %c0_4 = arith.constant 0 : index
    %3 = vector.load %arg3[%c0_3, %c0_4] : memref<32x1xf32, #tpu.memory_space<vmem>>, vector<32x1xf32>
    %4 = vector.broadcast %3 : vector<32x1xf32> to vector<32x256xf32>
    %5 = arith.addf %2, %4 : vector<32x256xf32>
    %cst_5 = arith.constant 0.000000e+00 : f32
    %6 = vector.broadcast %cst_5 : f32 to vector<32x256xf32>
    %7 = arith.maximumf %5, %6 : vector<32x256xf32>
    %c0_6 = arith.constant 0 : index
    %c0_7 = arith.constant 0 : index
    %8 = vector.load %arg4[%c0_6, %c0_7] : memref<32x256xf32, #tpu.memory_space<vmem>>, vector<32x256xf32>
    tpu.vector_store %arg4[%c0_6, %c0_7], %7 {strides = array<i32>} : memref<32x256xf32, #tpu.memory_space<vmem>>, vector<32x256xf32>,
    return
  }
  func.func @transform_0(%arg0: i32) -> (i32, i32) {
    %c0_i32 = arith.constant 0 : i32
    %c0_i32_0 = arith.constant 0 : i32
    %c0_i32_1 = arith.constant 0 : i32
    return %c0_i32, %c0_i32_0 : i32, i32
  }
  func.func @transform_1(%arg0: i32) -> (i32, i32) {
    %c0_i32 = arith.constant 0 : i32
    %c0_i32_0 = arith.constant 0 : i32
    return %c0_i32, %arg0 : i32, i32
  }
  func.func @transform_2(%arg0: i32) -> (i32, i32) {
    %c0_i32 = arith.constant 0 : i32
    %c0_i32_0 = arith.constant 0 : i32
    %c0_i32_1 = arith.constant 0 : i32
    return %c0_i32, %c0_i32_0 : i32, i32
  }
  func.func @transform_3(%arg0: i32) -> (i32, i32) {
    %c0_i32 = arith.constant 0 : i32
    %c0_i32_0 = arith.constant 0 : i32
    return %c0_i32, %arg0 : i32, i32
  }
}

module attributes {stable_mosaic.version = 11 : i64} {
  func.func @kernel(%arg0: i32, %arg1: memref<32x288xbf16, #tpu.memory_space<vmem>>, %arg2: memref<288x128xbf16, #tpu.memory_space<vmem>>, %arg3: memref<32x1xf32, #tpu.memory_space<vmem>>, %arg4: memref<32x128xf32, #tpu.memory_space<vmem>>) attributes {dimension_semantics = [#tpu.dimension_semantics<parallel>], iteration_bounds = array<i64: 1>, scalar_prefetch = 0 : i64, scratch_operands = 0 : i64, tpu.core_type = #tpu.core_type<tc>, window_params = [{pipeline_mode = #tpu.pipeline_mode<synchronous>, transform_indices = @transform_0, window_bounds = array<i64: 32, 288>}, {transform_indices = @transform_1, window_bounds = array<i64: 288, 128>}, {pipeline_mode = #tpu.pipeline_mode<synchronous>, transform_indices = @transform_2, window_bounds = array<i64: 32, 1>}, {transform_indices = @transform_3, window_bounds = array<i64: 32, 128>}]} {
    %c0 = arith.constant 0 : index
    %c0_0 = arith.constant 0 : index
    %0 = vector.load %arg1[%c0, %c0_0] : memref<32x288xbf16, #tpu.memory_space<vmem>>, vector<32x288xbf16>
    %c0_1 = arith.constant 0 : index
    %c0_2 = arith.constant 0 : index
    %1 = vector.load %arg2[%c0_1, %c0_2] : memref<288x128xbf16, #tpu.memory_space<vmem>>, vector<288x128xbf16>
    %cst = arith.constant dense<0.000000e+00> : vector<32x128xf32>
    %2 = tpu.matmul %0, %1, %cst {dimension_numbers = #tpu.dot_dimension_numbers<[1], [0], [0], [1], [0, 0, 1, 1], [], []>} : vector<32x288xbf16>, vector<288x128xbf16>, vector<32x128xf32> -> vector<32x128xf32>
    %c0_3 = arith.constant 0 : index
    %c0_4 = arith.constant 0 : index
    %3 = vector.load %arg3[%c0_3, %c0_4] : memref<32x1xf32, #tpu.memory_space<vmem>>, vector<32x1xf32>
    %4 = vector.broadcast %3 : vector<32x1xf32> to vector<32x128xf32>
    %5 = arith.addf %2, %4 : vector<32x128xf32>
    %cst_5 = arith.constant 0.000000e+00 : f32
    %6 = vector.broadcast %cst_5 : f32 to vector<32x128xf32>
    %7 = arith.maximumf %5, %6 : vector<32x128xf32>
    %c0_6 = arith.constant 0 : index
    %c0_7 = arith.constant 0 : index
    %8 = vector.load %arg4[%c0_6, %c0_7] : memref<32x128xf32, #tpu.memory_space<vmem>>, vector<32x128xf32>
    tpu.vector_store %arg4[%c0_6, %c0_7], %7 {strides = array<i32>} : memref<32x128xf32, #tpu.memory_space<vmem>>, vector<32x128xf32>,
    return
  }
  func.func @transform_0(%arg0: i32) -> (i32, i32) {
    %c0_i32 = arith.constant 0 : i32
    %c0_i32_0 = arith.constant 0 : i32
    %c0_i32_1 = arith.constant 0 : i32
    return %c0_i32, %c0_i32_0 : i32, i32
  }
  func.func @transform_1(%arg0: i32) -> (i32, i32) {
    %c0_i32 = arith.constant 0 : i32
    %c0_i32_0 = arith.constant 0 : i32
    return %c0_i32, %arg0 : i32, i32
  }
  func.func @transform_2(%arg0: i32) -> (i32, i32) {
    %c0_i32 = arith.constant 0 : i32
    %c0_i32_0 = arith.constant 0 : i32
    %c0_i32_1 = arith.constant 0 : i32
    return %c0_i32, %c0_i32_0 : i32, i32
  }
  func.func @transform_3(%arg0: i32) -> (i32, i32) {
    %c0_i32 = arith.constant 0 : i32
    %c0_i32_0 = arith.constant 0 : i32
    return %c0_i32, %arg0 : i32, i32
  }
}

module attributes {stable_mosaic.version = 11 : i64} {
  func.func @kernel(%arg0: i32, %arg1: memref<32x32xbf16, #tpu.memory_space<vmem>>, %arg2: memref<32x128xbf16, #tpu.memory_space<vmem>>, %arg3: memref<32x1xf32, #tpu.memory_space<vmem>>, %arg4: memref<32x128xf32, #tpu.memory_space<vmem>>) attributes {dimension_semantics = [#tpu.dimension_semantics<parallel>], iteration_bounds = array<i64: 1>, scalar_prefetch = 0 : i64, scratch_operands = 0 : i64, tpu.core_type = #tpu.core_type<tc>, window_params = [{pipeline_mode = #tpu.pipeline_mode<synchronous>, transform_indices = @transform_0, window_bounds = array<i64: 32, 32>}, {transform_indices = @transform_1, window_bounds = array<i64: 32, 128>}, {pipeline_mode = #tpu.pipeline_mode<synchronous>, transform_indices = @transform_2, window_bounds = array<i64: 32, 1>}, {transform_indices = @transform_3, window_bounds = array<i64: 32, 128>}]} {
    %c0 = arith.constant 0 : index
    %c0_0 = arith.constant 0 : index
    %0 = vector.load %arg1[%c0, %c0_0] : memref<32x32xbf16, #tpu.memory_space<vmem>>, vector<32x32xbf16>
    %c0_1 = arith.constant 0 : index
    %c0_2 = arith.constant 0 : index
    %1 = vector.load %arg2[%c0_1, %c0_2] : memref<32x128xbf16, #tpu.memory_space<vmem>>, vector<32x128xbf16>
    %cst = arith.constant dense<0.000000e+00> : vector<32x128xf32>
    %2 = tpu.matmul %0, %1, %cst {dimension_numbers = #tpu.dot_dimension_numbers<[1], [0], [0], [1], [0, 0, 1, 1], [], []>} : vector<32x32xbf16>, vector<32x128xbf16>, vector<32x128xf32> -> vector<32x128xf32>
    %c0_3 = arith.constant 0 : index
    %c0_4 = arith.constant 0 : index
    %3 = vector.load %arg3[%c0_3, %c0_4] : memref<32x1xf32, #tpu.memory_space<vmem>>, vector<32x1xf32>
    %4 = vector.broadcast %3 : vector<32x1xf32> to vector<32x128xf32>
    %5 = arith.addf %2, %4 : vector<32x128xf32>
    %c0_5 = arith.constant 0 : index
    %c0_6 = arith.constant 0 : index
    %6 = vector.load %arg4[%c0_5, %c0_6] : memref<32x128xf32, #tpu.memory_space<vmem>>, vector<32x128xf32>
    tpu.vector_store %arg4[%c0_5, %c0_6], %5 {strides = array<i32>} : memref<32x128xf32, #tpu.memory_space<vmem>>, vector<32x128xf32>,
    return
  }
  func.func @transform_0(%arg0: i32) -> (i32, i32) {
    %c0_i32 = arith.constant 0 : i32
    %c0_i32_0 = arith.constant 0 : i32
    %c0_i32_1 = arith.constant 0 : i32
    return %c0_i32, %c0_i32_0 : i32, i32
  }
  func.func @transform_1(%arg0: i32) -> (i32, i32) {
    %c0_i32 = arith.constant 0 : i32
    %c0_i32_0 = arith.constant 0 : i32
    return %c0_i32, %arg0 : i32, i32
  }
  func.func @transform_2(%arg0: i32) -> (i32, i32) {
    %c0_i32 = arith.constant 0 : i32
    %c0_i32_0 = arith.constant 0 : i32
    %c0_i32_1 = arith.constant 0 : i32
    return %c0_i32, %c0_i32_0 : i32, i32
  }
  func.func @transform_3(%arg0: i32) -> (i32, i32) {
    %c0_i32 = arith.constant 0 : i32
    %c0_i32_0 = arith.constant 0 : i32
    return %c0_i32, %arg0 : i32, i32
  }
}

module attributes {stable_mosaic.version = 11 : i64} {
  func.func @kernel(%arg0: i32, %arg1: memref<32x288xbf16, #tpu.memory_space<vmem>>, %arg2: memref<288x128xbf16, #tpu.memory_space<vmem>>, %arg3: memref<32x1xf32, #tpu.memory_space<vmem>>, %arg4: memref<32x128xf32, #tpu.memory_space<vmem>>, %arg5: memref<32x128xf32, #tpu.memory_space<vmem>>) attributes {dimension_semantics = [#tpu.dimension_semantics<parallel>], iteration_bounds = array<i64: 1>, scalar_prefetch = 0 : i64, scratch_operands = 0 : i64, tpu.core_type = #tpu.core_type<tc>, window_params = [{pipeline_mode = #tpu.pipeline_mode<synchronous>, transform_indices = @transform_0, window_bounds = array<i64: 32, 288>}, {transform_indices = @transform_1, window_bounds = array<i64: 288, 128>}, {pipeline_mode = #tpu.pipeline_mode<synchronous>, transform_indices = @transform_2, window_bounds = array<i64: 32, 1>}, {transform_indices = @transform_3, window_bounds = array<i64: 32, 128>}, {transform_indices = @transform_4, window_bounds = array<i64: 32, 128>}]} {
    %c0 = arith.constant 0 : index
    %c0_0 = arith.constant 0 : index
    %0 = vector.load %arg1[%c0, %c0_0] : memref<32x288xbf16, #tpu.memory_space<vmem>>, vector<32x288xbf16>
    %c0_1 = arith.constant 0 : index
    %c0_2 = arith.constant 0 : index
    %1 = vector.load %arg2[%c0_1, %c0_2] : memref<288x128xbf16, #tpu.memory_space<vmem>>, vector<288x128xbf16>
    %cst = arith.constant dense<0.000000e+00> : vector<32x128xf32>
    %2 = tpu.matmul %0, %1, %cst {dimension_numbers = #tpu.dot_dimension_numbers<[1], [0], [0], [1], [0, 0, 1, 1], [], []>} : vector<32x288xbf16>, vector<288x128xbf16>, vector<32x128xf32> -> vector<32x128xf32>
    %c0_3 = arith.constant 0 : index
    %c0_4 = arith.constant 0 : index
    %3 = vector.load %arg3[%c0_3, %c0_4] : memref<32x1xf32, #tpu.memory_space<vmem>>, vector<32x1xf32>
    %4 = vector.broadcast %3 : vector<32x1xf32> to vector<32x128xf32>
    %5 = arith.addf %2, %4 : vector<32x128xf32>
    %c0_5 = arith.constant 0 : index
    %c0_6 = arith.constant 0 : index
    %6 = vector.load %arg4[%c0_5, %c0_6] : memref<32x128xf32, #tpu.memory_space<vmem>>, vector<32x128xf32>
    %7 = arith.addf %5, %6 : vector<32x128xf32>
    %c0_7 = arith.constant 0 : index
    %c0_8 = arith.constant 0 : index
    %8 = vector.load %arg5[%c0_7, %c0_8] : memref<32x128xf32, #tpu.memory_space<vmem>>, vector<32x128xf32>
    tpu.vector_store %arg5[%c0_7, %c0_8], %7 {strides = array<i32>} : memref<32x128xf32, #tpu.memory_space<vmem>>, vector<32x128xf32>,
    return
  }
  func.func @transform_0(%arg0: i32) -> (i32, i32) {
    %c0_i32 = arith.constant 0 : i32
    %c0_i32_0 = arith.constant 0 : i32
    %c0_i32_1 = arith.constant 0 : i32
    return %c0_i32, %c0_i32_0 : i32, i32
  }
  func.func @transform_1(%arg0: i32) -> (i32, i32) {
    %c0_i32 = arith.constant 0 : i32
    %c0_i32_0 = arith.constant 0 : i32
    return %c0_i32, %arg0 : i32, i32
  }
  func.func @transform_2(%arg0: i32) -> (i32, i32) {
    %c0_i32 = arith.constant 0 : i32
    %c0_i32_0 = arith.constant 0 : i32
    %c0_i32_1 = arith.constant 0 : i32
    return %c0_i32, %c0_i32_0 : i32, i32
  }
  func.func @transform_3(%arg0: i32) -> (i32, i32) {
    %c0_i32 = arith.constant 0 : i32
    %c0_i32_0 = arith.constant 0 : i32
    return %c0_i32, %arg0 : i32, i32
  }
  func.func @transform_4(%arg0: i32) -> (i32, i32) {
    %c0_i32 = arith.constant 0 : i32
    %c0_i32_0 = arith.constant 0 : i32
    return %c0_i32, %arg0 : i32, i32
  }
}

module attributes {stable_mosaic.version = 11 : i64} {
  func.func @kernel(%arg0: i32, %arg1: memref<64x288xbf16, #tpu.memory_space<vmem>>, %arg2: memref<288x128xbf16, #tpu.memory_space<vmem>>, %arg3: memref<64x1xf32, #tpu.memory_space<vmem>>, %arg4: memref<64x128xf32, #tpu.memory_space<vmem>>) attributes {dimension_semantics = [#tpu.dimension_semantics<parallel>], iteration_bounds = array<i64: 1>, scalar_prefetch = 0 : i64, scratch_operands = 0 : i64, tpu.core_type = #tpu.core_type<tc>, window_params = [{pipeline_mode = #tpu.pipeline_mode<synchronous>, transform_indices = @transform_0, window_bounds = array<i64: 64, 288>}, {transform_indices = @transform_1, window_bounds = array<i64: 288, 128>}, {pipeline_mode = #tpu.pipeline_mode<synchronous>, transform_indices = @transform_2, window_bounds = array<i64: 64, 1>}, {transform_indices = @transform_3, window_bounds = array<i64: 64, 128>}]} {
    %c0 = arith.constant 0 : index
    %c0_0 = arith.constant 0 : index
    %0 = vector.load %arg1[%c0, %c0_0] : memref<64x288xbf16, #tpu.memory_space<vmem>>, vector<64x288xbf16>
    %c0_1 = arith.constant 0 : index
    %c0_2 = arith.constant 0 : index
    %1 = vector.load %arg2[%c0_1, %c0_2] : memref<288x128xbf16, #tpu.memory_space<vmem>>, vector<288x128xbf16>
    %cst = arith.constant dense<0.000000e+00> : vector<64x128xf32>
    %2 = tpu.matmul %0, %1, %cst {dimension_numbers = #tpu.dot_dimension_numbers<[1], [0], [0], [1], [0, 0, 1, 1], [], []>} : vector<64x288xbf16>, vector<288x128xbf16>, vector<64x128xf32> -> vector<64x128xf32>
    %c0_3 = arith.constant 0 : index
    %c0_4 = arith.constant 0 : index
    %3 = vector.load %arg3[%c0_3, %c0_4] : memref<64x1xf32, #tpu.memory_space<vmem>>, vector<64x1xf32>
    %4 = vector.broadcast %3 : vector<64x1xf32> to vector<64x128xf32>
    %5 = arith.addf %2, %4 : vector<64x128xf32>
    %cst_5 = arith.constant 0.000000e+00 : f32
    %6 = vector.broadcast %cst_5 : f32 to vector<64x128xf32>
    %7 = arith.maximumf %5, %6 : vector<64x128xf32>
    %c0_6 = arith.constant 0 : index
    %c0_7 = arith.constant 0 : index
    %8 = vector.load %arg4[%c0_6, %c0_7] : memref<64x128xf32, #tpu.memory_space<vmem>>, vector<64x128xf32>
    tpu.vector_store %arg4[%c0_6, %c0_7], %7 {strides = array<i32>} : memref<64x128xf32, #tpu.memory_space<vmem>>, vector<64x128xf32>,
    return
  }
  func.func @transform_0(%arg0: i32) -> (i32, i32) {
    %c0_i32 = arith.constant 0 : i32
    %c0_i32_0 = arith.constant 0 : i32
    %c0_i32_1 = arith.constant 0 : i32
    return %c0_i32, %c0_i32_0 : i32, i32
  }
  func.func @transform_1(%arg0: i32) -> (i32, i32) {
    %c0_i32 = arith.constant 0 : i32
    %c0_i32_0 = arith.constant 0 : i32
    return %c0_i32, %arg0 : i32, i32
  }
  func.func @transform_2(%arg0: i32) -> (i32, i32) {
    %c0_i32 = arith.constant 0 : i32
    %c0_i32_0 = arith.constant 0 : i32
    %c0_i32_1 = arith.constant 0 : i32
    return %c0_i32, %c0_i32_0 : i32, i32
  }
  func.func @transform_3(%arg0: i32) -> (i32, i32) {
    %c0_i32 = arith.constant 0 : i32
    %c0_i32_0 = arith.constant 0 : i32
    return %c0_i32, %arg0 : i32, i32
  }
}

module attributes {stable_mosaic.version = 11 : i64} {
  func.func @kernel(%arg0: i32, %arg1: memref<64x576xbf16, #tpu.memory_space<vmem>>, %arg2: memref<576x128xbf16, #tpu.memory_space<vmem>>, %arg3: memref<64x1xf32, #tpu.memory_space<vmem>>, %arg4: memref<64x128xf32, #tpu.memory_space<vmem>>) attributes {dimension_semantics = [#tpu.dimension_semantics<parallel>], iteration_bounds = array<i64: 1>, scalar_prefetch = 0 : i64, scratch_operands = 0 : i64, tpu.core_type = #tpu.core_type<tc>, window_params = [{pipeline_mode = #tpu.pipeline_mode<synchronous>, transform_indices = @transform_0, window_bounds = array<i64: 64, 576>}, {transform_indices = @transform_1, window_bounds = array<i64: 576, 128>}, {pipeline_mode = #tpu.pipeline_mode<synchronous>, transform_indices = @transform_2, window_bounds = array<i64: 64, 1>}, {transform_indices = @transform_3, window_bounds = array<i64: 64, 128>}]} {
    %c0 = arith.constant 0 : index
    %c0_0 = arith.constant 0 : index
    %0 = vector.load %arg1[%c0, %c0_0] : memref<64x576xbf16, #tpu.memory_space<vmem>>, vector<64x576xbf16>
    %c0_1 = arith.constant 0 : index
    %c0_2 = arith.constant 0 : index
    %1 = vector.load %arg2[%c0_1, %c0_2] : memref<576x128xbf16, #tpu.memory_space<vmem>>, vector<576x128xbf16>
    %cst = arith.constant dense<0.000000e+00> : vector<64x128xf32>
    %2 = tpu.matmul %0, %1, %cst {dimension_numbers = #tpu.dot_dimension_numbers<[1], [0], [0], [1], [0, 0, 1, 1], [], []>} : vector<64x576xbf16>, vector<576x128xbf16>, vector<64x128xf32> -> vector<64x128xf32>
    %c0_3 = arith.constant 0 : index
    %c0_4 = arith.constant 0 : index
    %3 = vector.load %arg3[%c0_3, %c0_4] : memref<64x1xf32, #tpu.memory_space<vmem>>, vector<64x1xf32>
    %4 = vector.broadcast %3 : vector<64x1xf32> to vector<64x128xf32>
    %5 = arith.addf %2, %4 : vector<64x128xf32>
    %cst_5 = arith.constant 0.000000e+00 : f32
    %6 = vector.broadcast %cst_5 : f32 to vector<64x128xf32>
    %7 = arith.maximumf %5, %6 : vector<64x128xf32>
    %c0_6 = arith.constant 0 : index
    %c0_7 = arith.constant 0 : index
    %8 = vector.load %arg4[%c0_6, %c0_7] : memref<64x128xf32, #tpu.memory_space<vmem>>, vector<64x128xf32>
    tpu.vector_store %arg4[%c0_6, %c0_7], %7 {strides = array<i32>} : memref<64x128xf32, #tpu.memory_space<vmem>>, vector<64x128xf32>,
    return
  }
  func.func @transform_0(%arg0: i32) -> (i32, i32) {
    %c0_i32 = arith.constant 0 : i32
    %c0_i32_0 = arith.constant 0 : i32
    %c0_i32_1 = arith.constant 0 : i32
    return %c0_i32, %c0_i32_0 : i32, i32
  }
  func.func @transform_1(%arg0: i32) -> (i32, i32) {
    %c0_i32 = arith.constant 0 : i32
    %c0_i32_0 = arith.constant 0 : i32
    return %c0_i32, %arg0 : i32, i32
  }
  func.func @transform_2(%arg0: i32) -> (i32, i32) {
    %c0_i32 = arith.constant 0 : i32
    %c0_i32_0 = arith.constant 0 : i32
    %c0_i32_1 = arith.constant 0 : i32
    return %c0_i32, %c0_i32_0 : i32, i32
  }
  func.func @transform_3(%arg0: i32) -> (i32, i32) {
    %c0_i32 = arith.constant 0 : i32
    %c0_i32_0 = arith.constant 0 : i32
    return %c0_i32, %arg0 : i32, i32
  }
}

module attributes {stable_mosaic.version = 11 : i64} {
  func.func @kernel(%arg0: i32, %arg1: memref<64x32xbf16, #tpu.memory_space<vmem>>, %arg2: memref<32x128xbf16, #tpu.memory_space<vmem>>, %arg3: memref<64x1xf32, #tpu.memory_space<vmem>>, %arg4: memref<64x128xf32, #tpu.memory_space<vmem>>) attributes {dimension_semantics = [#tpu.dimension_semantics<parallel>], iteration_bounds = array<i64: 1>, scalar_prefetch = 0 : i64, scratch_operands = 0 : i64, tpu.core_type = #tpu.core_type<tc>, window_params = [{pipeline_mode = #tpu.pipeline_mode<synchronous>, transform_indices = @transform_0, window_bounds = array<i64: 64, 32>}, {transform_indices = @transform_1, window_bounds = array<i64: 32, 128>}, {pipeline_mode = #tpu.pipeline_mode<synchronous>, transform_indices = @transform_2, window_bounds = array<i64: 64, 1>}, {transform_indices = @transform_3, window_bounds = array<i64: 64, 128>}]} {
    %c0 = arith.constant 0 : index
    %c0_0 = arith.constant 0 : index
    %0 = vector.load %arg1[%c0, %c0_0] : memref<64x32xbf16, #tpu.memory_space<vmem>>, vector<64x32xbf16>
    %c0_1 = arith.constant 0 : index
    %c0_2 = arith.constant 0 : index
    %1 = vector.load %arg2[%c0_1, %c0_2] : memref<32x128xbf16, #tpu.memory_space<vmem>>, vector<32x128xbf16>
    %cst = arith.constant dense<0.000000e+00> : vector<64x128xf32>
    %2 = tpu.matmul %0, %1, %cst {dimension_numbers = #tpu.dot_dimension_numbers<[1], [0], [0], [1], [0, 0, 1, 1], [], []>} : vector<64x32xbf16>, vector<32x128xbf16>, vector<64x128xf32> -> vector<64x128xf32>
    %c0_3 = arith.constant 0 : index
    %c0_4 = arith.constant 0 : index
    %3 = vector.load %arg3[%c0_3, %c0_4] : memref<64x1xf32, #tpu.memory_space<vmem>>, vector<64x1xf32>
    %4 = vector.broadcast %3 : vector<64x1xf32> to vector<64x128xf32>
    %5 = arith.addf %2, %4 : vector<64x128xf32>
    %c0_5 = arith.constant 0 : index
    %c0_6 = arith.constant 0 : index
    %6 = vector.load %arg4[%c0_5, %c0_6] : memref<64x128xf32, #tpu.memory_space<vmem>>, vector<64x128xf32>
    tpu.vector_store %arg4[%c0_5, %c0_6], %5 {strides = array<i32>} : memref<64x128xf32, #tpu.memory_space<vmem>>, vector<64x128xf32>,
    return
  }
  func.func @transform_0(%arg0: i32) -> (i32, i32) {
    %c0_i32 = arith.constant 0 : i32
    %c0_i32_0 = arith.constant 0 : i32
    %c0_i32_1 = arith.constant 0 : i32
    return %c0_i32, %c0_i32_0 : i32, i32
  }
  func.func @transform_1(%arg0: i32) -> (i32, i32) {
    %c0_i32 = arith.constant 0 : i32
    %c0_i32_0 = arith.constant 0 : i32
    return %c0_i32, %arg0 : i32, i32
  }
  func.func @transform_2(%arg0: i32) -> (i32, i32) {
    %c0_i32 = arith.constant 0 : i32
    %c0_i32_0 = arith.constant 0 : i32
    %c0_i32_1 = arith.constant 0 : i32
    return %c0_i32, %c0_i32_0 : i32, i32
  }
  func.func @transform_3(%arg0: i32) -> (i32, i32) {
    %c0_i32 = arith.constant 0 : i32
    %c0_i32_0 = arith.constant 0 : i32
    return %c0_i32, %arg0 : i32, i32
  }
}

module attributes {stable_mosaic.version = 11 : i64} {
  func.func @kernel(%arg0: i32, %arg1: memref<64x576xbf16, #tpu.memory_space<vmem>>, %arg2: memref<576x128xbf16, #tpu.memory_space<vmem>>, %arg3: memref<64x1xf32, #tpu.memory_space<vmem>>, %arg4: memref<64x128xf32, #tpu.memory_space<vmem>>, %arg5: memref<64x128xf32, #tpu.memory_space<vmem>>) attributes {dimension_semantics = [#tpu.dimension_semantics<parallel>], iteration_bounds = array<i64: 1>, scalar_prefetch = 0 : i64, scratch_operands = 0 : i64, tpu.core_type = #tpu.core_type<tc>, window_params = [{pipeline_mode = #tpu.pipeline_mode<synchronous>, transform_indices = @transform_0, window_bounds = array<i64: 64, 576>}, {transform_indices = @transform_1, window_bounds = array<i64: 576, 128>}, {pipeline_mode = #tpu.pipeline_mode<synchronous>, transform_indices = @transform_2, window_bounds = array<i64: 64, 1>}, {transform_indices = @transform_3, window_bounds = array<i64: 64, 128>}, {transform_indices = @transform_4, window_bounds = array<i64: 64, 128>}]} {
    %c0 = arith.constant 0 : index
    %c0_0 = arith.constant 0 : index
    %0 = vector.load %arg1[%c0, %c0_0] : memref<64x576xbf16, #tpu.memory_space<vmem>>, vector<64x576xbf16>
    %c0_1 = arith.constant 0 : index
    %c0_2 = arith.constant 0 : index
    %1 = vector.load %arg2[%c0_1, %c0_2] : memref<576x128xbf16, #tpu.memory_space<vmem>>, vector<576x128xbf16>
    %cst = arith.constant dense<0.000000e+00> : vector<64x128xf32>
    %2 = tpu.matmul %0, %1, %cst {dimension_numbers = #tpu.dot_dimension_numbers<[1], [0], [0], [1], [0, 0, 1, 1], [], []>} : vector<64x576xbf16>, vector<576x128xbf16>, vector<64x128xf32> -> vector<64x128xf32>
    %c0_3 = arith.constant 0 : index
    %c0_4 = arith.constant 0 : index
    %3 = vector.load %arg3[%c0_3, %c0_4] : memref<64x1xf32, #tpu.memory_space<vmem>>, vector<64x1xf32>
    %4 = vector.broadcast %3 : vector<64x1xf32> to vector<64x128xf32>
    %5 = arith.addf %2, %4 : vector<64x128xf32>
    %c0_5 = arith.constant 0 : index
    %c0_6 = arith.constant 0 : index
    %6 = vector.load %arg4[%c0_5, %c0_6] : memref<64x128xf32, #tpu.memory_space<vmem>>, vector<64x128xf32>
    %7 = arith.addf %5, %6 : vector<64x128xf32>
    %c0_7 = arith.constant 0 : index
    %c0_8 = arith.constant 0 : index
    %8 = vector.load %arg5[%c0_7, %c0_8] : memref<64x128xf32, #tpu.memory_space<vmem>>, vector<64x128xf32>
    tpu.vector_store %arg5[%c0_7, %c0_8], %7 {strides = array<i32>} : memref<64x128xf32, #tpu.memory_space<vmem>>, vector<64x128xf32>,
    return
  }
  func.func @transform_0(%arg0: i32) -> (i32, i32) {
    %c0_i32 = arith.constant 0 : i32
    %c0_i32_0 = arith.constant 0 : i32
    %c0_i32_1 = arith.constant 0 : i32
    return %c0_i32, %c0_i32_0 : i32, i32
  }
  func.func @transform_1(%arg0: i32) -> (i32, i32) {
    %c0_i32 = arith.constant 0 : i32
    %c0_i32_0 = arith.constant 0 : i32
    return %c0_i32, %arg0 : i32, i32
  }
  func.func @transform_2(%arg0: i32) -> (i32, i32) {
    %c0_i32 = arith.constant 0 : i32
    %c0_i32_0 = arith.constant 0 : i32
    %c0_i32_1 = arith.constant 0 : i32
    return %c0_i32, %c0_i32_0 : i32, i32
  }
  func.func @transform_3(%arg0: i32) -> (i32, i32) {
    %c0_i32 = arith.constant 0 : i32
    %c0_i32_0 = arith.constant 0 : i32
    return %c0_i32, %arg0 : i32, i32
  }
  func.func @transform_4(%arg0: i32) -> (i32, i32) {
    %c0_i32 = arith.constant 0 : i32
    %c0_i32_0 = arith.constant 0 : i32
    return %c0_i32, %arg0 : i32, i32
  }
}

module attributes {stable_mosaic.version = 11 : i64} {
  func.func @kernel(%arg0: i32, %arg1: memref<128x288xbf16, #tpu.memory_space<vmem>>, %arg2: memref<288x128xbf16, #tpu.memory_space<vmem>>, %arg3: memref<128x1xf32, #tpu.memory_space<vmem>>, %arg4: memref<128x128xf32, #tpu.memory_space<vmem>>) attributes {dimension_semantics = [#tpu.dimension_semantics<parallel>], iteration_bounds = array<i64: 1>, scalar_prefetch = 0 : i64, scratch_operands = 0 : i64, tpu.core_type = #tpu.core_type<tc>, window_params = [{pipeline_mode = #tpu.pipeline_mode<synchronous>, transform_indices = @transform_0, window_bounds = array<i64: 128, 288>}, {transform_indices = @transform_1, window_bounds = array<i64: 288, 128>}, {pipeline_mode = #tpu.pipeline_mode<synchronous>, transform_indices = @transform_2, window_bounds = array<i64: 128, 1>}, {transform_indices = @transform_3, window_bounds = array<i64: 128, 128>}]} {
    %c0 = arith.constant 0 : index
    %c0_0 = arith.constant 0 : index
    %0 = vector.load %arg1[%c0, %c0_0] : memref<128x288xbf16, #tpu.memory_space<vmem>>, vector<128x288xbf16>
    %c0_1 = arith.constant 0 : index
    %c0_2 = arith.constant 0 : index
    %1 = vector.load %arg2[%c0_1, %c0_2] : memref<288x128xbf16, #tpu.memory_space<vmem>>, vector<288x128xbf16>
    %cst = arith.constant dense<0.000000e+00> : vector<128x128xf32>
    %2 = tpu.matmul %0, %1, %cst {dimension_numbers = #tpu.dot_dimension_numbers<[1], [0], [0], [1], [0, 0, 1, 1], [], []>} : vector<128x288xbf16>, vector<288x128xbf16>, vector<128x128xf32> -> vector<128x128xf32>
    %c0_3 = arith.constant 0 : index
    %c0_4 = arith.constant 0 : index
    %3 = vector.load %arg3[%c0_3, %c0_4] : memref<128x1xf32, #tpu.memory_space<vmem>>, vector<128x1xf32>
    %4 = vector.broadcast %3 : vector<128x1xf32> to vector<128x128xf32>
    %5 = arith.addf %2, %4 : vector<128x128xf32>
    %cst_5 = arith.constant 0.000000e+00 : f32
    %6 = vector.broadcast %cst_5 : f32 to vector<128x128xf32>
    %7 = arith.maximumf %5, %6 : vector<128x128xf32>
    %c0_6 = arith.constant 0 : index
    %c0_7 = arith.constant 0 : index
    %8 = vector.load %arg4[%c0_6, %c0_7] : memref<128x128xf32, #tpu.memory_space<vmem>>, vector<128x128xf32>
    tpu.vector_store %arg4[%c0_6, %c0_7], %7 {strides = array<i32>} : memref<128x128xf32, #tpu.memory_space<vmem>>, vector<128x128xf32>,
    return
  }
  func.func @transform_0(%arg0: i32) -> (i32, i32) {
    %c0_i32 = arith.constant 0 : i32
    %c0_i32_0 = arith.constant 0 : i32
    %c0_i32_1 = arith.constant 0 : i32
    return %c0_i32, %c0_i32_0 : i32, i32
  }
  func.func @transform_1(%arg0: i32) -> (i32, i32) {
    %c0_i32 = arith.constant 0 : i32
    %c0_i32_0 = arith.constant 0 : i32
    return %c0_i32, %arg0 : i32, i32
  }
  func.func @transform_2(%arg0: i32) -> (i32, i32) {
    %c0_i32 = arith.constant 0 : i32
    %c0_i32_0 = arith.constant 0 : i32
    %c0_i32_1 = arith.constant 0 : i32
    return %c0_i32, %c0_i32_0 : i32, i32
  }
  func.func @transform_3(%arg0: i32) -> (i32, i32) {
    %c0_i32 = arith.constant 0 : i32
    %c0_i32_0 = arith.constant 0 : i32
    return %c0_i32, %arg0 : i32, i32
  }
}

module attributes {stable_mosaic.version = 11 : i64} {
  func.func @kernel(%arg0: i32, %arg1: memref<128x1152xbf16, #tpu.memory_space<vmem>>, %arg2: memref<1152x128xbf16, #tpu.memory_space<vmem>>, %arg3: memref<128x1xf32, #tpu.memory_space<vmem>>, %arg4: memref<128x128xf32, #tpu.memory_space<vmem>>, %arg5: memref<128x128xf32, #tpu.memory_space<vmem>>) attributes {dimension_semantics = [#tpu.dimension_semantics<parallel>], iteration_bounds = array<i64: 1>, scalar_prefetch = 0 : i64, scratch_operands = 0 : i64, tpu.core_type = #tpu.core_type<tc>, window_params = [{pipeline_mode = #tpu.pipeline_mode<synchronous>, transform_indices = @transform_0, window_bounds = array<i64: 128, 1152>}, {transform_indices = @transform_1, window_bounds = array<i64: 1152, 128>}, {pipeline_mode = #tpu.pipeline_mode<synchronous>, transform_indices = @transform_2, window_bounds = array<i64: 128, 1>}, {transform_indices = @transform_3, window_bounds = array<i64: 128, 128>}, {transform_indices = @transform_4, window_bounds = array<i64: 128, 128>}]} {
    %c0 = arith.constant 0 : index
    %c0_0 = arith.constant 0 : index
    %0 = vector.load %arg1[%c0, %c0_0] : memref<128x1152xbf16, #tpu.memory_space<vmem>>, vector<128x1152xbf16>
    %c0_1 = arith.constant 0 : index
    %c0_2 = arith.constant 0 : index
    %1 = vector.load %arg2[%c0_1, %c0_2] : memref<1152x128xbf16, #tpu.memory_space<vmem>>, vector<1152x128xbf16>
    %cst = arith.constant dense<0.000000e+00> : vector<128x128xf32>
    %2 = tpu.matmul %0, %1, %cst {dimension_numbers = #tpu.dot_dimension_numbers<[1], [0], [0], [1], [0, 0, 1, 1], [], []>} : vector<128x1152xbf16>, vector<1152x128xbf16>, vector<128x128xf32> -> vector<128x128xf32>
    %c0_3 = arith.constant 0 : index
    %c0_4 = arith.constant 0 : index
    %3 = vector.load %arg3[%c0_3, %c0_4] : memref<128x1xf32, #tpu.memory_space<vmem>>, vector<128x1xf32>
    %4 = vector.broadcast %3 : vector<128x1xf32> to vector<128x128xf32>
    %5 = arith.addf %2, %4 : vector<128x128xf32>
    %c0_5 = arith.constant 0 : index
    %c0_6 = arith.constant 0 : index
    %6 = vector.load %arg4[%c0_5, %c0_6] : memref<128x128xf32, #tpu.memory_space<vmem>>, vector<128x128xf32>
    %7 = arith.addf %5, %6 : vector<128x128xf32>
    %c0_7 = arith.constant 0 : index
    %c0_8 = arith.constant 0 : index
    %8 = vector.load %arg5[%c0_7, %c0_8] : memref<128x128xf32, #tpu.memory_space<vmem>>, vector<128x128xf32>
    tpu.vector_store %arg5[%c0_7, %c0_8], %7 {strides = array<i32>} : memref<128x128xf32, #tpu.memory_space<vmem>>, vector<128x128xf32>,
    return
  }
  func.func @transform_0(%arg0: i32) -> (i32, i32) {
    %c0_i32 = arith.constant 0 : i32
    %c0_i32_0 = arith.constant 0 : i32
    %c0_i32_1 = arith.constant 0 : i32
    return %c0_i32, %c0_i32_0 : i32, i32
  }
  func.func @transform_1(%arg0: i32) -> (i32, i32) {
    %c0_i32 = arith.constant 0 : i32
    %c0_i32_0 = arith.constant 0 : i32
    return %c0_i32, %arg0 : i32, i32
  }
  func.func @transform_2(%arg0: i32) -> (i32, i32) {
    %c0_i32 = arith.constant 0 : i32
    %c0_i32_0 = arith.constant 0 : i32
    %c0_i32_1 = arith.constant 0 : i32
    return %c0_i32, %c0_i32_0 : i32, i32
  }
  func.func @transform_3(%arg0: i32) -> (i32, i32) {
    %c0_i32 = arith.constant 0 : i32
    %c0_i32_0 = arith.constant 0 : i32
    return %c0_i32, %arg0 : i32, i32
  }
  func.func @transform_4(%arg0: i32) -> (i32, i32) {
    %c0_i32 = arith.constant 0 : i32
    %c0_i32_0 = arith.constant 0 : i32
    return %c0_i32, %arg0 : i32, i32
  }
}

module attributes {stable_mosaic.version = 11 : i64} {
  func.func @kernel(%arg0: i32, %arg1: memref<128x1152xbf16, #tpu.memory_space<vmem>>, %arg2: memref<1152x128xbf16, #tpu.memory_space<vmem>>, %arg3: memref<128x1xf32, #tpu.memory_space<vmem>>, %arg4: memref<128x128xf32, #tpu.memory_space<vmem>>) attributes {dimension_semantics = [#tpu.dimension_semantics<parallel>], iteration_bounds = array<i64: 1>, scalar_prefetch = 0 : i64, scratch_operands = 0 : i64, tpu.core_type = #tpu.core_type<tc>, window_params = [{pipeline_mode = #tpu.pipeline_mode<synchronous>, transform_indices = @transform_0, window_bounds = array<i64: 128, 1152>}, {transform_indices = @transform_1, window_bounds = array<i64: 1152, 128>}, {pipeline_mode = #tpu.pipeline_mode<synchronous>, transform_indices = @transform_2, window_bounds = array<i64: 128, 1>}, {transform_indices = @transform_3, window_bounds = array<i64: 128, 128>}]} {
    %c0 = arith.constant 0 : index
    %c0_0 = arith.constant 0 : index
    %0 = vector.load %arg1[%c0, %c0_0] : memref<128x1152xbf16, #tpu.memory_space<vmem>>, vector<128x1152xbf16>
    %c0_1 = arith.constant 0 : index
    %c0_2 = arith.constant 0 : index
    %1 = vector.load %arg2[%c0_1, %c0_2] : memref<1152x128xbf16, #tpu.memory_space<vmem>>, vector<1152x128xbf16>
    %cst = arith.constant dense<0.000000e+00> : vector<128x128xf32>
    %2 = tpu.matmul %0, %1, %cst {dimension_numbers = #tpu.dot_dimension_numbers<[1], [0], [0], [1], [0, 0, 1, 1], [], []>} : vector<128x1152xbf16>, vector<1152x128xbf16>, vector<128x128xf32> -> vector<128x128xf32>
    %c0_3 = arith.constant 0 : index
    %c0_4 = arith.constant 0 : index
    %3 = vector.load %arg3[%c0_3, %c0_4] : memref<128x1xf32, #tpu.memory_space<vmem>>, vector<128x1xf32>
    %4 = vector.broadcast %3 : vector<128x1xf32> to vector<128x128xf32>
    %5 = arith.addf %2, %4 : vector<128x128xf32>
    %cst_5 = arith.constant 0.000000e+00 : f32
    %6 = vector.broadcast %cst_5 : f32 to vector<128x128xf32>
    %7 = arith.maximumf %5, %6 : vector<128x128xf32>
    %c0_6 = arith.constant 0 : index
    %c0_7 = arith.constant 0 : index
    %8 = vector.load %arg4[%c0_6, %c0_7] : memref<128x128xf32, #tpu.memory_space<vmem>>, vector<128x128xf32>
    tpu.vector_store %arg4[%c0_6, %c0_7], %7 {strides = array<i32>} : memref<128x128xf32, #tpu.memory_space<vmem>>, vector<128x128xf32>,
    return
  }
  func.func @transform_0(%arg0: i32) -> (i32, i32) {
    %c0_i32 = arith.constant 0 : i32
    %c0_i32_0 = arith.constant 0 : i32
    %c0_i32_1 = arith.constant 0 : i32
    return %c0_i32, %c0_i32_0 : i32, i32
  }
  func.func @transform_1(%arg0: i32) -> (i32, i32) {
    %c0_i32 = arith.constant 0 : i32
    %c0_i32_0 = arith.constant 0 : i32
    return %c0_i32, %arg0 : i32, i32
  }
  func.func @transform_2(%arg0: i32) -> (i32, i32) {
    %c0_i32 = arith.constant 0 : i32
    %c0_i32_0 = arith.constant 0 : i32
    %c0_i32_1 = arith.constant 0 : i32
    return %c0_i32, %c0_i32_0 : i32, i32
  }
  func.func @transform_3(%arg0: i32) -> (i32, i32) {
    %c0_i32 = arith.constant 0 : i32
    %c0_i32_0 = arith.constant 0 : i32
    return %c0_i32, %arg0 : i32, i32
  }
}

module attributes {stable_mosaic.version = 11 : i64} {
  func.func @kernel(%arg0: i32, %arg1: memref<128x32xbf16, #tpu.memory_space<vmem>>, %arg2: memref<32x128xbf16, #tpu.memory_space<vmem>>, %arg3: memref<128x1xf32, #tpu.memory_space<vmem>>, %arg4: memref<128x128xf32, #tpu.memory_space<vmem>>) attributes {dimension_semantics = [#tpu.dimension_semantics<parallel>], iteration_bounds = array<i64: 1>, scalar_prefetch = 0 : i64, scratch_operands = 0 : i64, tpu.core_type = #tpu.core_type<tc>, window_params = [{pipeline_mode = #tpu.pipeline_mode<synchronous>, transform_indices = @transform_0, window_bounds = array<i64: 128, 32>}, {transform_indices = @transform_1, window_bounds = array<i64: 32, 128>}, {pipeline_mode = #tpu.pipeline_mode<synchronous>, transform_indices = @transform_2, window_bounds = array<i64: 128, 1>}, {transform_indices = @transform_3, window_bounds = array<i64: 128, 128>}]} {
    %c0 = arith.constant 0 : index
    %c0_0 = arith.constant 0 : index
    %0 = vector.load %arg1[%c0, %c0_0] : memref<128x32xbf16, #tpu.memory_space<vmem>>, vector<128x32xbf16>
    %c0_1 = arith.constant 0 : index
    %c0_2 = arith.constant 0 : index
    %1 = vector.load %arg2[%c0_1, %c0_2] : memref<32x128xbf16, #tpu.memory_space<vmem>>, vector<32x128xbf16>
    %cst = arith.constant dense<0.000000e+00> : vector<128x128xf32>
    %2 = tpu.matmul %0, %1, %cst {dimension_numbers = #tpu.dot_dimension_numbers<[1], [0], [0], [1], [0, 0, 1, 1], [], []>} : vector<128x32xbf16>, vector<32x128xbf16>, vector<128x128xf32> -> vector<128x128xf32>
    %c0_3 = arith.constant 0 : index
    %c0_4 = arith.constant 0 : index
    %3 = vector.load %arg3[%c0_3, %c0_4] : memref<128x1xf32, #tpu.memory_space<vmem>>, vector<128x1xf32>
    %4 = vector.broadcast %3 : vector<128x1xf32> to vector<128x128xf32>
    %5 = arith.addf %2, %4 : vector<128x128xf32>
    %c0_5 = arith.constant 0 : index
    %c0_6 = arith.constant 0 : index
    %6 = vector.load %arg4[%c0_5, %c0_6] : memref<128x128xf32, #tpu.memory_space<vmem>>, vector<128x128xf32>
    tpu.vector_store %arg4[%c0_5, %c0_6], %5 {strides = array<i32>} : memref<128x128xf32, #tpu.memory_space<vmem>>, vector<128x128xf32>,
    return
  }
  func.func @transform_0(%arg0: i32) -> (i32, i32) {
    %c0_i32 = arith.constant 0 : i32
    %c0_i32_0 = arith.constant 0 : i32
    %c0_i32_1 = arith.constant 0 : i32
    return %c0_i32, %c0_i32_0 : i32, i32
  }
  func.func @transform_1(%arg0: i32) -> (i32, i32) {
    %c0_i32 = arith.constant 0 : i32
    %c0_i32_0 = arith.constant 0 : i32
    return %c0_i32, %arg0 : i32, i32
  }
  func.func @transform_2(%arg0: i32) -> (i32, i32) {
    %c0_i32 = arith.constant 0 : i32
    %c0_i32_0 = arith.constant 0 : i32
    %c0_i32_1 = arith.constant 0 : i32
    return %c0_i32, %c0_i32_0 : i32, i32
  }
  func.func @transform_3(%arg0: i32) -> (i32, i32) {
    %c0_i32 = arith.constant 0 : i32
    %c0_i32_0 = arith.constant 0 : i32
    return %c0_i32, %arg0 : i32, i32
  }
}

module attributes {stable_mosaic.version = 11 : i64} {
  func.func @kernel(%arg0: i32, %arg1: memref<64x32xbf16, #tpu.memory_space<vmem>>, %arg2: memref<32x128xbf16, #tpu.memory_space<vmem>>, %arg3: memref<64x1xf32, #tpu.memory_space<vmem>>, %arg4: memref<64x128xf32, #tpu.memory_space<vmem>>) attributes {dimension_semantics = [#tpu.dimension_semantics<parallel>], iteration_bounds = array<i64: 1>, scalar_prefetch = 0 : i64, scratch_operands = 0 : i64, tpu.core_type = #tpu.core_type<tc>, window_params = [{pipeline_mode = #tpu.pipeline_mode<synchronous>, transform_indices = @transform_0, window_bounds = array<i64: 64, 32>}, {transform_indices = @transform_1, window_bounds = array<i64: 32, 128>}, {pipeline_mode = #tpu.pipeline_mode<synchronous>, transform_indices = @transform_2, window_bounds = array<i64: 64, 1>}, {transform_indices = @transform_3, window_bounds = array<i64: 64, 128>}]} {
    %c0 = arith.constant 0 : index
    %c0_0 = arith.constant 0 : index
    %0 = vector.load %arg1[%c0, %c0_0] : memref<64x32xbf16, #tpu.memory_space<vmem>>, vector<64x32xbf16>
    %c0_1 = arith.constant 0 : index
    %c0_2 = arith.constant 0 : index
    %1 = vector.load %arg2[%c0_1, %c0_2] : memref<32x128xbf16, #tpu.memory_space<vmem>>, vector<32x128xbf16>
    %cst = arith.constant dense<0.000000e+00> : vector<64x128xf32>
    %2 = tpu.matmul %0, %1, %cst {dimension_numbers = #tpu.dot_dimension_numbers<[1], [0], [0], [1], [0, 0, 1, 1], [], []>} : vector<64x32xbf16>, vector<32x128xbf16>, vector<64x128xf32> -> vector<64x128xf32>
    %c0_3 = arith.constant 0 : index
    %c0_4 = arith.constant 0 : index
    %3 = vector.load %arg3[%c0_3, %c0_4] : memref<64x1xf32, #tpu.memory_space<vmem>>, vector<64x1xf32>
    %4 = vector.broadcast %3 : vector<64x1xf32> to vector<64x128xf32>
    %5 = arith.addf %2, %4 : vector<64x128xf32>
    %cst_5 = arith.constant 0.000000e+00 : f32
    %6 = vector.broadcast %cst_5 : f32 to vector<64x128xf32>
    %7 = arith.maximumf %5, %6 : vector<64x128xf32>
    %c0_6 = arith.constant 0 : index
    %c0_7 = arith.constant 0 : index
    %8 = vector.load %arg4[%c0_6, %c0_7] : memref<64x128xf32, #tpu.memory_space<vmem>>, vector<64x128xf32>
    tpu.vector_store %arg4[%c0_6, %c0_7], %7 {strides = array<i32>} : memref<64x128xf32, #tpu.memory_space<vmem>>, vector<64x128xf32>,
    return
  }
  func.func @transform_0(%arg0: i32) -> (i32, i32) {
    %c0_i32 = arith.constant 0 : i32
    %c0_i32_0 = arith.constant 0 : i32
    %c0_i32_1 = arith.constant 0 : i32
    return %c0_i32, %c0_i32_0 : i32, i32
  }
  func.func @transform_1(%arg0: i32) -> (i32, i32) {
    %c0_i32 = arith.constant 0 : i32
    %c0_i32_0 = arith.constant 0 : i32
    return %c0_i32, %arg0 : i32, i32
  }
  func.func @transform_2(%arg0: i32) -> (i32, i32) {
    %c0_i32 = arith.constant 0 : i32
    %c0_i32_0 = arith.constant 0 : i32
    %c0_i32_1 = arith.constant 0 : i32
    return %c0_i32, %c0_i32_0 : i32, i32
  }
  func.func @transform_3(%arg0: i32) -> (i32, i32) {
    %c0_i32 = arith.constant 0 : i32
    %c0_i32_0 = arith.constant 0 : i32
    return %c0_i32, %arg0 : i32, i32
  }
}

module attributes {stable_mosaic.version = 11 : i64} {
  func.func @kernel(%arg0: i32, %arg1: memref<64x64xbf16, #tpu.memory_space<vmem>>, %arg2: memref<64x128xbf16, #tpu.memory_space<vmem>>, %arg3: memref<64x1xf32, #tpu.memory_space<vmem>>, %arg4: memref<64x128xf32, #tpu.memory_space<vmem>>) attributes {dimension_semantics = [#tpu.dimension_semantics<parallel>], iteration_bounds = array<i64: 1>, scalar_prefetch = 0 : i64, scratch_operands = 0 : i64, tpu.core_type = #tpu.core_type<tc>, window_params = [{pipeline_mode = #tpu.pipeline_mode<synchronous>, transform_indices = @transform_0, window_bounds = array<i64: 64, 64>}, {transform_indices = @transform_1, window_bounds = array<i64: 64, 128>}, {pipeline_mode = #tpu.pipeline_mode<synchronous>, transform_indices = @transform_2, window_bounds = array<i64: 64, 1>}, {transform_indices = @transform_3, window_bounds = array<i64: 64, 128>}]} {
    %c0 = arith.constant 0 : index
    %c0_0 = arith.constant 0 : index
    %0 = vector.load %arg1[%c0, %c0_0] : memref<64x64xbf16, #tpu.memory_space<vmem>>, vector<64x64xbf16>
    %c0_1 = arith.constant 0 : index
    %c0_2 = arith.constant 0 : index
    %1 = vector.load %arg2[%c0_1, %c0_2] : memref<64x128xbf16, #tpu.memory_space<vmem>>, vector<64x128xbf16>
    %cst = arith.constant dense<0.000000e+00> : vector<64x128xf32>
    %2 = tpu.matmul %0, %1, %cst {dimension_numbers = #tpu.dot_dimension_numbers<[1], [0], [0], [1], [0, 0, 1, 1], [], []>} : vector<64x64xbf16>, vector<64x128xbf16>, vector<64x128xf32> -> vector<64x128xf32>
    %c0_3 = arith.constant 0 : index
    %c0_4 = arith.constant 0 : index
    %3 = vector.load %arg3[%c0_3, %c0_4] : memref<64x1xf32, #tpu.memory_space<vmem>>, vector<64x1xf32>
    %4 = vector.broadcast %3 : vector<64x1xf32> to vector<64x128xf32>
    %5 = arith.addf %2, %4 : vector<64x128xf32>
    %cst_5 = arith.constant 0.000000e+00 : f32
    %6 = vector.broadcast %cst_5 : f32 to vector<64x128xf32>
    %7 = arith.maximumf %5, %6 : vector<64x128xf32>
    %c0_6 = arith.constant 0 : index
    %c0_7 = arith.constant 0 : index
    %8 = vector.load %arg4[%c0_6, %c0_7] : memref<64x128xf32, #tpu.memory_space<vmem>>, vector<64x128xf32>
    tpu.vector_store %arg4[%c0_6, %c0_7], %7 {strides = array<i32>} : memref<64x128xf32, #tpu.memory_space<vmem>>, vector<64x128xf32>,
    return
  }
  func.func @transform_0(%arg0: i32) -> (i32, i32) {
    %c0_i32 = arith.constant 0 : i32
    %c0_i32_0 = arith.constant 0 : i32
    %c0_i32_1 = arith.constant 0 : i32
    return %c0_i32, %c0_i32_0 : i32, i32
  }
  func.func @transform_1(%arg0: i32) -> (i32, i32) {
    %c0_i32 = arith.constant 0 : i32
    %c0_i32_0 = arith.constant 0 : i32
    return %c0_i32, %arg0 : i32, i32
  }
  func.func @transform_2(%arg0: i32) -> (i32, i32) {
    %c0_i32 = arith.constant 0 : i32
    %c0_i32_0 = arith.constant 0 : i32
    %c0_i32_1 = arith.constant 0 : i32
    return %c0_i32, %c0_i32_0 : i32, i32
  }
  func.func @transform_3(%arg0: i32) -> (i32, i32) {
    %c0_i32 = arith.constant 0 : i32
    %c0_i32_0 = arith.constant 0 : i32
    return %c0_i32, %arg0 : i32, i32
  }
}

module attributes {stable_mosaic.version = 11 : i64} {
  func.func @kernel(%arg0: i32, %arg1: memref<32x128xbf16, #tpu.memory_space<vmem>>, %arg2: memref<128x128xbf16, #tpu.memory_space<vmem>>, %arg3: memref<32x1xf32, #tpu.memory_space<vmem>>, %arg4: memref<32x128xf32, #tpu.memory_space<vmem>>) attributes {dimension_semantics = [#tpu.dimension_semantics<parallel>], iteration_bounds = array<i64: 1>, scalar_prefetch = 0 : i64, scratch_operands = 0 : i64, tpu.core_type = #tpu.core_type<tc>, window_params = [{pipeline_mode = #tpu.pipeline_mode<synchronous>, transform_indices = @transform_0, window_bounds = array<i64: 32, 128>}, {transform_indices = @transform_1, window_bounds = array<i64: 128, 128>}, {pipeline_mode = #tpu.pipeline_mode<synchronous>, transform_indices = @transform_2, window_bounds = array<i64: 32, 1>}, {transform_indices = @transform_3, window_bounds = array<i64: 32, 128>}]} {
    %c0 = arith.constant 0 : index
    %c0_0 = arith.constant 0 : index
    %0 = vector.load %arg1[%c0, %c0_0] : memref<32x128xbf16, #tpu.memory_space<vmem>>, vector<32x128xbf16>
    %c0_1 = arith.constant 0 : index
    %c0_2 = arith.constant 0 : index
    %1 = vector.load %arg2[%c0_1, %c0_2] : memref<128x128xbf16, #tpu.memory_space<vmem>>, vector<128x128xbf16>
    %cst = arith.constant dense<0.000000e+00> : vector<32x128xf32>
    %2 = tpu.matmul %0, %1, %cst {dimension_numbers = #tpu.dot_dimension_numbers<[1], [0], [0], [1], [0, 0, 1, 1], [], []>} : vector<32x128xbf16>, vector<128x128xbf16>, vector<32x128xf32> -> vector<32x128xf32>
    %c0_3 = arith.constant 0 : index
    %c0_4 = arith.constant 0 : index
    %3 = vector.load %arg3[%c0_3, %c0_4] : memref<32x1xf32, #tpu.memory_space<vmem>>, vector<32x1xf32>
    %4 = vector.broadcast %3 : vector<32x1xf32> to vector<32x128xf32>
    %5 = arith.addf %2, %4 : vector<32x128xf32>
    %c0_5 = arith.constant 0 : index
    %c0_6 = arith.constant 0 : index
    %6 = vector.load %arg4[%c0_5, %c0_6] : memref<32x128xf32, #tpu.memory_space<vmem>>, vector<32x128xf32>
    tpu.vector_store %arg4[%c0_5, %c0_6], %5 {strides = array<i32>} : memref<32x128xf32, #tpu.memory_space<vmem>>, vector<32x128xf32>,
    return
  }
  func.func @transform_0(%arg0: i32) -> (i32, i32) {
    %c0_i32 = arith.constant 0 : i32
    %c0_i32_0 = arith.constant 0 : i32
    %c0_i32_1 = arith.constant 0 : i32
    return %c0_i32, %c0_i32_0 : i32, i32
  }
  func.func @transform_1(%arg0: i32) -> (i32, i32) {
    %c0_i32 = arith.constant 0 : i32
    %c0_i32_0 = arith.constant 0 : i32
    return %c0_i32, %arg0 : i32, i32
  }
  func.func @transform_2(%arg0: i32) -> (i32, i32) {
    %c0_i32 = arith.constant 0 : i32
    %c0_i32_0 = arith.constant 0 : i32
    %c0_i32_1 = arith.constant 0 : i32
    return %c0_i32, %c0_i32_0 : i32, i32
  }
  func.func @transform_3(%arg0: i32) -> (i32, i32) {
    %c0_i32 = arith.constant 0 : i32
    %c0_i32_0 = arith.constant 0 : i32
    return %c0_i32, %arg0 : i32, i32
  }
}

module attributes {stable_mosaic.version = 11 : i64} {
  func.func @kernel(%arg0: i32, %arg1: memref<128x3456xbf16, #tpu.memory_space<vmem>>, %arg2: memref<3456x128xbf16, #tpu.memory_space<vmem>>, %arg3: memref<128x1xf32, #tpu.memory_space<vmem>>, %arg4: memref<128x128xf32, #tpu.memory_space<vmem>>) attributes {dimension_semantics = [#tpu.dimension_semantics<parallel>], iteration_bounds = array<i64: 1>, scalar_prefetch = 0 : i64, scratch_operands = 0 : i64, tpu.core_type = #tpu.core_type<tc>, window_params = [{pipeline_mode = #tpu.pipeline_mode<synchronous>, transform_indices = @transform_0, window_bounds = array<i64: 128, 3456>}, {transform_indices = @transform_1, window_bounds = array<i64: 3456, 128>}, {pipeline_mode = #tpu.pipeline_mode<synchronous>, transform_indices = @transform_2, window_bounds = array<i64: 128, 1>}, {transform_indices = @transform_3, window_bounds = array<i64: 128, 128>}]} {
    %c0 = arith.constant 0 : index
    %c0_0 = arith.constant 0 : index
    %0 = vector.load %arg1[%c0, %c0_0] : memref<128x3456xbf16, #tpu.memory_space<vmem>>, vector<128x3456xbf16>
    %c0_1 = arith.constant 0 : index
    %c0_2 = arith.constant 0 : index
    %1 = vector.load %arg2[%c0_1, %c0_2] : memref<3456x128xbf16, #tpu.memory_space<vmem>>, vector<3456x128xbf16>
    %cst = arith.constant dense<0.000000e+00> : vector<128x128xf32>
    %2 = tpu.matmul %0, %1, %cst {dimension_numbers = #tpu.dot_dimension_numbers<[1], [0], [0], [1], [0, 0, 1, 1], [], []>} : vector<128x3456xbf16>, vector<3456x128xbf16>, vector<128x128xf32> -> vector<128x128xf32>
    %c0_3 = arith.constant 0 : index
    %c0_4 = arith.constant 0 : index
    %3 = vector.load %arg3[%c0_3, %c0_4] : memref<128x1xf32, #tpu.memory_space<vmem>>, vector<128x1xf32>
    %4 = vector.broadcast %3 : vector<128x1xf32> to vector<128x128xf32>
    %5 = arith.addf %2, %4 : vector<128x128xf32>
    %cst_5 = arith.constant 0.000000e+00 : f32
    %6 = vector.broadcast %cst_5 : f32 to vector<128x128xf32>
    %7 = arith.maximumf %5, %6 : vector<128x128xf32>
    %c0_6 = arith.constant 0 : index
    %c0_7 = arith.constant 0 : index
    %8 = vector.load %arg4[%c0_6, %c0_7] : memref<128x128xf32, #tpu.memory_space<vmem>>, vector<128x128xf32>
    tpu.vector_store %arg4[%c0_6, %c0_7], %7 {strides = array<i32>} : memref<128x128xf32, #tpu.memory_space<vmem>>, vector<128x128xf32>,
    return
  }
  func.func @transform_0(%arg0: i32) -> (i32, i32) {
    %c0_i32 = arith.constant 0 : i32
    %c0_i32_0 = arith.constant 0 : i32
    %c0_i32_1 = arith.constant 0 : i32
    return %c0_i32, %c0_i32_0 : i32, i32
  }
  func.func @transform_1(%arg0: i32) -> (i32, i32) {
    %c0_i32 = arith.constant 0 : i32
    %c0_i32_0 = arith.constant 0 : i32
    return %c0_i32, %arg0 : i32, i32
  }
  func.func @transform_2(%arg0: i32) -> (i32, i32) {
    %c0_i32 = arith.constant 0 : i32
    %c0_i32_0 = arith.constant 0 : i32
    %c0_i32_1 = arith.constant 0 : i32
    return %c0_i32, %c0_i32_0 : i32, i32
  }
  func.func @transform_3(%arg0: i32) -> (i32, i32) {
    %c0_i32 = arith.constant 0 : i32
    %c0_i32_0 = arith.constant 0 : i32
    return %c0_i32, %arg0 : i32, i32
  }
}

</mosaic_0001>

<llo_original>
// kernel: feature_extraction_forward.43
$region0: #{feature_extraction_forward.43}
  #allocation0 [shape = 'u32[]', space=smem, size = 0x4, offset = 0x4, fixed_abs, tag = 'smem constant byte address 0x4 - core index']
  #allocation1 [shape = 'u32[72,128]{1,0:T(1,128)}', space=vmem, size = 0x9000, scoped, tag = 'internal scratch']
  %s0 = inlined_call_operand.vmem [shape: bf16[32,27], index: 0, kind: input, shape index: {}]
  %s1 = inlined_call_operand.vmem [shape: bf16[27,512], index: 1, kind: input, shape index: {}]
  %s2 = inlined_call_operand.vmem [shape: f32[32,1], index: 2, kind: input, shape index: {}]
  %s3 = inlined_call_operand.vmem [shape: f32[32,512], index: 3, kind: output, shape index: {}]
  %s4 = sld [smem:[#allocation0]]
  $region102: #{feature_extraction_forward.43} parent=0
    _
  %s6 = ssub.s32 1, %s4
  %s7 = scalar_select 0, %s6, %s4
  $region1: #{feature_extraction_forward.43} parent=0
    #allocation2 [shape = 'u8[32768]{0}', space=vmem, size = 0x8000, scoped, tag = 'input window, operand 1']
    #allocation3 [shape = 'u8[65536]{0}', space=vmem, size = 0x10000, scoped, tag = 'output window, operand 0']
    loop: start=0, step=1, limit=4
    $region2: #{feature_extraction_forward.43} parent=1 // loop_pre_header
      _
    $region3: #{feature_extraction_forward.43} parent=1 // loop_header
      %s9 = sphi 0, %s13
      %p10 = scmp.ge.s32.totalorder %s9, 4
      %s17 = sphi 0, %s17
      %s19 = sphi 0, %s17
      %s20 = sphi 0, %s19
      %s34 = sphi 0, %s20
      %s40 = sphi 0, %s42
      %s43 = sphi 0, %s40
      %s44 = sphi 0, %s43
      %s60 = sphi 0, %s44
      %s64 = sphi 0, %s64
      %s66 = sphi 0, %s64
      %s67 = sphi 0, %s66
      %s81 = sphi 0, %s67
      %s87 = sphi 0, %s89
      %s90 = sphi 0, %s87
      %s91 = sphi 0, %s90
      %s107 = sphi 0, %s91
    $region4: #{feature_extraction_forward.43} parent=1 // loop_header_branch
      %12 = sbr.rel (%p10) target = $region8
    $region5: #{feature_extraction_forward.43} parent=1 // loop_body
      %s14 = ssub.s32 %s9, 1
      %s15 = ssub.s32 %s9, 2
      %s16 = sadd.s32 %s9, 1
      %s18 = sadd.s32 %s17, 1
      %p21 = scmp.eq.s32.totalorder %s9, 1
      %p22 = scmp.ne.s32.totalorder %s17, %s19
      %p23 = scmp.eq.s32.totalorder %s9, 0
      %p24 = por %p22, %p23
      %p25 = scmp.ne.s32.totalorder %s17, %s19
      %p26 = scmp.eq.s32.totalorder %s14, 1
      %p27 = por %p25, %p26
      %p28 = scmp.ne.s32.totalorder %s19, %s20
      %p29 = scmp.eq.s32.totalorder %s14, 0
      %p30 = por %p28, %p29
      %p31 = scmp.ne.s32.totalorder %s19, %s20
      %p32 = scmp.eq.s32.totalorder %s15, 1
      %p33 = por %p31, %p32
      %p35 = scmp.ne.s32.totalorder %s20, %s34
      %p36 = scmp.eq.s32.totalorder %s15, 0
      %p37 = por %p35, %p36
      %s38 = ssub.s32 %s9, %s16
      %p39 = scmp.eq.s32.totalorder %s38, 0
      %s41 = sadd.s32 %s40, 1
      %s42 = scalar_select %p39, %s40, %s41
      %p45 = pneg %p39
      %p46 = scmp.eq.s32.totalorder %s9, 1
      %p47 = por %p45, %p46
      %p48 = scmp.ne.s32.totalorder %s40, %s43
      %p49 = scmp.eq.s32.totalorder %s9, 0
      %p50 = por %p48, %p49
      %p51 = scmp.ne.s32.totalorder %s40, %s43
      %p52 = scmp.eq.s32.totalorder %s14, 1
      %p53 = por %p51, %p52
      %p54 = scmp.ne.s32.totalorder %s43, %s44
      %p55 = scmp.eq.s32.totalorder %s14, 0
      %p56 = por %p54, %p55
      %p57 = scmp.ne.s32.totalorder %s43, %s44
      %p58 = scmp.eq.s32.totalorder %s15, 1
      %p59 = por %p57, %p58
      %p61 = scmp.ne.s32.totalorder %s44, %s60
      %p62 = scmp.eq.s32.totalorder %s15, 0
      %p63 = por %p61, %p62
      %s65 = sadd.s32 %s64, 1
      %p68 = scmp.eq.s32.totalorder %s9, 1
      %p69 = scmp.ne.s32.totalorder %s64, %s66
      %p70 = scmp.eq.s32.totalorder %s9, 0
      %p71 = por %p69, %p70
      %p72 = scmp.ne.s32.totalorder %s64, %s66
      %p73 = scmp.eq.s32.totalorder %s14, 1
      %p74 = por %p72, %p73
      %p75 = scmp.ne.s32.totalorder %s66, %s67
      %p76 = scmp.eq.s32.totalorder %s14, 0
      %p77 = por %p75, %p76
      %p78 = scmp.ne.s32.totalorder %s66, %s67
      %p79 = scmp.eq.s32.totalorder %s15, 1
      %p80 = por %p78, %p79
      %p82 = scmp.ne.s32.totalorder %s67, %s81
      %p83 = scmp.eq.s32.totalorder %s15, 0
      %p84 = por %p82, %p83
      %s85 = ssub.s32 %s9, %s16
      %p86 = scmp.eq.s32.totalorder %s85, 0
      %s88 = sadd.s32 %s87, 1
      %s89 = scalar_select %p86, %s87, %s88
      %p92 = pneg %p86
      %p93 = scmp.eq.s32.totalorder %s9, 1
      %p94 = por %p92, %p93
      %p95 = scmp.ne.s32.totalorder %s87, %s90
      %p96 = scmp.eq.s32.totalorder %s9, 0
      %p97 = por %p95, %p96
      %p98 = scmp.ne.s32.totalorder %s87, %s90
      %p99 = scmp.eq.s32.totalorder %s14, 1
      %p100 = por %p98, %p99
      %p101 = scmp.ne.s32.totalorder %s90, %s91
      %p102 = scmp.eq.s32.totalorder %s14, 0
      %p103 = por %p101, %p102
      %p104 = scmp.ne.s32.totalorder %s90, %s91
      %p105 = scmp.eq.s32.totalorder %s15, 1
      %p106 = por %p104, %p105
      %p108 = scmp.ne.s32.totalorder %s91, %s107
      %p109 = scmp.eq.s32.totalorder %s15, 0
      %p110 = por %p108, %p109
      %p111 = scmp.le.s32.totalorder 1, %s9
      %p112 = scmp.lt.s32.totalorder %s9, 3
      %p113 = pnand %p111, %p112
      %p114 = pneg %p113
      // Predicated region
      $region9: #{feature_extraction_forward.43} parent=5 // pred_check
        _
      $region10: #{feature_extraction_forward.43} parent=5 // pred_check_branch
        %116 = sbr.rel (%p113) target = $region12
      $region11: #{feature_extraction_forward.43} parent=5 // pred_region
        %s117 = ssub.s32 %s9, 1
        // Predicated region
        $region13: #{feature_extraction_forward.43} parent=11 // pred_check
          %p118 = pneg %p30
        $region14: #{feature_extraction_forward.43} parent=11 // pred_check_branch
          %120 = sbr.rel (%p118) target = $region16
        $region15: #{feature_extraction_forward.43} parent=11 // pred_region
          _
        $region16: #{feature_extraction_forward.43} parent=11 // pred_fallthru
          _
        // Predicated region
        $region17: #{feature_extraction_forward.43} parent=11 // pred_check
          %p121 = pneg %p77
        $region18: #{feature_extraction_forward.43} parent=11 // pred_check_branch
          %123 = sbr.rel (%p121) target = $region20
        $region19: #{feature_extraction_forward.43} parent=11 // pred_region
          _
        $region20: #{feature_extraction_forward.43} parent=11 // pred_fallthru
          _
      $region12: #{feature_extraction_forward.43} parent=5 // pred_fallthru
        _
      %p124 = scmp.lt.s32.totalorder %s9, 2
      // Predicated region
      $region21: #{feature_extraction_forward.43} parent=5 // pred_check
        %p125 = pneg %p124
      $region22: #{feature_extraction_forward.43} parent=5 // pred_check_branch
        %127 = sbr.rel (%p125) target = $region24
      $region23: #{feature_extraction_forward.43} parent=5 // pred_region
        // Predicated region
        $region25: #{feature_extraction_forward.43} parent=23 // pred_check
          %p128 = pneg %p50
        $region26: #{feature_extraction_forward.43} parent=23 // pred_check_branch
          %130 = sbr.rel (%p128) target = $region28
        $region27: #{feature_extraction_forward.43} parent=23 // pred_region
          %s131 = sand.u32 %s40, 1
          %s132 = sand.u32 %s40, 1
          %s133 = smul.addr %s132, 32
          %s134 = scalar_lea.vmem [#allocation2], %s133
          %s135 = smul.u32 2, %s9
          %s136 = smul.addr %s135, 4
          %s137 = scalar_lea.vmem %s1, %s136
          // Predicated region
          $region29: #{feature_extraction_forward.43} parent=27 // pred_check
            _
          $region30: #{feature_extraction_forward.43} parent=27 // pred_check_branch
            %139 = sbr.rel (0) target = $region32
          $region31: #{feature_extraction_forward.43} parent=27 // pred_region
            // Predicated region
            $region33: #{feature_extraction_forward.43} parent=31 // pred_check
              _
            $region34: #{feature_extraction_forward.43} parent=31 // pred_check_branch
              %141 = sbr.rel (0) target = $region36
            $region35: #{feature_extraction_forward.43} parent=31 // pred_region
              // Predicated region
              $region48: #{feature_extraction_forward.43} parent=35 // pred_check
                _
              $region49: #{feature_extraction_forward.43} parent=35 // pred_check_branch
                %163 = sbr.rel (0) target = $region51
              $region50: #{feature_extraction_forward.43} parent=35 // pred_region
                loop: start=0, step=1, limit=1
                $region52: #{feature_extraction_forward.43} parent=50 // loop_pre_header
                  _
                $region53: #{feature_extraction_forward.43} parent=50 // loop_header
                  %s165 = sphi 0, %s169
                  %p166 = scmp.ge.s32.totalorder %s165, 1
                  %s170 = sphi %s137, %s137
                  %s171 = sphi %s134, %s134
                $region54: #{feature_extraction_forward.43} parent=50 // loop_header_branch
                  %168 = sbr.rel (%p166) target = $region58
                $region55: #{feature_extraction_forward.43} parent=50 // loop_body
                  %v172 = vld [vmem:[%s170] sm:$0xff]
                  %173 = vst [vmem:[%s171] sm:$0xff] %v172
                  %v174 = vld [vmem:[%s170 + $0x10] sm:$0xff]
                  %175 = vst [vmem:[%s171 + $0x8] sm:$0xff] %v174
                  %v176 = vld [vmem:[%s170 + $0x20] sm:$0xff]
                  %177 = vst [vmem:[%s171 + $0x10] sm:$0xff] %v176
                  %v178 = vld [vmem:[%s170 + $0x30] sm:$0xff]
                  %179 = vst [vmem:[%s171 + $0x18] sm:$0xff] %v178
                $region56: #{feature_extraction_forward.43} parent=50 // loop_footer
                  %s169 = sadd.s32 1, %s165
                $region57: #{feature_extraction_forward.43} parent=50 // loop_footer_branch
                  %164 = sbr.rel target = $region53
                $region58: #{feature_extraction_forward.43} parent=50 // loop_exit
                  _
              $region51: #{feature_extraction_forward.43} parent=35 // pred_fallthru
                _
              // Predicated region
              $region59: #{feature_extraction_forward.43} parent=35 // pred_check
                _
              $region60: #{feature_extraction_forward.43} parent=35 // pred_check_branch
                %181 = sbr.rel target = $region62
              $region61: #{feature_extraction_forward.43} parent=35 // pred_region
                _
              $region62: #{feature_extraction_forward.43} parent=35 // pred_fallthru
                _
            $region36: #{feature_extraction_forward.43} parent=31 // pred_fallthru
              _
            // Predicated region
            $region37: #{feature_extraction_forward.43} parent=31 // pred_check
              _
            $region38: #{feature_extraction_forward.43} parent=31 // pred_check_branch
              %143 = sbr.rel target = $region40
            $region39: #{feature_extraction_forward.43} parent=31 // pred_region
              %s145 = ssub.s32 256, 1
              loop: start=0, step=1, limit=1
              $region41: #{feature_extraction_forward.43} parent=39 // loop_pre_header
                _
              $region42: #{feature_extraction_forward.43} parent=39 // loop_header
                %s147 = sphi 0, %s151
                %p148 = scmp.ge.s32.totalorder %s147, 1
                %s152 = sphi %s137, %s137
                %s153 = sphi %s134, %s134
              $region43: #{feature_extraction_forward.43} parent=39 // loop_header_branch
                %150 = sbr.rel (%p148) target = $region47
              $region44: #{feature_extraction_forward.43} parent=39 // loop_body
                %v154 = vld [vmem:[%s152] sm:%s145]
                %155 = vst [vmem:[%s153] sm:%s145] %v154
                %v156 = vld [vmem:[%s152 + $0x10] sm:%s145]
                %157 = vst [vmem:[%s153 + $0x8] sm:%s145] %v156
                %v158 = vld [vmem:[%s152 + $0x20] sm:%s145]
                %159 = vst [vmem:[%s153 + $0x10] sm:%s145] %v158
                %v160 = vld [vmem:[%s152 + $0x30] sm:%s145]
                %161 = vst [vmem:[%s153 + $0x18] sm:%s145] %v160
              $region45: #{feature_extraction_forward.43} parent=39 // loop_footer
                %s151 = sadd.s32 1, %s147
              $region46: #{feature_extraction_forward.43} parent=39 // loop_footer_branch
                %146 = sbr.rel target = $region42
              $region47: #{feature_extraction_forward.43} parent=39 // loop_exit
                _
            $region40: #{feature_extraction_forward.43} parent=31 // pred_fallthru
              _
          $region32: #{feature_extraction_forward.43} parent=27 // pred_fallthru
            _
          %182 = vnop
        $region28: #{feature_extraction_forward.43} parent=23 // pred_fallthru
          _
      $region24: #{feature_extraction_forward.43} parent=5 // pred_fallthru
        _
      %p183 = scmp.le.s32.totalorder 1, %s9
      %p184 = scmp.lt.s32.totalorder %s9, 3
      %p185 = pnand %p183, %p184
      %p186 = pneg %p185
      // Predicated region
      $region63: #{feature_extraction_forward.43} parent=5 // pred_check
        _
      $region64: #{feature_extraction_forward.43} parent=5 // pred_check_branch
        %188 = sbr.rel (%p185) target = $region66
      $region65: #{feature_extraction_forward.43} parent=5 // pred_region
        %s189 = ssub.s32 %s9, 1
        %s190 = sand.u32 %s43, 1
        %s191 = sand.u32 %s43, 1
        %s192 = smul.addr %s191, 32
        %s193 = scalar_lea.vmem [#allocation2], %s192
        // Predicated region
        $region67: #{feature_extraction_forward.43} parent=65 // pred_check
          %p194 = pneg %p56
        $region68: #{feature_extraction_forward.43} parent=65 // pred_check_branch
          %196 = sbr.rel (%p194) target = $region70
        $region69: #{feature_extraction_forward.43} parent=65 // pred_region
          _
        $region70: #{feature_extraction_forward.43} parent=65 // pred_fallthru
          _
        %p197 = pneg %p30
        %p198 = pneg %p27
        %s199 = sand.u32 %s43, 1
        %s200 = sand.u32 %s43, 1
        %s201 = smul.addr %s200, 32
        %s202 = scalar_lea.vmem [#allocation2], %s201
        %p203 = pneg %p56
        %p204 = pneg %p53
        %p205 = pneg %p77
        %p206 = pneg %p74
        %p207 = pneg %p103
        %p208 = pneg %p100
        %s209 = sand.u32 %s90, 1
        %s210 = sand.u32 %s90, 1
        %s211 = smul.addr %s210, 64
        %s212 = scalar_lea.vmem [#allocation3], %s211
        %s213 = smul.u32 2, %s14
        %s214 = smul.u32 2, %s14
        %v216 = vld [vmem:[%s0] sm:$0xf]
        %v217 = vld [vmem:[%s0 + $0x4] sm:$0xf]
        %v218 = vld [vmem:[%s0 + $0x8] sm:$0xf]
        %v219 = vld [vmem:[%s0 + $0xc] sm:$0xf]
        %v220 = vld [vmem:[%s193] sm:$0xff]
        %v221 = vld [vmem:[%s193 + $0x8] sm:$0xff]
        %v222 = vld [vmem:[%s193 + $0x10] sm:$0xff]
        %v223 = vld [vmem:[%s193 + $0x18] sm:$0x33]
        %v224 = vld [vmem:[%s2] sm:$0xff]
        %v225 = vld [vmem:[%s2 + $0x8] sm:$0xff]
        %v226 = vld [vmem:[%s2 + $0x10] sm:$0xff]
        %v227 = vld [vmem:[%s2 + $0x18] sm:$0xff]
        %229 = vset.pattern.permute.xlu0 0
        %230 = vperm.xlu0 %229, %v224
        %v231 = vpop.permute.xlu0 %230
        %234 = vset.pattern.permute.xlu0 0
        %235 = vperm.xlu0 %234, %v225
        %v236 = vpop.permute.xlu0 %235
        %239 = vset.pattern.permute.xlu0 0
        %240 = vperm.xlu0 %239, %v226
        %v241 = vpop.permute.xlu0 %240
        %244 = vset.pattern.permute.xlu0 0
        %245 = vperm.xlu0 %244, %v227
        %v246 = vpop.permute.xlu0 %245
        %v252 = vunpack.c.l.b16 %v216
        %v253 = vunpack.c.l.b16 %v217
        %v254 = vunpack.c.l.b16 %v218
        %v255 = vunpack.c.l.b16 %v219
        %v256 = vpack.c.b16 %v253, %v252
        %v257 = vpack.c.b16 %v255, %v254
        %v262 = vunpack.c.l.b16 %v220
        %v263 = vunpack.c.h.b16 %v220
        %v264 = vunpack.c.l.b16 %v221
        %v265 = vunpack.c.h.b16 %v221
        %v266 = vunpack.c.l.b16 %v222
        %v267 = vunpack.c.h.b16 %v222
        %v268 = vunpack.c.l.b16 %v223
        %v269 = vunpack.c.h.b16 %v223
        %v270 = vpack.c.b16 %v264, %v262
        %v271 = vpack.c.b16 %v265, %v263
        %v272 = vpack.c.b16 %v268, %v266
        %v273 = vpack.c.b16 %v269, %v267
        %vm276 = vcmask 220160
        %v278 = vsel %vm276, %v256, 0
        %v281 = vsel %vm276, %v257, 0
        %vm283 = vcmask 1044480
        %vm284 = vcmask 1045504
        %v285 = vsel %vm283, 4294967295, 65535
        %v286 = vsel %vm284, %v285, 0
        %v288 = vand.u32 %v272, %v286
        %v291 = vand.u32 %v273, %v286
        %293 = vmatpush.bf16.msra.mxu0 0
        %294 = vmatpush.bf16.msra.mxu0 0
        %295 = vmatpush.bf16.msra.mxu0 0
        %296 = vmatpush.bf16.msra.mxu0 0
        %297 = vmatpush.bf16.msra.mxu0 0
        %298 = vmatpush.bf16.msra.mxu0 0
        %299 = vmatpush.bf16.msra.mxu0 %v288
        %300 = vmatpush.bf16.msra.mxu0 %v270
        %301 = vmatmul.bf16.gmra.mxu0 %v278
        %v302 = vpop.f32.mrf.mxu0
        %v303 = vadd.f32 %v231, %v302
        %v304 = vpop.f32.mrf.mxu0
        %v305 = vadd.f32 %v236, %v304
        %306 = vmatmul.bf16.gmra.mxu0 %v281
        %v307 = vpop.f32.mrf.mxu0
        %v308 = vadd.f32 %v241, %v307
        %v309 = vpop.f32.mrf.mxu0
        %v310 = vadd.f32 %v246, %v309
        %311 = vdwg.mxu0
        %312 = vmatpush.bf16.msra.mxu0 0
        %313 = vmatpush.bf16.msra.mxu0 0
        %314 = vmatpush.bf16.msra.mxu0 0
        %315 = vmatpush.bf16.msra.mxu0 0
        %316 = vmatpush.bf16.msra.mxu0 0
        %317 = vmatpush.bf16.msra.mxu0 0
        %318 = vmatpush.bf16.msra.mxu0 %v291
        %319 = vmatpush.bf16.msra.mxu0 %v271
        %320 = vmatmul.bf16.gmra.mxu0 %v278
        %v321 = vpop.f32.mrf.mxu0
        %v322 = vadd.f32 %v231, %v321
        %v323 = vpop.f32.mrf.mxu0
        %v324 = vadd.f32 %v236, %v323
        %325 = vmatmul.bf16.gmra.mxu0 %v281
        %v326 = vpop.f32.mrf.mxu0
        %v327 = vadd.f32 %v241, %v326
        %v328 = vpop.f32.mrf.mxu0
        %v329 = vadd.f32 %v246, %v328
        %330 = vdwg.mxu0
        %v331 = vmax.f32 %v303, 0.0
        %v332 = vmax.f32 %v322, 0.0
        %v333 = vmax.f32 %v305, 0.0
        %v334 = vmax.f32 %v324, 0.0
        %v335 = vmax.f32 %v308, 0.0
        %v336 = vmax.f32 %v327, 0.0
        %v337 = vmax.f32 %v310, 0.0
        %v338 = vmax.f32 %v329, 0.0
        %339 = vst [vmem:[%s212] sm:$0xff] %v331
        %340 = vst [vmem:[%s212 + $0x8] sm:$0xff] %v332
        %341 = vst [vmem:[%s212 + $0x10] sm:$0xff] %v333
        %342 = vst [vmem:[%s212 + $0x18] sm:$0xff] %v334
        %343 = vst [vmem:[%s212 + $0x20] sm:$0xff] %v335
        %344 = vst [vmem:[%s212 + $0x28] sm:$0xff] %v336
        %345 = vst [vmem:[%s212 + $0x30] sm:$0xff] %v337
        %346 = vst [vmem:[%s212 + $0x38] sm:$0xff] %v338
        %s347 = sand.u32 %s90, 1
        %s348 = sand.u32 %s90, 1
        %s349 = smul.addr %s348, 64
        %s350 = scalar_lea.vmem [#allocation3], %s349
        // Predicated region
        $region71: #{feature_extraction_forward.43} parent=65 // pred_check
          %p351 = pneg %p100
        $region72: #{feature_extraction_forward.43} parent=65 // pred_check_branch
          %353 = sbr.rel (%p351) target = $region74
        $region73: #{feature_extraction_forward.43} parent=65 // pred_region
          %s354 = smul.u32 2, %s14
          %s355 = smul.addr %s354, 8
          %s356 = scalar_lea.vmem %s3, %s355
          // Predicated region
          $region75: #{feature_extraction_forward.43} parent=73 // pred_check
            _
          $region76: #{feature_extraction_forward.43} parent=73 // pred_check_branch
            %358 = sbr.rel (0) target = $region78
          $region77: #{feature_extraction_forward.43} parent=73 // pred_region
            // Predicated region
            $region79: #{feature_extraction_forward.43} parent=77 // pred_check
              _
            $region80: #{feature_extraction_forward.43} parent=77 // pred_check_branch
              %360 = sbr.rel (0) target = $region82
            $region81: #{feature_extraction_forward.43} parent=77 // pred_region
              loop: start=0, step=1, limit=1
              $region83: #{feature_extraction_forward.43} parent=81 // loop_pre_header
                _
              $region84: #{feature_extraction_forward.43} parent=81 // loop_header
                %s362 = sphi 0, %s366
                %p363 = scmp.ge.s32.totalorder %s362, 1
                %s367 = sphi %s350, %s350
                %s368 = sphi %s356, %s356
              $region85: #{feature_extraction_forward.43} parent=81 // loop_header_branch
                %365 = sbr.rel (%p363) target = $region89
              $region86: #{feature_extraction_forward.43} parent=81 // loop_body
                %v369 = vld [vmem:[%s367] sm:$0xff]
                %370 = vst [vmem:[%s368] sm:$0xff] %v369
                %v371 = vld [vmem:[%s367 + $0x8] sm:$0xff]
                %372 = vst [vmem:[%s368 + $0x8] sm:$0xff] %v371
                %v373 = vld [vmem:[%s367 + $0x10] sm:$0xff]
                %374 = vst [vmem:[%s368 + $0x20] sm:$0xff] %v373
                %v375 = vld [vmem:[%s367 + $0x18] sm:$0xff]
                %376 = vst [vmem:[%s368 + $0x28] sm:$0xff] %v375
                %v377 = vld [vmem:[%s367 + $0x20] sm:$0xff]
                %378 = vst [vmem:[%s368 + $0x40] sm:$0xff] %v377
                %v379 = vld [vmem:[%s367 + $0x28] sm:$0xff]
                %380 = vst [vmem:[%s368 + $0x48] sm:$0xff] %v379
                %v381 = vld [vmem:[%s367 + $0x30] sm:$0xff]
                %382 = vst [vmem:[%s368 + $0x60] sm:$0xff] %v381
                %v383 = vld [vmem:[%s367 + $0x38] sm:$0xff]
                %384 = vst [vmem:[%s368 + $0x68] sm:$0xff] %v383
              $region87: #{feature_extraction_forward.43} parent=81 // loop_footer
                %s366 = sadd.s32 1, %s362
              $region88: #{feature_extraction_forward.43} parent=81 // loop_footer_branch
                %361 = sbr.rel target = $region84
              $region89: #{feature_extraction_forward.43} parent=81 // loop_exit
                _
            $region82: #{feature_extraction_forward.43} parent=77 // pred_fallthru
              _
            // Predicated region
            $region90: #{feature_extraction_forward.43} parent=77 // pred_check
              _
            $region91: #{feature_extraction_forward.43} parent=77 // pred_check_branch
              %386 = sbr.rel target = $region93
            $region92: #{feature_extraction_forward.43} parent=77 // pred_region
              _
            $region93: #{feature_extraction_forward.43} parent=77 // pred_fallthru
              _
          $region78: #{feature_extraction_forward.43} parent=73 // pred_fallthru
            _
          %387 = vnop
        $region74: #{feature_extraction_forward.43} parent=65 // pred_fallthru
          _
      $region66: #{feature_extraction_forward.43} parent=5 // pred_fallthru
        _
      %p388 = scmp.le.s32.totalorder 2, %s9
      // Predicated region
      $region94: #{feature_extraction_forward.43} parent=5 // pred_check
        %p389 = pneg %p388
      $region95: #{feature_extraction_forward.43} parent=5 // pred_check_branch
        %391 = sbr.rel (%p389) target = $region97
      $region96: #{feature_extraction_forward.43} parent=5 // pred_region
        %s392 = ssub.s32 %s9, 2
        // Predicated region
        $region98: #{feature_extraction_forward.43} parent=96 // pred_check
          %p393 = pneg %p106
        $region99: #{feature_extraction_forward.43} parent=96 // pred_check_branch
          %395 = sbr.rel (%p393) target = $region101
        $region100: #{feature_extraction_forward.43} parent=96 // pred_region
          %s396 = sand.u32 %s91, 1
          %s397 = sand.u32 %s91, 1
          %s398 = smul.addr %s397, 64
          %s399 = scalar_lea.vmem [#allocation3], %s398
        $region101: #{feature_extraction_forward.43} parent=96 // pred_fallthru
          _
      $region97: #{feature_extraction_forward.43} parent=5 // pred_fallthru
        _
    $region6: #{feature_extraction_forward.43} parent=1 // loop_footer
      %s13 = sadd.s32 1, %s9
    $region7: #{feature_extraction_forward.43} parent=1 // loop_footer_branch
      %8 = sbr.rel target = $region3
    $region8: #{feature_extraction_forward.43} parent=1 // loop_exit
      _

// kernel: feature_extraction_forward.44
$region0: #{feature_extraction_forward.44}
  #allocation0 [shape = 'u32[]', space=smem, size = 0x4, offset = 0x4, fixed_abs, tag = 'smem constant byte address 0x4 - core index']
  #allocation1 [shape = 'u32[72,128]{1,0:T(1,128)}', space=vmem, size = 0x9000, scoped, tag = 'internal scratch']
  %s0 = inlined_call_operand.vmem [shape: bf16[32,288], index: 0, kind: input, shape index: {}]
  %s1 = inlined_call_operand.vmem [shape: bf16[288,512], index: 1, kind: input, shape index: {}]
  %s2 = inlined_call_operand.vmem [shape: f32[32,1], index: 2, kind: input, shape index: {}]
  %s3 = inlined_call_operand.vmem [shape: f32[32,512], index: 3, kind: output, shape index: {}]
  %s4 = sld [smem:[#allocation0]]
  $region102: #{feature_extraction_forward.44} parent=0
    _
  %s6 = ssub.s32 1, %s4
  %s7 = scalar_select 0, %s6, %s4
  $region1: #{feature_extraction_forward.44} parent=0
    #allocation2 [shape = 'u8[294912]{0}', space=vmem, size = 0x48000, scoped, tag = 'input window, operand 1']
    #allocation3 [shape = 'u8[65536]{0}', space=vmem, size = 0x10000, scoped, tag = 'output window, operand 0']
    loop: start=0, step=1, limit=4
    $region2: #{feature_extraction_forward.44} parent=1 // loop_pre_header
      _
    $region3: #{feature_extraction_forward.44} parent=1 // loop_header
      %s9 = sphi 0, %s13
      %p10 = scmp.ge.s32.totalorder %s9, 4
      %s17 = sphi 0, %s17
      %s19 = sphi 0, %s17
      %s20 = sphi 0, %s19
      %s34 = sphi 0, %s20
      %s40 = sphi 0, %s42
      %s43 = sphi 0, %s40
      %s44 = sphi 0, %s43
      %s60 = sphi 0, %s44
      %s64 = sphi 0, %s64
      %s66 = sphi 0, %s64
      %s67 = sphi 0, %s66
      %s81 = sphi 0, %s67
      %s87 = sphi 0, %s89
      %s90 = sphi 0, %s87
      %s91 = sphi 0, %s90
      %s107 = sphi 0, %s91
    $region4: #{feature_extraction_forward.44} parent=1 // loop_header_branch
      %12 = sbr.rel (%p10) target = $region8
    $region5: #{feature_extraction_forward.44} parent=1 // loop_body
      %s14 = ssub.s32 %s9, 1
      %s15 = ssub.s32 %s9, 2
      %s16 = sadd.s32 %s9, 1
      %s18 = sadd.s32 %s17, 1
      %p21 = scmp.eq.s32.totalorder %s9, 1
      %p22 = scmp.ne.s32.totalorder %s17, %s19
      %p23 = scmp.eq.s32.totalorder %s9, 0
      %p24 = por %p22, %p23
      %p25 = scmp.ne.s32.totalorder %s17, %s19
      %p26 = scmp.eq.s32.totalorder %s14, 1
      %p27 = por %p25, %p26
      %p28 = scmp.ne.s32.totalorder %s19, %s20
      %p29 = scmp.eq.s32.totalorder %s14, 0
      %p30 = por %p28, %p29
      %p31 = scmp.ne.s32.totalorder %s19, %s20
      %p32 = scmp.eq.s32.totalorder %s15, 1
      %p33 = por %p31, %p32
      %p35 = scmp.ne.s32.totalorder %s20, %s34
      %p36 = scmp.eq.s32.totalorder %s15, 0
      %p37 = por %p35, %p36
      %s38 = ssub.s32 %s9, %s16
      %p39 = scmp.eq.s32.totalorder %s38, 0
      %s41 = sadd.s32 %s40, 1
      %s42 = scalar_select %p39, %s40, %s41
      %p45 = pneg %p39
      %p46 = scmp.eq.s32.totalorder %s9, 1
      %p47 = por %p45, %p46
      %p48 = scmp.ne.s32.totalorder %s40, %s43
      %p49 = scmp.eq.s32.totalorder %s9, 0
      %p50 = por %p48, %p49
      %p51 = scmp.ne.s32.totalorder %s40, %s43
      %p52 = scmp.eq.s32.totalorder %s14, 1
      %p53 = por %p51, %p52
      %p54 = scmp.ne.s32.totalorder %s43, %s44
      %p55 = scmp.eq.s32.totalorder %s14, 0
      %p56 = por %p54, %p55
      %p57 = scmp.ne.s32.totalorder %s43, %s44
      %p58 = scmp.eq.s32.totalorder %s15, 1
      %p59 = por %p57, %p58
      %p61 = scmp.ne.s32.totalorder %s44, %s60
      %p62 = scmp.eq.s32.totalorder %s15, 0
      %p63 = por %p61, %p62
      %s65 = sadd.s32 %s64, 1
      %p68 = scmp.eq.s32.totalorder %s9, 1
      %p69 = scmp.ne.s32.totalorder %s64, %s66
      %p70 = scmp.eq.s32.totalorder %s9, 0
      %p71 = por %p69, %p70
      %p72 = scmp.ne.s32.totalorder %s64, %s66
      %p73 = scmp.eq.s32.totalorder %s14, 1
      %p74 = por %p72, %p73
      %p75 = scmp.ne.s32.totalorder %s66, %s67
      %p76 = scmp.eq.s32.totalorder %s14, 0
      %p77 = por %p75, %p76
      %p78 = scmp.ne.s32.totalorder %s66, %s67
      %p79 = scmp.eq.s32.totalorder %s15, 1
      %p80 = por %p78, %p79
      %p82 = scmp.ne.s32.totalorder %s67, %s81
      %p83 = scmp.eq.s32.totalorder %s15, 0
      %p84 = por %p82, %p83
      %s85 = ssub.s32 %s9, %s16
      %p86 = scmp.eq.s32.totalorder %s85, 0
      %s88 = sadd.s32 %s87, 1
      %s89 = scalar_select %p86, %s87, %s88
      %p92 = pneg %p86
      %p93 = scmp.eq.s32.totalorder %s9, 1
      %p94 = por %p92, %p93
      %p95 = scmp.ne.s32.totalorder %s87, %s90
      %p96 = scmp.eq.s32.totalorder %s9, 0
      %p97 = por %p95, %p96
      %p98 = scmp.ne.s32.totalorder %s87, %s90
      %p99 = scmp.eq.s32.totalorder %s14, 1
      %p100 = por %p98, %p99
      %p101 = scmp.ne.s32.totalorder %s90, %s91
      %p102 = scmp.eq.s32.totalorder %s14, 0
      %p103 = por %p101, %p102
      %p104 = scmp.ne.s32.totalorder %s90, %s91
      %p105 = scmp.eq.s32.totalorder %s15, 1
      %p106 = por %p104, %p105
      %p108 = scmp.ne.s32.totalorder %s91, %s107
      %p109 = scmp.eq.s32.totalorder %s15, 0
      %p110 = por %p108, %p109
      %p111 = scmp.le.s32.totalorder 1, %s9
      %p112 = scmp.lt.s32.totalorder %s9, 3
      %p113 = pnand %p111, %p112
      %p114 = pneg %p113
      // Predicated region
      $region9: #{feature_extraction_forward.44} parent=5 // pred_check
        _
      $region10: #{feature_extraction_forward.44} parent=5 // pred_check_branch
        %116 = sbr.rel (%p113) target = $region12
      $region11: #{feature_extraction_forward.44} parent=5 // pred_region
        %s117 = ssub.s32 %s9, 1
        // Predicated region
        $region13: #{feature_extraction_forward.44} parent=11 // pred_check
          %p118 = pneg %p30
        $region14: #{feature_extraction_forward.44} parent=11 // pred_check_branch
          %120 = sbr.rel (%p118) target = $region16
        $region15: #{feature_extraction_forward.44} parent=11 // pred_region
          _
        $region16: #{feature_extraction_forward.44} parent=11 // pred_fallthru
          _
        // Predicated region
        $region17: #{feature_extraction_forward.44} parent=11 // pred_check
          %p121 = pneg %p77
        $region18: #{feature_extraction_forward.44} parent=11 // pred_check_branch
          %123 = sbr.rel (%p121) target = $region20
        $region19: #{feature_extraction_forward.44} parent=11 // pred_region
          _
        $region20: #{feature_extraction_forward.44} parent=11 // pred_fallthru
          _
      $region12: #{feature_extraction_forward.44} parent=5 // pred_fallthru
        _
      %p124 = scmp.lt.s32.totalorder %s9, 2
      // Predicated region
      $region21: #{feature_extraction_forward.44} parent=5 // pred_check
        %p125 = pneg %p124
      $region22: #{feature_extraction_forward.44} parent=5 // pred_check_branch
        %127 = sbr.rel (%p125) target = $region24
      $region23: #{feature_extraction_forward.44} parent=5 // pred_region
        // Predicated region
        $region25: #{feature_extraction_forward.44} parent=23 // pred_check
          %p128 = pneg %p50
        $region26: #{feature_extraction_forward.44} parent=23 // pred_check_branch
          %130 = sbr.rel (%p128) target = $region28
        $region27: #{feature_extraction_forward.44} parent=23 // pred_region
          %s131 = sand.u32 %s40, 1
          %s132 = sand.u32 %s40, 1
          %s133 = smul.addr %s132, 288
          %s134 = scalar_lea.vmem [#allocation2], %s133
          %s135 = smul.u32 2, %s9
          %s136 = smul.addr %s135, 4
          %s137 = scalar_lea.vmem %s1, %s136
          // Predicated region
          $region29: #{feature_extraction_forward.44} parent=27 // pred_check
            _
          $region30: #{feature_extraction_forward.44} parent=27 // pred_check_branch
            %139 = sbr.rel (0) target = $region32
          $region31: #{feature_extraction_forward.44} parent=27 // pred_region
            // Predicated region
            $region33: #{feature_extraction_forward.44} parent=31 // pred_check
              _
            $region34: #{feature_extraction_forward.44} parent=31 // pred_check_branch
              %141 = sbr.rel (0) target = $region36
            $region35: #{feature_extraction_forward.44} parent=31 // pred_region
              // Predicated region
              $region48: #{feature_extraction_forward.44} parent=35 // pred_check
                _
              $region49: #{feature_extraction_forward.44} parent=35 // pred_check_branch
                %227 = sbr.rel (0) target = $region51
              $region50: #{feature_extraction_forward.44} parent=35 // pred_region
                loop: start=0, step=1, limit=1
                $region52: #{feature_extraction_forward.44} parent=50 // loop_pre_header
                  _
                $region53: #{feature_extraction_forward.44} parent=50 // loop_header
                  %s229 = sphi 0, %s233
                  %p230 = scmp.ge.s32.totalorder %s229, 1
                  %s234 = sphi %s137, %s137
                  %s235 = sphi %s134, %s134
                $region54: #{feature_extraction_forward.44} parent=50 // loop_header_branch
                  %232 = sbr.rel (%p230) target = $region58
                $region55: #{feature_extraction_forward.44} parent=50 // loop_body
                  %v236 = vld [vmem:[%s234] sm:$0xff]
                  %237 = vst [vmem:[%s235] sm:$0xff] %v236
                  %v238 = vld [vmem:[%s234 + $0x10] sm:$0xff]
                  %239 = vst [vmem:[%s235 + $0x8] sm:$0xff] %v238
                  %v240 = vld [vmem:[%s234 + $0x20] sm:$0xff]
                  %241 = vst [vmem:[%s235 + $0x10] sm:$0xff] %v240
                  %v242 = vld [vmem:[%s234 + $0x30] sm:$0xff]
                  %243 = vst [vmem:[%s235 + $0x18] sm:$0xff] %v242
                  %v244 = vld [vmem:[%s234 + $0x40] sm:$0xff]
                  %245 = vst [vmem:[%s235 + $0x20] sm:$0xff] %v244
                  %v246 = vld [vmem:[%s234 + $0x50] sm:$0xff]
                  %247 = vst [vmem:[%s235 + $0x28] sm:$0xff] %v246
                  %v248 = vld [vmem:[%s234 + $0x60] sm:$0xff]
                  %249 = vst [vmem:[%s235 + $0x30] sm:$0xff] %v248
                  %v250 = vld [vmem:[%s234 + $0x70] sm:$0xff]
                  %251 = vst [vmem:[%s235 + $0x38] sm:$0xff] %v250
                  %v252 = vld [vmem:[%s234 + $0x80] sm:$0xff]
                  %253 = vst [vmem:[%s235 + $0x40] sm:$0xff] %v252
                  %v254 = vld [vmem:[%s234 + $0x90] sm:$0xff]
                  %255 = vst [vmem:[%s235 + $0x48] sm:$0xff] %v254
                  %v256 = vld [vmem:[%s234 + $0xa0] sm:$0xff]
                  %257 = vst [vmem:[%s235 + $0x50] sm:$0xff] %v256
                  %v258 = vld [vmem:[%s234 + $0xb0] sm:$0xff]
                  %259 = vst [vmem:[%s235 + $0x58] sm:$0xff] %v258
                  %v260 = vld [vmem:[%s234 + $0xc0] sm:$0xff]
                  %261 = vst [vmem:[%s235 + $0x60] sm:$0xff] %v260
                  %v262 = vld [vmem:[%s234 + $0xd0] sm:$0xff]
                  %263 = vst [vmem:[%s235 + $0x68] sm:$0xff] %v262
                  %v264 = vld [vmem:[%s234 + $0xe0] sm:$0xff]
                  %265 = vst [vmem:[%s235 + $0x70] sm:$0xff] %v264
                  %v266 = vld [vmem:[%s234 + $0xf0] sm:$0xff]
                  %267 = vst [vmem:[%s235 + $0x78] sm:$0xff] %v266
                  %v268 = vld [vmem:[%s234 + $0x100] sm:$0xff]
                  %269 = vst [vmem:[%s235 + $0x80] sm:$0xff] %v268
                  %v270 = vld [vmem:[%s234 + $0x110] sm:$0xff]
                  %271 = vst [vmem:[%s235 + $0x88] sm:$0xff] %v270
                  %v272 = vld [vmem:[%s234 + $0x120] sm:$0xff]
                  %273 = vst [vmem:[%s235 + $0x90] sm:$0xff] %v272
                  %v274 = vld [vmem:[%s234 + $0x130] sm:$0xff]
                  %275 = vst [vmem:[%s235 + $0x98] sm:$0xff] %v274
                  %v276 = vld [vmem:[%s234 + $0x140] sm:$0xff]
                  %277 = vst [vmem:[%s235 + $0xa0] sm:$0xff] %v276
                  %v278 = vld [vmem:[%s234 + $0x150] sm:$0xff]
                  %279 = vst [vmem:[%s235 + $0xa8] sm:$0xff] %v278
                  %v280 = vld [vmem:[%s234 + $0x160] sm:$0xff]
                  %281 = vst [vmem:[%s235 + $0xb0] sm:$0xff] %v280
                  %v282 = vld [vmem:[%s234 + $0x170] sm:$0xff]
                  %283 = vst [vmem:[%s235 + $0xb8] sm:$0xff] %v282
                  %v284 = vld [vmem:[%s234 + $0x180] sm:$0xff]
                  %285 = vst [vmem:[%s235 + $0xc0] sm:$0xff] %v284
                  %v286 = vld [vmem:[%s234 + $0x190] sm:$0xff]
                  %287 = vst [vmem:[%s235 + $0xc8] sm:$0xff] %v286
                  %v288 = vld [vmem:[%s234 + $0x1a0] sm:$0xff]
                  %289 = vst [vmem:[%s235 + $0xd0] sm:$0xff] %v288
                  %v290 = vld [vmem:[%s234 + $0x1b0] sm:$0xff]
                  %291 = vst [vmem:[%s235 + $0xd8] sm:$0xff] %v290
                  %v292 = vld [vmem:[%s234 + $0x1c0] sm:$0xff]
                  %293 = vst [vmem:[%s235 + $0xe0] sm:$0xff] %v292
                  %v294 = vld [vmem:[%s234 + $0x1d0] sm:$0xff]
                  %295 = vst [vmem:[%s235 + $0xe8] sm:$0xff] %v294
                  %v296 = vld [vmem:[%s234 + $0x1e0] sm:$0xff]
                  %297 = vst [vmem:[%s235 + $0xf0] sm:$0xff] %v296
                  %v298 = vld [vmem:[%s234 + $0x1f0] sm:$0xff]
                  %299 = vst [vmem:[%s235 + $0xf8] sm:$0xff] %v298
                  %v300 = vld [vmem:[%s234 + $0x200] sm:$0xff]
                  %301 = vst [vmem:[%s235 + $0x100] sm:$0xff] %v300
                  %v302 = vld [vmem:[%s234 + $0x210] sm:$0xff]
                  %303 = vst [vmem:[%s235 + $0x108] sm:$0xff] %v302
                  %v304 = vld [vmem:[%s234 + $0x220] sm:$0xff]
                  %305 = vst [vmem:[%s235 + $0x110] sm:$0xff] %v304
                  %v306 = vld [vmem:[%s234 + $0x230] sm:$0xff]
                  %307 = vst [vmem:[%s235 + $0x118] sm:$0xff] %v306
                $region56: #{feature_extraction_forward.44} parent=50 // loop_footer
                  %s233 = sadd.s32 1, %s229
                $region57: #{feature_extraction_forward.44} parent=50 // loop_footer_branch
                  %228 = sbr.rel target = $region53
                $region58: #{feature_extraction_forward.44} parent=50 // loop_exit
                  _
              $region51: #{feature_extraction_forward.44} parent=35 // pred_fallthru
                _
              // Predicated region
              $region59: #{feature_extraction_forward.44} parent=35 // pred_check
                _
              $region60: #{feature_extraction_forward.44} parent=35 // pred_check_branch
                %309 = sbr.rel target = $region62
              $region61: #{feature_extraction_forward.44} parent=35 // pred_region
                _
              $region62: #{feature_extraction_forward.44} parent=35 // pred_fallthru
                _
            $region36: #{feature_extraction_forward.44} parent=31 // pred_fallthru
              _
            // Predicated region
            $region37: #{feature_extraction_forward.44} parent=31 // pred_check
              _
            $region38: #{feature_extraction_forward.44} parent=31 // pred_check_branch
              %143 = sbr.rel target = $region40
            $region39: #{feature_extraction_forward.44} parent=31 // pred_region
              %s145 = ssub.s32 256, 1
              loop: start=0, step=1, limit=1
              $region41: #{feature_extraction_forward.44} parent=39 // loop_pre_header
                _
              $region42: #{feature_extraction_forward.44} parent=39 // loop_header
                %s147 = sphi 0, %s151
                %p148 = scmp.ge.s32.totalorder %s147, 1
                %s152 = sphi %s137, %s137
                %s153 = sphi %s134, %s134
              $region43: #{feature_extraction_forward.44} parent=39 // loop_header_branch
                %150 = sbr.rel (%p148) target = $region47
              $region44: #{feature_extraction_forward.44} parent=39 // loop_body
                %v154 = vld [vmem:[%s152] sm:%s145]
                %155 = vst [vmem:[%s153] sm:%s145] %v154
                %v156 = vld [vmem:[%s152 + $0x10] sm:%s145]
                %157 = vst [vmem:[%s153 + $0x8] sm:%s145] %v156
                %v158 = vld [vmem:[%s152 + $0x20] sm:%s145]
                %159 = vst [vmem:[%s153 + $0x10] sm:%s145] %v158
                %v160 = vld [vmem:[%s152 + $0x30] sm:%s145]
                %161 = vst [vmem:[%s153 + $0x18] sm:%s145] %v160
                %v162 = vld [vmem:[%s152 + $0x40] sm:%s145]
                %163 = vst [vmem:[%s153 + $0x20] sm:%s145] %v162
                %v164 = vld [vmem:[%s152 + $0x50] sm:%s145]
                %165 = vst [vmem:[%s153 + $0x28] sm:%s145] %v164
                %v166 = vld [vmem:[%s152 + $0x60] sm:%s145]
                %167 = vst [vmem:[%s153 + $0x30] sm:%s145] %v166
                %v168 = vld [vmem:[%s152 + $0x70] sm:%s145]
                %169 = vst [vmem:[%s153 + $0x38] sm:%s145] %v168
                %v170 = vld [vmem:[%s152 + $0x80] sm:%s145]
                %171 = vst [vmem:[%s153 + $0x40] sm:%s145] %v170
                %v172 = vld [vmem:[%s152 + $0x90] sm:%s145]
                %173 = vst [vmem:[%s153 + $0x48] sm:%s145] %v172
                %v174 = vld [vmem:[%s152 + $0xa0] sm:%s145]
                %175 = vst [vmem:[%s153 + $0x50] sm:%s145] %v174
                %v176 = vld [vmem:[%s152 + $0xb0] sm:%s145]
                %177 = vst [vmem:[%s153 + $0x58] sm:%s145] %v176
                %v178 = vld [vmem:[%s152 + $0xc0] sm:%s145]
                %179 = vst [vmem:[%s153 + $0x60] sm:%s145] %v178
                %v180 = vld [vmem:[%s152 + $0xd0] sm:%s145]
                %181 = vst [vmem:[%s153 + $0x68] sm:%s145] %v180
                %v182 = vld [vmem:[%s152 + $0xe0] sm:%s145]
                %183 = vst [vmem:[%s153 + $0x70] sm:%s145] %v182
                %v184 = vld [vmem:[%s152 + $0xf0] sm:%s145]
                %185 = vst [vmem:[%s153 + $0x78] sm:%s145] %v184
                %v186 = vld [vmem:[%s152 + $0x100] sm:%s145]
                %187 = vst [vmem:[%s153 + $0x80] sm:%s145] %v186
                %v188 = vld [vmem:[%s152 + $0x110] sm:%s145]
                %189 = vst [vmem:[%s153 + $0x88] sm:%s145] %v188
                %v190 = vld [vmem:[%s152 + $0x120] sm:%s145]
                %191 = vst [vmem:[%s153 + $0x90] sm:%s145] %v190
                %v192 = vld [vmem:[%s152 + $0x130] sm:%s145]
                %193 = vst [vmem:[%s153 + $0x98] sm:%s145] %v192
                %v194 = vld [vmem:[%s152 + $0x140] sm:%s145]
                %195 = vst [vmem:[%s153 + $0xa0] sm:%s145] %v194
                %v196 = vld [vmem:[%s152 + $0x150] sm:%s145]
                %197 = vst [vmem:[%s153 + $0xa8] sm:%s145] %v196
                %v198 = vld [vmem:[%s152 + $0x160] sm:%s145]
                %199 = vst [vmem:[%s153 + $0xb0] sm:%s145] %v198
                %v200 = vld [vmem:[%s152 + $0x170] sm:%s145]
                %201 = vst [vmem:[%s153 + $0xb8] sm:%s145] %v200
                %v202 = vld [vmem:[%s152 + $0x180] sm:%s145]
                %203 = vst [vmem:[%s153 + $0xc0] sm:%s145] %v202
                %v204 = vld [vmem:[%s152 + $0x190] sm:%s145]
                %205 = vst [vmem:[%s153 + $0xc8] sm:%s145] %v204
                %v206 = vld [vmem:[%s152 + $0x1a0] sm:%s145]
                %207 = vst [vmem:[%s153 + $0xd0] sm:%s145] %v206
                %v208 = vld [vmem:[%s152 + $0x1b0] sm:%s145]
                %209 = vst [vmem:[%s153 + $0xd8] sm:%s145] %v208
                %v210 = vld [vmem:[%s152 + $0x1c0] sm:%s145]
                %211 = vst [vmem:[%s153 + $0xe0] sm:%s145] %v210
                %v212 = vld [vmem:[%s152 + $0x1d0] sm:%s145]
                %213 = vst [vmem:[%s153 + $0xe8] sm:%s145] %v212
                %v214 = vld [vmem:[%s152 + $0x1e0] sm:%s145]
                %215 = vst [vmem:[%s153 + $0xf0] sm:%s145] %v214
                %v216 = vld [vmem:[%s152 + $0x1f0] sm:%s145]
                %217 = vst [vmem:[%s153 + $0xf8] sm:%s145] %v216
                %v218 = vld [vmem:[%s152 + $0x200] sm:%s145]
                %219 = vst [vmem:[%s153 + $0x100] sm:%s145] %v218
                %v220 = vld [vmem:[%s152 + $0x210] sm:%s145]
                %221 = vst [vmem:[%s153 + $0x108] sm:%s145] %v220
                %v222 = vld [vmem:[%s152 + $0x220] sm:%s145]
                %223 = vst [vmem:[%s153 + $0x110] sm:%s145] %v222
                %v224 = vld [vmem:[%s152 + $0x230] sm:%s145]
                %225 = vst [vmem:[%s153 + $0x118] sm:%s145] %v224
              $region45: #{feature_extraction_forward.44} parent=39 // loop_footer
                %s151 = sadd.s32 1, %s147
              $region46: #{feature_extraction_forward.44} parent=39 // loop_footer_branch
                %146 = sbr.rel target = $region42
              $region47: #{feature_extraction_forward.44} parent=39 // loop_exit
                _
            $region40: #{feature_extraction_forward.44} parent=31 // pred_fallthru
              _
          $region32: #{feature_extraction_forward.44} parent=27 // pred_fallthru
            _
          %310 = vnop
        $region28: #{feature_extraction_forward.44} parent=23 // pred_fallthru
          _
      $region24: #{feature_extraction_forward.44} parent=5 // pred_fallthru
        _
      %p311 = scmp.le.s32.totalorder 1, %s9
      %p312 = scmp.lt.s32.totalorder %s9, 3
      %p313 = pnand %p311, %p312
      %p314 = pneg %p313
      // Predicated region
      $region63: #{feature_extraction_forward.44} parent=5 // pred_check
        _
      $region64: #{feature_extraction_forward.44} parent=5 // pred_check_branch
        %316 = sbr.rel (%p313) target = $region66
      $region65: #{feature_extraction_forward.44} parent=5 // pred_region
        %s317 = ssub.s32 %s9, 1
        %s318 = sand.u32 %s43, 1
        %s319 = sand.u32 %s43, 1
        %s320 = smul.addr %s319, 288
        %s321 = scalar_lea.vmem [#allocation2], %s320
        // Predicated region
        $region67: #{feature_extraction_forward.44} parent=65 // pred_check
          %p322 = pneg %p56
        $region68: #{feature_extraction_forward.44} parent=65 // pred_check_branch
          %324 = sbr.rel (%p322) target = $region70
        $region69: #{feature_extraction_forward.44} parent=65 // pred_region
          _
        $region70: #{feature_extraction_forward.44} parent=65 // pred_fallthru
          _
        %p325 = pneg %p30
        %p326 = pneg %p27
        %s327 = sand.u32 %s43, 1
        %s328 = sand.u32 %s43, 1
        %s329 = smul.addr %s328, 288
        %s330 = scalar_lea.vmem [#allocation2], %s329
        %p331 = pneg %p56
        %p332 = pneg %p53
        %p333 = pneg %p77
        %p334 = pneg %p74
        %p335 = pneg %p103
        %p336 = pneg %p100
        %s337 = sand.u32 %s90, 1
        %s338 = sand.u32 %s90, 1
        %s339 = smul.addr %s338, 64
        %s340 = scalar_lea.vmem [#allocation3], %s339
        %s341 = smul.u32 2, %s14
        %s342 = smul.u32 2, %s14
        %v344 = vld [vmem:[%s0] sm:$0xff]
        %v345 = vld [vmem:[%s0 + $0x8] sm:$0xf]
        %v346 = vld [vmem:[%s0 + $0xc] sm:$0xff]
        %v347 = vld [vmem:[%s0 + $0x14] sm:$0xf]
        %v348 = vld [vmem:[%s0 + $0x18] sm:$0xff]
        %v349 = vld [vmem:[%s0 + $0x20] sm:$0xf]
        %v350 = vld [vmem:[%s0 + $0x24] sm:$0xff]
        %v351 = vld [vmem:[%s0 + $0x2c] sm:$0xf]
        %v352 = vld [vmem:[%s321] sm:$0xff]
        %v353 = vld [vmem:[%s321 + $0x8] sm:$0xff]
        %v354 = vld [vmem:[%s321 + $0x10] sm:$0xff]
        %v355 = vld [vmem:[%s321 + $0x18] sm:$0xff]
        %v356 = vld [vmem:[%s321 + $0x20] sm:$0xff]
        %v357 = vld [vmem:[%s321 + $0x28] sm:$0xff]
        %v358 = vld [vmem:[%s321 + $0x30] sm:$0xff]
        %v359 = vld [vmem:[%s321 + $0x38] sm:$0xff]
        %v360 = vld [vmem:[%s321 + $0x40] sm:$0xff]
        %v361 = vld [vmem:[%s321 + $0x48] sm:$0xff]
        %v362 = vld [vmem:[%s321 + $0x50] sm:$0xff]
        %v363 = vld [vmem:[%s321 + $0x58] sm:$0xff]
        %v364 = vld [vmem:[%s321 + $0x60] sm:$0xff]
        %v365 = vld [vmem:[%s321 + $0x68] sm:$0xff]
        %v366 = vld [vmem:[%s321 + $0x70] sm:$0xff]
        %v367 = vld [vmem:[%s321 + $0x78] sm:$0xff]
        %v368 = vld [vmem:[%s321 + $0x80] sm:$0xff]
        %v369 = vld [vmem:[%s321 + $0x88] sm:$0xff]
        %v370 = vld [vmem:[%s321 + $0x90] sm:$0xff]
        %v371 = vld [vmem:[%s321 + $0x98] sm:$0xff]
        %v372 = vld [vmem:[%s321 + $0xa0] sm:$0xff]
        %v373 = vld [vmem:[%s321 + $0xa8] sm:$0xff]
        %v374 = vld [vmem:[%s321 + $0xb0] sm:$0xff]
        %v375 = vld [vmem:[%s321 + $0xb8] sm:$0xff]
        %v376 = vld [vmem:[%s321 + $0xc0] sm:$0xff]
        %v377 = vld [vmem:[%s321 + $0xc8] sm:$0xff]
        %v378 = vld [vmem:[%s321 + $0xd0] sm:$0xff]
        %v379 = vld [vmem:[%s321 + $0xd8] sm:$0xff]
        %v380 = vld [vmem:[%s321 + $0xe0] sm:$0xff]
        %v381 = vld [vmem:[%s321 + $0xe8] sm:$0xff]
        %v382 = vld [vmem:[%s321 + $0xf0] sm:$0xff]
        %v383 = vld [vmem:[%s321 + $0xf8] sm:$0xff]
        %v384 = vld [vmem:[%s321 + $0x100] sm:$0xff]
        %v385 = vld [vmem:[%s321 + $0x108] sm:$0xff]
        %v386 = vld [vmem:[%s321 + $0x110] sm:$0xff]
        %v387 = vld [vmem:[%s321 + $0x118] sm:$0xff]
        %v388 = vld [vmem:[%s2] sm:$0xff]
        %v389 = vld [vmem:[%s2 + $0x8] sm:$0xff]
        %v390 = vld [vmem:[%s2 + $0x10] sm:$0xff]
        %v391 = vld [vmem:[%s2 + $0x18] sm:$0xff]
        %393 = vset.pattern.permute.xlu0 0
        %394 = vperm.xlu0 %393, %v388
        %v395 = vpop.permute.xlu0 %394
        %398 = vset.pattern.permute.xlu0 0
        %399 = vperm.xlu0 %398, %v389
        %v400 = vpop.permute.xlu0 %399
        %403 = vset.pattern.permute.xlu0 0
        %404 = vperm.xlu0 %403, %v390
        %v405 = vpop.permute.xlu0 %404
        %408 = vset.pattern.permute.xlu0 0
        %409 = vperm.xlu0 %408, %v391
        %v410 = vpop.permute.xlu0 %409
        %v420 = vunpack.c.l.b16 %v344
        %v421 = vunpack.c.h.b16 %v344
        %v422 = vunpack.c.l.b16 %v345
        %v423 = vunpack.c.l.b16 %v346
        %v424 = vunpack.c.h.b16 %v346
        %v425 = vunpack.c.l.b16 %v347
        %v426 = vunpack.c.l.b16 %v348
        %v427 = vunpack.c.h.b16 %v348
        %v428 = vunpack.c.l.b16 %v349
        %v429 = vunpack.c.l.b16 %v350
        %v430 = vunpack.c.h.b16 %v350
        %v431 = vunpack.c.l.b16 %v351
        %v432 = vpack.c.b16 %v423, %v420
        %v433 = vpack.c.b16 %v424, %v421
        %v434 = vpack.c.b16 %v425, %v422
        %v435 = vpack.c.b16 %v429, %v426
        %v436 = vpack.c.b16 %v430, %v427
        %v437 = vpack.c.b16 %v431, %v428
        %v478 = vunpack.c.l.b16 %v352
        %v479 = vunpack.c.h.b16 %v352
        %v480 = vunpack.c.l.b16 %v353
        %v481 = vunpack.c.h.b16 %v353
        %v482 = vunpack.c.l.b16 %v354
        %v483 = vunpack.c.h.b16 %v354
        %v484 = vunpack.c.l.b16 %v355
        %v485 = vunpack.c.h.b16 %v355
        %v486 = vunpack.c.l.b16 %v356
        %v487 = vunpack.c.h.b16 %v356
        %v488 = vunpack.c.l.b16 %v357
        %v489 = vunpack.c.h.b16 %v357
        %v490 = vunpack.c.l.b16 %v358
        %v491 = vunpack.c.h.b16 %v358
        %v492 = vunpack.c.l.b16 %v359
        %v493 = vunpack.c.h.b16 %v359
        %v494 = vunpack.c.l.b16 %v360
        %v495 = vunpack.c.h.b16 %v360
        %v496 = vunpack.c.l.b16 %v361
        %v497 = vunpack.c.h.b16 %v361
        %v498 = vunpack.c.l.b16 %v362
        %v499 = vunpack.c.h.b16 %v362
        %v500 = vunpack.c.l.b16 %v363
        %v501 = vunpack.c.h.b16 %v363
        %v502 = vunpack.c.l.b16 %v364
        %v503 = vunpack.c.h.b16 %v364
        %v504 = vunpack.c.l.b16 %v365
        %v505 = vunpack.c.h.b16 %v365
        %v506 = vunpack.c.l.b16 %v366
        %v507 = vunpack.c.h.b16 %v366
        %v508 = vunpack.c.l.b16 %v367
        %v509 = vunpack.c.h.b16 %v367
        %v510 = vunpack.c.l.b16 %v368
        %v511 = vunpack.c.h.b16 %v368
        %v512 = vunpack.c.l.b16 %v369
        %v513 = vunpack.c.h.b16 %v369
        %v514 = vunpack.c.l.b16 %v370
        %v515 = vunpack.c.h.b16 %v370
        %v516 = vunpack.c.l.b16 %v371
        %v517 = vunpack.c.h.b16 %v371
        %v518 = vunpack.c.l.b16 %v372
        %v519 = vunpack.c.h.b16 %v372
        %v520 = vunpack.c.l.b16 %v373
        %v521 = vunpack.c.h.b16 %v373
        %v522 = vunpack.c.l.b16 %v374
        %v523 = vunpack.c.h.b16 %v374
        %v524 = vunpack.c.l.b16 %v375
        %v525 = vunpack.c.h.b16 %v375
        %v526 = vunpack.c.l.b16 %v376
        %v527 = vunpack.c.h.b16 %v376
        %v528 = vunpack.c.l.b16 %v377
        %v529 = vunpack.c.h.b16 %v377
        %v530 = vunpack.c.l.b16 %v378
        %v531 = vunpack.c.h.b16 %v378
        %v532 = vunpack.c.l.b16 %v379
        %v533 = vunpack.c.h.b16 %v379
        %v534 = vunpack.c.l.b16 %v380
        %v535 = vunpack.c.h.b16 %v380
        %v536 = vunpack.c.l.b16 %v381
        %v537 = vunpack.c.h.b16 %v381
        %v538 = vunpack.c.l.b16 %v382
        %v539 = vunpack.c.h.b16 %v382
        %v540 = vunpack.c.l.b16 %v383
        %v541 = vunpack.c.h.b16 %v383
        %v542 = vunpack.c.l.b16 %v384
        %v543 = vunpack.c.h.b16 %v384
        %v544 = vunpack.c.l.b16 %v385
        %v545 = vunpack.c.h.b16 %v385
        %v546 = vunpack.c.l.b16 %v386
        %v547 = vunpack.c.h.b16 %v386
        %v548 = vunpack.c.l.b16 %v387
        %v549 = vunpack.c.h.b16 %v387
        %v550 = vpack.c.b16 %v480, %v478
        %v551 = vpack.c.b16 %v481, %v479
        %v552 = vpack.c.b16 %v484, %v482
        %v553 = vpack.c.b16 %v485, %v483
        %v554 = vpack.c.b16 %v488, %v486
        %v555 = vpack.c.b16 %v489, %v487
        %v556 = vpack.c.b16 %v492, %v490
        %v557 = vpack.c.b16 %v493, %v491
        %v558 = vpack.c.b16 %v496, %v494
        %v559 = vpack.c.b16 %v497, %v495
        %v560 = vpack.c.b16 %v500, %v498
        %v561 = vpack.c.b16 %v501, %v499
        %v562 = vpack.c.b16 %v504, %v502
        %v563 = vpack.c.b16 %v505, %v503
        %v564 = vpack.c.b16 %v508, %v506
        %v565 = vpack.c.b16 %v509, %v507
        %v566 = vpack.c.b16 %v512, %v510
        %v567 = vpack.c.b16 %v513, %v511
        %v568 = vpack.c.b16 %v516, %v514
        %v569 = vpack.c.b16 %v517, %v515
        %v570 = vpack.c.b16 %v520, %v518
        %v571 = vpack.c.b16 %v521, %v519
        %v572 = vpack.c.b16 %v524, %v522
        %v573 = vpack.c.b16 %v525, %v523
        %v574 = vpack.c.b16 %v528, %v526
        %v575 = vpack.c.b16 %v529, %v527
        %v576 = vpack.c.b16 %v532, %v530
        %v577 = vpack.c.b16 %v533, %v531
        %v578 = vpack.c.b16 %v536, %v534
        %v579 = vpack.c.b16 %v537, %v535
        %v580 = vpack.c.b16 %v540, %v538
        %v581 = vpack.c.b16 %v541, %v539
        %v582 = vpack.c.b16 %v544, %v542
        %v583 = vpack.c.b16 %v545, %v543
        %v584 = vpack.c.b16 %v548, %v546
        %v585 = vpack.c.b16 %v549, %v547
        %vm622 = vcmask 261120
        %v624 = vsel %vm622, %v434, 0
        %v627 = vsel %vm622, %v437, 0
        %629 = vmatpush.bf16.msra.mxu0 %v564
        %630 = vmatpush.bf16.msra.mxu0 %v562
        %631 = vmatpush.bf16.msra.mxu0 %v560
        %632 = vmatpush.bf16.msra.mxu0 %v558
        %633 = vmatpush.bf16.msra.mxu0 %v556
        %634 = vmatpush.bf16.msra.mxu0 %v554
        %635 = vmatpush.bf16.msra.mxu0 %v552
        %636 = vmatpush.bf16.msra.mxu0 %v550
        %637 = vmatmul.bf16.gmra.mxu0 %v432
        %v638 = vpop.f32.mrf.mxu0
        %v639 = vadd.f32 %v395, %v638
        %v640 = vpop.f32.mrf.mxu0
        %v641 = vadd.f32 %v400, %v640
        %642 = vmatmul.bf16.gmra.mxu0 %v435
        %v643 = vpop.f32.mrf.mxu0
        %v644 = vadd.f32 %v405, %v643
        %v645 = vpop.f32.mrf.mxu0
        %v646 = vadd.f32 %v410, %v645
        %647 = vdwg.mxu0
        %648 = vmatpush.bf16.msra.mxu0 %v580
        %649 = vmatpush.bf16.msra.mxu0 %v578
        %650 = vmatpush.bf16.msra.mxu0 %v576
        %651 = vmatpush.bf16.msra.mxu0 %v574
        %652 = vmatpush.bf16.msra.mxu0 %v572
        %653 = vmatpush.bf16.msra.mxu0 %v570
        %654 = vmatpush.bf16.msra.mxu0 %v568
        %655 = vmatpush.bf16.msra.mxu0 %v566
        %656 = vmatmul.bf16.gmra.mxu0 %v433
        %v657 = vpop.f32.mrf.mxu0
        %v658 = vadd.f32 %v639, %v657
        %v659 = vpop.f32.mrf.mxu0
        %v660 = vadd.f32 %v641, %v659
        %661 = vmatmul.bf16.gmra.mxu0 %v436
        %v662 = vpop.f32.mrf.mxu0
        %v663 = vadd.f32 %v644, %v662
        %v664 = vpop.f32.mrf.mxu0
        %v665 = vadd.f32 %v646, %v664
        %666 = vdwg.mxu0
        %667 = vmatpush.bf16.msra.mxu0 0
        %668 = vmatpush.bf16.msra.mxu0 0
        %669 = vmatpush.bf16.msra.mxu0 0
        %670 = vmatpush.bf16.msra.mxu0 0
        %671 = vmatpush.bf16.msra.mxu0 0
        %672 = vmatpush.bf16.msra.mxu0 0
        %673 = vmatpush.bf16.msra.mxu0 %v584
        %674 = vmatpush.bf16.msra.mxu0 %v582
        %675 = vmatmul.bf16.gmra.mxu0 %v624
        %v676 = vpop.f32.mrf.mxu0
        %v677 = vadd.f32 %v658, %v676
        %v678 = vpop.f32.mrf.mxu0
        %v679 = vadd.f32 %v660, %v678
        %680 = vmatmul.bf16.gmra.mxu0 %v627
        %v681 = vpop.f32.mrf.mxu0
        %v682 = vadd.f32 %v663, %v681
        %v683 = vpop.f32.mrf.mxu0
        %v684 = vadd.f32 %v665, %v683
        %685 = vdwg.mxu0
        %686 = vmatpush.bf16.msra.mxu0 %v565
        %687 = vmatpush.bf16.msra.mxu0 %v563
        %688 = vmatpush.bf16.msra.mxu0 %v561
        %689 = vmatpush.bf16.msra.mxu0 %v559
        %690 = vmatpush.bf16.msra.mxu0 %v557
        %691 = vmatpush.bf16.msra.mxu0 %v555
        %692 = vmatpush.bf16.msra.mxu0 %v553
        %693 = vmatpush.bf16.msra.mxu0 %v551
        %694 = vmatmul.bf16.gmra.mxu0 %v432
        %v695 = vpop.f32.mrf.mxu0
        %v696 = vadd.f32 %v395, %v695
        %v697 = vpop.f32.mrf.mxu0
        %v698 = vadd.f32 %v400, %v697
        %699 = vmatmul.bf16.gmra.mxu0 %v435
        %v700 = vpop.f32.mrf.mxu0
        %v701 = vadd.f32 %v405, %v700
        %v702 = vpop.f32.mrf.mxu0
        %v703 = vadd.f32 %v410, %v702
        %704 = vdwg.mxu0
        %705 = vmatpush.bf16.msra.mxu0 %v581
        %706 = vmatpush.bf16.msra.mxu0 %v579
        %707 = vmatpush.bf16.msra.mxu0 %v577
        %708 = vmatpush.bf16.msra.mxu0 %v575
        %709 = vmatpush.bf16.msra.mxu0 %v573
        %710 = vmatpush.bf16.msra.mxu0 %v571
        %711 = vmatpush.bf16.msra.mxu0 %v569
        %712 = vmatpush.bf16.msra.mxu0 %v567
        %713 = vmatmul.bf16.gmra.mxu0 %v433
        %v714 = vpop.f32.mrf.mxu0
        %v715 = vadd.f32 %v696, %v714
        %v716 = vpop.f32.mrf.mxu0
        %v717 = vadd.f32 %v698, %v716
        %718 = vmatmul.bf16.gmra.mxu0 %v436
        %v719 = vpop.f32.mrf.mxu0
        %v720 = vadd.f32 %v701, %v719
        %v721 = vpop.f32.mrf.mxu0
        %v722 = vadd.f32 %v703, %v721
        %723 = vdwg.mxu0
        %724 = vmatpush.bf16.msra.mxu0 0
        %725 = vmatpush.bf16.msra.mxu0 0
        %726 = vmatpush.bf16.msra.mxu0 0
        %727 = vmatpush.bf16.msra.mxu0 0
        %728 = vmatpush.bf16.msra.mxu0 0
        %729 = vmatpush.bf16.msra.mxu0 0
        %730 = vmatpush.bf16.msra.mxu0 %v585
        %731 = vmatpush.bf16.msra.mxu0 %v583
        %732 = vmatmul.bf16.gmra.mxu0 %v624
        %v733 = vpop.f32.mrf.mxu0
        %v734 = vadd.f32 %v715, %v733
        %v735 = vpop.f32.mrf.mxu0
        %v736 = vadd.f32 %v717, %v735
        %737 = vmatmul.bf16.gmra.mxu0 %v627
        %v738 = vpop.f32.mrf.mxu0
        %v739 = vadd.f32 %v720, %v738
        %v740 = vpop.f32.mrf.mxu0
        %v741 = vadd.f32 %v722, %v740
        %742 = vdwg.mxu0
        %v743 = vmax.f32 %v677, 0.0
        %v744 = vmax.f32 %v734, 0.0
        %v745 = vmax.f32 %v679, 0.0
        %v746 = vmax.f32 %v736, 0.0
        %v747 = vmax.f32 %v682, 0.0
        %v748 = vmax.f32 %v739, 0.0
        %v749 = vmax.f32 %v684, 0.0
        %v750 = vmax.f32 %v741, 0.0
        %751 = vst [vmem:[%s340] sm:$0xff] %v743
        %752 = vst [vmem:[%s340 + $0x8] sm:$0xff] %v744
        %753 = vst [vmem:[%s340 + $0x10] sm:$0xff] %v745
        %754 = vst [vmem:[%s340 + $0x18] sm:$0xff] %v746
        %755 = vst [vmem:[%s340 + $0x20] sm:$0xff] %v747
        %756 = vst [vmem:[%s340 + $0x28] sm:$0xff] %v748
        %757 = vst [vmem:[%s340 + $0x30] sm:$0xff] %v749
        %758 = vst [vmem:[%s340 + $0x38] sm:$0xff] %v750
        %s759 = sand.u32 %s90, 1
        %s760 = sand.u32 %s90, 1
        %s761 = smul.addr %s760, 64
        %s762 = scalar_lea.vmem [#allocation3], %s761
        // Predicated region
        $region71: #{feature_extraction_forward.44} parent=65 // pred_check
          %p763 = pneg %p100
        $region72: #{feature_extraction_forward.44} parent=65 // pred_check_branch
          %765 = sbr.rel (%p763) target = $region74
        $region73: #{feature_extraction_forward.44} parent=65 // pred_region
          %s766 = smul.u32 2, %s14
          %s767 = smul.addr %s766, 8
          %s768 = scalar_lea.vmem %s3, %s767
          // Predicated region
          $region75: #{feature_extraction_forward.44} parent=73 // pred_check
            _
          $region76: #{feature_extraction_forward.44} parent=73 // pred_check_branch
            %770 = sbr.rel (0) target = $region78
          $region77: #{feature_extraction_forward.44} parent=73 // pred_region
            // Predicated region
            $region79: #{feature_extraction_forward.44} parent=77 // pred_check
              _
            $region80: #{feature_extraction_forward.44} parent=77 // pred_check_branch
              %772 = sbr.rel (0) target = $region82
            $region81: #{feature_extraction_forward.44} parent=77 // pred_region
              loop: start=0, step=1, limit=1
              $region83: #{feature_extraction_forward.44} parent=81 // loop_pre_header
                _
              $region84: #{feature_extraction_forward.44} parent=81 // loop_header
                %s774 = sphi 0, %s778
                %p775 = scmp.ge.s32.totalorder %s774, 1
                %s779 = sphi %s762, %s762
                %s780 = sphi %s768, %s768
              $region85: #{feature_extraction_forward.44} parent=81 // loop_header_branch
                %777 = sbr.rel (%p775) target = $region89
              $region86: #{feature_extraction_forward.44} parent=81 // loop_body
                %v781 = vld [vmem:[%s779] sm:$0xff]
                %782 = vst [vmem:[%s780] sm:$0xff] %v781
                %v783 = vld [vmem:[%s779 + $0x8] sm:$0xff]
                %784 = vst [vmem:[%s780 + $0x8] sm:$0xff] %v783
                %v785 = vld [vmem:[%s779 + $0x10] sm:$0xff]
                %786 = vst [vmem:[%s780 + $0x20] sm:$0xff] %v785
                %v787 = vld [vmem:[%s779 + $0x18] sm:$0xff]
                %788 = vst [vmem:[%s780 + $0x28] sm:$0xff] %v787
                %v789 = vld [vmem:[%s779 + $0x20] sm:$0xff]
                %790 = vst [vmem:[%s780 + $0x40] sm:$0xff] %v789
                %v791 = vld [vmem:[%s779 + $0x28] sm:$0xff]
                %792 = vst [vmem:[%s780 + $0x48] sm:$0xff] %v791
                %v793 = vld [vmem:[%s779 + $0x30] sm:$0xff]
                %794 = vst [vmem:[%s780 + $0x60] sm:$0xff] %v793
                %v795 = vld [vmem:[%s779 + $0x38] sm:$0xff]
                %796 = vst [vmem:[%s780 + $0x68] sm:$0xff] %v795
              $region87: #{feature_extraction_forward.44} parent=81 // loop_footer
                %s778 = sadd.s32 1, %s774
              $region88: #{feature_extraction_forward.44} parent=81 // loop_footer_branch
                %773 = sbr.rel target = $region84
              $region89: #{feature_extraction_forward.44} parent=81 // loop_exit
                _
            $region82: #{feature_extraction_forward.44} parent=77 // pred_fallthru
              _
            // Predicated region
            $region90: #{feature_extraction_forward.44} parent=77 // pred_check
              _
            $region91: #{feature_extraction_forward.44} parent=77 // pred_check_branch
              %798 = sbr.rel target = $region93
            $region92: #{feature_extraction_forward.44} parent=77 // pred_region
              _
            $region93: #{feature_extraction_forward.44} parent=77 // pred_fallthru
              _
          $region78: #{feature_extraction_forward.44} parent=73 // pred_fallthru
            _
          %799 = vnop
        $region74: #{feature_extraction_forward.44} parent=65 // pred_fallthru
          _
      $region66: #{feature_extraction_forward.44} parent=5 // pred_fallthru
        _
      %p800 = scmp.le.s32.totalorder 2, %s9
      // Predicated region
      $region94: #{feature_extraction_forward.44} parent=5 // pred_check
        %p801 = pneg %p800
      $region95: #{feature_extraction_forward.44} parent=5 // pred_check_branch
        %803 = sbr.rel (%p801) target = $region97
      $region96: #{feature_extraction_forward.44} parent=5 // pred_region
        %s804 = ssub.s32 %s9, 2
        // Predicated region
        $region98: #{feature_extraction_forward.44} parent=96 // pred_check
          %p805 = pneg %p106
        $region99: #{feature_extraction_forward.44} parent=96 // pred_check_branch
          %807 = sbr.rel (%p805) target = $region101
        $region100: #{feature_extraction_forward.44} parent=96 // pred_region
          %s808 = sand.u32 %s91, 1
          %s809 = sand.u32 %s91, 1
          %s810 = smul.addr %s809, 64
          %s811 = scalar_lea.vmem [#allocation3], %s810
        $region101: #{feature_extraction_forward.44} parent=96 // pred_fallthru
          _
      $region97: #{feature_extraction_forward.44} parent=5 // pred_fallthru
        _
    $region6: #{feature_extraction_forward.44} parent=1 // loop_footer
      %s13 = sadd.s32 1, %s9
    $region7: #{feature_extraction_forward.44} parent=1 // loop_footer_branch
      %8 = sbr.rel target = $region3
    $region8: #{feature_extraction_forward.44} parent=1 // loop_exit
      _

// kernel: feature_extraction_forward.46
$region0: #{feature_extraction_forward.46}
  #allocation0 [shape = 'u32[]', space=smem, size = 0x4, offset = 0x4, fixed_abs, tag = 'smem constant byte address 0x4 - core index']
  #allocation1 [shape = 'u32[72,128]{1,0:T(1,128)}', space=vmem, size = 0x9000, scoped, tag = 'internal scratch']
  %s0 = inlined_call_operand.vmem [shape: bf16[32,288], index: 0, kind: input, shape index: {}]
  %s1 = inlined_call_operand.vmem [shape: bf16[288,128], index: 1, kind: input, shape index: {}]
  %s2 = inlined_call_operand.vmem [shape: f32[32,1], index: 2, kind: input, shape index: {}]
  %s3 = inlined_call_operand.vmem [shape: f32[32,128], index: 3, kind: output, shape index: {}]
  %s4 = sld [smem:[#allocation0]]
  $region22: #{feature_extraction_forward.46} parent=0
    _
  %s6 = ssub.s32 1, %s4
  %s7 = scalar_select 0, %s6, %s4
  // Predicated region
  $region2: #{feature_extraction_forward.46} parent=0 // pred_check
    _
  $region3: #{feature_extraction_forward.46} parent=0 // pred_check_branch
    %9 = sbr.rel (0) target = $region5
  $region4: #{feature_extraction_forward.46} parent=0 // pred_region
    _
  $region5: #{feature_extraction_forward.46} parent=0 // pred_fallthru
    _
  // Predicated region
  $region6: #{feature_extraction_forward.46} parent=0 // pred_check
    _
  $region7: #{feature_extraction_forward.46} parent=0 // pred_check_branch
    %11 = sbr.rel (0) target = $region9
  $region8: #{feature_extraction_forward.46} parent=0 // pred_region
    _
  $region9: #{feature_extraction_forward.46} parent=0 // pred_fallthru
    _
  // Predicated region
  $region10: #{feature_extraction_forward.46} parent=0 // pred_check
    _
  $region11: #{feature_extraction_forward.46} parent=0 // pred_check_branch
    %13 = sbr.rel (0) target = $region13
  $region12: #{feature_extraction_forward.46} parent=0 // pred_region
    _
  $region13: #{feature_extraction_forward.46} parent=0 // pred_fallthru
    _
  %v15 = vld [vmem:[%s0] sm:$0xff]
  %v16 = vld [vmem:[%s0 + $0x8] sm:$0xf]
  %v17 = vld [vmem:[%s0 + $0xc] sm:$0xff]
  %v18 = vld [vmem:[%s0 + $0x14] sm:$0xf]
  %v19 = vld [vmem:[%s0 + $0x18] sm:$0xff]
  %v20 = vld [vmem:[%s0 + $0x20] sm:$0xf]
  %v21 = vld [vmem:[%s0 + $0x24] sm:$0xff]
  %v22 = vld [vmem:[%s0 + $0x2c] sm:$0xf]
  %v23 = vld [vmem:[%s1] sm:$0xf]
  %v24 = vld [vmem:[%s1 + $0x4] sm:$0xf]
  %v25 = vld [vmem:[%s1 + $0x8] sm:$0xf]
  %v26 = vld [vmem:[%s1 + $0xc] sm:$0xf]
  %v27 = vld [vmem:[%s1 + $0x10] sm:$0xf]
  %v28 = vld [vmem:[%s1 + $0x14] sm:$0xf]
  %v29 = vld [vmem:[%s1 + $0x18] sm:$0xf]
  %v30 = vld [vmem:[%s1 + $0x1c] sm:$0xf]
  %v31 = vld [vmem:[%s1 + $0x20] sm:$0xf]
  %v32 = vld [vmem:[%s1 + $0x24] sm:$0xf]
  %v33 = vld [vmem:[%s1 + $0x28] sm:$0xf]
  %v34 = vld [vmem:[%s1 + $0x2c] sm:$0xf]
  %v35 = vld [vmem:[%s1 + $0x30] sm:$0xf]
  %v36 = vld [vmem:[%s1 + $0x34] sm:$0xf]
  %v37 = vld [vmem:[%s1 + $0x38] sm:$0xf]
  %v38 = vld [vmem:[%s1 + $0x3c] sm:$0xf]
  %v39 = vld [vmem:[%s1 + $0x40] sm:$0xf]
  %v40 = vld [vmem:[%s1 + $0x44] sm:$0xf]
  %v41 = vld [vmem:[%s1 + $0x48] sm:$0xf]
  %v42 = vld [vmem:[%s1 + $0x4c] sm:$0xf]
  %v43 = vld [vmem:[%s1 + $0x50] sm:$0xf]
  %v44 = vld [vmem:[%s1 + $0x54] sm:$0xf]
  %v45 = vld [vmem:[%s1 + $0x58] sm:$0xf]
  %v46 = vld [vmem:[%s1 + $0x5c] sm:$0xf]
  %v47 = vld [vmem:[%s1 + $0x60] sm:$0xf]
  %v48 = vld [vmem:[%s1 + $0x64] sm:$0xf]
  %v49 = vld [vmem:[%s1 + $0x68] sm:$0xf]
  %v50 = vld [vmem:[%s1 + $0x6c] sm:$0xf]
  %v51 = vld [vmem:[%s1 + $0x70] sm:$0xf]
  %v52 = vld [vmem:[%s1 + $0x74] sm:$0xf]
  %v53 = vld [vmem:[%s1 + $0x78] sm:$0xf]
  %v54 = vld [vmem:[%s1 + $0x7c] sm:$0xf]
  %v55 = vld [vmem:[%s1 + $0x80] sm:$0xf]
  %v56 = vld [vmem:[%s1 + $0x84] sm:$0xf]
  %v57 = vld [vmem:[%s1 + $0x88] sm:$0xf]
  %v58 = vld [vmem:[%s1 + $0x8c] sm:$0xf]
  %v59 = vld [vmem:[%s2] sm:$0xff]
  %v60 = vld [vmem:[%s2 + $0x8] sm:$0xff]
  %v61 = vld [vmem:[%s2 + $0x10] sm:$0xff]
  %v62 = vld [vmem:[%s2 + $0x18] sm:$0xff]
  %64 = vset.pattern.permute.xlu0 0
  %65 = vperm.xlu0 %64, %v59
  %v66 = vpop.permute.xlu0 %65
  %69 = vset.pattern.permute.xlu0 0
  %70 = vperm.xlu0 %69, %v60
  %v71 = vpop.permute.xlu0 %70
  %74 = vset.pattern.permute.xlu0 0
  %75 = vperm.xlu0 %74, %v61
  %v76 = vpop.permute.xlu0 %75
  %79 = vset.pattern.permute.xlu0 0
  %80 = vperm.xlu0 %79, %v62
  %v81 = vpop.permute.xlu0 %80
  %v91 = vunpack.c.l.b16 %v15
  %v92 = vunpack.c.h.b16 %v15
  %v93 = vunpack.c.l.b16 %v16
  %v94 = vunpack.c.l.b16 %v17
  %v95 = vunpack.c.h.b16 %v17
  %v96 = vunpack.c.l.b16 %v18
  %v97 = vunpack.c.l.b16 %v19
  %v98 = vunpack.c.h.b16 %v19
  %v99 = vunpack.c.l.b16 %v20
  %v100 = vunpack.c.l.b16 %v21
  %v101 = vunpack.c.h.b16 %v21
  %v102 = vunpack.c.l.b16 %v22
  %v103 = vpack.c.b16 %v94, %v91
  %v104 = vpack.c.b16 %v95, %v92
  %v105 = vpack.c.b16 %v96, %v93
  %v106 = vpack.c.b16 %v100, %v97
  %v107 = vpack.c.b16 %v101, %v98
  %v108 = vpack.c.b16 %v102, %v99
  %v149 = vunpack.c.l.b16 %v23
  %v150 = vunpack.c.l.b16 %v24
  %v151 = vunpack.c.l.b16 %v25
  %v152 = vunpack.c.l.b16 %v26
  %v153 = vunpack.c.l.b16 %v27
  %v154 = vunpack.c.l.b16 %v28
  %v155 = vunpack.c.l.b16 %v29
  %v156 = vunpack.c.l.b16 %v30
  %v157 = vunpack.c.l.b16 %v31
  %v158 = vunpack.c.l.b16 %v32
  %v159 = vunpack.c.l.b16 %v33
  %v160 = vunpack.c.l.b16 %v34
  %v161 = vunpack.c.l.b16 %v35
  %v162 = vunpack.c.l.b16 %v36
  %v163 = vunpack.c.l.b16 %v37
  %v164 = vunpack.c.l.b16 %v38
  %v165 = vunpack.c.l.b16 %v39
  %v166 = vunpack.c.l.b16 %v40
  %v167 = vunpack.c.l.b16 %v41
  %v168 = vunpack.c.l.b16 %v42
  %v169 = vunpack.c.l.b16 %v43
  %v170 = vunpack.c.l.b16 %v44
  %v171 = vunpack.c.l.b16 %v45
  %v172 = vunpack.c.l.b16 %v46
  %v173 = vunpack.c.l.b16 %v47
  %v174 = vunpack.c.l.b16 %v48
  %v175 = vunpack.c.l.b16 %v49
  %v176 = vunpack.c.l.b16 %v50
  %v177 = vunpack.c.l.b16 %v51
  %v178 = vunpack.c.l.b16 %v52
  %v179 = vunpack.c.l.b16 %v53
  %v180 = vunpack.c.l.b16 %v54
  %v181 = vunpack.c.l.b16 %v55
  %v182 = vunpack.c.l.b16 %v56
  %v183 = vunpack.c.l.b16 %v57
  %v184 = vunpack.c.l.b16 %v58
  %v185 = vpack.c.b16 %v150, %v149
  %v186 = vpack.c.b16 %v152, %v151
  %v187 = vpack.c.b16 %v154, %v153
  %v188 = vpack.c.b16 %v156, %v155
  %v189 = vpack.c.b16 %v158, %v157
  %v190 = vpack.c.b16 %v160, %v159
  %v191 = vpack.c.b16 %v162, %v161
  %v192 = vpack.c.b16 %v164, %v163
  %v193 = vpack.c.b16 %v166, %v165
  %v194 = vpack.c.b16 %v168, %v167
  %v195 = vpack.c.b16 %v170, %v169
  %v196 = vpack.c.b16 %v172, %v171
  %v197 = vpack.c.b16 %v174, %v173
  %v198 = vpack.c.b16 %v176, %v175
  %v199 = vpack.c.b16 %v178, %v177
  %v200 = vpack.c.b16 %v180, %v179
  %v201 = vpack.c.b16 %v182, %v181
  %v202 = vpack.c.b16 %v184, %v183
  %vm221 = vcmask 261120
  %v223 = vsel %vm221, %v105, 0
  %v226 = vsel %vm221, %v108, 0
  %228 = vmatpush.bf16.msra.mxu0 %v192
  %229 = vmatpush.bf16.msra.mxu0 %v191
  %230 = vmatpush.bf16.msra.mxu0 %v190
  %231 = vmatpush.bf16.msra.mxu0 %v189
  %232 = vmatpush.bf16.msra.mxu0 %v188
  %233 = vmatpush.bf16.msra.mxu0 %v187
  %234 = vmatpush.bf16.msra.mxu0 %v186
  %235 = vmatpush.bf16.msra.mxu0 %v185
  %236 = vmatmul.bf16.gmra.mxu0 %v103
  %v237 = vpop.f32.mrf.mxu0
  %v238 = vadd.f32 %v66, %v237
  %v239 = vpop.f32.mrf.mxu0
  %v240 = vadd.f32 %v71, %v239
  %241 = vmatmul.bf16.gmra.mxu0 %v106
  %v242 = vpop.f32.mrf.mxu0
  %v243 = vadd.f32 %v76, %v242
  %v244 = vpop.f32.mrf.mxu0
  %v245 = vadd.f32 %v81, %v244
  %246 = vdwg.mxu0
  %247 = vmatpush.bf16.msra.mxu0 %v200
  %248 = vmatpush.bf16.msra.mxu0 %v199
  %249 = vmatpush.bf16.msra.mxu0 %v198
  %250 = vmatpush.bf16.msra.mxu0 %v197
  %251 = vmatpush.bf16.msra.mxu0 %v196
  %252 = vmatpush.bf16.msra.mxu0 %v195
  %253 = vmatpush.bf16.msra.mxu0 %v194
  %254 = vmatpush.bf16.msra.mxu0 %v193
  %255 = vmatmul.bf16.gmra.mxu0 %v104
  %v256 = vpop.f32.mrf.mxu0
  %v257 = vadd.f32 %v238, %v256
  %v258 = vpop.f32.mrf.mxu0
  %v259 = vadd.f32 %v240, %v258
  %260 = vmatmul.bf16.gmra.mxu0 %v107
  %v261 = vpop.f32.mrf.mxu0
  %v262 = vadd.f32 %v243, %v261
  %v263 = vpop.f32.mrf.mxu0
  %v264 = vadd.f32 %v245, %v263
  %265 = vdwg.mxu0
  %266 = vmatpush.bf16.msra.mxu0 0
  %267 = vmatpush.bf16.msra.mxu0 0
  %268 = vmatpush.bf16.msra.mxu0 0
  %269 = vmatpush.bf16.msra.mxu0 0
  %270 = vmatpush.bf16.msra.mxu0 0
  %271 = vmatpush.bf16.msra.mxu0 0
  %272 = vmatpush.bf16.msra.mxu0 %v202
  %273 = vmatpush.bf16.msra.mxu0 %v201
  %274 = vmatmul.bf16.gmra.mxu0 %v223
  %v275 = vpop.f32.mrf.mxu0
  %v276 = vadd.f32 %v257, %v275
  %v277 = vpop.f32.mrf.mxu0
  %v278 = vadd.f32 %v259, %v277
  %279 = vmatmul.bf16.gmra.mxu0 %v226
  %v280 = vpop.f32.mrf.mxu0
  %v281 = vadd.f32 %v262, %v280
  %v282 = vpop.f32.mrf.mxu0
  %v283 = vadd.f32 %v264, %v282
  %284 = vdwg.mxu0
  %v285 = vmax.f32 %v276, 0.0
  %v286 = vmax.f32 %v278, 0.0
  %v287 = vmax.f32 %v281, 0.0
  %v288 = vmax.f32 %v283, 0.0
  %289 = vst [vmem:[%s3] sm:$0xff] %v285
  %290 = vst [vmem:[%s3 + $0x8] sm:$0xff] %v286
  %291 = vst [vmem:[%s3 + $0x10] sm:$0xff] %v287
  %292 = vst [vmem:[%s3 + $0x18] sm:$0xff] %v288
  // Predicated region
  $region14: #{feature_extraction_forward.46} parent=0 // pred_check
    _
  $region15: #{feature_extraction_forward.46} parent=0 // pred_check_branch
    %294 = sbr.rel (0) target = $region17
  $region16: #{feature_extraction_forward.46} parent=0 // pred_region
    _
  $region17: #{feature_extraction_forward.46} parent=0 // pred_fallthru
    _
  // Predicated region
  $region18: #{feature_extraction_forward.46} parent=0 // pred_check
    _
  $region19: #{feature_extraction_forward.46} parent=0 // pred_check_branch
    %296 = sbr.rel (0) target = $region21
  $region20: #{feature_extraction_forward.46} parent=0 // pred_region
    _
  $region21: #{feature_extraction_forward.46} parent=0 // pred_fallthru
    _

// kernel: feature_extraction_forward.47
$region0: #{feature_extraction_forward.47}
  #allocation0 [shape = 'u32[]', space=smem, size = 0x4, offset = 0x4, fixed_abs, tag = 'smem constant byte address 0x4 - core index']
  #allocation1 [shape = 'u32[72,128]{1,0:T(1,128)}', space=vmem, size = 0x9000, scoped, tag = 'internal scratch']
  %s0 = inlined_call_operand.vmem [shape: bf16[32,32], index: 0, kind: input, shape index: {}]
  %s1 = inlined_call_operand.vmem [shape: bf16[32,128], index: 1, kind: input, shape index: {}]
  %s2 = inlined_call_operand.vmem [shape: f32[32,1], index: 2, kind: input, shape index: {}]
  %s3 = inlined_call_operand.vmem [shape: f32[32,128], index: 3, kind: output, shape index: {}]
  %s4 = sld [smem:[#allocation0]]
  $region22: #{feature_extraction_forward.47} parent=0
    _
  %s6 = ssub.s32 1, %s4
  %s7 = scalar_select 0, %s6, %s4
  // Predicated region
  $region2: #{feature_extraction_forward.47} parent=0 // pred_check
    _
  $region3: #{feature_extraction_forward.47} parent=0 // pred_check_branch
    %9 = sbr.rel (0) target = $region5
  $region4: #{feature_extraction_forward.47} parent=0 // pred_region
    _
  $region5: #{feature_extraction_forward.47} parent=0 // pred_fallthru
    _
  // Predicated region
  $region6: #{feature_extraction_forward.47} parent=0 // pred_check
    _
  $region7: #{feature_extraction_forward.47} parent=0 // pred_check_branch
    %11 = sbr.rel (0) target = $region9
  $region8: #{feature_extraction_forward.47} parent=0 // pred_region
    _
  $region9: #{feature_extraction_forward.47} parent=0 // pred_fallthru
    _
  // Predicated region
  $region10: #{feature_extraction_forward.47} parent=0 // pred_check
    _
  $region11: #{feature_extraction_forward.47} parent=0 // pred_check_branch
    %13 = sbr.rel (0) target = $region13
  $region12: #{feature_extraction_forward.47} parent=0 // pred_region
    _
  $region13: #{feature_extraction_forward.47} parent=0 // pred_fallthru
    _
  %v15 = vld [vmem:[%s0] sm:$0xf]
  %v16 = vld [vmem:[%s0 + $0x4] sm:$0xf]
  %v17 = vld [vmem:[%s0 + $0x8] sm:$0xf]
  %v18 = vld [vmem:[%s0 + $0xc] sm:$0xf]
  %v19 = vld [vmem:[%s1] sm:$0xf]
  %v20 = vld [vmem:[%s1 + $0x4] sm:$0xf]
  %v21 = vld [vmem:[%s1 + $0x8] sm:$0xf]
  %v22 = vld [vmem:[%s1 + $0xc] sm:$0xf]
  %v23 = vld [vmem:[%s2] sm:$0xff]
  %v24 = vld [vmem:[%s2 + $0x8] sm:$0xff]
  %v25 = vld [vmem:[%s2 + $0x10] sm:$0xff]
  %v26 = vld [vmem:[%s2 + $0x18] sm:$0xff]
  %28 = vset.pattern.permute.xlu0 0
  %29 = vperm.xlu0 %28, %v23
  %v30 = vpop.permute.xlu0 %29
  %33 = vset.pattern.permute.xlu0 0
  %34 = vperm.xlu0 %33, %v24
  %v35 = vpop.permute.xlu0 %34
  %38 = vset.pattern.permute.xlu0 0
  %39 = vperm.xlu0 %38, %v25
  %v40 = vpop.permute.xlu0 %39
  %43 = vset.pattern.permute.xlu0 0
  %44 = vperm.xlu0 %43, %v26
  %v45 = vpop.permute.xlu0 %44
  %v51 = vunpack.c.l.b16 %v15
  %v52 = vunpack.c.l.b16 %v16
  %v53 = vunpack.c.l.b16 %v17
  %v54 = vunpack.c.l.b16 %v18
  %v55 = vpack.c.b16 %v52, %v51
  %v56 = vpack.c.b16 %v54, %v53
  %v61 = vunpack.c.l.b16 %v19
  %v62 = vunpack.c.l.b16 %v20
  %v63 = vunpack.c.l.b16 %v21
  %v64 = vunpack.c.l.b16 %v22
  %v65 = vpack.c.b16 %v62, %v61
  %v66 = vpack.c.b16 %v64, %v63
  %vm69 = vcmask 261120
  %v71 = vsel %vm69, %v55, 0
  %v74 = vsel %vm69, %v56, 0
  %76 = vmatpush.bf16.msra.mxu0 0
  %77 = vmatpush.bf16.msra.mxu0 0
  %78 = vmatpush.bf16.msra.mxu0 0
  %79 = vmatpush.bf16.msra.mxu0 0
  %80 = vmatpush.bf16.msra.mxu0 0
  %81 = vmatpush.bf16.msra.mxu0 0
  %82 = vmatpush.bf16.msra.mxu0 %v66
  %83 = vmatpush.bf16.msra.mxu0 %v65
  %84 = vmatmul.bf16.gmra.mxu0 %v71
  %v85 = vpop.f32.mrf.mxu0
  %v86 = vadd.f32 %v30, %v85
  %v87 = vpop.f32.mrf.mxu0
  %v88 = vadd.f32 %v35, %v87
  %89 = vmatmul.bf16.gmra.mxu0 %v74
  %v90 = vpop.f32.mrf.mxu0
  %v91 = vadd.f32 %v40, %v90
  %v92 = vpop.f32.mrf.mxu0
  %v93 = vadd.f32 %v45, %v92
  %94 = vdwg.mxu0
  %95 = vst [vmem:[%s3] sm:$0xff] %v86
  %96 = vst [vmem:[%s3 + $0x8] sm:$0xff] %v88
  %97 = vst [vmem:[%s3 + $0x10] sm:$0xff] %v91
  %98 = vst [vmem:[%s3 + $0x18] sm:$0xff] %v93
  // Predicated region
  $region14: #{feature_extraction_forward.47} parent=0 // pred_check
    _
  $region15: #{feature_extraction_forward.47} parent=0 // pred_check_branch
    %100 = sbr.rel (0) target = $region17
  $region16: #{feature_extraction_forward.47} parent=0 // pred_region
    _
  $region17: #{feature_extraction_forward.47} parent=0 // pred_fallthru
    _
  // Predicated region
  $region18: #{feature_extraction_forward.47} parent=0 // pred_check
    _
  $region19: #{feature_extraction_forward.47} parent=0 // pred_check_branch
    %102 = sbr.rel (0) target = $region21
  $region20: #{feature_extraction_forward.47} parent=0 // pred_region
    _
  $region21: #{feature_extraction_forward.47} parent=0 // pred_fallthru
    _

// kernel: feature_extraction_forward.48
$region0: #{feature_extraction_forward.48}
  #allocation0 [shape = 'u32[]', space=smem, size = 0x4, offset = 0x4, fixed_abs, tag = 'smem constant byte address 0x4 - core index']
  #allocation1 [shape = 'u32[72,128]{1,0:T(1,128)}', space=vmem, size = 0x9000, scoped, tag = 'internal scratch']
  %s0 = inlined_call_operand.vmem [shape: bf16[32,288], index: 0, kind: input, shape index: {}]
  %s1 = inlined_call_operand.vmem [shape: bf16[288,128], index: 1, kind: input, shape index: {}]
  %s2 = inlined_call_operand.vmem [shape: f32[32,1], index: 2, kind: input, shape index: {}]
  %s3 = inlined_call_operand.vmem [shape: f32[32,128], index: 3, kind: input, shape index: {}]
  %s4 = inlined_call_operand.vmem [shape: f32[32,128], index: 4, kind: output, shape index: {}]
  %s5 = sld [smem:[#allocation0]]
  $region26: #{feature_extraction_forward.48} parent=0
    _
  %s7 = ssub.s32 1, %s5
  %s8 = scalar_select 0, %s7, %s5
  // Predicated region
  $region2: #{feature_extraction_forward.48} parent=0 // pred_check
    _
  $region3: #{feature_extraction_forward.48} parent=0 // pred_check_branch
    %10 = sbr.rel (0) target = $region5
  $region4: #{feature_extraction_forward.48} parent=0 // pred_region
    _
  $region5: #{feature_extraction_forward.48} parent=0 // pred_fallthru
    _
  // Predicated region
  $region6: #{feature_extraction_forward.48} parent=0 // pred_check
    _
  $region7: #{feature_extraction_forward.48} parent=0 // pred_check_branch
    %12 = sbr.rel (0) target = $region9
  $region8: #{feature_extraction_forward.48} parent=0 // pred_region
    _
  $region9: #{feature_extraction_forward.48} parent=0 // pred_fallthru
    _
  // Predicated region
  $region10: #{feature_extraction_forward.48} parent=0 // pred_check
    _
  $region11: #{feature_extraction_forward.48} parent=0 // pred_check_branch
    %14 = sbr.rel (0) target = $region13
  $region12: #{feature_extraction_forward.48} parent=0 // pred_region
    _
  $region13: #{feature_extraction_forward.48} parent=0 // pred_fallthru
    _
  // Predicated region
  $region14: #{feature_extraction_forward.48} parent=0 // pred_check
    _
  $region15: #{feature_extraction_forward.48} parent=0 // pred_check_branch
    %16 = sbr.rel (0) target = $region17
  $region16: #{feature_extraction_forward.48} parent=0 // pred_region
    _
  $region17: #{feature_extraction_forward.48} parent=0 // pred_fallthru
    _
  %v18 = vld [vmem:[%s0] sm:$0xff]
  %v19 = vld [vmem:[%s0 + $0x8] sm:$0xf]
  %v20 = vld [vmem:[%s0 + $0xc] sm:$0xff]
  %v21 = vld [vmem:[%s0 + $0x14] sm:$0xf]
  %v22 = vld [vmem:[%s0 + $0x18] sm:$0xff]
  %v23 = vld [vmem:[%s0 + $0x20] sm:$0xf]
  %v24 = vld [vmem:[%s0 + $0x24] sm:$0xff]
  %v25 = vld [vmem:[%s0 + $0x2c] sm:$0xf]
  %v26 = vld [vmem:[%s1] sm:$0xf]
  %v27 = vld [vmem:[%s1 + $0x4] sm:$0xf]
  %v28 = vld [vmem:[%s1 + $0x8] sm:$0xf]
  %v29 = vld [vmem:[%s1 + $0xc] sm:$0xf]
  %v30 = vld [vmem:[%s1 + $0x10] sm:$0xf]
  %v31 = vld [vmem:[%s1 + $0x14] sm:$0xf]
  %v32 = vld [vmem:[%s1 + $0x18] sm:$0xf]
  %v33 = vld [vmem:[%s1 + $0x1c] sm:$0xf]
  %v34 = vld [vmem:[%s1 + $0x20] sm:$0xf]
  %v35 = vld [vmem:[%s1 + $0x24] sm:$0xf]
  %v36 = vld [vmem:[%s1 + $0x28] sm:$0xf]
  %v37 = vld [vmem:[%s1 + $0x2c] sm:$0xf]
  %v38 = vld [vmem:[%s1 + $0x30] sm:$0xf]
  %v39 = vld [vmem:[%s1 + $0x34] sm:$0xf]
  %v40 = vld [vmem:[%s1 + $0x38] sm:$0xf]
  %v41 = vld [vmem:[%s1 + $0x3c] sm:$0xf]
  %v42 = vld [vmem:[%s1 + $0x40] sm:$0xf]
  %v43 = vld [vmem:[%s1 + $0x44] sm:$0xf]
  %v44 = vld [vmem:[%s1 + $0x48] sm:$0xf]
  %v45 = vld [vmem:[%s1 + $0x4c] sm:$0xf]
  %v46 = vld [vmem:[%s1 + $0x50] sm:$0xf]
  %v47 = vld [vmem:[%s1 + $0x54] sm:$0xf]
  %v48 = vld [vmem:[%s1 + $0x58] sm:$0xf]
  %v49 = vld [vmem:[%s1 + $0x5c] sm:$0xf]
  %v50 = vld [vmem:[%s1 + $0x60] sm:$0xf]
  %v51 = vld [vmem:[%s1 + $0x64] sm:$0xf]
  %v52 = vld [vmem:[%s1 + $0x68] sm:$0xf]
  %v53 = vld [vmem:[%s1 + $0x6c] sm:$0xf]
  %v54 = vld [vmem:[%s1 + $0x70] sm:$0xf]
  %v55 = vld [vmem:[%s1 + $0x74] sm:$0xf]
  %v56 = vld [vmem:[%s1 + $0x78] sm:$0xf]
  %v57 = vld [vmem:[%s1 + $0x7c] sm:$0xf]
  %v58 = vld [vmem:[%s1 + $0x80] sm:$0xf]
  %v59 = vld [vmem:[%s1 + $0x84] sm:$0xf]
  %v60 = vld [vmem:[%s1 + $0x88] sm:$0xf]
  %v61 = vld [vmem:[%s1 + $0x8c] sm:$0xf]
  %v62 = vld [vmem:[%s2] sm:$0xff]
  %v63 = vld [vmem:[%s2 + $0x8] sm:$0xff]
  %v64 = vld [vmem:[%s2 + $0x10] sm:$0xff]
  %v65 = vld [vmem:[%s2 + $0x18] sm:$0xff]
  %67 = vset.pattern.permute.xlu0 0
  %68 = vperm.xlu0 %67, %v62
  %v69 = vpop.permute.xlu0 %68
  %72 = vset.pattern.permute.xlu0 0
  %73 = vperm.xlu0 %72, %v63
  %v74 = vpop.permute.xlu0 %73
  %77 = vset.pattern.permute.xlu0 0
  %78 = vperm.xlu0 %77, %v64
  %v79 = vpop.permute.xlu0 %78
  %82 = vset.pattern.permute.xlu0 0
  %83 = vperm.xlu0 %82, %v65
  %v84 = vpop.permute.xlu0 %83
  %v94 = vunpack.c.l.b16 %v18
  %v95 = vunpack.c.h.b16 %v18
  %v96 = vunpack.c.l.b16 %v19
  %v97 = vunpack.c.l.b16 %v20
  %v98 = vunpack.c.h.b16 %v20
  %v99 = vunpack.c.l.b16 %v21
  %v100 = vunpack.c.l.b16 %v22
  %v101 = vunpack.c.h.b16 %v22
  %v102 = vunpack.c.l.b16 %v23
  %v103 = vunpack.c.l.b16 %v24
  %v104 = vunpack.c.h.b16 %v24
  %v105 = vunpack.c.l.b16 %v25
  %v106 = vpack.c.b16 %v97, %v94
  %v107 = vpack.c.b16 %v98, %v95
  %v108 = vpack.c.b16 %v99, %v96
  %v109 = vpack.c.b16 %v103, %v100
  %v110 = vpack.c.b16 %v104, %v101
  %v111 = vpack.c.b16 %v105, %v102
  %v152 = vunpack.c.l.b16 %v26
  %v153 = vunpack.c.l.b16 %v27
  %v154 = vunpack.c.l.b16 %v28
  %v155 = vunpack.c.l.b16 %v29
  %v156 = vunpack.c.l.b16 %v30
  %v157 = vunpack.c.l.b16 %v31
  %v158 = vunpack.c.l.b16 %v32
  %v159 = vunpack.c.l.b16 %v33
  %v160 = vunpack.c.l.b16 %v34
  %v161 = vunpack.c.l.b16 %v35
  %v162 = vunpack.c.l.b16 %v36
  %v163 = vunpack.c.l.b16 %v37
  %v164 = vunpack.c.l.b16 %v38
  %v165 = vunpack.c.l.b16 %v39
  %v166 = vunpack.c.l.b16 %v40
  %v167 = vunpack.c.l.b16 %v41
  %v168 = vunpack.c.l.b16 %v42
  %v169 = vunpack.c.l.b16 %v43
  %v170 = vunpack.c.l.b16 %v44
  %v171 = vunpack.c.l.b16 %v45
  %v172 = vunpack.c.l.b16 %v46
  %v173 = vunpack.c.l.b16 %v47
  %v174 = vunpack.c.l.b16 %v48
  %v175 = vunpack.c.l.b16 %v49
  %v176 = vunpack.c.l.b16 %v50
  %v177 = vunpack.c.l.b16 %v51
  %v178 = vunpack.c.l.b16 %v52
  %v179 = vunpack.c.l.b16 %v53
  %v180 = vunpack.c.l.b16 %v54
  %v181 = vunpack.c.l.b16 %v55
  %v182 = vunpack.c.l.b16 %v56
  %v183 = vunpack.c.l.b16 %v57
  %v184 = vunpack.c.l.b16 %v58
  %v185 = vunpack.c.l.b16 %v59
  %v186 = vunpack.c.l.b16 %v60
  %v187 = vunpack.c.l.b16 %v61
  %v188 = vpack.c.b16 %v153, %v152
  %v189 = vpack.c.b16 %v155, %v154
  %v190 = vpack.c.b16 %v157, %v156
  %v191 = vpack.c.b16 %v159, %v158
  %v192 = vpack.c.b16 %v161, %v160
  %v193 = vpack.c.b16 %v163, %v162
  %v194 = vpack.c.b16 %v165, %v164
  %v195 = vpack.c.b16 %v167, %v166
  %v196 = vpack.c.b16 %v169, %v168
  %v197 = vpack.c.b16 %v171, %v170
  %v198 = vpack.c.b16 %v173, %v172
  %v199 = vpack.c.b16 %v175, %v174
  %v200 = vpack.c.b16 %v177, %v176
  %v201 = vpack.c.b16 %v179, %v178
  %v202 = vpack.c.b16 %v181, %v180
  %v203 = vpack.c.b16 %v183, %v182
  %v204 = vpack.c.b16 %v185, %v184
  %v205 = vpack.c.b16 %v187, %v186
  %vm224 = vcmask 261120
  %v226 = vsel %vm224, %v108, 0
  %v229 = vsel %vm224, %v111, 0
  %231 = vmatpush.bf16.msra.mxu0 %v195
  %232 = vmatpush.bf16.msra.mxu0 %v194
  %233 = vmatpush.bf16.msra.mxu0 %v193
  %234 = vmatpush.bf16.msra.mxu0 %v192
  %235 = vmatpush.bf16.msra.mxu0 %v191
  %236 = vmatpush.bf16.msra.mxu0 %v190
  %237 = vmatpush.bf16.msra.mxu0 %v189
  %238 = vmatpush.bf16.msra.mxu0 %v188
  %239 = vmatmul.bf16.gmra.mxu0 %v106
  %v240 = vpop.f32.mrf.mxu0
  %v241 = vadd.f32 %v69, %v240
  %v242 = vpop.f32.mrf.mxu0
  %v243 = vadd.f32 %v74, %v242
  %244 = vmatmul.bf16.gmra.mxu0 %v109
  %v245 = vpop.f32.mrf.mxu0
  %v246 = vadd.f32 %v79, %v245
  %v247 = vpop.f32.mrf.mxu0
  %v248 = vadd.f32 %v84, %v247
  %249 = vdwg.mxu0
  %250 = vmatpush.bf16.msra.mxu0 %v203
  %251 = vmatpush.bf16.msra.mxu0 %v202
  %252 = vmatpush.bf16.msra.mxu0 %v201
  %253 = vmatpush.bf16.msra.mxu0 %v200
  %254 = vmatpush.bf16.msra.mxu0 %v199
  %255 = vmatpush.bf16.msra.mxu0 %v198
  %256 = vmatpush.bf16.msra.mxu0 %v197
  %257 = vmatpush.bf16.msra.mxu0 %v196
  %258 = vmatmul.bf16.gmra.mxu0 %v107
  %v259 = vpop.f32.mrf.mxu0
  %v260 = vadd.f32 %v241, %v259
  %v261 = vpop.f32.mrf.mxu0
  %v262 = vadd.f32 %v243, %v261
  %263 = vmatmul.bf16.gmra.mxu0 %v110
  %v264 = vpop.f32.mrf.mxu0
  %v265 = vadd.f32 %v246, %v264
  %v266 = vpop.f32.mrf.mxu0
  %v267 = vadd.f32 %v248, %v266
  %268 = vdwg.mxu0
  %269 = vmatpush.bf16.msra.mxu0 0
  %270 = vmatpush.bf16.msra.mxu0 0
  %271 = vmatpush.bf16.msra.mxu0 0
  %272 = vmatpush.bf16.msra.mxu0 0
  %273 = vmatpush.bf16.msra.mxu0 0
  %274 = vmatpush.bf16.msra.mxu0 0
  %275 = vmatpush.bf16.msra.mxu0 %v205
  %276 = vmatpush.bf16.msra.mxu0 %v204
  %277 = vmatmul.bf16.gmra.mxu0 %v226
  %v278 = vpop.f32.mrf.mxu0
  %v279 = vadd.f32 %v260, %v278
  %v280 = vpop.f32.mrf.mxu0
  %v281 = vadd.f32 %v262, %v280
  %282 = vmatmul.bf16.gmra.mxu0 %v229
  %v283 = vpop.f32.mrf.mxu0
  %v284 = vadd.f32 %v265, %v283
  %v285 = vpop.f32.mrf.mxu0
  %v286 = vadd.f32 %v267, %v285
  %287 = vdwg.mxu0
  %v288 = vld [vmem:[%s3] sm:$0xff]
  %v289 = vld [vmem:[%s3 + $0x8] sm:$0xff]
  %v290 = vld [vmem:[%s3 + $0x10] sm:$0xff]
  %v291 = vld [vmem:[%s3 + $0x18] sm:$0xff]
  %v292 = vadd.f32 %v279, %v288
  %v293 = vadd.f32 %v281, %v289
  %v294 = vadd.f32 %v284, %v290
  %v295 = vadd.f32 %v286, %v291
  %296 = vst [vmem:[%s4] sm:$0xff] %v292
  %297 = vst [vmem:[%s4 + $0x8] sm:$0xff] %v293
  %298 = vst [vmem:[%s4 + $0x10] sm:$0xff] %v294
  %299 = vst [vmem:[%s4 + $0x18] sm:$0xff] %v295
  // Predicated region
  $region18: #{feature_extraction_forward.48} parent=0 // pred_check
    _
  $region19: #{feature_extraction_forward.48} parent=0 // pred_check_branch
    %301 = sbr.rel (0) target = $region21
  $region20: #{feature_extraction_forward.48} parent=0 // pred_region
    _
  $region21: #{feature_extraction_forward.48} parent=0 // pred_fallthru
    _
  // Predicated region
  $region22: #{feature_extraction_forward.48} parent=0 // pred_check
    _
  $region23: #{feature_extraction_forward.48} parent=0 // pred_check_branch
    %303 = sbr.rel (0) target = $region25
  $region24: #{feature_extraction_forward.48} parent=0 // pred_region
    _
  $region25: #{feature_extraction_forward.48} parent=0 // pred_fallthru
    _

// kernel: feature_extraction_forward.57
$region0: #{feature_extraction_forward.57}
  #allocation0 [shape = 'u32[]', space=smem, size = 0x4, offset = 0x4, fixed_abs, tag = 'smem constant byte address 0x4 - core index']
  #allocation1 [shape = 'u32[72,128]{1,0:T(1,128)}', space=vmem, size = 0x9000, scoped, tag = 'internal scratch']
  %s0 = inlined_call_operand.vmem [shape: bf16[64,288], index: 0, kind: input, shape index: {}]
  %s1 = inlined_call_operand.vmem [shape: bf16[288,128], index: 1, kind: input, shape index: {}]
  %s2 = inlined_call_operand.vmem [shape: f32[64,1], index: 2, kind: input, shape index: {}]
  %s3 = inlined_call_operand.vmem [shape: f32[64,128], index: 3, kind: output, shape index: {}]
  %s4 = sld [smem:[#allocation0]]
  $region22: #{feature_extraction_forward.57} parent=0
    _
  %s6 = ssub.s32 1, %s4
  %s7 = scalar_select 0, %s6, %s4
  // Predicated region
  $region2: #{feature_extraction_forward.57} parent=0 // pred_check
    _
  $region3: #{feature_extraction_forward.57} parent=0 // pred_check_branch
    %9 = sbr.rel (0) target = $region5
  $region4: #{feature_extraction_forward.57} parent=0 // pred_region
    _
  $region5: #{feature_extraction_forward.57} parent=0 // pred_fallthru
    _
  // Predicated region
  $region6: #{feature_extraction_forward.57} parent=0 // pred_check
    _
  $region7: #{feature_extraction_forward.57} parent=0 // pred_check_branch
    %11 = sbr.rel (0) target = $region9
  $region8: #{feature_extraction_forward.57} parent=0 // pred_region
    _
  $region9: #{feature_extraction_forward.57} parent=0 // pred_fallthru
    _
  // Predicated region
  $region10: #{feature_extraction_forward.57} parent=0 // pred_check
    _
  $region11: #{feature_extraction_forward.57} parent=0 // pred_check_branch
    %13 = sbr.rel (0) target = $region13
  $region12: #{feature_extraction_forward.57} parent=0 // pred_region
    _
  $region13: #{feature_extraction_forward.57} parent=0 // pred_fallthru
    _
  %v15 = vld [vmem:[%s0] sm:$0xff]
  %v16 = vld [vmem:[%s0 + $0x8] sm:$0xf]
  %v17 = vld [vmem:[%s0 + $0xc] sm:$0xff]
  %v18 = vld [vmem:[%s0 + $0x14] sm:$0xf]
  %v19 = vld [vmem:[%s0 + $0x18] sm:$0xff]
  %v20 = vld [vmem:[%s0 + $0x20] sm:$0xf]
  %v21 = vld [vmem:[%s0 + $0x24] sm:$0xff]
  %v22 = vld [vmem:[%s0 + $0x2c] sm:$0xf]
  %v23 = vld [vmem:[%s0 + $0x30] sm:$0xff]
  %v24 = vld [vmem:[%s0 + $0x38] sm:$0xf]
  %v25 = vld [vmem:[%s0 + $0x3c] sm:$0xff]
  %v26 = vld [vmem:[%s0 + $0x44] sm:$0xf]
  %v27 = vld [vmem:[%s0 + $0x48] sm:$0xff]
  %v28 = vld [vmem:[%s0 + $0x50] sm:$0xf]
  %v29 = vld [vmem:[%s0 + $0x54] sm:$0xff]
  %v30 = vld [vmem:[%s0 + $0x5c] sm:$0xf]
  %v31 = vld [vmem:[%s1] sm:$0xf]
  %v32 = vld [vmem:[%s1 + $0x4] sm:$0xf]
  %v33 = vld [vmem:[%s1 + $0x8] sm:$0xf]
  %v34 = vld [vmem:[%s1 + $0xc] sm:$0xf]
  %v35 = vld [vmem:[%s1 + $0x10] sm:$0xf]
  %v36 = vld [vmem:[%s1 + $0x14] sm:$0xf]
  %v37 = vld [vmem:[%s1 + $0x18] sm:$0xf]
  %v38 = vld [vmem:[%s1 + $0x1c] sm:$0xf]
  %v39 = vld [vmem:[%s1 + $0x20] sm:$0xf]
  %v40 = vld [vmem:[%s1 + $0x24] sm:$0xf]
  %v41 = vld [vmem:[%s1 + $0x28] sm:$0xf]
  %v42 = vld [vmem:[%s1 + $0x2c] sm:$0xf]
  %v43 = vld [vmem:[%s1 + $0x30] sm:$0xf]
  %v44 = vld [vmem:[%s1 + $0x34] sm:$0xf]
  %v45 = vld [vmem:[%s1 + $0x38] sm:$0xf]
  %v46 = vld [vmem:[%s1 + $0x3c] sm:$0xf]
  %v47 = vld [vmem:[%s1 + $0x40] sm:$0xf]
  %v48 = vld [vmem:[%s1 + $0x44] sm:$0xf]
  %v49 = vld [vmem:[%s1 + $0x48] sm:$0xf]
  %v50 = vld [vmem:[%s1 + $0x4c] sm:$0xf]
  %v51 = vld [vmem:[%s1 + $0x50] sm:$0xf]
  %v52 = vld [vmem:[%s1 + $0x54] sm:$0xf]
  %v53 = vld [vmem:[%s1 + $0x58] sm:$0xf]
  %v54 = vld [vmem:[%s1 + $0x5c] sm:$0xf]
  %v55 = vld [vmem:[%s1 + $0x60] sm:$0xf]
  %v56 = vld [vmem:[%s1 + $0x64] sm:$0xf]
  %v57 = vld [vmem:[%s1 + $0x68] sm:$0xf]
  %v58 = vld [vmem:[%s1 + $0x6c] sm:$0xf]
  %v59 = vld [vmem:[%s1 + $0x70] sm:$0xf]
  %v60 = vld [vmem:[%s1 + $0x74] sm:$0xf]
  %v61 = vld [vmem:[%s1 + $0x78] sm:$0xf]
  %v62 = vld [vmem:[%s1 + $0x7c] sm:$0xf]
  %v63 = vld [vmem:[%s1 + $0x80] sm:$0xf]
  %v64 = vld [vmem:[%s1 + $0x84] sm:$0xf]
  %v65 = vld [vmem:[%s1 + $0x88] sm:$0xf]
  %v66 = vld [vmem:[%s1 + $0x8c] sm:$0xf]
  %v67 = vld [vmem:[%s2] sm:$0xff]
  %v68 = vld [vmem:[%s2 + $0x8] sm:$0xff]
  %v69 = vld [vmem:[%s2 + $0x10] sm:$0xff]
  %v70 = vld [vmem:[%s2 + $0x18] sm:$0xff]
  %v71 = vld [vmem:[%s2 + $0x20] sm:$0xff]
  %v72 = vld [vmem:[%s2 + $0x28] sm:$0xff]
  %v73 = vld [vmem:[%s2 + $0x30] sm:$0xff]
  %v74 = vld [vmem:[%s2 + $0x38] sm:$0xff]
  %76 = vset.pattern.permute.xlu0 0
  %77 = vperm.xlu0 %76, %v67
  %v78 = vpop.permute.xlu0 %77
  %81 = vset.pattern.permute.xlu0 0
  %82 = vperm.xlu0 %81, %v68
  %v83 = vpop.permute.xlu0 %82
  %86 = vset.pattern.permute.xlu0 0
  %87 = vperm.xlu0 %86, %v69
  %v88 = vpop.permute.xlu0 %87
  %91 = vset.pattern.permute.xlu0 0
  %92 = vperm.xlu0 %91, %v70
  %v93 = vpop.permute.xlu0 %92
  %96 = vset.pattern.permute.xlu0 0
  %97 = vperm.xlu0 %96, %v71
  %v98 = vpop.permute.xlu0 %97
  %101 = vset.pattern.permute.xlu0 0
  %102 = vperm.xlu0 %101, %v72
  %v103 = vpop.permute.xlu0 %102
  %106 = vset.pattern.permute.xlu0 0
  %107 = vperm.xlu0 %106, %v73
  %v108 = vpop.permute.xlu0 %107
  %111 = vset.pattern.permute.xlu0 0
  %112 = vperm.xlu0 %111, %v74
  %v113 = vpop.permute.xlu0 %112
  %v131 = vunpack.c.l.b16 %v15
  %v132 = vunpack.c.h.b16 %v15
  %v133 = vunpack.c.l.b16 %v16
  %v134 = vunpack.c.l.b16 %v17
  %v135 = vunpack.c.h.b16 %v17
  %v136 = vunpack.c.l.b16 %v18
  %v137 = vunpack.c.l.b16 %v19
  %v138 = vunpack.c.h.b16 %v19
  %v139 = vunpack.c.l.b16 %v20
  %v140 = vunpack.c.l.b16 %v21
  %v141 = vunpack.c.h.b16 %v21
  %v142 = vunpack.c.l.b16 %v22
  %v143 = vunpack.c.l.b16 %v23
  %v144 = vunpack.c.h.b16 %v23
  %v145 = vunpack.c.l.b16 %v24
  %v146 = vunpack.c.l.b16 %v25
  %v147 = vunpack.c.h.b16 %v25
  %v148 = vunpack.c.l.b16 %v26
  %v149 = vunpack.c.l.b16 %v27
  %v150 = vunpack.c.h.b16 %v27
  %v151 = vunpack.c.l.b16 %v28
  %v152 = vunpack.c.l.b16 %v29
  %v153 = vunpack.c.h.b16 %v29
  %v154 = vunpack.c.l.b16 %v30
  %v155 = vpack.c.b16 %v134, %v131
  %v156 = vpack.c.b16 %v135, %v132
  %v157 = vpack.c.b16 %v136, %v133
  %v158 = vpack.c.b16 %v140, %v137
  %v159 = vpack.c.b16 %v141, %v138
  %v160 = vpack.c.b16 %v142, %v139
  %v161 = vpack.c.b16 %v146, %v143
  %v162 = vpack.c.b16 %v147, %v144
  %v163 = vpack.c.b16 %v148, %v145
  %v164 = vpack.c.b16 %v152, %v149
  %v165 = vpack.c.b16 %v153, %v150
  %v166 = vpack.c.b16 %v154, %v151
  %v211 = vunpack.c.l.b16 %v31
  %v212 = vunpack.c.l.b16 %v32
  %v213 = vunpack.c.l.b16 %v33
  %v214 = vunpack.c.l.b16 %v34
  %v215 = vunpack.c.l.b16 %v35
  %v216 = vunpack.c.l.b16 %v36
  %v217 = vunpack.c.l.b16 %v37
  %v218 = vunpack.c.l.b16 %v38
  %v219 = vunpack.c.l.b16 %v39
  %v220 = vunpack.c.l.b16 %v40
  %v221 = vunpack.c.l.b16 %v41
  %v222 = vunpack.c.l.b16 %v42
  %v223 = vunpack.c.l.b16 %v43
  %v224 = vunpack.c.l.b16 %v44
  %v225 = vunpack.c.l.b16 %v45
  %v226 = vunpack.c.l.b16 %v46
  %v227 = vunpack.c.l.b16 %v47
  %v228 = vunpack.c.l.b16 %v48
  %v229 = vunpack.c.l.b16 %v49
  %v230 = vunpack.c.l.b16 %v50
  %v231 = vunpack.c.l.b16 %v51
  %v232 = vunpack.c.l.b16 %v52
  %v233 = vunpack.c.l.b16 %v53
  %v234 = vunpack.c.l.b16 %v54
  %v235 = vunpack.c.l.b16 %v55
  %v236 = vunpack.c.l.b16 %v56
  %v237 = vunpack.c.l.b16 %v57
  %v238 = vunpack.c.l.b16 %v58
  %v239 = vunpack.c.l.b16 %v59
  %v240 = vunpack.c.l.b16 %v60
  %v241 = vunpack.c.l.b16 %v61
  %v242 = vunpack.c.l.b16 %v62
  %v243 = vunpack.c.l.b16 %v63
  %v244 = vunpack.c.l.b16 %v64
  %v245 = vunpack.c.l.b16 %v65
  %v246 = vunpack.c.l.b16 %v66
  %v247 = vpack.c.b16 %v212, %v211
  %v248 = vpack.c.b16 %v214, %v213
  %v249 = vpack.c.b16 %v216, %v215
  %v250 = vpack.c.b16 %v218, %v217
  %v251 = vpack.c.b16 %v220, %v219
  %v252 = vpack.c.b16 %v222, %v221
  %v253 = vpack.c.b16 %v224, %v223
  %v254 = vpack.c.b16 %v226, %v225
  %v255 = vpack.c.b16 %v228, %v227
  %v256 = vpack.c.b16 %v230, %v229
  %v257 = vpack.c.b16 %v232, %v231
  %v258 = vpack.c.b16 %v234, %v233
  %v259 = vpack.c.b16 %v236, %v235
  %v260 = vpack.c.b16 %v238, %v237
  %v261 = vpack.c.b16 %v240, %v239
  %v262 = vpack.c.b16 %v242, %v241
  %v263 = vpack.c.b16 %v244, %v243
  %v264 = vpack.c.b16 %v246, %v245
  %vm283 = vcmask 261120
  %v285 = vsel %vm283, %v157, 0
  %v288 = vsel %vm283, %v160, 0
  %v291 = vsel %vm283, %v163, 0
  %v294 = vsel %vm283, %v166, 0
  %296 = vmatpush.bf16.msra.mxu0 %v254
  %297 = vmatpush.bf16.msra.mxu0 %v253
  %298 = vmatpush.bf16.msra.mxu0 %v252
  %299 = vmatpush.bf16.msra.mxu0 %v251
  %300 = vmatpush.bf16.msra.mxu0 %v250
  %301 = vmatpush.bf16.msra.mxu0 %v249
  %302 = vmatpush.bf16.msra.mxu0 %v248
  %303 = vmatpush.bf16.msra.mxu0 %v247
  %304 = vmatmul.bf16.gmra.mxu0 %v155
  %v305 = vpop.f32.mrf.mxu0
  %v306 = vadd.f32 %v78, %v305
  %v307 = vpop.f32.mrf.mxu0
  %v308 = vadd.f32 %v83, %v307
  %309 = vmatmul.bf16.gmra.mxu0 %v158
  %v310 = vpop.f32.mrf.mxu0
  %v311 = vadd.f32 %v88, %v310
  %v312 = vpop.f32.mrf.mxu0
  %v313 = vadd.f32 %v93, %v312
  %314 = vmatmul.bf16.gmra.mxu0 %v161
  %v315 = vpop.f32.mrf.mxu0
  %v316 = vadd.f32 %v98, %v315
  %v317 = vpop.f32.mrf.mxu0
  %v318 = vadd.f32 %v103, %v317
  %319 = vmatmul.bf16.gmra.mxu0 %v164
  %v320 = vpop.f32.mrf.mxu0
  %v321 = vadd.f32 %v108, %v320
  %v322 = vpop.f32.mrf.mxu0
  %v323 = vadd.f32 %v113, %v322
  %324 = vdwg.mxu0
  %325 = vmatpush.bf16.msra.mxu0 %v262
  %326 = vmatpush.bf16.msra.mxu0 %v261
  %327 = vmatpush.bf16.msra.mxu0 %v260
  %328 = vmatpush.bf16.msra.mxu0 %v259
  %329 = vmatpush.bf16.msra.mxu0 %v258
  %330 = vmatpush.bf16.msra.mxu0 %v257
  %331 = vmatpush.bf16.msra.mxu0 %v256
  %332 = vmatpush.bf16.msra.mxu0 %v255
  %333 = vmatmul.bf16.gmra.mxu0 %v156
  %v334 = vpop.f32.mrf.mxu0
  %v335 = vadd.f32 %v306, %v334
  %v336 = vpop.f32.mrf.mxu0
  %v337 = vadd.f32 %v308, %v336
  %338 = vmatmul.bf16.gmra.mxu0 %v159
  %v339 = vpop.f32.mrf.mxu0
  %v340 = vadd.f32 %v311, %v339
  %v341 = vpop.f32.mrf.mxu0
  %v342 = vadd.f32 %v313, %v341
  %343 = vmatmul.bf16.gmra.mxu0 %v162
  %v344 = vpop.f32.mrf.mxu0
  %v345 = vadd.f32 %v316, %v344
  %v346 = vpop.f32.mrf.mxu0
  %v347 = vadd.f32 %v318, %v346
  %348 = vmatmul.bf16.gmra.mxu0 %v165
  %v349 = vpop.f32.mrf.mxu0
  %v350 = vadd.f32 %v321, %v349
  %v351 = vpop.f32.mrf.mxu0
  %v352 = vadd.f32 %v323, %v351
  %353 = vdwg.mxu0
  %354 = vmatpush.bf16.msra.mxu0 0
  %355 = vmatpush.bf16.msra.mxu0 0
  %356 = vmatpush.bf16.msra.mxu0 0
  %357 = vmatpush.bf16.msra.mxu0 0
  %358 = vmatpush.bf16.msra.mxu0 0
  %359 = vmatpush.bf16.msra.mxu0 0
  %360 = vmatpush.bf16.msra.mxu0 %v264
  %361 = vmatpush.bf16.msra.mxu0 %v263
  %362 = vmatmul.bf16.gmra.mxu0 %v285
  %v363 = vpop.f32.mrf.mxu0
  %v364 = vadd.f32 %v335, %v363
  %v365 = vpop.f32.mrf.mxu0
  %v366 = vadd.f32 %v337, %v365
  %367 = vmatmul.bf16.gmra.mxu0 %v288
  %v368 = vpop.f32.mrf.mxu0
  %v369 = vadd.f32 %v340, %v368
  %v370 = vpop.f32.mrf.mxu0
  %v371 = vadd.f32 %v342, %v370
  %372 = vmatmul.bf16.gmra.mxu0 %v291
  %v373 = vpop.f32.mrf.mxu0
  %v374 = vadd.f32 %v345, %v373
  %v375 = vpop.f32.mrf.mxu0
  %v376 = vadd.f32 %v347, %v375
  %377 = vmatmul.bf16.gmra.mxu0 %v294
  %v378 = vpop.f32.mrf.mxu0
  %v379 = vadd.f32 %v350, %v378
  %v380 = vpop.f32.mrf.mxu0
  %v381 = vadd.f32 %v352, %v380
  %382 = vdwg.mxu0
  %v383 = vmax.f32 %v364, 0.0
  %v384 = vmax.f32 %v366, 0.0
  %v385 = vmax.f32 %v369, 0.0
  %v386 = vmax.f32 %v371, 0.0
  %v387 = vmax.f32 %v374, 0.0
  %v388 = vmax.f32 %v376, 0.0
  %v389 = vmax.f32 %v379, 0.0
  %v390 = vmax.f32 %v381, 0.0
  %391 = vst [vmem:[%s3] sm:$0xff] %v383
  %392 = vst [vmem:[%s3 + $0x8] sm:$0xff] %v384
  %393 = vst [vmem:[%s3 + $0x10] sm:$0xff] %v385
  %394 = vst [vmem:[%s3 + $0x18] sm:$0xff] %v386
  %395 = vst [vmem:[%s3 + $0x20] sm:$0xff] %v387
  %396 = vst [vmem:[%s3 + $0x28] sm:$0xff] %v388
  %397 = vst [vmem:[%s3 + $0x30] sm:$0xff] %v389
  %398 = vst [vmem:[%s3 + $0x38] sm:$0xff] %v390
  // Predicated region
  $region14: #{feature_extraction_forward.57} parent=0 // pred_check
    _
  $region15: #{feature_extraction_forward.57} parent=0 // pred_check_branch
    %400 = sbr.rel (0) target = $region17
  $region16: #{feature_extraction_forward.57} parent=0 // pred_region
    _
  $region17: #{feature_extraction_forward.57} parent=0 // pred_fallthru
    _
  // Predicated region
  $region18: #{feature_extraction_forward.57} parent=0 // pred_check
    _
  $region19: #{feature_extraction_forward.57} parent=0 // pred_check_branch
    %402 = sbr.rel (0) target = $region21
  $region20: #{feature_extraction_forward.57} parent=0 // pred_region
    _
  $region21: #{feature_extraction_forward.57} parent=0 // pred_fallthru
    _

// kernel: feature_extraction_forward.58
$region0: #{feature_extraction_forward.58}
  #allocation0 [shape = 'u32[]', space=smem, size = 0x4, offset = 0x4, fixed_abs, tag = 'smem constant byte address 0x4 - core index']
  #allocation1 [shape = 'u32[72,128]{1,0:T(1,128)}', space=vmem, size = 0x9000, scoped, tag = 'internal scratch']
  %s0 = inlined_call_operand.vmem [shape: bf16[64,32], index: 0, kind: input, shape index: {}]
  %s1 = inlined_call_operand.vmem [shape: bf16[32,128], index: 1, kind: input, shape index: {}]
  %s2 = inlined_call_operand.vmem [shape: f32[64,1], index: 2, kind: input, shape index: {}]
  %s3 = inlined_call_operand.vmem [shape: f32[64,128], index: 3, kind: output, shape index: {}]
  %s4 = sld [smem:[#allocation0]]
  $region22: #{feature_extraction_forward.58} parent=0
    _
  %s6 = ssub.s32 1, %s4
  %s7 = scalar_select 0, %s6, %s4
  // Predicated region
  $region2: #{feature_extraction_forward.58} parent=0 // pred_check
    _
  $region3: #{feature_extraction_forward.58} parent=0 // pred_check_branch
    %9 = sbr.rel (0) target = $region5
  $region4: #{feature_extraction_forward.58} parent=0 // pred_region
    _
  $region5: #{feature_extraction_forward.58} parent=0 // pred_fallthru
    _
  // Predicated region
  $region6: #{feature_extraction_forward.58} parent=0 // pred_check
    _
  $region7: #{feature_extraction_forward.58} parent=0 // pred_check_branch
    %11 = sbr.rel (0) target = $region9
  $region8: #{feature_extraction_forward.58} parent=0 // pred_region
    _
  $region9: #{feature_extraction_forward.58} parent=0 // pred_fallthru
    _
  // Predicated region
  $region10: #{feature_extraction_forward.58} parent=0 // pred_check
    _
  $region11: #{feature_extraction_forward.58} parent=0 // pred_check_branch
    %13 = sbr.rel (0) target = $region13
  $region12: #{feature_extraction_forward.58} parent=0 // pred_region
    _
  $region13: #{feature_extraction_forward.58} parent=0 // pred_fallthru
    _
  %v15 = vld [vmem:[%s0] sm:$0xf]
  %v16 = vld [vmem:[%s0 + $0x4] sm:$0xf]
  %v17 = vld [vmem:[%s0 + $0x8] sm:$0xf]
  %v18 = vld [vmem:[%s0 + $0xc] sm:$0xf]
  %v19 = vld [vmem:[%s0 + $0x10] sm:$0xf]
  %v20 = vld [vmem:[%s0 + $0x14] sm:$0xf]
  %v21 = vld [vmem:[%s0 + $0x18] sm:$0xf]
  %v22 = vld [vmem:[%s0 + $0x1c] sm:$0xf]
  %v23 = vld [vmem:[%s1] sm:$0xf]
  %v24 = vld [vmem:[%s1 + $0x4] sm:$0xf]
  %v25 = vld [vmem:[%s1 + $0x8] sm:$0xf]
  %v26 = vld [vmem:[%s1 + $0xc] sm:$0xf]
  %v27 = vld [vmem:[%s2] sm:$0xff]
  %v28 = vld [vmem:[%s2 + $0x8] sm:$0xff]
  %v29 = vld [vmem:[%s2 + $0x10] sm:$0xff]
  %v30 = vld [vmem:[%s2 + $0x18] sm:$0xff]
  %v31 = vld [vmem:[%s2 + $0x20] sm:$0xff]
  %v32 = vld [vmem:[%s2 + $0x28] sm:$0xff]
  %v33 = vld [vmem:[%s2 + $0x30] sm:$0xff]
  %v34 = vld [vmem:[%s2 + $0x38] sm:$0xff]
  %36 = vset.pattern.permute.xlu0 0
  %37 = vperm.xlu0 %36, %v27
  %v38 = vpop.permute.xlu0 %37
  %41 = vset.pattern.permute.xlu0 0
  %42 = vperm.xlu0 %41, %v28
  %v43 = vpop.permute.xlu0 %42
  %46 = vset.pattern.permute.xlu0 0
  %47 = vperm.xlu0 %46, %v29
  %v48 = vpop.permute.xlu0 %47
  %51 = vset.pattern.permute.xlu0 0
  %52 = vperm.xlu0 %51, %v30
  %v53 = vpop.permute.xlu0 %52
  %56 = vset.pattern.permute.xlu0 0
  %57 = vperm.xlu0 %56, %v31
  %v58 = vpop.permute.xlu0 %57
  %61 = vset.pattern.permute.xlu0 0
  %62 = vperm.xlu0 %61, %v32
  %v63 = vpop.permute.xlu0 %62
  %66 = vset.pattern.permute.xlu0 0
  %67 = vperm.xlu0 %66, %v33
  %v68 = vpop.permute.xlu0 %67
  %71 = vset.pattern.permute.xlu0 0
  %72 = vperm.xlu0 %71, %v34
  %v73 = vpop.permute.xlu0 %72
  %v83 = vunpack.c.l.b16 %v15
  %v84 = vunpack.c.l.b16 %v16
  %v85 = vunpack.c.l.b16 %v17
  %v86 = vunpack.c.l.b16 %v18
  %v87 = vunpack.c.l.b16 %v19
  %v88 = vunpack.c.l.b16 %v20
  %v89 = vunpack.c.l.b16 %v21
  %v90 = vunpack.c.l.b16 %v22
  %v91 = vpack.c.b16 %v84, %v83
  %v92 = vpack.c.b16 %v86, %v85
  %v93 = vpack.c.b16 %v88, %v87
  %v94 = vpack.c.b16 %v90, %v89
  %v99 = vunpack.c.l.b16 %v23
  %v100 = vunpack.c.l.b16 %v24
  %v101 = vunpack.c.l.b16 %v25
  %v102 = vunpack.c.l.b16 %v26
  %v103 = vpack.c.b16 %v100, %v99
  %v104 = vpack.c.b16 %v102, %v101
  %vm107 = vcmask 261120
  %v109 = vsel %vm107, %v91, 0
  %v112 = vsel %vm107, %v92, 0
  %v115 = vsel %vm107, %v93, 0
  %v118 = vsel %vm107, %v94, 0
  %120 = vmatpush.bf16.msra.mxu0 0
  %121 = vmatpush.bf16.msra.mxu0 0
  %122 = vmatpush.bf16.msra.mxu0 0
  %123 = vmatpush.bf16.msra.mxu0 0
  %124 = vmatpush.bf16.msra.mxu0 0
  %125 = vmatpush.bf16.msra.mxu0 0
  %126 = vmatpush.bf16.msra.mxu0 %v104
  %127 = vmatpush.bf16.msra.mxu0 %v103
  %128 = vmatmul.bf16.gmra.mxu0 %v109
  %v129 = vpop.f32.mrf.mxu0
  %v130 = vadd.f32 %v38, %v129
  %v131 = vpop.f32.mrf.mxu0
  %v132 = vadd.f32 %v43, %v131
  %133 = vmatmul.bf16.gmra.mxu0 %v112
  %v134 = vpop.f32.mrf.mxu0
  %v135 = vadd.f32 %v48, %v134
  %v136 = vpop.f32.mrf.mxu0
  %v137 = vadd.f32 %v53, %v136
  %138 = vmatmul.bf16.gmra.mxu0 %v115
  %v139 = vpop.f32.mrf.mxu0
  %v140 = vadd.f32 %v58, %v139
  %v141 = vpop.f32.mrf.mxu0
  %v142 = vadd.f32 %v63, %v141
  %143 = vmatmul.bf16.gmra.mxu0 %v118
  %v144 = vpop.f32.mrf.mxu0
  %v145 = vadd.f32 %v68, %v144
  %v146 = vpop.f32.mrf.mxu0
  %v147 = vadd.f32 %v73, %v146
  %148 = vdwg.mxu0
  %149 = vst [vmem:[%s3] sm:$0xff] %v130
  %150 = vst [vmem:[%s3 + $0x8] sm:$0xff] %v132
  %151 = vst [vmem:[%s3 + $0x10] sm:$0xff] %v135
  %152 = vst [vmem:[%s3 + $0x18] sm:$0xff] %v137
  %153 = vst [vmem:[%s3 + $0x20] sm:$0xff] %v140
  %154 = vst [vmem:[%s3 + $0x28] sm:$0xff] %v142
  %155 = vst [vmem:[%s3 + $0x30] sm:$0xff] %v145
  %156 = vst [vmem:[%s3 + $0x38] sm:$0xff] %v147
  // Predicated region
  $region14: #{feature_extraction_forward.58} parent=0 // pred_check
    _
  $region15: #{feature_extraction_forward.58} parent=0 // pred_check_branch
    %158 = sbr.rel (0) target = $region17
  $region16: #{feature_extraction_forward.58} parent=0 // pred_region
    _
  $region17: #{feature_extraction_forward.58} parent=0 // pred_fallthru
    _
  // Predicated region
  $region18: #{feature_extraction_forward.58} parent=0 // pred_check
    _
  $region19: #{feature_extraction_forward.58} parent=0 // pred_check_branch
    %160 = sbr.rel (0) target = $region21
  $region20: #{feature_extraction_forward.58} parent=0 // pred_region
    _
  $region21: #{feature_extraction_forward.58} parent=0 // pred_fallthru
    _

// kernel: feature_extraction_forward.60
$region0: #{feature_extraction_forward.60}
  #allocation0 [shape = 'u32[]', space=smem, size = 0x4, offset = 0x4, fixed_abs, tag = 'smem constant byte address 0x4 - core index']
  #allocation1 [shape = 'u32[72,128]{1,0:T(1,128)}', space=vmem, size = 0x9000, scoped, tag = 'internal scratch']
  %s0 = inlined_call_operand.vmem [shape: bf16[64,576], index: 0, kind: input, shape index: {}]
  %s1 = inlined_call_operand.vmem [shape: bf16[576,128], index: 1, kind: input, shape index: {}]
  %s2 = inlined_call_operand.vmem [shape: f32[64,1], index: 2, kind: input, shape index: {}]
  %s3 = inlined_call_operand.vmem [shape: f32[64,128], index: 3, kind: output, shape index: {}]
  %s4 = sld [smem:[#allocation0]]
  $region22: #{feature_extraction_forward.60} parent=0
    _
  %s6 = ssub.s32 1, %s4
  %s7 = scalar_select 0, %s6, %s4
  // Predicated region
  $region2: #{feature_extraction_forward.60} parent=0 // pred_check
    _
  $region3: #{feature_extraction_forward.60} parent=0 // pred_check_branch
    %9 = sbr.rel (0) target = $region5
  $region4: #{feature_extraction_forward.60} parent=0 // pred_region
    _
  $region5: #{feature_extraction_forward.60} parent=0 // pred_fallthru
    _
  // Predicated region
  $region6: #{feature_extraction_forward.60} parent=0 // pred_check
    _
  $region7: #{feature_extraction_forward.60} parent=0 // pred_check_branch
    %11 = sbr.rel (0) target = $region9
  $region8: #{feature_extraction_forward.60} parent=0 // pred_region
    _
  $region9: #{feature_extraction_forward.60} parent=0 // pred_fallthru
    _
  // Predicated region
  $region10: #{feature_extraction_forward.60} parent=0 // pred_check
    _
  $region11: #{feature_extraction_forward.60} parent=0 // pred_check_branch
    %13 = sbr.rel (0) target = $region13
  $region12: #{feature_extraction_forward.60} parent=0 // pred_region
    _
  $region13: #{feature_extraction_forward.60} parent=0 // pred_fallthru
    _
  %v15 = vld [vmem:[%s0] sm:$0xff]
  %v16 = vld [vmem:[%s0 + $0x8] sm:$0xff]
  %v17 = vld [vmem:[%s0 + $0x10] sm:$0xf]
  %v18 = vld [vmem:[%s0 + $0x14] sm:$0xff]
  %v19 = vld [vmem:[%s0 + $0x1c] sm:$0xff]
  %v20 = vld [vmem:[%s0 + $0x24] sm:$0xf]
  %v21 = vld [vmem:[%s0 + $0x28] sm:$0xff]
  %v22 = vld [vmem:[%s0 + $0x30] sm:$0xff]
  %v23 = vld [vmem:[%s0 + $0x38] sm:$0xf]
  %v24 = vld [vmem:[%s0 + $0x3c] sm:$0xff]
  %v25 = vld [vmem:[%s0 + $0x44] sm:$0xff]
  %v26 = vld [vmem:[%s0 + $0x4c] sm:$0xf]
  %v27 = vld [vmem:[%s0 + $0x50] sm:$0xff]
  %v28 = vld [vmem:[%s0 + $0x58] sm:$0xff]
  %v29 = vld [vmem:[%s0 + $0x60] sm:$0xf]
  %v30 = vld [vmem:[%s0 + $0x64] sm:$0xff]
  %v31 = vld [vmem:[%s0 + $0x6c] sm:$0xff]
  %v32 = vld [vmem:[%s0 + $0x74] sm:$0xf]
  %v33 = vld [vmem:[%s0 + $0x78] sm:$0xff]
  %v34 = vld [vmem:[%s0 + $0x80] sm:$0xff]
  %v35 = vld [vmem:[%s0 + $0x88] sm:$0xf]
  %v36 = vld [vmem:[%s0 + $0x8c] sm:$0xff]
  %v37 = vld [vmem:[%s0 + $0x94] sm:$0xff]
  %v38 = vld [vmem:[%s0 + $0x9c] sm:$0xf]
  %v39 = vld [vmem:[%s1] sm:$0xf]
  %v40 = vld [vmem:[%s1 + $0x4] sm:$0xf]
  %v41 = vld [vmem:[%s1 + $0x8] sm:$0xf]
  %v42 = vld [vmem:[%s1 + $0xc] sm:$0xf]
  %v43 = vld [vmem:[%s1 + $0x10] sm:$0xf]
  %v44 = vld [vmem:[%s1 + $0x14] sm:$0xf]
  %v45 = vld [vmem:[%s1 + $0x18] sm:$0xf]
  %v46 = vld [vmem:[%s1 + $0x1c] sm:$0xf]
  %v47 = vld [vmem:[%s1 + $0x20] sm:$0xf]
  %v48 = vld [vmem:[%s1 + $0x24] sm:$0xf]
  %v49 = vld [vmem:[%s1 + $0x28] sm:$0xf]
  %v50 = vld [vmem:[%s1 + $0x2c] sm:$0xf]
  %v51 = vld [vmem:[%s1 + $0x30] sm:$0xf]
  %v52 = vld [vmem:[%s1 + $0x34] sm:$0xf]
  %v53 = vld [vmem:[%s1 + $0x38] sm:$0xf]
  %v54 = vld [vmem:[%s1 + $0x3c] sm:$0xf]
  %v55 = vld [vmem:[%s1 + $0x40] sm:$0xf]
  %v56 = vld [vmem:[%s1 + $0x44] sm:$0xf]
  %v57 = vld [vmem:[%s1 + $0x48] sm:$0xf]
  %v58 = vld [vmem:[%s1 + $0x4c] sm:$0xf]
  %v59 = vld [vmem:[%s1 + $0x50] sm:$0xf]
  %v60 = vld [vmem:[%s1 + $0x54] sm:$0xf]
  %v61 = vld [vmem:[%s1 + $0x58] sm:$0xf]
  %v62 = vld [vmem:[%s1 + $0x5c] sm:$0xf]
  %v63 = vld [vmem:[%s1 + $0x60] sm:$0xf]
  %v64 = vld [vmem:[%s1 + $0x64] sm:$0xf]
  %v65 = vld [vmem:[%s1 + $0x68] sm:$0xf]
  %v66 = vld [vmem:[%s1 + $0x6c] sm:$0xf]
  %v67 = vld [vmem:[%s1 + $0x70] sm:$0xf]
  %v68 = vld [vmem:[%s1 + $0x74] sm:$0xf]
  %v69 = vld [vmem:[%s1 + $0x78] sm:$0xf]
  %v70 = vld [vmem:[%s1 + $0x7c] sm:$0xf]
  %v71 = vld [vmem:[%s1 + $0x80] sm:$0xf]
  %v72 = vld [vmem:[%s1 + $0x84] sm:$0xf]
  %v73 = vld [vmem:[%s1 + $0x88] sm:$0xf]
  %v74 = vld [vmem:[%s1 + $0x8c] sm:$0xf]
  %v75 = vld [vmem:[%s1 + $0x90] sm:$0xf]
  %v76 = vld [vmem:[%s1 + $0x94] sm:$0xf]
  %v77 = vld [vmem:[%s1 + $0x98] sm:$0xf]
  %v78 = vld [vmem:[%s1 + $0x9c] sm:$0xf]
  %v79 = vld [vmem:[%s1 + $0xa0] sm:$0xf]
  %v80 = vld [vmem:[%s1 + $0xa4] sm:$0xf]
  %v81 = vld [vmem:[%s1 + $0xa8] sm:$0xf]
  %v82 = vld [vmem:[%s1 + $0xac] sm:$0xf]
  %v83 = vld [vmem:[%s1 + $0xb0] sm:$0xf]
  %v84 = vld [vmem:[%s1 + $0xb4] sm:$0xf]
  %v85 = vld [vmem:[%s1 + $0xb8] sm:$0xf]
  %v86 = vld [vmem:[%s1 + $0xbc] sm:$0xf]
  %v87 = vld [vmem:[%s1 + $0xc0] sm:$0xf]
  %v88 = vld [vmem:[%s1 + $0xc4] sm:$0xf]
  %v89 = vld [vmem:[%s1 + $0xc8] sm:$0xf]
  %v90 = vld [vmem:[%s1 + $0xcc] sm:$0xf]
  %v91 = vld [vmem:[%s1 + $0xd0] sm:$0xf]
  %v92 = vld [vmem:[%s1 + $0xd4] sm:$0xf]
  %v93 = vld [vmem:[%s1 + $0xd8] sm:$0xf]
  %v94 = vld [vmem:[%s1 + $0xdc] sm:$0xf]
  %v95 = vld [vmem:[%s1 + $0xe0] sm:$0xf]
  %v96 = vld [vmem:[%s1 + $0xe4] sm:$0xf]
  %v97 = vld [vmem:[%s1 + $0xe8] sm:$0xf]
  %v98 = vld [vmem:[%s1 + $0xec] sm:$0xf]
  %v99 = vld [vmem:[%s1 + $0xf0] sm:$0xf]
  %v100 = vld [vmem:[%s1 + $0xf4] sm:$0xf]
  %v101 = vld [vmem:[%s1 + $0xf8] sm:$0xf]
  %v102 = vld [vmem:[%s1 + $0xfc] sm:$0xf]
  %v103 = vld [vmem:[%s1 + $0x100] sm:$0xf]
  %v104 = vld [vmem:[%s1 + $0x104] sm:$0xf]
  %v105 = vld [vmem:[%s1 + $0x108] sm:$0xf]
  %v106 = vld [vmem:[%s1 + $0x10c] sm:$0xf]
  %v107 = vld [vmem:[%s1 + $0x110] sm:$0xf]
  %v108 = vld [vmem:[%s1 + $0x114] sm:$0xf]
  %v109 = vld [vmem:[%s1 + $0x118] sm:$0xf]
  %v110 = vld [vmem:[%s1 + $0x11c] sm:$0xf]
  %v111 = vld [vmem:[%s2] sm:$0xff]
  %v112 = vld [vmem:[%s2 + $0x8] sm:$0xff]
  %v113 = vld [vmem:[%s2 + $0x10] sm:$0xff]
  %v114 = vld [vmem:[%s2 + $0x18] sm:$0xff]
  %v115 = vld [vmem:[%s2 + $0x20] sm:$0xff]
  %v116 = vld [vmem:[%s2 + $0x28] sm:$0xff]
  %v117 = vld [vmem:[%s2 + $0x30] sm:$0xff]
  %v118 = vld [vmem:[%s2 + $0x38] sm:$0xff]
  %120 = vset.pattern.permute.xlu0 0
  %121 = vperm.xlu0 %120, %v111
  %v122 = vpop.permute.xlu0 %121
  %125 = vset.pattern.permute.xlu0 0
  %126 = vperm.xlu0 %125, %v112
  %v127 = vpop.permute.xlu0 %126
  %130 = vset.pattern.permute.xlu0 0
  %131 = vperm.xlu0 %130, %v113
  %v132 = vpop.permute.xlu0 %131
  %135 = vset.pattern.permute.xlu0 0
  %136 = vperm.xlu0 %135, %v114
  %v137 = vpop.permute.xlu0 %136
  %140 = vset.pattern.permute.xlu0 0
  %141 = vperm.xlu0 %140, %v115
  %v142 = vpop.permute.xlu0 %141
  %145 = vset.pattern.permute.xlu0 0
  %146 = vperm.xlu0 %145, %v116
  %v147 = vpop.permute.xlu0 %146
  %150 = vset.pattern.permute.xlu0 0
  %151 = vperm.xlu0 %150, %v117
  %v152 = vpop.permute.xlu0 %151
  %155 = vset.pattern.permute.xlu0 0
  %156 = vperm.xlu0 %155, %v118
  %v157 = vpop.permute.xlu0 %156
  %v183 = vunpack.c.l.b16 %v15
  %v184 = vunpack.c.h.b16 %v15
  %v185 = vunpack.c.l.b16 %v16
  %v186 = vunpack.c.h.b16 %v16
  %v187 = vunpack.c.l.b16 %v17
  %v188 = vunpack.c.l.b16 %v18
  %v189 = vunpack.c.h.b16 %v18
  %v190 = vunpack.c.l.b16 %v19
  %v191 = vunpack.c.h.b16 %v19
  %v192 = vunpack.c.l.b16 %v20
  %v193 = vunpack.c.l.b16 %v21
  %v194 = vunpack.c.h.b16 %v21
  %v195 = vunpack.c.l.b16 %v22
  %v196 = vunpack.c.h.b16 %v22
  %v197 = vunpack.c.l.b16 %v23
  %v198 = vunpack.c.l.b16 %v24
  %v199 = vunpack.c.h.b16 %v24
  %v200 = vunpack.c.l.b16 %v25
  %v201 = vunpack.c.h.b16 %v25
  %v202 = vunpack.c.l.b16 %v26
  %v203 = vunpack.c.l.b16 %v27
  %v204 = vunpack.c.h.b16 %v27
  %v205 = vunpack.c.l.b16 %v28
  %v206 = vunpack.c.h.b16 %v28
  %v207 = vunpack.c.l.b16 %v29
  %v208 = vunpack.c.l.b16 %v30
  %v209 = vunpack.c.h.b16 %v30
  %v210 = vunpack.c.l.b16 %v31
  %v211 = vunpack.c.h.b16 %v31
  %v212 = vunpack.c.l.b16 %v32
  %v213 = vunpack.c.l.b16 %v33
  %v214 = vunpack.c.h.b16 %v33
  %v215 = vunpack.c.l.b16 %v34
  %v216 = vunpack.c.h.b16 %v34
  %v217 = vunpack.c.l.b16 %v35
  %v218 = vunpack.c.l.b16 %v36
  %v219 = vunpack.c.h.b16 %v36
  %v220 = vunpack.c.l.b16 %v37
  %v221 = vunpack.c.h.b16 %v37
  %v222 = vunpack.c.l.b16 %v38
  %v223 = vpack.c.b16 %v188, %v183
  %v224 = vpack.c.b16 %v189, %v184
  %v225 = vpack.c.b16 %v190, %v185
  %v226 = vpack.c.b16 %v191, %v186
  %v227 = vpack.c.b16 %v192, %v187
  %v228 = vpack.c.b16 %v198, %v193
  %v229 = vpack.c.b16 %v199, %v194
  %v230 = vpack.c.b16 %v200, %v195
  %v231 = vpack.c.b16 %v201, %v196
  %v232 = vpack.c.b16 %v202, %v197
  %v233 = vpack.c.b16 %v208, %v203
  %v234 = vpack.c.b16 %v209, %v204
  %v235 = vpack.c.b16 %v210, %v205
  %v236 = vpack.c.b16 %v211, %v206
  %v237 = vpack.c.b16 %v212, %v207
  %v238 = vpack.c.b16 %v218, %v213
  %v239 = vpack.c.b16 %v219, %v214
  %v240 = vpack.c.b16 %v220, %v215
  %v241 = vpack.c.b16 %v221, %v216
  %v242 = vpack.c.b16 %v222, %v217
  %v331 = vunpack.c.l.b16 %v39
  %v332 = vunpack.c.l.b16 %v40
  %v333 = vunpack.c.l.b16 %v41
  %v334 = vunpack.c.l.b16 %v42
  %v335 = vunpack.c.l.b16 %v43
  %v336 = vunpack.c.l.b16 %v44
  %v337 = vunpack.c.l.b16 %v45
  %v338 = vunpack.c.l.b16 %v46
  %v339 = vunpack.c.l.b16 %v47
  %v340 = vunpack.c.l.b16 %v48
  %v341 = vunpack.c.l.b16 %v49
  %v342 = vunpack.c.l.b16 %v50
  %v343 = vunpack.c.l.b16 %v51
  %v344 = vunpack.c.l.b16 %v52
  %v345 = vunpack.c.l.b16 %v53
  %v346 = vunpack.c.l.b16 %v54
  %v347 = vunpack.c.l.b16 %v55
  %v348 = vunpack.c.l.b16 %v56
  %v349 = vunpack.c.l.b16 %v57
  %v350 = vunpack.c.l.b16 %v58
  %v351 = vunpack.c.l.b16 %v59
  %v352 = vunpack.c.l.b16 %v60
  %v353 = vunpack.c.l.b16 %v61
  %v354 = vunpack.c.l.b16 %v62
  %v355 = vunpack.c.l.b16 %v63
  %v356 = vunpack.c.l.b16 %v64
  %v357 = vunpack.c.l.b16 %v65
  %v358 = vunpack.c.l.b16 %v66
  %v359 = vunpack.c.l.b16 %v67
  %v360 = vunpack.c.l.b16 %v68
  %v361 = vunpack.c.l.b16 %v69
  %v362 = vunpack.c.l.b16 %v70
  %v363 = vunpack.c.l.b16 %v71
  %v364 = vunpack.c.l.b16 %v72
  %v365 = vunpack.c.l.b16 %v73
  %v366 = vunpack.c.l.b16 %v74
  %v367 = vunpack.c.l.b16 %v75
  %v368 = vunpack.c.l.b16 %v76
  %v369 = vunpack.c.l.b16 %v77
  %v370 = vunpack.c.l.b16 %v78
  %v371 = vunpack.c.l.b16 %v79
  %v372 = vunpack.c.l.b16 %v80
  %v373 = vunpack.c.l.b16 %v81
  %v374 = vunpack.c.l.b16 %v82
  %v375 = vunpack.c.l.b16 %v83
  %v376 = vunpack.c.l.b16 %v84
  %v377 = vunpack.c.l.b16 %v85
  %v378 = vunpack.c.l.b16 %v86
  %v379 = vunpack.c.l.b16 %v87
  %v380 = vunpack.c.l.b16 %v88
  %v381 = vunpack.c.l.b16 %v89
  %v382 = vunpack.c.l.b16 %v90
  %v383 = vunpack.c.l.b16 %v91
  %v384 = vunpack.c.l.b16 %v92
  %v385 = vunpack.c.l.b16 %v93
  %v386 = vunpack.c.l.b16 %v94
  %v387 = vunpack.c.l.b16 %v95
  %v388 = vunpack.c.l.b16 %v96
  %v389 = vunpack.c.l.b16 %v97
  %v390 = vunpack.c.l.b16 %v98
  %v391 = vunpack.c.l.b16 %v99
  %v392 = vunpack.c.l.b16 %v100
  %v393 = vunpack.c.l.b16 %v101
  %v394 = vunpack.c.l.b16 %v102
  %v395 = vunpack.c.l.b16 %v103
  %v396 = vunpack.c.l.b16 %v104
  %v397 = vunpack.c.l.b16 %v105
  %v398 = vunpack.c.l.b16 %v106
  %v399 = vunpack.c.l.b16 %v107
  %v400 = vunpack.c.l.b16 %v108
  %v401 = vunpack.c.l.b16 %v109
  %v402 = vunpack.c.l.b16 %v110
  %v403 = vpack.c.b16 %v332, %v331
  %v404 = vpack.c.b16 %v334, %v333
  %v405 = vpack.c.b16 %v336, %v335
  %v406 = vpack.c.b16 %v338, %v337
  %v407 = vpack.c.b16 %v340, %v339
  %v408 = vpack.c.b16 %v342, %v341
  %v409 = vpack.c.b16 %v344, %v343
  %v410 = vpack.c.b16 %v346, %v345
  %v411 = vpack.c.b16 %v348, %v347
  %v412 = vpack.c.b16 %v350, %v349
  %v413 = vpack.c.b16 %v352, %v351
  %v414 = vpack.c.b16 %v354, %v353
  %v415 = vpack.c.b16 %v356, %v355
  %v416 = vpack.c.b16 %v358, %v357
  %v417 = vpack.c.b16 %v360, %v359
  %v418 = vpack.c.b16 %v362, %v361
  %v419 = vpack.c.b16 %v364, %v363
  %v420 = vpack.c.b16 %v366, %v365
  %v421 = vpack.c.b16 %v368, %v367
  %v422 = vpack.c.b16 %v370, %v369
  %v423 = vpack.c.b16 %v372, %v371
  %v424 = vpack.c.b16 %v374, %v373
  %v425 = vpack.c.b16 %v376, %v375
  %v426 = vpack.c.b16 %v378, %v377
  %v427 = vpack.c.b16 %v380, %v379
  %v428 = vpack.c.b16 %v382, %v381
  %v429 = vpack.c.b16 %v384, %v383
  %v430 = vpack.c.b16 %v386, %v385
  %v431 = vpack.c.b16 %v388, %v387
  %v432 = vpack.c.b16 %v390, %v389
  %v433 = vpack.c.b16 %v392, %v391
  %v434 = vpack.c.b16 %v394, %v393
  %v435 = vpack.c.b16 %v396, %v395
  %v436 = vpack.c.b16 %v398, %v397
  %v437 = vpack.c.b16 %v400, %v399
  %v438 = vpack.c.b16 %v402, %v401
  %vm475 = vcmask 523264
  %v477 = vsel %vm475, %v227, 0
  %v480 = vsel %vm475, %v232, 0
  %v483 = vsel %vm475, %v237, 0
  %v486 = vsel %vm475, %v242, 0
  %488 = vmatpush.bf16.msra.mxu0 %v410
  %489 = vmatpush.bf16.msra.mxu0 %v409
  %490 = vmatpush.bf16.msra.mxu0 %v408
  %491 = vmatpush.bf16.msra.mxu0 %v407
  %492 = vmatpush.bf16.msra.mxu0 %v406
  %493 = vmatpush.bf16.msra.mxu0 %v405
  %494 = vmatpush.bf16.msra.mxu0 %v404
  %495 = vmatpush.bf16.msra.mxu0 %v403
  %496 = vmatmul.bf16.gmra.mxu0 %v223
  %v497 = vpop.f32.mrf.mxu0
  %v498 = vadd.f32 %v122, %v497
  %v499 = vpop.f32.mrf.mxu0
  %v500 = vadd.f32 %v127, %v499
  %501 = vmatmul.bf16.gmra.mxu0 %v228
  %v502 = vpop.f32.mrf.mxu0
  %v503 = vadd.f32 %v132, %v502
  %v504 = vpop.f32.mrf.mxu0
  %v505 = vadd.f32 %v137, %v504
  %506 = vmatmul.bf16.gmra.mxu0 %v233
  %v507 = vpop.f32.mrf.mxu0
  %v508 = vadd.f32 %v142, %v507
  %v509 = vpop.f32.mrf.mxu0
  %v510 = vadd.f32 %v147, %v509
  %511 = vmatmul.bf16.gmra.mxu0 %v238
  %v512 = vpop.f32.mrf.mxu0
  %v513 = vadd.f32 %v152, %v512
  %v514 = vpop.f32.mrf.mxu0
  %v515 = vadd.f32 %v157, %v514
  %516 = vdwg.mxu0
  %517 = vmatpush.bf16.msra.mxu0 %v418
  %518 = vmatpush.bf16.msra.mxu0 %v417
  %519 = vmatpush.bf16.msra.mxu0 %v416
  %520 = vmatpush.bf16.msra.mxu0 %v415
  %521 = vmatpush.bf16.msra.mxu0 %v414
  %522 = vmatpush.bf16.msra.mxu0 %v413
  %523 = vmatpush.bf16.msra.mxu0 %v412
  %524 = vmatpush.bf16.msra.mxu0 %v411
  %525 = vmatmul.bf16.gmra.mxu0 %v224
  %v526 = vpop.f32.mrf.mxu0
  %v527 = vadd.f32 %v498, %v526
  %v528 = vpop.f32.mrf.mxu0
  %v529 = vadd.f32 %v500, %v528
  %530 = vmatmul.bf16.gmra.mxu0 %v229
  %v531 = vpop.f32.mrf.mxu0
  %v532 = vadd.f32 %v503, %v531
  %v533 = vpop.f32.mrf.mxu0
  %v534 = vadd.f32 %v505, %v533
  %535 = vmatmul.bf16.gmra.mxu0 %v234
  %v536 = vpop.f32.mrf.mxu0
  %v537 = vadd.f32 %v508, %v536
  %v538 = vpop.f32.mrf.mxu0
  %v539 = vadd.f32 %v510, %v538
  %540 = vmatmul.bf16.gmra.mxu0 %v239
  %v541 = vpop.f32.mrf.mxu0
  %v542 = vadd.f32 %v513, %v541
  %v543 = vpop.f32.mrf.mxu0
  %v544 = vadd.f32 %v515, %v543
  %545 = vdwg.mxu0
  %546 = vmatpush.bf16.msra.mxu0 %v426
  %547 = vmatpush.bf16.msra.mxu0 %v425
  %548 = vmatpush.bf16.msra.mxu0 %v424
  %549 = vmatpush.bf16.msra.mxu0 %v423
  %550 = vmatpush.bf16.msra.mxu0 %v422
  %551 = vmatpush.bf16.msra.mxu0 %v421
  %552 = vmatpush.bf16.msra.mxu0 %v420
  %553 = vmatpush.bf16.msra.mxu0 %v419
  %554 = vmatmul.bf16.gmra.mxu0 %v225
  %v555 = vpop.f32.mrf.mxu0
  %v556 = vadd.f32 %v527, %v555
  %v557 = vpop.f32.mrf.mxu0
  %v558 = vadd.f32 %v529, %v557
  %559 = vmatmul.bf16.gmra.mxu0 %v230
  %v560 = vpop.f32.mrf.mxu0
  %v561 = vadd.f32 %v532, %v560
  %v562 = vpop.f32.mrf.mxu0
  %v563 = vadd.f32 %v534, %v562
  %564 = vmatmul.bf16.gmra.mxu0 %v235
  %v565 = vpop.f32.mrf.mxu0
  %v566 = vadd.f32 %v537, %v565
  %v567 = vpop.f32.mrf.mxu0
  %v568 = vadd.f32 %v539, %v567
  %569 = vmatmul.bf16.gmra.mxu0 %v240
  %v570 = vpop.f32.mrf.mxu0
  %v571 = vadd.f32 %v542, %v570
  %v572 = vpop.f32.mrf.mxu0
  %v573 = vadd.f32 %v544, %v572
  %574 = vdwg.mxu0
  %575 = vmatpush.bf16.msra.mxu0 %v434
  %576 = vmatpush.bf16.msra.mxu0 %v433
  %577 = vmatpush.bf16.msra.mxu0 %v432
  %578 = vmatpush.bf16.msra.mxu0 %v431
  %579 = vmatpush.bf16.msra.mxu0 %v430
  %580 = vmatpush.bf16.msra.mxu0 %v429
  %581 = vmatpush.bf16.msra.mxu0 %v428
  %582 = vmatpush.bf16.msra.mxu0 %v427
  %583 = vmatmul.bf16.gmra.mxu0 %v226
  %v584 = vpop.f32.mrf.mxu0
  %v585 = vadd.f32 %v556, %v584
  %v586 = vpop.f32.mrf.mxu0
  %v587 = vadd.f32 %v558, %v586
  %588 = vmatmul.bf16.gmra.mxu0 %v231
  %v589 = vpop.f32.mrf.mxu0
  %v590 = vadd.f32 %v561, %v589
  %v591 = vpop.f32.mrf.mxu0
  %v592 = vadd.f32 %v563, %v591
  %593 = vmatmul.bf16.gmra.mxu0 %v236
  %v594 = vpop.f32.mrf.mxu0
  %v595 = vadd.f32 %v566, %v594
  %v596 = vpop.f32.mrf.mxu0
  %v597 = vadd.f32 %v568, %v596
  %598 = vmatmul.bf16.gmra.mxu0 %v241
  %v599 = vpop.f32.mrf.mxu0
  %v600 = vadd.f32 %v571, %v599
  %v601 = vpop.f32.mrf.mxu0
  %v602 = vadd.f32 %v573, %v601
  %603 = vdwg.mxu0
  %604 = vmatpush.bf16.msra.mxu0 0
  %605 = vmatpush.bf16.msra.mxu0 0
  %606 = vmatpush.bf16.msra.mxu0 0
  %607 = vmatpush.bf16.msra.mxu0 0
  %608 = vmatpush.bf16.msra.mxu0 %v438
  %609 = vmatpush.bf16.msra.mxu0 %v437
  %610 = vmatpush.bf16.msra.mxu0 %v436
  %611 = vmatpush.bf16.msra.mxu0 %v435
  %612 = vmatmul.bf16.gmra.mxu0 %v477
  %v613 = vpop.f32.mrf.mxu0
  %v614 = vadd.f32 %v585, %v613
  %v615 = vpop.f32.mrf.mxu0
  %v616 = vadd.f32 %v587, %v615
  %617 = vmatmul.bf16.gmra.mxu0 %v480
  %v618 = vpop.f32.mrf.mxu0
  %v619 = vadd.f32 %v590, %v618
  %v620 = vpop.f32.mrf.mxu0
  %v621 = vadd.f32 %v592, %v620
  %622 = vmatmul.bf16.gmra.mxu0 %v483
  %v623 = vpop.f32.mrf.mxu0
  %v624 = vadd.f32 %v595, %v623
  %v625 = vpop.f32.mrf.mxu0
  %v626 = vadd.f32 %v597, %v625
  %627 = vmatmul.bf16.gmra.mxu0 %v486
  %v628 = vpop.f32.mrf.mxu0
  %v629 = vadd.f32 %v600, %v628
  %v630 = vpop.f32.mrf.mxu0
  %v631 = vadd.f32 %v602, %v630
  %632 = vdwg.mxu0
  %v633 = vmax.f32 %v614, 0.0
  %v634 = vmax.f32 %v616, 0.0
  %v635 = vmax.f32 %v619, 0.0
  %v636 = vmax.f32 %v621, 0.0
  %v637 = vmax.f32 %v624, 0.0
  %v638 = vmax.f32 %v626, 0.0
  %v639 = vmax.f32 %v629, 0.0
  %v640 = vmax.f32 %v631, 0.0
  %641 = vst [vmem:[%s3] sm:$0xff] %v633
  %642 = vst [vmem:[%s3 + $0x8] sm:$0xff] %v634
  %643 = vst [vmem:[%s3 + $0x10] sm:$0xff] %v635
  %644 = vst [vmem:[%s3 + $0x18] sm:$0xff] %v636
  %645 = vst [vmem:[%s3 + $0x20] sm:$0xff] %v637
  %646 = vst [vmem:[%s3 + $0x28] sm:$0xff] %v638
  %647 = vst [vmem:[%s3 + $0x30] sm:$0xff] %v639
  %648 = vst [vmem:[%s3 + $0x38] sm:$0xff] %v640
  // Predicated region
  $region14: #{feature_extraction_forward.60} parent=0 // pred_check
    _
  $region15: #{feature_extraction_forward.60} parent=0 // pred_check_branch
    %650 = sbr.rel (0) target = $region17
  $region16: #{feature_extraction_forward.60} parent=0 // pred_region
    _
  $region17: #{feature_extraction_forward.60} parent=0 // pred_fallthru
    _
  // Predicated region
  $region18: #{feature_extraction_forward.60} parent=0 // pred_check
    _
  $region19: #{feature_extraction_forward.60} parent=0 // pred_check_branch
    %652 = sbr.rel (0) target = $region21
  $region20: #{feature_extraction_forward.60} parent=0 // pred_region
    _
  $region21: #{feature_extraction_forward.60} parent=0 // pred_fallthru
    _

// kernel: feature_extraction_forward.59
$region0: #{feature_extraction_forward.59}
  #allocation0 [shape = 'u32[]', space=smem, size = 0x4, offset = 0x4, fixed_abs, tag = 'smem constant byte address 0x4 - core index']
  #allocation1 [shape = 'u32[72,128]{1,0:T(1,128)}', space=vmem, size = 0x9000, scoped, tag = 'internal scratch']
  %s0 = inlined_call_operand.vmem [shape: bf16[64,576], index: 0, kind: input, shape index: {}]
  %s1 = inlined_call_operand.vmem [shape: bf16[576,128], index: 1, kind: input, shape index: {}]
  %s2 = inlined_call_operand.vmem [shape: f32[64,1], index: 2, kind: input, shape index: {}]
  %s3 = inlined_call_operand.vmem [shape: f32[64,128], index: 3, kind: input, shape index: {}]
  %s4 = inlined_call_operand.vmem [shape: f32[64,128], index: 4, kind: output, shape index: {}]
  %s5 = sld [smem:[#allocation0]]
  $region26: #{feature_extraction_forward.59} parent=0
    _
  %s7 = ssub.s32 1, %s5
  %s8 = scalar_select 0, %s7, %s5
  // Predicated region
  $region2: #{feature_extraction_forward.59} parent=0 // pred_check
    _
  $region3: #{feature_extraction_forward.59} parent=0 // pred_check_branch
    %10 = sbr.rel (0) target = $region5
  $region4: #{feature_extraction_forward.59} parent=0 // pred_region
    _
  $region5: #{feature_extraction_forward.59} parent=0 // pred_fallthru
    _
  // Predicated region
  $region6: #{feature_extraction_forward.59} parent=0 // pred_check
    _
  $region7: #{feature_extraction_forward.59} parent=0 // pred_check_branch
    %12 = sbr.rel (0) target = $region9
  $region8: #{feature_extraction_forward.59} parent=0 // pred_region
    _
  $region9: #{feature_extraction_forward.59} parent=0 // pred_fallthru
    _
  // Predicated region
  $region10: #{feature_extraction_forward.59} parent=0 // pred_check
    _
  $region11: #{feature_extraction_forward.59} parent=0 // pred_check_branch
    %14 = sbr.rel (0) target = $region13
  $region12: #{feature_extraction_forward.59} parent=0 // pred_region
    _
  $region13: #{feature_extraction_forward.59} parent=0 // pred_fallthru
    _
  // Predicated region
  $region14: #{feature_extraction_forward.59} parent=0 // pred_check
    _
  $region15: #{feature_extraction_forward.59} parent=0 // pred_check_branch
    %16 = sbr.rel (0) target = $region17
  $region16: #{feature_extraction_forward.59} parent=0 // pred_region
    _
  $region17: #{feature_extraction_forward.59} parent=0 // pred_fallthru
    _
  %v18 = vld [vmem:[%s0] sm:$0xff]
  %v19 = vld [vmem:[%s0 + $0x8] sm:$0xff]
  %v20 = vld [vmem:[%s0 + $0x10] sm:$0xf]
  %v21 = vld [vmem:[%s0 + $0x14] sm:$0xff]
  %v22 = vld [vmem:[%s0 + $0x1c] sm:$0xff]
  %v23 = vld [vmem:[%s0 + $0x24] sm:$0xf]
  %v24 = vld [vmem:[%s0 + $0x28] sm:$0xff]
  %v25 = vld [vmem:[%s0 + $0x30] sm:$0xff]
  %v26 = vld [vmem:[%s0 + $0x38] sm:$0xf]
  %v27 = vld [vmem:[%s0 + $0x3c] sm:$0xff]
  %v28 = vld [vmem:[%s0 + $0x44] sm:$0xff]
  %v29 = vld [vmem:[%s0 + $0x4c] sm:$0xf]
  %v30 = vld [vmem:[%s0 + $0x50] sm:$0xff]
  %v31 = vld [vmem:[%s0 + $0x58] sm:$0xff]
  %v32 = vld [vmem:[%s0 + $0x60] sm:$0xf]
  %v33 = vld [vmem:[%s0 + $0x64] sm:$0xff]
  %v34 = vld [vmem:[%s0 + $0x6c] sm:$0xff]
  %v35 = vld [vmem:[%s0 + $0x74] sm:$0xf]
  %v36 = vld [vmem:[%s0 + $0x78] sm:$0xff]
  %v37 = vld [vmem:[%s0 + $0x80] sm:$0xff]
  %v38 = vld [vmem:[%s0 + $0x88] sm:$0xf]
  %v39 = vld [vmem:[%s0 + $0x8c] sm:$0xff]
  %v40 = vld [vmem:[%s0 + $0x94] sm:$0xff]
  %v41 = vld [vmem:[%s0 + $0x9c] sm:$0xf]
  %v42 = vld [vmem:[%s1] sm:$0xf]
  %v43 = vld [vmem:[%s1 + $0x4] sm:$0xf]
  %v44 = vld [vmem:[%s1 + $0x8] sm:$0xf]
  %v45 = vld [vmem:[%s1 + $0xc] sm:$0xf]
  %v46 = vld [vmem:[%s1 + $0x10] sm:$0xf]
  %v47 = vld [vmem:[%s1 + $0x14] sm:$0xf]
  %v48 = vld [vmem:[%s1 + $0x18] sm:$0xf]
  %v49 = vld [vmem:[%s1 + $0x1c] sm:$0xf]
  %v50 = vld [vmem:[%s1 + $0x20] sm:$0xf]
  %v51 = vld [vmem:[%s1 + $0x24] sm:$0xf]
  %v52 = vld [vmem:[%s1 + $0x28] sm:$0xf]
  %v53 = vld [vmem:[%s1 + $0x2c] sm:$0xf]
  %v54 = vld [vmem:[%s1 + $0x30] sm:$0xf]
  %v55 = vld [vmem:[%s1 + $0x34] sm:$0xf]
  %v56 = vld [vmem:[%s1 + $0x38] sm:$0xf]
  %v57 = vld [vmem:[%s1 + $0x3c] sm:$0xf]
  %v58 = vld [vmem:[%s1 + $0x40] sm:$0xf]
  %v59 = vld [vmem:[%s1 + $0x44] sm:$0xf]
  %v60 = vld [vmem:[%s1 + $0x48] sm:$0xf]
  %v61 = vld [vmem:[%s1 + $0x4c] sm:$0xf]
  %v62 = vld [vmem:[%s1 + $0x50] sm:$0xf]
  %v63 = vld [vmem:[%s1 + $0x54] sm:$0xf]
  %v64 = vld [vmem:[%s1 + $0x58] sm:$0xf]
  %v65 = vld [vmem:[%s1 + $0x5c] sm:$0xf]
  %v66 = vld [vmem:[%s1 + $0x60] sm:$0xf]
  %v67 = vld [vmem:[%s1 + $0x64] sm:$0xf]
  %v68 = vld [vmem:[%s1 + $0x68] sm:$0xf]
  %v69 = vld [vmem:[%s1 + $0x6c] sm:$0xf]
  %v70 = vld [vmem:[%s1 + $0x70] sm:$0xf]
  %v71 = vld [vmem:[%s1 + $0x74] sm:$0xf]
  %v72 = vld [vmem:[%s1 + $0x78] sm:$0xf]
  %v73 = vld [vmem:[%s1 + $0x7c] sm:$0xf]
  %v74 = vld [vmem:[%s1 + $0x80] sm:$0xf]
  %v75 = vld [vmem:[%s1 + $0x84] sm:$0xf]
  %v76 = vld [vmem:[%s1 + $0x88] sm:$0xf]
  %v77 = vld [vmem:[%s1 + $0x8c] sm:$0xf]
  %v78 = vld [vmem:[%s1 + $0x90] sm:$0xf]
  %v79 = vld [vmem:[%s1 + $0x94] sm:$0xf]
  %v80 = vld [vmem:[%s1 + $0x98] sm:$0xf]
  %v81 = vld [vmem:[%s1 + $0x9c] sm:$0xf]
  %v82 = vld [vmem:[%s1 + $0xa0] sm:$0xf]
  %v83 = vld [vmem:[%s1 + $0xa4] sm:$0xf]
  %v84 = vld [vmem:[%s1 + $0xa8] sm:$0xf]
  %v85 = vld [vmem:[%s1 + $0xac] sm:$0xf]
  %v86 = vld [vmem:[%s1 + $0xb0] sm:$0xf]
  %v87 = vld [vmem:[%s1 + $0xb4] sm:$0xf]
  %v88 = vld [vmem:[%s1 + $0xb8] sm:$0xf]
  %v89 = vld [vmem:[%s1 + $0xbc] sm:$0xf]
  %v90 = vld [vmem:[%s1 + $0xc0] sm:$0xf]
  %v91 = vld [vmem:[%s1 + $0xc4] sm:$0xf]
  %v92 = vld [vmem:[%s1 + $0xc8] sm:$0xf]
  %v93 = vld [vmem:[%s1 + $0xcc] sm:$0xf]
  %v94 = vld [vmem:[%s1 + $0xd0] sm:$0xf]
  %v95 = vld [vmem:[%s1 + $0xd4] sm:$0xf]
  %v96 = vld [vmem:[%s1 + $0xd8] sm:$0xf]
  %v97 = vld [vmem:[%s1 + $0xdc] sm:$0xf]
  %v98 = vld [vmem:[%s1 + $0xe0] sm:$0xf]
  %v99 = vld [vmem:[%s1 + $0xe4] sm:$0xf]
  %v100 = vld [vmem:[%s1 + $0xe8] sm:$0xf]
  %v101 = vld [vmem:[%s1 + $0xec] sm:$0xf]
  %v102 = vld [vmem:[%s1 + $0xf0] sm:$0xf]
  %v103 = vld [vmem:[%s1 + $0xf4] sm:$0xf]
  %v104 = vld [vmem:[%s1 + $0xf8] sm:$0xf]
  %v105 = vld [vmem:[%s1 + $0xfc] sm:$0xf]
  %v106 = vld [vmem:[%s1 + $0x100] sm:$0xf]
  %v107 = vld [vmem:[%s1 + $0x104] sm:$0xf]
  %v108 = vld [vmem:[%s1 + $0x108] sm:$0xf]
  %v109 = vld [vmem:[%s1 + $0x10c] sm:$0xf]
  %v110 = vld [vmem:[%s1 + $0x110] sm:$0xf]
  %v111 = vld [vmem:[%s1 + $0x114] sm:$0xf]
  %v112 = vld [vmem:[%s1 + $0x118] sm:$0xf]
  %v113 = vld [vmem:[%s1 + $0x11c] sm:$0xf]
  %v114 = vld [vmem:[%s2] sm:$0xff]
  %v115 = vld [vmem:[%s2 + $0x8] sm:$0xff]
  %v116 = vld [vmem:[%s2 + $0x10] sm:$0xff]
  %v117 = vld [vmem:[%s2 + $0x18] sm:$0xff]
  %v118 = vld [vmem:[%s2 + $0x20] sm:$0xff]
  %v119 = vld [vmem:[%s2 + $0x28] sm:$0xff]
  %v120 = vld [vmem:[%s2 + $0x30] sm:$0xff]
  %v121 = vld [vmem:[%s2 + $0x38] sm:$0xff]
  %123 = vset.pattern.permute.xlu0 0
  %124 = vperm.xlu0 %123, %v114
  %v125 = vpop.permute.xlu0 %124
  %128 = vset.pattern.permute.xlu0 0
  %129 = vperm.xlu0 %128, %v115
  %v130 = vpop.permute.xlu0 %129
  %133 = vset.pattern.permute.xlu0 0
  %134 = vperm.xlu0 %133, %v116
  %v135 = vpop.permute.xlu0 %134
  %138 = vset.pattern.permute.xlu0 0
  %139 = vperm.xlu0 %138, %v117
  %v140 = vpop.permute.xlu0 %139
  %143 = vset.pattern.permute.xlu0 0
  %144 = vperm.xlu0 %143, %v118
  %v145 = vpop.permute.xlu0 %144
  %148 = vset.pattern.permute.xlu0 0
  %149 = vperm.xlu0 %148, %v119
  %v150 = vpop.permute.xlu0 %149
  %153 = vset.pattern.permute.xlu0 0
  %154 = vperm.xlu0 %153, %v120
  %v155 = vpop.permute.xlu0 %154
  %158 = vset.pattern.permute.xlu0 0
  %159 = vperm.xlu0 %158, %v121
  %v160 = vpop.permute.xlu0 %159
  %v186 = vunpack.c.l.b16 %v18
  %v187 = vunpack.c.h.b16 %v18
  %v188 = vunpack.c.l.b16 %v19
  %v189 = vunpack.c.h.b16 %v19
  %v190 = vunpack.c.l.b16 %v20
  %v191 = vunpack.c.l.b16 %v21
  %v192 = vunpack.c.h.b16 %v21
  %v193 = vunpack.c.l.b16 %v22
  %v194 = vunpack.c.h.b16 %v22
  %v195 = vunpack.c.l.b16 %v23
  %v196 = vunpack.c.l.b16 %v24
  %v197 = vunpack.c.h.b16 %v24
  %v198 = vunpack.c.l.b16 %v25
  %v199 = vunpack.c.h.b16 %v25
  %v200 = vunpack.c.l.b16 %v26
  %v201 = vunpack.c.l.b16 %v27
  %v202 = vunpack.c.h.b16 %v27
  %v203 = vunpack.c.l.b16 %v28
  %v204 = vunpack.c.h.b16 %v28
  %v205 = vunpack.c.l.b16 %v29
  %v206 = vunpack.c.l.b16 %v30
  %v207 = vunpack.c.h.b16 %v30
  %v208 = vunpack.c.l.b16 %v31
  %v209 = vunpack.c.h.b16 %v31
  %v210 = vunpack.c.l.b16 %v32
  %v211 = vunpack.c.l.b16 %v33
  %v212 = vunpack.c.h.b16 %v33
  %v213 = vunpack.c.l.b16 %v34
  %v214 = vunpack.c.h.b16 %v34
  %v215 = vunpack.c.l.b16 %v35
  %v216 = vunpack.c.l.b16 %v36
  %v217 = vunpack.c.h.b16 %v36
  %v218 = vunpack.c.l.b16 %v37
  %v219 = vunpack.c.h.b16 %v37
  %v220 = vunpack.c.l.b16 %v38
  %v221 = vunpack.c.l.b16 %v39
  %v222 = vunpack.c.h.b16 %v39
  %v223 = vunpack.c.l.b16 %v40
  %v224 = vunpack.c.h.b16 %v40
  %v225 = vunpack.c.l.b16 %v41
  %v226 = vpack.c.b16 %v191, %v186
  %v227 = vpack.c.b16 %v192, %v187
  %v228 = vpack.c.b16 %v193, %v188
  %v229 = vpack.c.b16 %v194, %v189
  %v230 = vpack.c.b16 %v195, %v190
  %v231 = vpack.c.b16 %v201, %v196
  %v232 = vpack.c.b16 %v202, %v197
  %v233 = vpack.c.b16 %v203, %v198
  %v234 = vpack.c.b16 %v204, %v199
  %v235 = vpack.c.b16 %v205, %v200
  %v236 = vpack.c.b16 %v211, %v206
  %v237 = vpack.c.b16 %v212, %v207
  %v238 = vpack.c.b16 %v213, %v208
  %v239 = vpack.c.b16 %v214, %v209
  %v240 = vpack.c.b16 %v215, %v210
  %v241 = vpack.c.b16 %v221, %v216
  %v242 = vpack.c.b16 %v222, %v217
  %v243 = vpack.c.b16 %v223, %v218
  %v244 = vpack.c.b16 %v224, %v219
  %v245 = vpack.c.b16 %v225, %v220
  %v334 = vunpack.c.l.b16 %v42
  %v335 = vunpack.c.l.b16 %v43
  %v336 = vunpack.c.l.b16 %v44
  %v337 = vunpack.c.l.b16 %v45
  %v338 = vunpack.c.l.b16 %v46
  %v339 = vunpack.c.l.b16 %v47
  %v340 = vunpack.c.l.b16 %v48
  %v341 = vunpack.c.l.b16 %v49
  %v342 = vunpack.c.l.b16 %v50
  %v343 = vunpack.c.l.b16 %v51
  %v344 = vunpack.c.l.b16 %v52
  %v345 = vunpack.c.l.b16 %v53
  %v346 = vunpack.c.l.b16 %v54
  %v347 = vunpack.c.l.b16 %v55
  %v348 = vunpack.c.l.b16 %v56
  %v349 = vunpack.c.l.b16 %v57
  %v350 = vunpack.c.l.b16 %v58
  %v351 = vunpack.c.l.b16 %v59
  %v352 = vunpack.c.l.b16 %v60
  %v353 = vunpack.c.l.b16 %v61
  %v354 = vunpack.c.l.b16 %v62
  %v355 = vunpack.c.l.b16 %v63
  %v356 = vunpack.c.l.b16 %v64
  %v357 = vunpack.c.l.b16 %v65
  %v358 = vunpack.c.l.b16 %v66
  %v359 = vunpack.c.l.b16 %v67
  %v360 = vunpack.c.l.b16 %v68
  %v361 = vunpack.c.l.b16 %v69
  %v362 = vunpack.c.l.b16 %v70
  %v363 = vunpack.c.l.b16 %v71
  %v364 = vunpack.c.l.b16 %v72
  %v365 = vunpack.c.l.b16 %v73
  %v366 = vunpack.c.l.b16 %v74
  %v367 = vunpack.c.l.b16 %v75
  %v368 = vunpack.c.l.b16 %v76
  %v369 = vunpack.c.l.b16 %v77
  %v370 = vunpack.c.l.b16 %v78
  %v371 = vunpack.c.l.b16 %v79
  %v372 = vunpack.c.l.b16 %v80
  %v373 = vunpack.c.l.b16 %v81
  %v374 = vunpack.c.l.b16 %v82
  %v375 = vunpack.c.l.b16 %v83
  %v376 = vunpack.c.l.b16 %v84
  %v377 = vunpack.c.l.b16 %v85
  %v378 = vunpack.c.l.b16 %v86
  %v379 = vunpack.c.l.b16 %v87
  %v380 = vunpack.c.l.b16 %v88
  %v381 = vunpack.c.l.b16 %v89
  %v382 = vunpack.c.l.b16 %v90
  %v383 = vunpack.c.l.b16 %v91
  %v384 = vunpack.c.l.b16 %v92
  %v385 = vunpack.c.l.b16 %v93
  %v386 = vunpack.c.l.b16 %v94
  %v387 = vunpack.c.l.b16 %v95
  %v388 = vunpack.c.l.b16 %v96
  %v389 = vunpack.c.l.b16 %v97
  %v390 = vunpack.c.l.b16 %v98
  %v391 = vunpack.c.l.b16 %v99
  %v392 = vunpack.c.l.b16 %v100
  %v393 = vunpack.c.l.b16 %v101
  %v394 = vunpack.c.l.b16 %v102
  %v395 = vunpack.c.l.b16 %v103
  %v396 = vunpack.c.l.b16 %v104
  %v397 = vunpack.c.l.b16 %v105
  %v398 = vunpack.c.l.b16 %v106
  %v399 = vunpack.c.l.b16 %v107
  %v400 = vunpack.c.l.b16 %v108
  %v401 = vunpack.c.l.b16 %v109
  %v402 = vunpack.c.l.b16 %v110
  %v403 = vunpack.c.l.b16 %v111
  %v404 = vunpack.c.l.b16 %v112
  %v405 = vunpack.c.l.b16 %v113
  %v406 = vpack.c.b16 %v335, %v334
  %v407 = vpack.c.b16 %v337, %v336
  %v408 = vpack.c.b16 %v339, %v338
  %v409 = vpack.c.b16 %v341, %v340
  %v410 = vpack.c.b16 %v343, %v342
  %v411 = vpack.c.b16 %v345, %v344
  %v412 = vpack.c.b16 %v347, %v346
  %v413 = vpack.c.b16 %v349, %v348
  %v414 = vpack.c.b16 %v351, %v350
  %v415 = vpack.c.b16 %v353, %v352
  %v416 = vpack.c.b16 %v355, %v354
  %v417 = vpack.c.b16 %v357, %v356
  %v418 = vpack.c.b16 %v359, %v358
  %v419 = vpack.c.b16 %v361, %v360
  %v420 = vpack.c.b16 %v363, %v362
  %v421 = vpack.c.b16 %v365, %v364
  %v422 = vpack.c.b16 %v367, %v366
  %v423 = vpack.c.b16 %v369, %v368
  %v424 = vpack.c.b16 %v371, %v370
  %v425 = vpack.c.b16 %v373, %v372
  %v426 = vpack.c.b16 %v375, %v374
  %v427 = vpack.c.b16 %v377, %v376
  %v428 = vpack.c.b16 %v379, %v378
  %v429 = vpack.c.b16 %v381, %v380
  %v430 = vpack.c.b16 %v383, %v382
  %v431 = vpack.c.b16 %v385, %v384
  %v432 = vpack.c.b16 %v387, %v386
  %v433 = vpack.c.b16 %v389, %v388
  %v434 = vpack.c.b16 %v391, %v390
  %v435 = vpack.c.b16 %v393, %v392
  %v436 = vpack.c.b16 %v395, %v394
  %v437 = vpack.c.b16 %v397, %v396
  %v438 = vpack.c.b16 %v399, %v398
  %v439 = vpack.c.b16 %v401, %v400
  %v440 = vpack.c.b16 %v403, %v402
  %v441 = vpack.c.b16 %v405, %v404
  %vm478 = vcmask 523264
  %v480 = vsel %vm478, %v230, 0
  %v483 = vsel %vm478, %v235, 0
  %v486 = vsel %vm478, %v240, 0
  %v489 = vsel %vm478, %v245, 0
  %491 = vmatpush.bf16.msra.mxu0 %v413
  %492 = vmatpush.bf16.msra.mxu0 %v412
  %493 = vmatpush.bf16.msra.mxu0 %v411
  %494 = vmatpush.bf16.msra.mxu0 %v410
  %495 = vmatpush.bf16.msra.mxu0 %v409
  %496 = vmatpush.bf16.msra.mxu0 %v408
  %497 = vmatpush.bf16.msra.mxu0 %v407
  %498 = vmatpush.bf16.msra.mxu0 %v406
  %499 = vmatmul.bf16.gmra.mxu0 %v226
  %v500 = vpop.f32.mrf.mxu0
  %v501 = vadd.f32 %v125, %v500
  %v502 = vpop.f32.mrf.mxu0
  %v503 = vadd.f32 %v130, %v502
  %504 = vmatmul.bf16.gmra.mxu0 %v231
  %v505 = vpop.f32.mrf.mxu0
  %v506 = vadd.f32 %v135, %v505
  %v507 = vpop.f32.mrf.mxu0
  %v508 = vadd.f32 %v140, %v507
  %509 = vmatmul.bf16.gmra.mxu0 %v236
  %v510 = vpop.f32.mrf.mxu0
  %v511 = vadd.f32 %v145, %v510
  %v512 = vpop.f32.mrf.mxu0
  %v513 = vadd.f32 %v150, %v512
  %514 = vmatmul.bf16.gmra.mxu0 %v241
  %v515 = vpop.f32.mrf.mxu0
  %v516 = vadd.f32 %v155, %v515
  %v517 = vpop.f32.mrf.mxu0
  %v518 = vadd.f32 %v160, %v517
  %519 = vdwg.mxu0
  %520 = vmatpush.bf16.msra.mxu0 %v421
  %521 = vmatpush.bf16.msra.mxu0 %v420
  %522 = vmatpush.bf16.msra.mxu0 %v419
  %523 = vmatpush.bf16.msra.mxu0 %v418
  %524 = vmatpush.bf16.msra.mxu0 %v417
  %525 = vmatpush.bf16.msra.mxu0 %v416
  %526 = vmatpush.bf16.msra.mxu0 %v415
  %527 = vmatpush.bf16.msra.mxu0 %v414
  %528 = vmatmul.bf16.gmra.mxu0 %v227
  %v529 = vpop.f32.mrf.mxu0
  %v530 = vadd.f32 %v501, %v529
  %v531 = vpop.f32.mrf.mxu0
  %v532 = vadd.f32 %v503, %v531
  %533 = vmatmul.bf16.gmra.mxu0 %v232
  %v534 = vpop.f32.mrf.mxu0
  %v535 = vadd.f32 %v506, %v534
  %v536 = vpop.f32.mrf.mxu0
  %v537 = vadd.f32 %v508, %v536
  %538 = vmatmul.bf16.gmra.mxu0 %v237
  %v539 = vpop.f32.mrf.mxu0
  %v540 = vadd.f32 %v511, %v539
  %v541 = vpop.f32.mrf.mxu0
  %v542 = vadd.f32 %v513, %v541
  %543 = vmatmul.bf16.gmra.mxu0 %v242
  %v544 = vpop.f32.mrf.mxu0
  %v545 = vadd.f32 %v516, %v544
  %v546 = vpop.f32.mrf.mxu0
  %v547 = vadd.f32 %v518, %v546
  %548 = vdwg.mxu0
  %549 = vmatpush.bf16.msra.mxu0 %v429
  %550 = vmatpush.bf16.msra.mxu0 %v428
  %551 = vmatpush.bf16.msra.mxu0 %v427
  %552 = vmatpush.bf16.msra.mxu0 %v426
  %553 = vmatpush.bf16.msra.mxu0 %v425
  %554 = vmatpush.bf16.msra.mxu0 %v424
  %555 = vmatpush.bf16.msra.mxu0 %v423
  %556 = vmatpush.bf16.msra.mxu0 %v422
  %557 = vmatmul.bf16.gmra.mxu0 %v228
  %v558 = vpop.f32.mrf.mxu0
  %v559 = vadd.f32 %v530, %v558
  %v560 = vpop.f32.mrf.mxu0
  %v561 = vadd.f32 %v532, %v560
  %562 = vmatmul.bf16.gmra.mxu0 %v233
  %v563 = vpop.f32.mrf.mxu0
  %v564 = vadd.f32 %v535, %v563
  %v565 = vpop.f32.mrf.mxu0
  %v566 = vadd.f32 %v537, %v565
  %567 = vmatmul.bf16.gmra.mxu0 %v238
  %v568 = vpop.f32.mrf.mxu0
  %v569 = vadd.f32 %v540, %v568
  %v570 = vpop.f32.mrf.mxu0
  %v571 = vadd.f32 %v542, %v570
  %572 = vmatmul.bf16.gmra.mxu0 %v243
  %v573 = vpop.f32.mrf.mxu0
  %v574 = vadd.f32 %v545, %v573
  %v575 = vpop.f32.mrf.mxu0
  %v576 = vadd.f32 %v547, %v575
  %577 = vdwg.mxu0
  %578 = vmatpush.bf16.msra.mxu0 %v437
  %579 = vmatpush.bf16.msra.mxu0 %v436
  %580 = vmatpush.bf16.msra.mxu0 %v435
  %581 = vmatpush.bf16.msra.mxu0 %v434
  %582 = vmatpush.bf16.msra.mxu0 %v433
  %583 = vmatpush.bf16.msra.mxu0 %v432
  %584 = vmatpush.bf16.msra.mxu0 %v431
  %585 = vmatpush.bf16.msra.mxu0 %v430
  %586 = vmatmul.bf16.gmra.mxu0 %v229
  %v587 = vpop.f32.mrf.mxu0
  %v588 = vadd.f32 %v559, %v587
  %v589 = vpop.f32.mrf.mxu0
  %v590 = vadd.f32 %v561, %v589
  %591 = vmatmul.bf16.gmra.mxu0 %v234
  %v592 = vpop.f32.mrf.mxu0
  %v593 = vadd.f32 %v564, %v592
  %v594 = vpop.f32.mrf.mxu0
  %v595 = vadd.f32 %v566, %v594
  %596 = vmatmul.bf16.gmra.mxu0 %v239
  %v597 = vpop.f32.mrf.mxu0
  %v598 = vadd.f32 %v569, %v597
  %v599 = vpop.f32.mrf.mxu0
  %v600 = vadd.f32 %v571, %v599
  %601 = vmatmul.bf16.gmra.mxu0 %v244
  %v602 = vpop.f32.mrf.mxu0
  %v603 = vadd.f32 %v574, %v602
  %v604 = vpop.f32.mrf.mxu0
  %v605 = vadd.f32 %v576, %v604
  %606 = vdwg.mxu0
  %607 = vmatpush.bf16.msra.mxu0 0
  %608 = vmatpush.bf16.msra.mxu0 0
  %609 = vmatpush.bf16.msra.mxu0 0
  %610 = vmatpush.bf16.msra.mxu0 0
  %611 = vmatpush.bf16.msra.mxu0 %v441
  %612 = vmatpush.bf16.msra.mxu0 %v440
  %613 = vmatpush.bf16.msra.mxu0 %v439
  %614 = vmatpush.bf16.msra.mxu0 %v438
  %615 = vmatmul.bf16.gmra.mxu0 %v480
  %v616 = vpop.f32.mrf.mxu0
  %v617 = vadd.f32 %v588, %v616
  %v618 = vpop.f32.mrf.mxu0
  %v619 = vadd.f32 %v590, %v618
  %620 = vmatmul.bf16.gmra.mxu0 %v483
  %v621 = vpop.f32.mrf.mxu0
  %v622 = vadd.f32 %v593, %v621
  %v623 = vpop.f32.mrf.mxu0
  %v624 = vadd.f32 %v595, %v623
  %625 = vmatmul.bf16.gmra.mxu0 %v486
  %v626 = vpop.f32.mrf.mxu0
  %v627 = vadd.f32 %v598, %v626
  %v628 = vpop.f32.mrf.mxu0
  %v629 = vadd.f32 %v600, %v628
  %630 = vmatmul.bf16.gmra.mxu0 %v489
  %v631 = vpop.f32.mrf.mxu0
  %v632 = vadd.f32 %v603, %v631
  %v633 = vpop.f32.mrf.mxu0
  %v634 = vadd.f32 %v605, %v633
  %635 = vdwg.mxu0
  %v636 = vld [vmem:[%s3] sm:$0xff]
  %v637 = vld [vmem:[%s3 + $0x8] sm:$0xff]
  %v638 = vld [vmem:[%s3 + $0x10] sm:$0xff]
  %v639 = vld [vmem:[%s3 + $0x18] sm:$0xff]
  %v640 = vld [vmem:[%s3 + $0x20] sm:$0xff]
  %v641 = vld [vmem:[%s3 + $0x28] sm:$0xff]
  %v642 = vld [vmem:[%s3 + $0x30] sm:$0xff]
  %v643 = vld [vmem:[%s3 + $0x38] sm:$0xff]
  %v644 = vadd.f32 %v617, %v636
  %v645 = vadd.f32 %v619, %v637
  %v646 = vadd.f32 %v622, %v638
  %v647 = vadd.f32 %v624, %v639
  %v648 = vadd.f32 %v627, %v640
  %v649 = vadd.f32 %v629, %v641
  %v650 = vadd.f32 %v632, %v642
  %v651 = vadd.f32 %v634, %v643
  %652 = vst [vmem:[%s4] sm:$0xff] %v644
  %653 = vst [vmem:[%s4 + $0x8] sm:$0xff] %v645
  %654 = vst [vmem:[%s4 + $0x10] sm:$0xff] %v646
  %655 = vst [vmem:[%s4 + $0x18] sm:$0xff] %v647
  %656 = vst [vmem:[%s4 + $0x20] sm:$0xff] %v648
  %657 = vst [vmem:[%s4 + $0x28] sm:$0xff] %v649
  %658 = vst [vmem:[%s4 + $0x30] sm:$0xff] %v650
  %659 = vst [vmem:[%s4 + $0x38] sm:$0xff] %v651
  // Predicated region
  $region18: #{feature_extraction_forward.59} parent=0 // pred_check
    _
  $region19: #{feature_extraction_forward.59} parent=0 // pred_check_branch
    %661 = sbr.rel (0) target = $region21
  $region20: #{feature_extraction_forward.59} parent=0 // pred_region
    _
  $region21: #{feature_extraction_forward.59} parent=0 // pred_fallthru
    _
  // Predicated region
  $region22: #{feature_extraction_forward.59} parent=0 // pred_check
    _
  $region23: #{feature_extraction_forward.59} parent=0 // pred_check_branch
    %663 = sbr.rel (0) target = $region25
  $region24: #{feature_extraction_forward.59} parent=0 // pred_region
    _
  $region25: #{feature_extraction_forward.59} parent=0 // pred_fallthru
    _

// kernel: feature_extraction_forward.66
$region0: #{feature_extraction_forward.66}
  #allocation0 [shape = 'u32[]', space=smem, size = 0x4, offset = 0x4, fixed_abs, tag = 'smem constant byte address 0x4 - core index']
  #allocation1 [shape = 'u32[72,128]{1,0:T(1,128)}', space=vmem, size = 0x9000, scoped, tag = 'internal scratch']
  %s0 = inlined_call_operand.vmem [shape: bf16[128,288], index: 0, kind: input, shape index: {}]
  %s1 = inlined_call_operand.vmem [shape: bf16[288,128], index: 1, kind: input, shape index: {}]
  %s2 = inlined_call_operand.vmem [shape: f32[128,1], index: 2, kind: input, shape index: {}]
  %s3 = inlined_call_operand.vmem [shape: f32[128,128], index: 3, kind: output, shape index: {}]
  %s4 = sld [smem:[#allocation0]]
  $region22: #{feature_extraction_forward.66} parent=0
    _
  %s6 = ssub.s32 1, %s4
  %s7 = scalar_select 0, %s6, %s4
  // Predicated region
  $region2: #{feature_extraction_forward.66} parent=0 // pred_check
    _
  $region3: #{feature_extraction_forward.66} parent=0 // pred_check_branch
    %9 = sbr.rel (0) target = $region5
  $region4: #{feature_extraction_forward.66} parent=0 // pred_region
    _
  $region5: #{feature_extraction_forward.66} parent=0 // pred_fallthru
    _
  // Predicated region
  $region6: #{feature_extraction_forward.66} parent=0 // pred_check
    _
  $region7: #{feature_extraction_forward.66} parent=0 // pred_check_branch
    %11 = sbr.rel (0) target = $region9
  $region8: #{feature_extraction_forward.66} parent=0 // pred_region
    _
  $region9: #{feature_extraction_forward.66} parent=0 // pred_fallthru
    _
  // Predicated region
  $region10: #{feature_extraction_forward.66} parent=0 // pred_check
    _
  $region11: #{feature_extraction_forward.66} parent=0 // pred_check_branch
    %13 = sbr.rel (0) target = $region13
  $region12: #{feature_extraction_forward.66} parent=0 // pred_region
    _
  $region13: #{feature_extraction_forward.66} parent=0 // pred_fallthru
    _
  %v15 = vld [vmem:[%s0] sm:$0xff]
  %v16 = vld [vmem:[%s0 + $0x8] sm:$0xf]
  %v17 = vld [vmem:[%s0 + $0xc] sm:$0xff]
  %v18 = vld [vmem:[%s0 + $0x14] sm:$0xf]
  %v19 = vld [vmem:[%s0 + $0x18] sm:$0xff]
  %v20 = vld [vmem:[%s0 + $0x20] sm:$0xf]
  %v21 = vld [vmem:[%s0 + $0x24] sm:$0xff]
  %v22 = vld [vmem:[%s0 + $0x2c] sm:$0xf]
  %v23 = vld [vmem:[%s0 + $0x30] sm:$0xff]
  %v24 = vld [vmem:[%s0 + $0x38] sm:$0xf]
  %v25 = vld [vmem:[%s0 + $0x3c] sm:$0xff]
  %v26 = vld [vmem:[%s0 + $0x44] sm:$0xf]
  %v27 = vld [vmem:[%s0 + $0x48] sm:$0xff]
  %v28 = vld [vmem:[%s0 + $0x50] sm:$0xf]
  %v29 = vld [vmem:[%s0 + $0x54] sm:$0xff]
  %v30 = vld [vmem:[%s0 + $0x5c] sm:$0xf]
  %v31 = vld [vmem:[%s0 + $0x60] sm:$0xff]
  %v32 = vld [vmem:[%s0 + $0x68] sm:$0xf]
  %v33 = vld [vmem:[%s0 + $0x6c] sm:$0xff]
  %v34 = vld [vmem:[%s0 + $0x74] sm:$0xf]
  %v35 = vld [vmem:[%s0 + $0x78] sm:$0xff]
  %v36 = vld [vmem:[%s0 + $0x80] sm:$0xf]
  %v37 = vld [vmem:[%s0 + $0x84] sm:$0xff]
  %v38 = vld [vmem:[%s0 + $0x8c] sm:$0xf]
  %v39 = vld [vmem:[%s0 + $0x90] sm:$0xff]
  %v40 = vld [vmem:[%s0 + $0x98] sm:$0xf]
  %v41 = vld [vmem:[%s0 + $0x9c] sm:$0xff]
  %v42 = vld [vmem:[%s0 + $0xa4] sm:$0xf]
  %v43 = vld [vmem:[%s0 + $0xa8] sm:$0xff]
  %v44 = vld [vmem:[%s0 + $0xb0] sm:$0xf]
  %v45 = vld [vmem:[%s0 + $0xb4] sm:$0xff]
  %v46 = vld [vmem:[%s0 + $0xbc] sm:$0xf]
  %v47 = vld [vmem:[%s1] sm:$0xf]
  %v48 = vld [vmem:[%s1 + $0x4] sm:$0xf]
  %v49 = vld [vmem:[%s1 + $0x8] sm:$0xf]
  %v50 = vld [vmem:[%s1 + $0xc] sm:$0xf]
  %v51 = vld [vmem:[%s1 + $0x10] sm:$0xf]
  %v52 = vld [vmem:[%s1 + $0x14] sm:$0xf]
  %v53 = vld [vmem:[%s1 + $0x18] sm:$0xf]
  %v54 = vld [vmem:[%s1 + $0x1c] sm:$0xf]
  %v55 = vld [vmem:[%s1 + $0x20] sm:$0xf]
  %v56 = vld [vmem:[%s1 + $0x24] sm:$0xf]
  %v57 = vld [vmem:[%s1 + $0x28] sm:$0xf]
  %v58 = vld [vmem:[%s1 + $0x2c] sm:$0xf]
  %v59 = vld [vmem:[%s1 + $0x30] sm:$0xf]
  %v60 = vld [vmem:[%s1 + $0x34] sm:$0xf]
  %v61 = vld [vmem:[%s1 + $0x38] sm:$0xf]
  %v62 = vld [vmem:[%s1 + $0x3c] sm:$0xf]
  %v63 = vld [vmem:[%s1 + $0x40] sm:$0xf]
  %v64 = vld [vmem:[%s1 + $0x44] sm:$0xf]
  %v65 = vld [vmem:[%s1 + $0x48] sm:$0xf]
  %v66 = vld [vmem:[%s1 + $0x4c] sm:$0xf]
  %v67 = vld [vmem:[%s1 + $0x50] sm:$0xf]
  %v68 = vld [vmem:[%s1 + $0x54] sm:$0xf]
  %v69 = vld [vmem:[%s1 + $0x58] sm:$0xf]
  %v70 = vld [vmem:[%s1 + $0x5c] sm:$0xf]
  %v71 = vld [vmem:[%s1 + $0x60] sm:$0xf]
  %v72 = vld [vmem:[%s1 + $0x64] sm:$0xf]
  %v73 = vld [vmem:[%s1 + $0x68] sm:$0xf]
  %v74 = vld [vmem:[%s1 + $0x6c] sm:$0xf]
  %v75 = vld [vmem:[%s1 + $0x70] sm:$0xf]
  %v76 = vld [vmem:[%s1 + $0x74] sm:$0xf]
  %v77 = vld [vmem:[%s1 + $0x78] sm:$0xf]
  %v78 = vld [vmem:[%s1 + $0x7c] sm:$0xf]
  %v79 = vld [vmem:[%s1 + $0x80] sm:$0xf]
  %v80 = vld [vmem:[%s1 + $0x84] sm:$0xf]
  %v81 = vld [vmem:[%s1 + $0x88] sm:$0xf]
  %v82 = vld [vmem:[%s1 + $0x8c] sm:$0xf]
  %v83 = vld [vmem:[%s2] sm:$0xff]
  %v84 = vld [vmem:[%s2 + $0x8] sm:$0xff]
  %v85 = vld [vmem:[%s2 + $0x10] sm:$0xff]
  %v86 = vld [vmem:[%s2 + $0x18] sm:$0xff]
  %v87 = vld [vmem:[%s2 + $0x20] sm:$0xff]
  %v88 = vld [vmem:[%s2 + $0x28] sm:$0xff]
  %v89 = vld [vmem:[%s2 + $0x30] sm:$0xff]
  %v90 = vld [vmem:[%s2 + $0x38] sm:$0xff]
  %v91 = vld [vmem:[%s2 + $0x40] sm:$0xff]
  %v92 = vld [vmem:[%s2 + $0x48] sm:$0xff]
  %v93 = vld [vmem:[%s2 + $0x50] sm:$0xff]
  %v94 = vld [vmem:[%s2 + $0x58] sm:$0xff]
  %v95 = vld [vmem:[%s2 + $0x60] sm:$0xff]
  %v96 = vld [vmem:[%s2 + $0x68] sm:$0xff]
  %v97 = vld [vmem:[%s2 + $0x70] sm:$0xff]
  %v98 = vld [vmem:[%s2 + $0x78] sm:$0xff]
  %100 = vset.pattern.permute.xlu0 0
  %101 = vperm.xlu0 %100, %v83
  %v102 = vpop.permute.xlu0 %101
  %105 = vset.pattern.permute.xlu0 0
  %106 = vperm.xlu0 %105, %v84
  %v107 = vpop.permute.xlu0 %106
  %110 = vset.pattern.permute.xlu0 0
  %111 = vperm.xlu0 %110, %v85
  %v112 = vpop.permute.xlu0 %111
  %115 = vset.pattern.permute.xlu0 0
  %116 = vperm.xlu0 %115, %v86
  %v117 = vpop.permute.xlu0 %116
  %120 = vset.pattern.permute.xlu0 0
  %121 = vperm.xlu0 %120, %v87
  %v122 = vpop.permute.xlu0 %121
  %125 = vset.pattern.permute.xlu0 0
  %126 = vperm.xlu0 %125, %v88
  %v127 = vpop.permute.xlu0 %126
  %130 = vset.pattern.permute.xlu0 0
  %131 = vperm.xlu0 %130, %v89
  %v132 = vpop.permute.xlu0 %131
  %135 = vset.pattern.permute.xlu0 0
  %136 = vperm.xlu0 %135, %v90
  %v137 = vpop.permute.xlu0 %136
  %140 = vset.pattern.permute.xlu0 0
  %141 = vperm.xlu0 %140, %v91
  %v142 = vpop.permute.xlu0 %141
  %145 = vset.pattern.permute.xlu0 0
  %146 = vperm.xlu0 %145, %v92
  %v147 = vpop.permute.xlu0 %146
  %150 = vset.pattern.permute.xlu0 0
  %151 = vperm.xlu0 %150, %v93
  %v152 = vpop.permute.xlu0 %151
  %155 = vset.pattern.permute.xlu0 0
  %156 = vperm.xlu0 %155, %v94
  %v157 = vpop.permute.xlu0 %156
  %160 = vset.pattern.permute.xlu0 0
  %161 = vperm.xlu0 %160, %v95
  %v162 = vpop.permute.xlu0 %161
  %165 = vset.pattern.permute.xlu0 0
  %166 = vperm.xlu0 %165, %v96
  %v167 = vpop.permute.xlu0 %166
  %170 = vset.pattern.permute.xlu0 0
  %171 = vperm.xlu0 %170, %v97
  %v172 = vpop.permute.xlu0 %171
  %175 = vset.pattern.permute.xlu0 0
  %176 = vperm.xlu0 %175, %v98
  %v177 = vpop.permute.xlu0 %176
  %v211 = vunpack.c.l.b16 %v15
  %v212 = vunpack.c.h.b16 %v15
  %v213 = vunpack.c.l.b16 %v16
  %v214 = vunpack.c.l.b16 %v17
  %v215 = vunpack.c.h.b16 %v17
  %v216 = vunpack.c.l.b16 %v18
  %v217 = vunpack.c.l.b16 %v19
  %v218 = vunpack.c.h.b16 %v19
  %v219 = vunpack.c.l.b16 %v20
  %v220 = vunpack.c.l.b16 %v21
  %v221 = vunpack.c.h.b16 %v21
  %v222 = vunpack.c.l.b16 %v22
  %v223 = vunpack.c.l.b16 %v23
  %v224 = vunpack.c.h.b16 %v23
  %v225 = vunpack.c.l.b16 %v24
  %v226 = vunpack.c.l.b16 %v25
  %v227 = vunpack.c.h.b16 %v25
  %v228 = vunpack.c.l.b16 %v26
  %v229 = vunpack.c.l.b16 %v27
  %v230 = vunpack.c.h.b16 %v27
  %v231 = vunpack.c.l.b16 %v28
  %v232 = vunpack.c.l.b16 %v29
  %v233 = vunpack.c.h.b16 %v29
  %v234 = vunpack.c.l.b16 %v30
  %v235 = vunpack.c.l.b16 %v31
  %v236 = vunpack.c.h.b16 %v31
  %v237 = vunpack.c.l.b16 %v32
  %v238 = vunpack.c.l.b16 %v33
  %v239 = vunpack.c.h.b16 %v33
  %v240 = vunpack.c.l.b16 %v34
  %v241 = vunpack.c.l.b16 %v35
  %v242 = vunpack.c.h.b16 %v35
  %v243 = vunpack.c.l.b16 %v36
  %v244 = vunpack.c.l.b16 %v37
  %v245 = vunpack.c.h.b16 %v37
  %v246 = vunpack.c.l.b16 %v38
  %v247 = vunpack.c.l.b16 %v39
  %v248 = vunpack.c.h.b16 %v39
  %v249 = vunpack.c.l.b16 %v40
  %v250 = vunpack.c.l.b16 %v41
  %v251 = vunpack.c.h.b16 %v41
  %v252 = vunpack.c.l.b16 %v42
  %v253 = vunpack.c.l.b16 %v43
  %v254 = vunpack.c.h.b16 %v43
  %v255 = vunpack.c.l.b16 %v44
  %v256 = vunpack.c.l.b16 %v45
  %v257 = vunpack.c.h.b16 %v45
  %v258 = vunpack.c.l.b16 %v46
  %v259 = vpack.c.b16 %v214, %v211
  %v260 = vpack.c.b16 %v215, %v212
  %v261 = vpack.c.b16 %v216, %v213
  %v262 = vpack.c.b16 %v220, %v217
  %v263 = vpack.c.b16 %v221, %v218
  %v264 = vpack.c.b16 %v222, %v219
  %v265 = vpack.c.b16 %v226, %v223
  %v266 = vpack.c.b16 %v227, %v224
  %v267 = vpack.c.b16 %v228, %v225
  %v268 = vpack.c.b16 %v232, %v229
  %v269 = vpack.c.b16 %v233, %v230
  %v270 = vpack.c.b16 %v234, %v231
  %v271 = vpack.c.b16 %v238, %v235
  %v272 = vpack.c.b16 %v239, %v236
  %v273 = vpack.c.b16 %v240, %v237
  %v274 = vpack.c.b16 %v244, %v241
  %v275 = vpack.c.b16 %v245, %v242
  %v276 = vpack.c.b16 %v246, %v243
  %v277 = vpack.c.b16 %v250, %v247
  %v278 = vpack.c.b16 %v251, %v248
  %v279 = vpack.c.b16 %v252, %v249
  %v280 = vpack.c.b16 %v256, %v253
  %v281 = vpack.c.b16 %v257, %v254
  %v282 = vpack.c.b16 %v258, %v255
  %v335 = vunpack.c.l.b16 %v47
  %v336 = vunpack.c.l.b16 %v48
  %v337 = vunpack.c.l.b16 %v49
  %v338 = vunpack.c.l.b16 %v50
  %v339 = vunpack.c.l.b16 %v51
  %v340 = vunpack.c.l.b16 %v52
  %v341 = vunpack.c.l.b16 %v53
  %v342 = vunpack.c.l.b16 %v54
  %v343 = vunpack.c.l.b16 %v55
  %v344 = vunpack.c.l.b16 %v56
  %v345 = vunpack.c.l.b16 %v57
  %v346 = vunpack.c.l.b16 %v58
  %v347 = vunpack.c.l.b16 %v59
  %v348 = vunpack.c.l.b16 %v60
  %v349 = vunpack.c.l.b16 %v61
  %v350 = vunpack.c.l.b16 %v62
  %v351 = vunpack.c.l.b16 %v63
  %v352 = vunpack.c.l.b16 %v64
  %v353 = vunpack.c.l.b16 %v65
  %v354 = vunpack.c.l.b16 %v66
  %v355 = vunpack.c.l.b16 %v67
  %v356 = vunpack.c.l.b16 %v68
  %v357 = vunpack.c.l.b16 %v69
  %v358 = vunpack.c.l.b16 %v70
  %v359 = vunpack.c.l.b16 %v71
  %v360 = vunpack.c.l.b16 %v72
  %v361 = vunpack.c.l.b16 %v73
  %v362 = vunpack.c.l.b16 %v74
  %v363 = vunpack.c.l.b16 %v75
  %v364 = vunpack.c.l.b16 %v76
  %v365 = vunpack.c.l.b16 %v77
  %v366 = vunpack.c.l.b16 %v78
  %v367 = vunpack.c.l.b16 %v79
  %v368 = vunpack.c.l.b16 %v80
  %v369 = vunpack.c.l.b16 %v81
  %v370 = vunpack.c.l.b16 %v82
  %v371 = vpack.c.b16 %v336, %v335
  %v372 = vpack.c.b16 %v338, %v337
  %v373 = vpack.c.b16 %v340, %v339
  %v374 = vpack.c.b16 %v342, %v341
  %v375 = vpack.c.b16 %v344, %v343
  %v376 = vpack.c.b16 %v346, %v345
  %v377 = vpack.c.b16 %v348, %v347
  %v378 = vpack.c.b16 %v350, %v349
  %v379 = vpack.c.b16 %v352, %v351
  %v380 = vpack.c.b16 %v354, %v353
  %v381 = vpack.c.b16 %v356, %v355
  %v382 = vpack.c.b16 %v358, %v357
  %v383 = vpack.c.b16 %v360, %v359
  %v384 = vpack.c.b16 %v362, %v361
  %v385 = vpack.c.b16 %v364, %v363
  %v386 = vpack.c.b16 %v366, %v365
  %v387 = vpack.c.b16 %v368, %v367
  %v388 = vpack.c.b16 %v370, %v369
  %vm407 = vcmask 261120
  %v409 = vsel %vm407, %v261, 0
  %v412 = vsel %vm407, %v264, 0
  %v415 = vsel %vm407, %v267, 0
  %v418 = vsel %vm407, %v270, 0
  %v421 = vsel %vm407, %v273, 0
  %v424 = vsel %vm407, %v276, 0
  %v427 = vsel %vm407, %v279, 0
  %v430 = vsel %vm407, %v282, 0
  %432 = vmatpush.bf16.msra.mxu0 %v378
  %433 = vmatpush.bf16.msra.mxu0 %v377
  %434 = vmatpush.bf16.msra.mxu0 %v376
  %435 = vmatpush.bf16.msra.mxu0 %v375
  %436 = vmatpush.bf16.msra.mxu0 %v374
  %437 = vmatpush.bf16.msra.mxu0 %v373
  %438 = vmatpush.bf16.msra.mxu0 %v372
  %439 = vmatpush.bf16.msra.mxu0 %v371
  %440 = vmatmul.bf16.gmra.mxu0 %v259
  %v441 = vpop.f32.mrf.mxu0
  %v442 = vadd.f32 %v102, %v441
  %v443 = vpop.f32.mrf.mxu0
  %v444 = vadd.f32 %v107, %v443
  %445 = vmatmul.bf16.gmra.mxu0 %v262
  %v446 = vpop.f32.mrf.mxu0
  %v447 = vadd.f32 %v112, %v446
  %v448 = vpop.f32.mrf.mxu0
  %v449 = vadd.f32 %v117, %v448
  %450 = vmatmul.bf16.gmra.mxu0 %v265
  %v451 = vpop.f32.mrf.mxu0
  %v452 = vadd.f32 %v122, %v451
  %v453 = vpop.f32.mrf.mxu0
  %v454 = vadd.f32 %v127, %v453
  %455 = vmatmul.bf16.gmra.mxu0 %v268
  %v456 = vpop.f32.mrf.mxu0
  %v457 = vadd.f32 %v132, %v456
  %v458 = vpop.f32.mrf.mxu0
  %v459 = vadd.f32 %v137, %v458
  %460 = vmatmul.bf16.gmra.mxu0 %v271
  %v461 = vpop.f32.mrf.mxu0
  %v462 = vadd.f32 %v142, %v461
  %v463 = vpop.f32.mrf.mxu0
  %v464 = vadd.f32 %v147, %v463
  %465 = vmatmul.bf16.gmra.mxu0 %v274
  %v466 = vpop.f32.mrf.mxu0
  %v467 = vadd.f32 %v152, %v466
  %v468 = vpop.f32.mrf.mxu0
  %v469 = vadd.f32 %v157, %v468
  %470 = vmatmul.bf16.gmra.mxu0 %v277
  %v471 = vpop.f32.mrf.mxu0
  %v472 = vadd.f32 %v162, %v471
  %v473 = vpop.f32.mrf.mxu0
  %v474 = vadd.f32 %v167, %v473
  %475 = vmatmul.bf16.gmra.mxu0 %v280
  %v476 = vpop.f32.mrf.mxu0
  %v477 = vadd.f32 %v172, %v476
  %v478 = vpop.f32.mrf.mxu0
  %v479 = vadd.f32 %v177, %v478
  %480 = vdwg.mxu0
  %481 = vmatpush.bf16.msra.mxu0 %v386
  %482 = vmatpush.bf16.msra.mxu0 %v385
  %483 = vmatpush.bf16.msra.mxu0 %v384
  %484 = vmatpush.bf16.msra.mxu0 %v383
  %485 = vmatpush.bf16.msra.mxu0 %v382
  %486 = vmatpush.bf16.msra.mxu0 %v381
  %487 = vmatpush.bf16.msra.mxu0 %v380
  %488 = vmatpush.bf16.msra.mxu0 %v379
  %489 = vmatmul.bf16.gmra.mxu0 %v260
  %v490 = vpop.f32.mrf.mxu0
  %v491 = vadd.f32 %v442, %v490
  %v492 = vpop.f32.mrf.mxu0
  %v493 = vadd.f32 %v444, %v492
  %494 = vmatmul.bf16.gmra.mxu0 %v263
  %v495 = vpop.f32.mrf.mxu0
  %v496 = vadd.f32 %v447, %v495
  %v497 = vpop.f32.mrf.mxu0
  %v498 = vadd.f32 %v449, %v497
  %499 = vmatmul.bf16.gmra.mxu0 %v266
  %v500 = vpop.f32.mrf.mxu0
  %v501 = vadd.f32 %v452, %v500
  %v502 = vpop.f32.mrf.mxu0
  %v503 = vadd.f32 %v454, %v502
  %504 = vmatmul.bf16.gmra.mxu0 %v269
  %v505 = vpop.f32.mrf.mxu0
  %v506 = vadd.f32 %v457, %v505
  %v507 = vpop.f32.mrf.mxu0
  %v508 = vadd.f32 %v459, %v507
  %509 = vmatmul.bf16.gmra.mxu0 %v272
  %v510 = vpop.f32.mrf.mxu0
  %v511 = vadd.f32 %v462, %v510
  %v512 = vpop.f32.mrf.mxu0
  %v513 = vadd.f32 %v464, %v512
  %514 = vmatmul.bf16.gmra.mxu0 %v275
  %v515 = vpop.f32.mrf.mxu0
  %v516 = vadd.f32 %v467, %v515
  %v517 = vpop.f32.mrf.mxu0
  %v518 = vadd.f32 %v469, %v517
  %519 = vmatmul.bf16.gmra.mxu0 %v278
  %v520 = vpop.f32.mrf.mxu0
  %v521 = vadd.f32 %v472, %v520
  %v522 = vpop.f32.mrf.mxu0
  %v523 = vadd.f32 %v474, %v522
  %524 = vmatmul.bf16.gmra.mxu0 %v281
  %v525 = vpop.f32.mrf.mxu0
  %v526 = vadd.f32 %v477, %v525
  %v527 = vpop.f32.mrf.mxu0
  %v528 = vadd.f32 %v479, %v527
  %529 = vdwg.mxu0
  %530 = vmatpush.bf16.msra.mxu0 0
  %531 = vmatpush.bf16.msra.mxu0 0
  %532 = vmatpush.bf16.msra.mxu0 0
  %533 = vmatpush.bf16.msra.mxu0 0
  %534 = vmatpush.bf16.msra.mxu0 0
  %535 = vmatpush.bf16.msra.mxu0 0
  %536 = vmatpush.bf16.msra.mxu0 %v388
  %537 = vmatpush.bf16.msra.mxu0 %v387
  %538 = vmatmul.bf16.gmra.mxu0 %v409
  %v539 = vpop.f32.mrf.mxu0
  %v540 = vadd.f32 %v491, %v539
  %v541 = vpop.f32.mrf.mxu0
  %v542 = vadd.f32 %v493, %v541
  %543 = vmatmul.bf16.gmra.mxu0 %v412
  %v544 = vpop.f32.mrf.mxu0
  %v545 = vadd.f32 %v496, %v544
  %v546 = vpop.f32.mrf.mxu0
  %v547 = vadd.f32 %v498, %v546
  %548 = vmatmul.bf16.gmra.mxu0 %v415
  %v549 = vpop.f32.mrf.mxu0
  %v550 = vadd.f32 %v501, %v549
  %v551 = vpop.f32.mrf.mxu0
  %v552 = vadd.f32 %v503, %v551
  %553 = vmatmul.bf16.gmra.mxu0 %v418
  %v554 = vpop.f32.mrf.mxu0
  %v555 = vadd.f32 %v506, %v554
  %v556 = vpop.f32.mrf.mxu0
  %v557 = vadd.f32 %v508, %v556
  %558 = vmatmul.bf16.gmra.mxu0 %v421
  %v559 = vpop.f32.mrf.mxu0
  %v560 = vadd.f32 %v511, %v559
  %v561 = vpop.f32.mrf.mxu0
  %v562 = vadd.f32 %v513, %v561
  %563 = vmatmul.bf16.gmra.mxu0 %v424
  %v564 = vpop.f32.mrf.mxu0
  %v565 = vadd.f32 %v516, %v564
  %v566 = vpop.f32.mrf.mxu0
  %v567 = vadd.f32 %v518, %v566
  %568 = vmatmul.bf16.gmra.mxu0 %v427
  %v569 = vpop.f32.mrf.mxu0
  %v570 = vadd.f32 %v521, %v569
  %v571 = vpop.f32.mrf.mxu0
  %v572 = vadd.f32 %v523, %v571
  %573 = vmatmul.bf16.gmra.mxu0 %v430
  %v574 = vpop.f32.mrf.mxu0
  %v575 = vadd.f32 %v526, %v574
  %v576 = vpop.f32.mrf.mxu0
  %v577 = vadd.f32 %v528, %v576
  %578 = vdwg.mxu0
  %v579 = vmax.f32 %v540, 0.0
  %v580 = vmax.f32 %v542, 0.0
  %v581 = vmax.f32 %v545, 0.0
  %v582 = vmax.f32 %v547, 0.0
  %v583 = vmax.f32 %v550, 0.0
  %v584 = vmax.f32 %v552, 0.0
  %v585 = vmax.f32 %v555, 0.0
  %v586 = vmax.f32 %v557, 0.0
  %v587 = vmax.f32 %v560, 0.0
  %v588 = vmax.f32 %v562, 0.0
  %v589 = vmax.f32 %v565, 0.0
  %v590 = vmax.f32 %v567, 0.0
  %v591 = vmax.f32 %v570, 0.0
  %v592 = vmax.f32 %v572, 0.0
  %v593 = vmax.f32 %v575, 0.0
  %v594 = vmax.f32 %v577, 0.0
  %595 = vst [vmem:[%s3] sm:$0xff] %v579
  %596 = vst [vmem:[%s3 + $0x8] sm:$0xff] %v580
  %597 = vst [vmem:[%s3 + $0x10] sm:$0xff] %v581
  %598 = vst [vmem:[%s3 + $0x18] sm:$0xff] %v582
  %599 = vst [vmem:[%s3 + $0x20] sm:$0xff] %v583
  %600 = vst [vmem:[%s3 + $0x28] sm:$0xff] %v584
  %601 = vst [vmem:[%s3 + $0x30] sm:$0xff] %v585
  %602 = vst [vmem:[%s3 + $0x38] sm:$0xff] %v586
  %603 = vst [vmem:[%s3 + $0x40] sm:$0xff] %v587
  %604 = vst [vmem:[%s3 + $0x48] sm:$0xff] %v588
  %605 = vst [vmem:[%s3 + $0x50] sm:$0xff] %v589
  %606 = vst [vmem:[%s3 + $0x58] sm:$0xff] %v590
  %607 = vst [vmem:[%s3 + $0x60] sm:$0xff] %v591
  %608 = vst [vmem:[%s3 + $0x68] sm:$0xff] %v592
  %609 = vst [vmem:[%s3 + $0x70] sm:$0xff] %v593
  %610 = vst [vmem:[%s3 + $0x78] sm:$0xff] %v594
  // Predicated region
  $region14: #{feature_extraction_forward.66} parent=0 // pred_check
    _
  $region15: #{feature_extraction_forward.66} parent=0 // pred_check_branch
    %612 = sbr.rel (0) target = $region17
  $region16: #{feature_extraction_forward.66} parent=0 // pred_region
    _
  $region17: #{feature_extraction_forward.66} parent=0 // pred_fallthru
    _
  // Predicated region
  $region18: #{feature_extraction_forward.66} parent=0 // pred_check
    _
  $region19: #{feature_extraction_forward.66} parent=0 // pred_check_branch
    %614 = sbr.rel (0) target = $region21
  $region20: #{feature_extraction_forward.66} parent=0 // pred_region
    _
  $region21: #{feature_extraction_forward.66} parent=0 // pred_fallthru
    _

// kernel: feature_extraction_forward.67
$region0: #{feature_extraction_forward.67}
  #allocation0 [shape = 'u32[]', space=smem, size = 0x4, offset = 0x4, fixed_abs, tag = 'smem constant byte address 0x4 - core index']
  #allocation1 [shape = 'u32[72,128]{1,0:T(1,128)}', space=vmem, size = 0x9000, scoped, tag = 'internal scratch']
  %s0 = inlined_call_operand.vmem [shape: bf16[128,32], index: 0, kind: input, shape index: {}]
  %s1 = inlined_call_operand.vmem [shape: bf16[32,128], index: 1, kind: input, shape index: {}]
  %s2 = inlined_call_operand.vmem [shape: f32[128,1], index: 2, kind: input, shape index: {}]
  %s3 = inlined_call_operand.vmem [shape: f32[128,128], index: 3, kind: output, shape index: {}]
  %s4 = sld [smem:[#allocation0]]
  $region22: #{feature_extraction_forward.67} parent=0
    _
  %s6 = ssub.s32 1, %s4
  %s7 = scalar_select 0, %s6, %s4
  // Predicated region
  $region2: #{feature_extraction_forward.67} parent=0 // pred_check
    _
  $region3: #{feature_extraction_forward.67} parent=0 // pred_check_branch
    %9 = sbr.rel (0) target = $region5
  $region4: #{feature_extraction_forward.67} parent=0 // pred_region
    _
  $region5: #{feature_extraction_forward.67} parent=0 // pred_fallthru
    _
  // Predicated region
  $region6: #{feature_extraction_forward.67} parent=0 // pred_check
    _
  $region7: #{feature_extraction_forward.67} parent=0 // pred_check_branch
    %11 = sbr.rel (0) target = $region9
  $region8: #{feature_extraction_forward.67} parent=0 // pred_region
    _
  $region9: #{feature_extraction_forward.67} parent=0 // pred_fallthru
    _
  // Predicated region
  $region10: #{feature_extraction_forward.67} parent=0 // pred_check
    _
  $region11: #{feature_extraction_forward.67} parent=0 // pred_check_branch
    %13 = sbr.rel (0) target = $region13
  $region12: #{feature_extraction_forward.67} parent=0 // pred_region
    _
  $region13: #{feature_extraction_forward.67} parent=0 // pred_fallthru
    _
  %v15 = vld [vmem:[%s0] sm:$0xf]
  %v16 = vld [vmem:[%s0 + $0x4] sm:$0xf]
  %v17 = vld [vmem:[%s0 + $0x8] sm:$0xf]
  %v18 = vld [vmem:[%s0 + $0xc] sm:$0xf]
  %v19 = vld [vmem:[%s0 + $0x10] sm:$0xf]
  %v20 = vld [vmem:[%s0 + $0x14] sm:$0xf]
  %v21 = vld [vmem:[%s0 + $0x18] sm:$0xf]
  %v22 = vld [vmem:[%s0 + $0x1c] sm:$0xf]
  %v23 = vld [vmem:[%s0 + $0x20] sm:$0xf]
  %v24 = vld [vmem:[%s0 + $0x24] sm:$0xf]
  %v25 = vld [vmem:[%s0 + $0x28] sm:$0xf]
  %v26 = vld [vmem:[%s0 + $0x2c] sm:$0xf]
  %v27 = vld [vmem:[%s0 + $0x30] sm:$0xf]
  %v28 = vld [vmem:[%s0 + $0x34] sm:$0xf]
  %v29 = vld [vmem:[%s0 + $0x38] sm:$0xf]
  %v30 = vld [vmem:[%s0 + $0x3c] sm:$0xf]
  %v31 = vld [vmem:[%s1] sm:$0xf]
  %v32 = vld [vmem:[%s1 + $0x4] sm:$0xf]
  %v33 = vld [vmem:[%s1 + $0x8] sm:$0xf]
  %v34 = vld [vmem:[%s1 + $0xc] sm:$0xf]
  %v35 = vld [vmem:[%s2] sm:$0xff]
  %v36 = vld [vmem:[%s2 + $0x8] sm:$0xff]
  %v37 = vld [vmem:[%s2 + $0x10] sm:$0xff]
  %v38 = vld [vmem:[%s2 + $0x18] sm:$0xff]
  %v39 = vld [vmem:[%s2 + $0x20] sm:$0xff]
  %v40 = vld [vmem:[%s2 + $0x28] sm:$0xff]
  %v41 = vld [vmem:[%s2 + $0x30] sm:$0xff]
  %v42 = vld [vmem:[%s2 + $0x38] sm:$0xff]
  %v43 = vld [vmem:[%s2 + $0x40] sm:$0xff]
  %v44 = vld [vmem:[%s2 + $0x48] sm:$0xff]
  %v45 = vld [vmem:[%s2 + $0x50] sm:$0xff]
  %v46 = vld [vmem:[%s2 + $0x58] sm:$0xff]
  %v47 = vld [vmem:[%s2 + $0x60] sm:$0xff]
  %v48 = vld [vmem:[%s2 + $0x68] sm:$0xff]
  %v49 = vld [vmem:[%s2 + $0x70] sm:$0xff]
  %v50 = vld [vmem:[%s2 + $0x78] sm:$0xff]
  %52 = vset.pattern.permute.xlu0 0
  %53 = vperm.xlu0 %52, %v35
  %v54 = vpop.permute.xlu0 %53
  %57 = vset.pattern.permute.xlu0 0
  %58 = vperm.xlu0 %57, %v36
  %v59 = vpop.permute.xlu0 %58
  %62 = vset.pattern.permute.xlu0 0
  %63 = vperm.xlu0 %62, %v37
  %v64 = vpop.permute.xlu0 %63
  %67 = vset.pattern.permute.xlu0 0
  %68 = vperm.xlu0 %67, %v38
  %v69 = vpop.permute.xlu0 %68
  %72 = vset.pattern.permute.xlu0 0
  %73 = vperm.xlu0 %72, %v39
  %v74 = vpop.permute.xlu0 %73
  %77 = vset.pattern.permute.xlu0 0
  %78 = vperm.xlu0 %77, %v40
  %v79 = vpop.permute.xlu0 %78
  %82 = vset.pattern.permute.xlu0 0
  %83 = vperm.xlu0 %82, %v41
  %v84 = vpop.permute.xlu0 %83
  %87 = vset.pattern.permute.xlu0 0
  %88 = vperm.xlu0 %87, %v42
  %v89 = vpop.permute.xlu0 %88
  %92 = vset.pattern.permute.xlu0 0
  %93 = vperm.xlu0 %92, %v43
  %v94 = vpop.permute.xlu0 %93
  %97 = vset.pattern.permute.xlu0 0
  %98 = vperm.xlu0 %97, %v44
  %v99 = vpop.permute.xlu0 %98
  %102 = vset.pattern.permute.xlu0 0
  %103 = vperm.xlu0 %102, %v45
  %v104 = vpop.permute.xlu0 %103
  %107 = vset.pattern.permute.xlu0 0
  %108 = vperm.xlu0 %107, %v46
  %v109 = vpop.permute.xlu0 %108
  %112 = vset.pattern.permute.xlu0 0
  %113 = vperm.xlu0 %112, %v47
  %v114 = vpop.permute.xlu0 %113
  %117 = vset.pattern.permute.xlu0 0
  %118 = vperm.xlu0 %117, %v48
  %v119 = vpop.permute.xlu0 %118
  %122 = vset.pattern.permute.xlu0 0
  %123 = vperm.xlu0 %122, %v49
  %v124 = vpop.permute.xlu0 %123
  %127 = vset.pattern.permute.xlu0 0
  %128 = vperm.xlu0 %127, %v50
  %v129 = vpop.permute.xlu0 %128
  %v147 = vunpack.c.l.b16 %v15
  %v148 = vunpack.c.l.b16 %v16
  %v149 = vunpack.c.l.b16 %v17
  %v150 = vunpack.c.l.b16 %v18
  %v151 = vunpack.c.l.b16 %v19
  %v152 = vunpack.c.l.b16 %v20
  %v153 = vunpack.c.l.b16 %v21
  %v154 = vunpack.c.l.b16 %v22
  %v155 = vunpack.c.l.b16 %v23
  %v156 = vunpack.c.l.b16 %v24
  %v157 = vunpack.c.l.b16 %v25
  %v158 = vunpack.c.l.b16 %v26
  %v159 = vunpack.c.l.b16 %v27
  %v160 = vunpack.c.l.b16 %v28
  %v161 = vunpack.c.l.b16 %v29
  %v162 = vunpack.c.l.b16 %v30
  %v163 = vpack.c.b16 %v148, %v147
  %v164 = vpack.c.b16 %v150, %v149
  %v165 = vpack.c.b16 %v152, %v151
  %v166 = vpack.c.b16 %v154, %v153
  %v167 = vpack.c.b16 %v156, %v155
  %v168 = vpack.c.b16 %v158, %v157
  %v169 = vpack.c.b16 %v160, %v159
  %v170 = vpack.c.b16 %v162, %v161
  %v175 = vunpack.c.l.b16 %v31
  %v176 = vunpack.c.l.b16 %v32
  %v177 = vunpack.c.l.b16 %v33
  %v178 = vunpack.c.l.b16 %v34
  %v179 = vpack.c.b16 %v176, %v175
  %v180 = vpack.c.b16 %v178, %v177
  %vm183 = vcmask 261120
  %v185 = vsel %vm183, %v163, 0
  %v188 = vsel %vm183, %v164, 0
  %v191 = vsel %vm183, %v165, 0
  %v194 = vsel %vm183, %v166, 0
  %v197 = vsel %vm183, %v167, 0
  %v200 = vsel %vm183, %v168, 0
  %v203 = vsel %vm183, %v169, 0
  %v206 = vsel %vm183, %v170, 0
  %208 = vmatpush.bf16.msra.mxu0 0
  %209 = vmatpush.bf16.msra.mxu0 0
  %210 = vmatpush.bf16.msra.mxu0 0
  %211 = vmatpush.bf16.msra.mxu0 0
  %212 = vmatpush.bf16.msra.mxu0 0
  %213 = vmatpush.bf16.msra.mxu0 0
  %214 = vmatpush.bf16.msra.mxu0 %v180
  %215 = vmatpush.bf16.msra.mxu0 %v179
  %216 = vmatmul.bf16.gmra.mxu0 %v185
  %v217 = vpop.f32.mrf.mxu0
  %v218 = vadd.f32 %v54, %v217
  %v219 = vpop.f32.mrf.mxu0
  %v220 = vadd.f32 %v59, %v219
  %221 = vmatmul.bf16.gmra.mxu0 %v188
  %v222 = vpop.f32.mrf.mxu0
  %v223 = vadd.f32 %v64, %v222
  %v224 = vpop.f32.mrf.mxu0
  %v225 = vadd.f32 %v69, %v224
  %226 = vmatmul.bf16.gmra.mxu0 %v191
  %v227 = vpop.f32.mrf.mxu0
  %v228 = vadd.f32 %v74, %v227
  %v229 = vpop.f32.mrf.mxu0
  %v230 = vadd.f32 %v79, %v229
  %231 = vmatmul.bf16.gmra.mxu0 %v194
  %v232 = vpop.f32.mrf.mxu0
  %v233 = vadd.f32 %v84, %v232
  %v234 = vpop.f32.mrf.mxu0
  %v235 = vadd.f32 %v89, %v234
  %236 = vmatmul.bf16.gmra.mxu0 %v197
  %v237 = vpop.f32.mrf.mxu0
  %v238 = vadd.f32 %v94, %v237
  %v239 = vpop.f32.mrf.mxu0
  %v240 = vadd.f32 %v99, %v239
  %241 = vmatmul.bf16.gmra.mxu0 %v200
  %v242 = vpop.f32.mrf.mxu0
  %v243 = vadd.f32 %v104, %v242
  %v244 = vpop.f32.mrf.mxu0
  %v245 = vadd.f32 %v109, %v244
  %246 = vmatmul.bf16.gmra.mxu0 %v203
  %v247 = vpop.f32.mrf.mxu0
  %v248 = vadd.f32 %v114, %v247
  %v249 = vpop.f32.mrf.mxu0
  %v250 = vadd.f32 %v119, %v249
  %251 = vmatmul.bf16.gmra.mxu0 %v206
  %v252 = vpop.f32.mrf.mxu0
  %v253 = vadd.f32 %v124, %v252
  %v254 = vpop.f32.mrf.mxu0
  %v255 = vadd.f32 %v129, %v254
  %256 = vdwg.mxu0
  %257 = vst [vmem:[%s3] sm:$0xff] %v218
  %258 = vst [vmem:[%s3 + $0x8] sm:$0xff] %v220
  %259 = vst [vmem:[%s3 + $0x10] sm:$0xff] %v223
  %260 = vst [vmem:[%s3 + $0x18] sm:$0xff] %v225
  %261 = vst [vmem:[%s3 + $0x20] sm:$0xff] %v228
  %262 = vst [vmem:[%s3 + $0x28] sm:$0xff] %v230
  %263 = vst [vmem:[%s3 + $0x30] sm:$0xff] %v233
  %264 = vst [vmem:[%s3 + $0x38] sm:$0xff] %v235
  %265 = vst [vmem:[%s3 + $0x40] sm:$0xff] %v238
  %266 = vst [vmem:[%s3 + $0x48] sm:$0xff] %v240
  %267 = vst [vmem:[%s3 + $0x50] sm:$0xff] %v243
  %268 = vst [vmem:[%s3 + $0x58] sm:$0xff] %v245
  %269 = vst [vmem:[%s3 + $0x60] sm:$0xff] %v248
  %270 = vst [vmem:[%s3 + $0x68] sm:$0xff] %v250
  %271 = vst [vmem:[%s3 + $0x70] sm:$0xff] %v253
  %272 = vst [vmem:[%s3 + $0x78] sm:$0xff] %v255
  // Predicated region
  $region14: #{feature_extraction_forward.67} parent=0 // pred_check
    _
  $region15: #{feature_extraction_forward.67} parent=0 // pred_check_branch
    %274 = sbr.rel (0) target = $region17
  $region16: #{feature_extraction_forward.67} parent=0 // pred_region
    _
  $region17: #{feature_extraction_forward.67} parent=0 // pred_fallthru
    _
  // Predicated region
  $region18: #{feature_extraction_forward.67} parent=0 // pred_check
    _
  $region19: #{feature_extraction_forward.67} parent=0 // pred_check_branch
    %276 = sbr.rel (0) target = $region21
  $region20: #{feature_extraction_forward.67} parent=0 // pred_region
    _
  $region21: #{feature_extraction_forward.67} parent=0 // pred_fallthru
    _

// kernel: feature_extraction_forward.68
$region0: #{feature_extraction_forward.68}
  #allocation0 [shape = 'u32[]', space=smem, size = 0x4, offset = 0x4, fixed_abs, tag = 'smem constant byte address 0x4 - core index']
  #allocation1 [shape = 'u32[72,128]{1,0:T(1,128)}', space=vmem, size = 0x9000, scoped, tag = 'internal scratch']
  %s0 = inlined_call_operand.vmem [shape: bf16[128,1152], index: 0, kind: input, shape index: {}]
  %s1 = inlined_call_operand.vmem [shape: bf16[1152,128], index: 1, kind: input, shape index: {}]
  %s2 = inlined_call_operand.vmem [shape: f32[128,1], index: 2, kind: input, shape index: {}]
  %s3 = inlined_call_operand.vmem [shape: f32[128,128], index: 3, kind: input, shape index: {}]
  %s4 = inlined_call_operand.vmem [shape: f32[128,128], index: 4, kind: output, shape index: {}]
  %s5 = sld [smem:[#allocation0]]
  $region26: #{feature_extraction_forward.68} parent=0
    _
  %s7 = ssub.s32 1, %s5
  %s8 = scalar_select 0, %s7, %s5
  // Predicated region
  $region2: #{feature_extraction_forward.68} parent=0 // pred_check
    _
  $region3: #{feature_extraction_forward.68} parent=0 // pred_check_branch
    %10 = sbr.rel (0) target = $region5
  $region4: #{feature_extraction_forward.68} parent=0 // pred_region
    _
  $region5: #{feature_extraction_forward.68} parent=0 // pred_fallthru
    _
  // Predicated region
  $region6: #{feature_extraction_forward.68} parent=0 // pred_check
    _
  $region7: #{feature_extraction_forward.68} parent=0 // pred_check_branch
    %12 = sbr.rel (0) target = $region9
  $region8: #{feature_extraction_forward.68} parent=0 // pred_region
    _
  $region9: #{feature_extraction_forward.68} parent=0 // pred_fallthru
    _
  // Predicated region
  $region10: #{feature_extraction_forward.68} parent=0 // pred_check
    _
  $region11: #{feature_extraction_forward.68} parent=0 // pred_check_branch
    %14 = sbr.rel (0) target = $region13
  $region12: #{feature_extraction_forward.68} parent=0 // pred_region
    _
  $region13: #{feature_extraction_forward.68} parent=0 // pred_fallthru
    _
  // Predicated region
  $region14: #{feature_extraction_forward.68} parent=0 // pred_check
    _
  $region15: #{feature_extraction_forward.68} parent=0 // pred_check_branch
    %16 = sbr.rel (0) target = $region17
  $region16: #{feature_extraction_forward.68} parent=0 // pred_region
    _
  $region17: #{feature_extraction_forward.68} parent=0 // pred_fallthru
    _
  %v17 = vld [vmem:[%s0] sm:$0xff]
  %v18 = vld [vmem:[%s0 + $0x8] sm:$0xff]
  %v19 = vld [vmem:[%s0 + $0x10] sm:$0xff]
  %v20 = vld [vmem:[%s0 + $0x18] sm:$0xff]
  %v21 = vld [vmem:[%s0 + $0x20] sm:$0xf]
  %v22 = vld [vmem:[%s0 + $0x24] sm:$0xff]
  %v23 = vld [vmem:[%s0 + $0x2c] sm:$0xff]
  %v24 = vld [vmem:[%s0 + $0x34] sm:$0xff]
  %v25 = vld [vmem:[%s0 + $0x3c] sm:$0xff]
  %v26 = vld [vmem:[%s0 + $0x44] sm:$0xf]
  %v27 = vld [vmem:[%s0 + $0x48] sm:$0xff]
  %v28 = vld [vmem:[%s0 + $0x50] sm:$0xff]
  %v29 = vld [vmem:[%s0 + $0x58] sm:$0xff]
  %v30 = vld [vmem:[%s0 + $0x60] sm:$0xff]
  %v31 = vld [vmem:[%s0 + $0x68] sm:$0xf]
  %v32 = vld [vmem:[%s0 + $0x6c] sm:$0xff]
  %v33 = vld [vmem:[%s0 + $0x74] sm:$0xff]
  %v34 = vld [vmem:[%s0 + $0x7c] sm:$0xff]
  %v35 = vld [vmem:[%s0 + $0x84] sm:$0xff]
  %v36 = vld [vmem:[%s0 + $0x8c] sm:$0xf]
  %v37 = vld [vmem:[%s0 + $0x90] sm:$0xff]
  %v38 = vld [vmem:[%s0 + $0x98] sm:$0xff]
  %v39 = vld [vmem:[%s0 + $0xa0] sm:$0xff]
  %v40 = vld [vmem:[%s0 + $0xa8] sm:$0xff]
  %v41 = vld [vmem:[%s0 + $0xb0] sm:$0xf]
  %v42 = vld [vmem:[%s0 + $0xb4] sm:$0xff]
  %v43 = vld [vmem:[%s0 + $0xbc] sm:$0xff]
  %v44 = vld [vmem:[%s0 + $0xc4] sm:$0xff]
  %v45 = vld [vmem:[%s0 + $0xcc] sm:$0xff]
  %v46 = vld [vmem:[%s0 + $0xd4] sm:$0xf]
  %v47 = vld [vmem:[%s0 + $0xd8] sm:$0xff]
  %v48 = vld [vmem:[%s0 + $0xe0] sm:$0xff]
  %v49 = vld [vmem:[%s0 + $0xe8] sm:$0xff]
  %v50 = vld [vmem:[%s0 + $0xf0] sm:$0xff]
  %v51 = vld [vmem:[%s0 + $0xf8] sm:$0xf]
  %v52 = vld [vmem:[%s0 + $0xfc] sm:$0xff]
  %v53 = vld [vmem:[%s0 + $0x104] sm:$0xff]
  %v54 = vld [vmem:[%s0 + $0x10c] sm:$0xff]
  %v55 = vld [vmem:[%s0 + $0x114] sm:$0xff]
  %v56 = vld [vmem:[%s0 + $0x11c] sm:$0xf]
  %v57 = vld [vmem:[%s0 + $0x120] sm:$0xff]
  %v58 = vld [vmem:[%s0 + $0x128] sm:$0xff]
  %v59 = vld [vmem:[%s0 + $0x130] sm:$0xff]
  %v60 = vld [vmem:[%s0 + $0x138] sm:$0xff]
  %v61 = vld [vmem:[%s0 + $0x140] sm:$0xf]
  %v62 = vld [vmem:[%s0 + $0x144] sm:$0xff]
  %v63 = vld [vmem:[%s0 + $0x14c] sm:$0xff]
  %v64 = vld [vmem:[%s0 + $0x154] sm:$0xff]
  %v65 = vld [vmem:[%s0 + $0x15c] sm:$0xff]
  %v66 = vld [vmem:[%s0 + $0x164] sm:$0xf]
  %v67 = vld [vmem:[%s0 + $0x168] sm:$0xff]
  %v68 = vld [vmem:[%s0 + $0x170] sm:$0xff]
  %v69 = vld [vmem:[%s0 + $0x178] sm:$0xff]
  %v70 = vld [vmem:[%s0 + $0x180] sm:$0xff]
  %v71 = vld [vmem:[%s0 + $0x188] sm:$0xf]
  %v72 = vld [vmem:[%s0 + $0x18c] sm:$0xff]
  %v73 = vld [vmem:[%s0 + $0x194] sm:$0xff]
  %v74 = vld [vmem:[%s0 + $0x19c] sm:$0xff]
  %v75 = vld [vmem:[%s0 + $0x1a4] sm:$0xff]
  %v76 = vld [vmem:[%s0 + $0x1ac] sm:$0xf]
  %v77 = vld [vmem:[%s0 + $0x1b0] sm:$0xff]
  %v78 = vld [vmem:[%s0 + $0x1b8] sm:$0xff]
  %v79 = vld [vmem:[%s0 + $0x1c0] sm:$0xff]
  %v80 = vld [vmem:[%s0 + $0x1c8] sm:$0xff]
  %v81 = vld [vmem:[%s0 + $0x1d0] sm:$0xf]
  %v82 = vld [vmem:[%s0 + $0x1d4] sm:$0xff]
  %v83 = vld [vmem:[%s0 + $0x1dc] sm:$0xff]
  %v84 = vld [vmem:[%s0 + $0x1e4] sm:$0xff]
  %v85 = vld [vmem:[%s0 + $0x1ec] sm:$0xff]
  %v86 = vld [vmem:[%s0 + $0x1f4] sm:$0xf]
  %v87 = vld [vmem:[%s0 + $0x1f8] sm:$0xff]
  %v88 = vld [vmem:[%s0 + $0x200] sm:$0xff]
  %v89 = vld [vmem:[%s0 + $0x208] sm:$0xff]
  %v90 = vld [vmem:[%s0 + $0x210] sm:$0xff]
  %v91 = vld [vmem:[%s0 + $0x218] sm:$0xf]
  %v92 = vld [vmem:[%s0 + $0x21c] sm:$0xff]
  %v93 = vld [vmem:[%s0 + $0x224] sm:$0xff]
  %v94 = vld [vmem:[%s0 + $0x22c] sm:$0xff]
  %v95 = vld [vmem:[%s0 + $0x234] sm:$0xff]
  %v96 = vld [vmem:[%s0 + $0x23c] sm:$0xf]
  %v97 = vld [vmem:[%s1] sm:$0xf]
  %v98 = vld [vmem:[%s1 + $0x4] sm:$0xf]
  %v99 = vld [vmem:[%s1 + $0x8] sm:$0xf]
  %v100 = vld [vmem:[%s1 + $0xc] sm:$0xf]
  %v101 = vld [vmem:[%s1 + $0x10] sm:$0xf]
  %v102 = vld [vmem:[%s1 + $0x14] sm:$0xf]
  %v103 = vld [vmem:[%s1 + $0x18] sm:$0xf]
  %v104 = vld [vmem:[%s1 + $0x1c] sm:$0xf]
  %v105 = vld [vmem:[%s1 + $0x20] sm:$0xf]
  %v106 = vld [vmem:[%s1 + $0x24] sm:$0xf]
  %v107 = vld [vmem:[%s1 + $0x28] sm:$0xf]
  %v108 = vld [vmem:[%s1 + $0x2c] sm:$0xf]
  %v109 = vld [vmem:[%s1 + $0x30] sm:$0xf]
  %v110 = vld [vmem:[%s1 + $0x34] sm:$0xf]
  %v111 = vld [vmem:[%s1 + $0x38] sm:$0xf]
  %v112 = vld [vmem:[%s1 + $0x3c] sm:$0xf]
  %v113 = vld [vmem:[%s1 + $0x40] sm:$0xf]
  %v114 = vld [vmem:[%s1 + $0x44] sm:$0xf]
  %v115 = vld [vmem:[%s1 + $0x48] sm:$0xf]
  %v116 = vld [vmem:[%s1 + $0x4c] sm:$0xf]
  %v117 = vld [vmem:[%s1 + $0x50] sm:$0xf]
  %v118 = vld [vmem:[%s1 + $0x54] sm:$0xf]
  %v119 = vld [vmem:[%s1 + $0x58] sm:$0xf]
  %v120 = vld [vmem:[%s1 + $0x5c] sm:$0xf]
  %v121 = vld [vmem:[%s1 + $0x60] sm:$0xf]
  %v122 = vld [vmem:[%s1 + $0x64] sm:$0xf]
  %v123 = vld [vmem:[%s1 + $0x68] sm:$0xf]
  %v124 = vld [vmem:[%s1 + $0x6c] sm:$0xf]
  %v125 = vld [vmem:[%s1 + $0x70] sm:$0xf]
  %v126 = vld [vmem:[%s1 + $0x74] sm:$0xf]
  %v127 = vld [vmem:[%s1 + $0x78] sm:$0xf]
  %v128 = vld [vmem:[%s1 + $0x7c] sm:$0xf]
  %v129 = vld [vmem:[%s1 + $0x80] sm:$0xf]
  %v130 = vld [vmem:[%s1 + $0x84] sm:$0xf]
  %v131 = vld [vmem:[%s1 + $0x88] sm:$0xf]
  %v132 = vld [vmem:[%s1 + $0x8c] sm:$0xf]
  %v133 = vld [vmem:[%s1 + $0x90] sm:$0xf]
  %v134 = vld [vmem:[%s1 + $0x94] sm:$0xf]
  %v135 = vld [vmem:[%s1 + $0x98] sm:$0xf]
  %v136 = vld [vmem:[%s1 + $0x9c] sm:$0xf]
  %v137 = vld [vmem:[%s1 + $0xa0] sm:$0xf]
  %v138 = vld [vmem:[%s1 + $0xa4] sm:$0xf]
  %v139 = vld [vmem:[%s1 + $0xa8] sm:$0xf]
  %v140 = vld [vmem:[%s1 + $0xac] sm:$0xf]
  %v141 = vld [vmem:[%s1 + $0xb0] sm:$0xf]
  %v142 = vld [vmem:[%s1 + $0xb4] sm:$0xf]
  %v143 = vld [vmem:[%s1 + $0xb8] sm:$0xf]
  %v144 = vld [vmem:[%s1 + $0xbc] sm:$0xf]
  %v145 = vld [vmem:[%s1 + $0xc0] sm:$0xf]
  %v146 = vld [vmem:[%s1 + $0xc4] sm:$0xf]
  %v147 = vld [vmem:[%s1 + $0xc8] sm:$0xf]
  %v148 = vld [vmem:[%s1 + $0xcc] sm:$0xf]
  %v149 = vld [vmem:[%s1 + $0xd0] sm:$0xf]
  %v150 = vld [vmem:[%s1 + $0xd4] sm:$0xf]
  %v151 = vld [vmem:[%s1 + $0xd8] sm:$0xf]
  %v152 = vld [vmem:[%s1 + $0xdc] sm:$0xf]
  %v153 = vld [vmem:[%s1 + $0xe0] sm:$0xf]
  %v154 = vld [vmem:[%s1 + $0xe4] sm:$0xf]
  %v155 = vld [vmem:[%s1 + $0xe8] sm:$0xf]
  %v156 = vld [vmem:[%s1 + $0xec] sm:$0xf]
  %v157 = vld [vmem:[%s1 + $0xf0] sm:$0xf]
  %v158 = vld [vmem:[%s1 + $0xf4] sm:$0xf]
  %v159 = vld [vmem:[%s1 + $0xf8] sm:$0xf]
  %v160 = vld [vmem:[%s1 + $0xfc] sm:$0xf]
  %v161 = vld [vmem:[%s1 + $0x100] sm:$0xf]
  %v162 = vld [vmem:[%s1 + $0x104] sm:$0xf]
  %v163 = vld [vmem:[%s1 + $0x108] sm:$0xf]
  %v164 = vld [vmem:[%s1 + $0x10c] sm:$0xf]
  %v165 = vld [vmem:[%s1 + $0x110] sm:$0xf]
  %v166 = vld [vmem:[%s1 + $0x114] sm:$0xf]
  %v167 = vld [vmem:[%s1 + $0x118] sm:$0xf]
  %v168 = vld [vmem:[%s1 + $0x11c] sm:$0xf]
  %v169 = vld [vmem:[%s1 + $0x120] sm:$0xf]
  %v170 = vld [vmem:[%s1 + $0x124] sm:$0xf]
  %v171 = vld [vmem:[%s1 + $0x128] sm:$0xf]
  %v172 = vld [vmem:[%s1 + $0x12c] sm:$0xf]
  %v173 = vld [vmem:[%s1 + $0x130] sm:$0xf]
  %v174 = vld [vmem:[%s1 + $0x134] sm:$0xf]
  %v175 = vld [vmem:[%s1 + $0x138] sm:$0xf]
  %v176 = vld [vmem:[%s1 + $0x13c] sm:$0xf]
  %v177 = vld [vmem:[%s1 + $0x140] sm:$0xf]
  %v178 = vld [vmem:[%s1 + $0x144] sm:$0xf]
  %v179 = vld [vmem:[%s1 + $0x148] sm:$0xf]
  %v180 = vld [vmem:[%s1 + $0x14c] sm:$0xf]
  %v181 = vld [vmem:[%s1 + $0x150] sm:$0xf]
  %v182 = vld [vmem:[%s1 + $0x154] sm:$0xf]
  %v183 = vld [vmem:[%s1 + $0x158] sm:$0xf]
  %v184 = vld [vmem:[%s1 + $0x15c] sm:$0xf]
  %v185 = vld [vmem:[%s1 + $0x160] sm:$0xf]
  %v186 = vld [vmem:[%s1 + $0x164] sm:$0xf]
  %v187 = vld [vmem:[%s1 + $0x168] sm:$0xf]
  %v188 = vld [vmem:[%s1 + $0x16c] sm:$0xf]
  %v189 = vld [vmem:[%s1 + $0x170] sm:$0xf]
  %v190 = vld [vmem:[%s1 + $0x174] sm:$0xf]
  %v191 = vld [vmem:[%s1 + $0x178] sm:$0xf]
  %v192 = vld [vmem:[%s1 + $0x17c] sm:$0xf]
  %v193 = vld [vmem:[%s1 + $0x180] sm:$0xf]
  %v194 = vld [vmem:[%s1 + $0x184] sm:$0xf]
  %v195 = vld [vmem:[%s1 + $0x188] sm:$0xf]
  %v196 = vld [vmem:[%s1 + $0x18c] sm:$0xf]
  %v197 = vld [vmem:[%s1 + $0x190] sm:$0xf]
  %v198 = vld [vmem:[%s1 + $0x194] sm:$0xf]
  %v199 = vld [vmem:[%s1 + $0x198] sm:$0xf]
  %v200 = vld [vmem:[%s1 + $0x19c] sm:$0xf]
  %v201 = vld [vmem:[%s1 + $0x1a0] sm:$0xf]
  %v202 = vld [vmem:[%s1 + $0x1a4] sm:$0xf]
  %v203 = vld [vmem:[%s1 + $0x1a8] sm:$0xf]
  %v204 = vld [vmem:[%s1 + $0x1ac] sm:$0xf]
  %v205 = vld [vmem:[%s1 + $0x1b0] sm:$0xf]
  %v206 = vld [vmem:[%s1 + $0x1b4] sm:$0xf]
  %v207 = vld [vmem:[%s1 + $0x1b8] sm:$0xf]
  %v208 = vld [vmem:[%s1 + $0x1bc] sm:$0xf]
  %v209 = vld [vmem:[%s1 + $0x1c0] sm:$0xf]
  %v210 = vld [vmem:[%s1 + $0x1c4] sm:$0xf]
  %v211 = vld [vmem:[%s1 + $0x1c8] sm:$0xf]
  %v212 = vld [vmem:[%s1 + $0x1cc] sm:$0xf]
  %v213 = vld [vmem:[%s1 + $0x1d0] sm:$0xf]
  %v214 = vld [vmem:[%s1 + $0x1d4] sm:$0xf]
  %v215 = vld [vmem:[%s1 + $0x1d8] sm:$0xf]
  %v216 = vld [vmem:[%s1 + $0x1dc] sm:$0xf]
  %v217 = vld [vmem:[%s1 + $0x1e0] sm:$0xf]
  %v218 = vld [vmem:[%s1 + $0x1e4] sm:$0xf]
  %v219 = vld [vmem:[%s1 + $0x1e8] sm:$0xf]
  %v220 = vld [vmem:[%s1 + $0x1ec] sm:$0xf]
  %v221 = vld [vmem:[%s1 + $0x1f0] sm:$0xf]
  %v222 = vld [vmem:[%s1 + $0x1f4] sm:$0xf]
  %v223 = vld [vmem:[%s1 + $0x1f8] sm:$0xf]
  %v224 = vld [vmem:[%s1 + $0x1fc] sm:$0xf]
  %v225 = vld [vmem:[%s1 + $0x200] sm:$0xf]
  %v226 = vld [vmem:[%s1 + $0x204] sm:$0xf]
  %v227 = vld [vmem:[%s1 + $0x208] sm:$0xf]
  %v228 = vld [vmem:[%s1 + $0x20c] sm:$0xf]
  %v229 = vld [vmem:[%s1 + $0x210] sm:$0xf]
  %v230 = vld [vmem:[%s1 + $0x214] sm:$0xf]
  %v231 = vld [vmem:[%s1 + $0x218] sm:$0xf]
  %v232 = vld [vmem:[%s1 + $0x21c] sm:$0xf]
  %v233 = vld [vmem:[%s1 + $0x220] sm:$0xf]
  %v234 = vld [vmem:[%s1 + $0x224] sm:$0xf]
  %v235 = vld [vmem:[%s1 + $0x228] sm:$0xf]
  %v236 = vld [vmem:[%s1 + $0x22c] sm:$0xf]
  %v237 = vld [vmem:[%s1 + $0x230] sm:$0xf]
  %v238 = vld [vmem:[%s1 + $0x234] sm:$0xf]
  %v239 = vld [vmem:[%s1 + $0x238] sm:$0xf]
  %v240 = vld [vmem:[%s1 + $0x23c] sm:$0xf]
  %v241 = vld [vmem:[%s2] sm:$0xff]
  %v242 = vld [vmem:[%s2 + $0x8] sm:$0xff]
  %v243 = vld [vmem:[%s2 + $0x10] sm:$0xff]
  %v244 = vld [vmem:[%s2 + $0x18] sm:$0xff]
  %v245 = vld [vmem:[%s2 + $0x20] sm:$0xff]
  %v246 = vld [vmem:[%s2 + $0x28] sm:$0xff]
  %v247 = vld [vmem:[%s2 + $0x30] sm:$0xff]
  %v248 = vld [vmem:[%s2 + $0x38] sm:$0xff]
  %v249 = vld [vmem:[%s2 + $0x40] sm:$0xff]
  %v250 = vld [vmem:[%s2 + $0x48] sm:$0xff]
  %v251 = vld [vmem:[%s2 + $0x50] sm:$0xff]
  %v252 = vld [vmem:[%s2 + $0x58] sm:$0xff]
  %v253 = vld [vmem:[%s2 + $0x60] sm:$0xff]
  %v254 = vld [vmem:[%s2 + $0x68] sm:$0xff]
  %v255 = vld [vmem:[%s2 + $0x70] sm:$0xff]
  %v256 = vld [vmem:[%s2 + $0x78] sm:$0xff]
  %258 = vset.pattern.permute.xlu0 0
  %259 = vperm.xlu0 %258, %v241
  %v260 = vpop.permute.xlu0 %259
  %263 = vset.pattern.permute.xlu0 0
  %264 = vperm.xlu0 %263, %v242
  %v265 = vpop.permute.xlu0 %264
  %268 = vset.pattern.permute.xlu0 0
  %269 = vperm.xlu0 %268, %v243
  %v270 = vpop.permute.xlu0 %269
  %273 = vset.pattern.permute.xlu0 0
  %274 = vperm.xlu0 %273, %v244
  %v275 = vpop.permute.xlu0 %274
  %278 = vset.pattern.permute.xlu0 0
  %279 = vperm.xlu0 %278, %v245
  %v280 = vpop.permute.xlu0 %279
  %283 = vset.pattern.permute.xlu0 0
  %284 = vperm.xlu0 %283, %v246
  %v285 = vpop.permute.xlu0 %284
  %288 = vset.pattern.permute.xlu0 0
  %289 = vperm.xlu0 %288, %v247
  %v290 = vpop.permute.xlu0 %289
  %293 = vset.pattern.permute.xlu0 0
  %294 = vperm.xlu0 %293, %v248
  %v295 = vpop.permute.xlu0 %294
  %298 = vset.pattern.permute.xlu0 0
  %299 = vperm.xlu0 %298, %v249
  %v300 = vpop.permute.xlu0 %299
  %303 = vset.pattern.permute.xlu0 0
  %304 = vperm.xlu0 %303, %v250
  %v305 = vpop.permute.xlu0 %304
  %308 = vset.pattern.permute.xlu0 0
  %309 = vperm.xlu0 %308, %v251
  %v310 = vpop.permute.xlu0 %309
  %313 = vset.pattern.permute.xlu0 0
  %314 = vperm.xlu0 %313, %v252
  %v315 = vpop.permute.xlu0 %314
  %318 = vset.pattern.permute.xlu0 0
  %319 = vperm.xlu0 %318, %v253
  %v320 = vpop.permute.xlu0 %319
  %323 = vset.pattern.permute.xlu0 0
  %324 = vperm.xlu0 %323, %v254
  %v325 = vpop.permute.xlu0 %324
  %328 = vset.pattern.permute.xlu0 0
  %329 = vperm.xlu0 %328, %v255
  %v330 = vpop.permute.xlu0 %329
  %333 = vset.pattern.permute.xlu0 0
  %334 = vperm.xlu0 %333, %v256
  %v335 = vpop.permute.xlu0 %334
  %v417 = vunpack.c.l.b16 %v17
  %v418 = vunpack.c.h.b16 %v17
  %v419 = vunpack.c.l.b16 %v18
  %v420 = vunpack.c.h.b16 %v18
  %v421 = vunpack.c.l.b16 %v19
  %v422 = vunpack.c.h.b16 %v19
  %v423 = vunpack.c.l.b16 %v20
  %v424 = vunpack.c.h.b16 %v20
  %v425 = vunpack.c.l.b16 %v21
  %v426 = vunpack.c.l.b16 %v22
  %v427 = vunpack.c.h.b16 %v22
  %v428 = vunpack.c.l.b16 %v23
  %v429 = vunpack.c.h.b16 %v23
  %v430 = vunpack.c.l.b16 %v24
  %v431 = vunpack.c.h.b16 %v24
  %v432 = vunpack.c.l.b16 %v25
  %v433 = vunpack.c.h.b16 %v25
  %v434 = vunpack.c.l.b16 %v26
  %v435 = vunpack.c.l.b16 %v27
  %v436 = vunpack.c.h.b16 %v27
  %v437 = vunpack.c.l.b16 %v28
  %v438 = vunpack.c.h.b16 %v28
  %v439 = vunpack.c.l.b16 %v29
  %v440 = vunpack.c.h.b16 %v29
  %v441 = vunpack.c.l.b16 %v30
  %v442 = vunpack.c.h.b16 %v30
  %v443 = vunpack.c.l.b16 %v31
  %v444 = vunpack.c.l.b16 %v32
  %v445 = vunpack.c.h.b16 %v32
  %v446 = vunpack.c.l.b16 %v33
  %v447 = vunpack.c.h.b16 %v33
  %v448 = vunpack.c.l.b16 %v34
  %v449 = vunpack.c.h.b16 %v34
  %v450 = vunpack.c.l.b16 %v35
  %v451 = vunpack.c.h.b16 %v35
  %v452 = vunpack.c.l.b16 %v36
  %v453 = vunpack.c.l.b16 %v37
  %v454 = vunpack.c.h.b16 %v37
  %v455 = vunpack.c.l.b16 %v38
  %v456 = vunpack.c.h.b16 %v38
  %v457 = vunpack.c.l.b16 %v39
  %v458 = vunpack.c.h.b16 %v39
  %v459 = vunpack.c.l.b16 %v40
  %v460 = vunpack.c.h.b16 %v40
  %v461 = vunpack.c.l.b16 %v41
  %v462 = vunpack.c.l.b16 %v42
  %v463 = vunpack.c.h.b16 %v42
  %v464 = vunpack.c.l.b16 %v43
  %v465 = vunpack.c.h.b16 %v43
  %v466 = vunpack.c.l.b16 %v44
  %v467 = vunpack.c.h.b16 %v44
  %v468 = vunpack.c.l.b16 %v45
  %v469 = vunpack.c.h.b16 %v45
  %v470 = vunpack.c.l.b16 %v46
  %v471 = vunpack.c.l.b16 %v47
  %v472 = vunpack.c.h.b16 %v47
  %v473 = vunpack.c.l.b16 %v48
  %v474 = vunpack.c.h.b16 %v48
  %v475 = vunpack.c.l.b16 %v49
  %v476 = vunpack.c.h.b16 %v49
  %v477 = vunpack.c.l.b16 %v50
  %v478 = vunpack.c.h.b16 %v50
  %v479 = vunpack.c.l.b16 %v51
  %v480 = vunpack.c.l.b16 %v52
  %v481 = vunpack.c.h.b16 %v52
  %v482 = vunpack.c.l.b16 %v53
  %v483 = vunpack.c.h.b16 %v53
  %v484 = vunpack.c.l.b16 %v54
  %v485 = vunpack.c.h.b16 %v54
  %v486 = vunpack.c.l.b16 %v55
  %v487 = vunpack.c.h.b16 %v55
  %v488 = vunpack.c.l.b16 %v56
  %v489 = vunpack.c.l.b16 %v57
  %v490 = vunpack.c.h.b16 %v57
  %v491 = vunpack.c.l.b16 %v58
  %v492 = vunpack.c.h.b16 %v58
  %v493 = vunpack.c.l.b16 %v59
  %v494 = vunpack.c.h.b16 %v59
  %v495 = vunpack.c.l.b16 %v60
  %v496 = vunpack.c.h.b16 %v60
  %v497 = vunpack.c.l.b16 %v61
  %v498 = vunpack.c.l.b16 %v62
  %v499 = vunpack.c.h.b16 %v62
  %v500 = vunpack.c.l.b16 %v63
  %v501 = vunpack.c.h.b16 %v63
  %v502 = vunpack.c.l.b16 %v64
  %v503 = vunpack.c.h.b16 %v64
  %v504 = vunpack.c.l.b16 %v65
  %v505 = vunpack.c.h.b16 %v65
  %v506 = vunpack.c.l.b16 %v66
  %v507 = vunpack.c.l.b16 %v67
  %v508 = vunpack.c.h.b16 %v67
  %v509 = vunpack.c.l.b16 %v68
  %v510 = vunpack.c.h.b16 %v68
  %v511 = vunpack.c.l.b16 %v69
  %v512 = vunpack.c.h.b16 %v69
  %v513 = vunpack.c.l.b16 %v70
  %v514 = vunpack.c.h.b16 %v70
  %v515 = vunpack.c.l.b16 %v71
  %v516 = vunpack.c.l.b16 %v72
  %v517 = vunpack.c.h.b16 %v72
  %v518 = vunpack.c.l.b16 %v73
  %v519 = vunpack.c.h.b16 %v73
  %v520 = vunpack.c.l.b16 %v74
  %v521 = vunpack.c.h.b16 %v74
  %v522 = vunpack.c.l.b16 %v75
  %v523 = vunpack.c.h.b16 %v75
  %v524 = vunpack.c.l.b16 %v76
  %v525 = vunpack.c.l.b16 %v77
  %v526 = vunpack.c.h.b16 %v77
  %v527 = vunpack.c.l.b16 %v78
  %v528 = vunpack.c.h.b16 %v78
  %v529 = vunpack.c.l.b16 %v79
  %v530 = vunpack.c.h.b16 %v79
  %v531 = vunpack.c.l.b16 %v80
  %v532 = vunpack.c.h.b16 %v80
  %v533 = vunpack.c.l.b16 %v81
  %v534 = vunpack.c.l.b16 %v82
  %v535 = vunpack.c.h.b16 %v82
  %v536 = vunpack.c.l.b16 %v83
  %v537 = vunpack.c.h.b16 %v83
  %v538 = vunpack.c.l.b16 %v84
  %v539 = vunpack.c.h.b16 %v84
  %v540 = vunpack.c.l.b16 %v85
  %v541 = vunpack.c.h.b16 %v85
  %v542 = vunpack.c.l.b16 %v86
  %v543 = vunpack.c.l.b16 %v87
  %v544 = vunpack.c.h.b16 %v87
  %v545 = vunpack.c.l.b16 %v88
  %v546 = vunpack.c.h.b16 %v88
  %v547 = vunpack.c.l.b16 %v89
  %v548 = vunpack.c.h.b16 %v89
  %v549 = vunpack.c.l.b16 %v90
  %v550 = vunpack.c.h.b16 %v90
  %v551 = vunpack.c.l.b16 %v91
  %v552 = vunpack.c.l.b16 %v92
  %v553 = vunpack.c.h.b16 %v92
  %v554 = vunpack.c.l.b16 %v93
  %v555 = vunpack.c.h.b16 %v93
  %v556 = vunpack.c.l.b16 %v94
  %v557 = vunpack.c.h.b16 %v94
  %v558 = vunpack.c.l.b16 %v95
  %v559 = vunpack.c.h.b16 %v95
  %v560 = vunpack.c.l.b16 %v96
  %v561 = vpack.c.b16 %v426, %v417
  %v562 = vpack.c.b16 %v427, %v418
  %v563 = vpack.c.b16 %v428, %v419
  %v564 = vpack.c.b16 %v429, %v420
  %v565 = vpack.c.b16 %v430, %v421
  %v566 = vpack.c.b16 %v431, %v422
  %v567 = vpack.c.b16 %v432, %v423
  %v568 = vpack.c.b16 %v433, %v424
  %v569 = vpack.c.b16 %v434, %v425
  %v570 = vpack.c.b16 %v444, %v435
  %v571 = vpack.c.b16 %v445, %v436
  %v572 = vpack.c.b16 %v446, %v437
  %v573 = vpack.c.b16 %v447, %v438
  %v574 = vpack.c.b16 %v448, %v439
  %v575 = vpack.c.b16 %v449, %v440
  %v576 = vpack.c.b16 %v450, %v441
  %v577 = vpack.c.b16 %v451, %v442
  %v578 = vpack.c.b16 %v452, %v443
  %v579 = vpack.c.b16 %v462, %v453
  %v580 = vpack.c.b16 %v463, %v454
  %v581 = vpack.c.b16 %v464, %v455
  %v582 = vpack.c.b16 %v465, %v456
  %v583 = vpack.c.b16 %v466, %v457
  %v584 = vpack.c.b16 %v467, %v458
  %v585 = vpack.c.b16 %v468, %v459
  %v586 = vpack.c.b16 %v469, %v460
  %v587 = vpack.c.b16 %v470, %v461
  %v588 = vpack.c.b16 %v480, %v471
  %v589 = vpack.c.b16 %v481, %v472
  %v590 = vpack.c.b16 %v482, %v473
  %v591 = vpack.c.b16 %v483, %v474
  %v592 = vpack.c.b16 %v484, %v475
  %v593 = vpack.c.b16 %v485, %v476
  %v594 = vpack.c.b16 %v486, %v477
  %v595 = vpack.c.b16 %v487, %v478
  %v596 = vpack.c.b16 %v488, %v479
  %v597 = vpack.c.b16 %v498, %v489
  %v598 = vpack.c.b16 %v499, %v490
  %v599 = vpack.c.b16 %v500, %v491
  %v600 = vpack.c.b16 %v501, %v492
  %v601 = vpack.c.b16 %v502, %v493
  %v602 = vpack.c.b16 %v503, %v494
  %v603 = vpack.c.b16 %v504, %v495
  %v604 = vpack.c.b16 %v505, %v496
  %v605 = vpack.c.b16 %v506, %v497
  %v606 = vpack.c.b16 %v516, %v507
  %v607 = vpack.c.b16 %v517, %v508
  %v608 = vpack.c.b16 %v518, %v509
  %v609 = vpack.c.b16 %v519, %v510
  %v610 = vpack.c.b16 %v520, %v511
  %v611 = vpack.c.b16 %v521, %v512
  %v612 = vpack.c.b16 %v522, %v513
  %v613 = vpack.c.b16 %v523, %v514
  %v614 = vpack.c.b16 %v524, %v515
  %v615 = vpack.c.b16 %v534, %v525
  %v616 = vpack.c.b16 %v535, %v526
  %v617 = vpack.c.b16 %v536, %v527
  %v618 = vpack.c.b16 %v537, %v528
  %v619 = vpack.c.b16 %v538, %v529
  %v620 = vpack.c.b16 %v539, %v530
  %v621 = vpack.c.b16 %v540, %v531
  %v622 = vpack.c.b16 %v541, %v532
  %v623 = vpack.c.b16 %v542, %v533
  %v624 = vpack.c.b16 %v552, %v543
  %v625 = vpack.c.b16 %v553, %v544
  %v626 = vpack.c.b16 %v554, %v545
  %v627 = vpack.c.b16 %v555, %v546
  %v628 = vpack.c.b16 %v556, %v547
  %v629 = vpack.c.b16 %v557, %v548
  %v630 = vpack.c.b16 %v558, %v549
  %v631 = vpack.c.b16 %v559, %v550
  %v632 = vpack.c.b16 %v560, %v551
  %v849 = vunpack.c.l.b16 %v97
  %v850 = vunpack.c.l.b16 %v98
  %v851 = vunpack.c.l.b16 %v99
  %v852 = vunpack.c.l.b16 %v100
  %v853 = vunpack.c.l.b16 %v101
  %v854 = vunpack.c.l.b16 %v102
  %v855 = vunpack.c.l.b16 %v103
  %v856 = vunpack.c.l.b16 %v104
  %v857 = vunpack.c.l.b16 %v105
  %v858 = vunpack.c.l.b16 %v106
  %v859 = vunpack.c.l.b16 %v107
  %v860 = vunpack.c.l.b16 %v108
  %v861 = vunpack.c.l.b16 %v109
  %v862 = vunpack.c.l.b16 %v110
  %v863 = vunpack.c.l.b16 %v111
  %v864 = vunpack.c.l.b16 %v112
  %v865 = vunpack.c.l.b16 %v113
  %v866 = vunpack.c.l.b16 %v114
  %v867 = vunpack.c.l.b16 %v115
  %v868 = vunpack.c.l.b16 %v116
  %v869 = vunpack.c.l.b16 %v117
  %v870 = vunpack.c.l.b16 %v118
  %v871 = vunpack.c.l.b16 %v119
  %v872 = vunpack.c.l.b16 %v120
  %v873 = vunpack.c.l.b16 %v121
  %v874 = vunpack.c.l.b16 %v122
  %v875 = vunpack.c.l.b16 %v123
  %v876 = vunpack.c.l.b16 %v124
  %v877 = vunpack.c.l.b16 %v125
  %v878 = vunpack.c.l.b16 %v126
  %v879 = vunpack.c.l.b16 %v127
  %v880 = vunpack.c.l.b16 %v128
  %v881 = vunpack.c.l.b16 %v129
  %v882 = vunpack.c.l.b16 %v130
  %v883 = vunpack.c.l.b16 %v131
  %v884 = vunpack.c.l.b16 %v132
  %v885 = vunpack.c.l.b16 %v133
  %v886 = vunpack.c.l.b16 %v134
  %v887 = vunpack.c.l.b16 %v135
  %v888 = vunpack.c.l.b16 %v136
  %v889 = vunpack.c.l.b16 %v137
  %v890 = vunpack.c.l.b16 %v138
  %v891 = vunpack.c.l.b16 %v139
  %v892 = vunpack.c.l.b16 %v140
  %v893 = vunpack.c.l.b16 %v141
  %v894 = vunpack.c.l.b16 %v142
  %v895 = vunpack.c.l.b16 %v143
  %v896 = vunpack.c.l.b16 %v144
  %v897 = vunpack.c.l.b16 %v145
  %v898 = vunpack.c.l.b16 %v146
  %v899 = vunpack.c.l.b16 %v147
  %v900 = vunpack.c.l.b16 %v148
  %v901 = vunpack.c.l.b16 %v149
  %v902 = vunpack.c.l.b16 %v150
  %v903 = vunpack.c.l.b16 %v151
  %v904 = vunpack.c.l.b16 %v152
  %v905 = vunpack.c.l.b16 %v153
  %v906 = vunpack.c.l.b16 %v154
  %v907 = vunpack.c.l.b16 %v155
  %v908 = vunpack.c.l.b16 %v156
  %v909 = vunpack.c.l.b16 %v157
  %v910 = vunpack.c.l.b16 %v158
  %v911 = vunpack.c.l.b16 %v159
  %v912 = vunpack.c.l.b16 %v160
  %v913 = vunpack.c.l.b16 %v161
  %v914 = vunpack.c.l.b16 %v162
  %v915 = vunpack.c.l.b16 %v163
  %v916 = vunpack.c.l.b16 %v164
  %v917 = vunpack.c.l.b16 %v165
  %v918 = vunpack.c.l.b16 %v166
  %v919 = vunpack.c.l.b16 %v167
  %v920 = vunpack.c.l.b16 %v168
  %v921 = vunpack.c.l.b16 %v169
  %v922 = vunpack.c.l.b16 %v170
  %v923 = vunpack.c.l.b16 %v171
  %v924 = vunpack.c.l.b16 %v172
  %v925 = vunpack.c.l.b16 %v173
  %v926 = vunpack.c.l.b16 %v174
  %v927 = vunpack.c.l.b16 %v175
  %v928 = vunpack.c.l.b16 %v176
  %v929 = vunpack.c.l.b16 %v177
  %v930 = vunpack.c.l.b16 %v178
  %v931 = vunpack.c.l.b16 %v179
  %v932 = vunpack.c.l.b16 %v180
  %v933 = vunpack.c.l.b16 %v181
  %v934 = vunpack.c.l.b16 %v182
  %v935 = vunpack.c.l.b16 %v183
  %v936 = vunpack.c.l.b16 %v184
  %v937 = vunpack.c.l.b16 %v185
  %v938 = vunpack.c.l.b16 %v186
  %v939 = vunpack.c.l.b16 %v187
  %v940 = vunpack.c.l.b16 %v188
  %v941 = vunpack.c.l.b16 %v189
  %v942 = vunpack.c.l.b16 %v190
  %v943 = vunpack.c.l.b16 %v191
  %v944 = vunpack.c.l.b16 %v192
  %v945 = vunpack.c.l.b16 %v193
  %v946 = vunpack.c.l.b16 %v194
  %v947 = vunpack.c.l.b16 %v195
  %v948 = vunpack.c.l.b16 %v196
  %v949 = vunpack.c.l.b16 %v197
  %v950 = vunpack.c.l.b16 %v198
  %v951 = vunpack.c.l.b16 %v199
  %v952 = vunpack.c.l.b16 %v200
  %v953 = vunpack.c.l.b16 %v201
  %v954 = vunpack.c.l.b16 %v202
  %v955 = vunpack.c.l.b16 %v203
  %v956 = vunpack.c.l.b16 %v204
  %v957 = vunpack.c.l.b16 %v205
  %v958 = vunpack.c.l.b16 %v206
  %v959 = vunpack.c.l.b16 %v207
  %v960 = vunpack.c.l.b16 %v208
  %v961 = vunpack.c.l.b16 %v209
  %v962 = vunpack.c.l.b16 %v210
  %v963 = vunpack.c.l.b16 %v211
  %v964 = vunpack.c.l.b16 %v212
  %v965 = vunpack.c.l.b16 %v213
  %v966 = vunpack.c.l.b16 %v214
  %v967 = vunpack.c.l.b16 %v215
  %v968 = vunpack.c.l.b16 %v216
  %v969 = vunpack.c.l.b16 %v217
  %v970 = vunpack.c.l.b16 %v218
  %v971 = vunpack.c.l.b16 %v219
  %v972 = vunpack.c.l.b16 %v220
  %v973 = vunpack.c.l.b16 %v221
  %v974 = vunpack.c.l.b16 %v222
  %v975 = vunpack.c.l.b16 %v223
  %v976 = vunpack.c.l.b16 %v224
  %v977 = vunpack.c.l.b16 %v225
  %v978 = vunpack.c.l.b16 %v226
  %v979 = vunpack.c.l.b16 %v227
  %v980 = vunpack.c.l.b16 %v228
  %v981 = vunpack.c.l.b16 %v229
  %v982 = vunpack.c.l.b16 %v230
  %v983 = vunpack.c.l.b16 %v231
  %v984 = vunpack.c.l.b16 %v232
  %v985 = vunpack.c.l.b16 %v233
  %v986 = vunpack.c.l.b16 %v234
  %v987 = vunpack.c.l.b16 %v235
  %v988 = vunpack.c.l.b16 %v236
  %v989 = vunpack.c.l.b16 %v237
  %v990 = vunpack.c.l.b16 %v238
  %v991 = vunpack.c.l.b16 %v239
  %v992 = vunpack.c.l.b16 %v240
  %v993 = vpack.c.b16 %v850, %v849
  %v994 = vpack.c.b16 %v852, %v851
  %v995 = vpack.c.b16 %v854, %v853
  %v996 = vpack.c.b16 %v856, %v855
  %v997 = vpack.c.b16 %v858, %v857
  %v998 = vpack.c.b16 %v860, %v859
  %v999 = vpack.c.b16 %v862, %v861
  %v1000 = vpack.c.b16 %v864, %v863
  %v1001 = vpack.c.b16 %v866, %v865
  %v1002 = vpack.c.b16 %v868, %v867
  %v1003 = vpack.c.b16 %v870, %v869
  %v1004 = vpack.c.b16 %v872, %v871
  %v1005 = vpack.c.b16 %v874, %v873
  %v1006 = vpack.c.b16 %v876, %v875
  %v1007 = vpack.c.b16 %v878, %v877
  %v1008 = vpack.c.b16 %v880, %v879
  %v1009 = vpack.c.b16 %v882, %v881
  %v1010 = vpack.c.b16 %v884, %v883
  %v1011 = vpack.c.b16 %v886, %v885
  %v1012 = vpack.c.b16 %v888, %v887
  %v1013 = vpack.c.b16 %v890, %v889
  %v1014 = vpack.c.b16 %v892, %v891
  %v1015 = vpack.c.b16 %v894, %v893
  %v1016 = vpack.c.b16 %v896, %v895
  %v1017 = vpack.c.b16 %v898, %v897
  %v1018 = vpack.c.b16 %v900, %v899
  %v1019 = vpack.c.b16 %v902, %v901
  %v1020 = vpack.c.b16 %v904, %v903
  %v1021 = vpack.c.b16 %v906, %v905
  %v1022 = vpack.c.b16 %v908, %v907
  %v1023 = vpack.c.b16 %v910, %v909
  %v1024 = vpack.c.b16 %v912, %v911
  %v1025 = vpack.c.b16 %v914, %v913
  %v1026 = vpack.c.b16 %v916, %v915
  %v1027 = vpack.c.b16 %v918, %v917
  %v1028 = vpack.c.b16 %v920, %v919
  %v1029 = vpack.c.b16 %v922, %v921
  %v1030 = vpack.c.b16 %v924, %v923
  %v1031 = vpack.c.b16 %v926, %v925
  %v1032 = vpack.c.b16 %v928, %v927
  %v1033 = vpack.c.b16 %v930, %v929
  %v1034 = vpack.c.b16 %v932, %v931
  %v1035 = vpack.c.b16 %v934, %v933
  %v1036 = vpack.c.b16 %v936, %v935
  %v1037 = vpack.c.b16 %v938, %v937
  %v1038 = vpack.c.b16 %v940, %v939
  %v1039 = vpack.c.b16 %v942, %v941
  %v1040 = vpack.c.b16 %v944, %v943
  %v1041 = vpack.c.b16 %v946, %v945
  %v1042 = vpack.c.b16 %v948, %v947
  %v1043 = vpack.c.b16 %v950, %v949
  %v1044 = vpack.c.b16 %v952, %v951
  %v1045 = vpack.c.b16 %v954, %v953
  %v1046 = vpack.c.b16 %v956, %v955
  %v1047 = vpack.c.b16 %v958, %v957
  %v1048 = vpack.c.b16 %v960, %v959
  %v1049 = vpack.c.b16 %v962, %v961
  %v1050 = vpack.c.b16 %v964, %v963
  %v1051 = vpack.c.b16 %v966, %v965
  %v1052 = vpack.c.b16 %v968, %v967
  %v1053 = vpack.c.b16 %v970, %v969
  %v1054 = vpack.c.b16 %v972, %v971
  %v1055 = vpack.c.b16 %v974, %v973
  %v1056 = vpack.c.b16 %v976, %v975
  %v1057 = vpack.c.b16 %v978, %v977
  %v1058 = vpack.c.b16 %v980, %v979
  %v1059 = vpack.c.b16 %v982, %v981
  %v1060 = vpack.c.b16 %v984, %v983
  %v1061 = vpack.c.b16 %v986, %v985
  %v1062 = vpack.c.b16 %v988, %v987
  %v1063 = vpack.c.b16 %v990, %v989
  %v1064 = vpack.c.b16 %v992, %v991
  %1137 = vmatpush.bf16.msra.mxu0 %v1000
  %1138 = vmatpush.bf16.msra.mxu0 %v999
  %1139 = vmatpush.bf16.msra.mxu0 %v998
  %1140 = vmatpush.bf16.msra.mxu0 %v997
  %1141 = vmatpush.bf16.msra.mxu0 %v996
  %1142 = vmatpush.bf16.msra.mxu0 %v995
  %1143 = vmatpush.bf16.msra.mxu0 %v994
  %1144 = vmatpush.bf16.msra.mxu0 %v993
  %1145 = vmatmul.bf16.gmra.mxu0 %v561
  %v1146 = vpop.f32.mrf.mxu0
  %v1147 = vadd.f32 %v260, %v1146
  %v1148 = vpop.f32.mrf.mxu0
  %v1149 = vadd.f32 %v265, %v1148
  %1150 = vmatmul.bf16.gmra.mxu0 %v570
  %v1151 = vpop.f32.mrf.mxu0
  %v1152 = vadd.f32 %v270, %v1151
  %v1153 = vpop.f32.mrf.mxu0
  %v1154 = vadd.f32 %v275, %v1153
  %1155 = vmatmul.bf16.gmra.mxu0 %v579
  %v1156 = vpop.f32.mrf.mxu0
  %v1157 = vadd.f32 %v280, %v1156
  %v1158 = vpop.f32.mrf.mxu0
  %v1159 = vadd.f32 %v285, %v1158
  %1160 = vmatmul.bf16.gmra.mxu0 %v588
  %v1161 = vpop.f32.mrf.mxu0
  %v1162 = vadd.f32 %v290, %v1161
  %v1163 = vpop.f32.mrf.mxu0
  %v1164 = vadd.f32 %v295, %v1163
  %1165 = vmatmul.bf16.gmra.mxu0 %v597
  %v1166 = vpop.f32.mrf.mxu0
  %v1167 = vadd.f32 %v300, %v1166
  %v1168 = vpop.f32.mrf.mxu0
  %v1169 = vadd.f32 %v305, %v1168
  %1170 = vmatmul.bf16.gmra.mxu0 %v606
  %v1171 = vpop.f32.mrf.mxu0
  %v1172 = vadd.f32 %v310, %v1171
  %v1173 = vpop.f32.mrf.mxu0
  %v1174 = vadd.f32 %v315, %v1173
  %1175 = vmatmul.bf16.gmra.mxu0 %v615
  %v1176 = vpop.f32.mrf.mxu0
  %v1177 = vadd.f32 %v320, %v1176
  %v1178 = vpop.f32.mrf.mxu0
  %v1179 = vadd.f32 %v325, %v1178
  %1180 = vmatmul.bf16.gmra.mxu0 %v624
  %v1181 = vpop.f32.mrf.mxu0
  %v1182 = vadd.f32 %v330, %v1181
  %v1183 = vpop.f32.mrf.mxu0
  %v1184 = vadd.f32 %v335, %v1183
  %1185 = vdwg.mxu0
  %1186 = vmatpush.bf16.msra.mxu0 %v1008
  %1187 = vmatpush.bf16.msra.mxu0 %v1007
  %1188 = vmatpush.bf16.msra.mxu0 %v1006
  %1189 = vmatpush.bf16.msra.mxu0 %v1005
  %1190 = vmatpush.bf16.msra.mxu0 %v1004
  %1191 = vmatpush.bf16.msra.mxu0 %v1003
  %1192 = vmatpush.bf16.msra.mxu0 %v1002
  %1193 = vmatpush.bf16.msra.mxu0 %v1001
  %1194 = vmatmul.bf16.gmra.mxu0 %v562
  %v1195 = vpop.f32.mrf.mxu0
  %v1196 = vadd.f32 %v1147, %v1195
  %v1197 = vpop.f32.mrf.mxu0
  %v1198 = vadd.f32 %v1149, %v1197
  %1199 = vmatmul.bf16.gmra.mxu0 %v571
  %v1200 = vpop.f32.mrf.mxu0
  %v1201 = vadd.f32 %v1152, %v1200
  %v1202 = vpop.f32.mrf.mxu0
  %v1203 = vadd.f32 %v1154, %v1202
  %1204 = vmatmul.bf16.gmra.mxu0 %v580
  %v1205 = vpop.f32.mrf.mxu0
  %v1206 = vadd.f32 %v1157, %v1205
  %v1207 = vpop.f32.mrf.mxu0
  %v1208 = vadd.f32 %v1159, %v1207
  %1209 = vmatmul.bf16.gmra.mxu0 %v589
  %v1210 = vpop.f32.mrf.mxu0
  %v1211 = vadd.f32 %v1162, %v1210
  %v1212 = vpop.f32.mrf.mxu0
  %v1213 = vadd.f32 %v1164, %v1212
  %1214 = vmatmul.bf16.gmra.mxu0 %v598
  %v1215 = vpop.f32.mrf.mxu0
  %v1216 = vadd.f32 %v1167, %v1215
  %v1217 = vpop.f32.mrf.mxu0
  %v1218 = vadd.f32 %v1169, %v1217
  %1219 = vmatmul.bf16.gmra.mxu0 %v607
  %v1220 = vpop.f32.mrf.mxu0
  %v1221 = vadd.f32 %v1172, %v1220
  %v1222 = vpop.f32.mrf.mxu0
  %v1223 = vadd.f32 %v1174, %v1222
  %1224 = vmatmul.bf16.gmra.mxu0 %v616
  %v1225 = vpop.f32.mrf.mxu0
  %v1226 = vadd.f32 %v1177, %v1225
  %v1227 = vpop.f32.mrf.mxu0
  %v1228 = vadd.f32 %v1179, %v1227
  %1229 = vmatmul.bf16.gmra.mxu0 %v625
  %v1230 = vpop.f32.mrf.mxu0
  %v1231 = vadd.f32 %v1182, %v1230
  %v1232 = vpop.f32.mrf.mxu0
  %v1233 = vadd.f32 %v1184, %v1232
  %1234 = vdwg.mxu0
  %1235 = vmatpush.bf16.msra.mxu0 %v1016
  %1236 = vmatpush.bf16.msra.mxu0 %v1015
  %1237 = vmatpush.bf16.msra.mxu0 %v1014
  %1238 = vmatpush.bf16.msra.mxu0 %v1013
  %1239 = vmatpush.bf16.msra.mxu0 %v1012
  %1240 = vmatpush.bf16.msra.mxu0 %v1011
  %1241 = vmatpush.bf16.msra.mxu0 %v1010
  %1242 = vmatpush.bf16.msra.mxu0 %v1009
  %1243 = vmatmul.bf16.gmra.mxu0 %v563
  %v1244 = vpop.f32.mrf.mxu0
  %v1245 = vadd.f32 %v1196, %v1244
  %v1246 = vpop.f32.mrf.mxu0
  %v1247 = vadd.f32 %v1198, %v1246
  %1248 = vmatmul.bf16.gmra.mxu0 %v572
  %v1249 = vpop.f32.mrf.mxu0
  %v1250 = vadd.f32 %v1201, %v1249
  %v1251 = vpop.f32.mrf.mxu0
  %v1252 = vadd.f32 %v1203, %v1251
  %1253 = vmatmul.bf16.gmra.mxu0 %v581
  %v1254 = vpop.f32.mrf.mxu0
  %v1255 = vadd.f32 %v1206, %v1254
  %v1256 = vpop.f32.mrf.mxu0
  %v1257 = vadd.f32 %v1208, %v1256
  %1258 = vmatmul.bf16.gmra.mxu0 %v590
  %v1259 = vpop.f32.mrf.mxu0
  %v1260 = vadd.f32 %v1211, %v1259
  %v1261 = vpop.f32.mrf.mxu0
  %v1262 = vadd.f32 %v1213, %v1261
  %1263 = vmatmul.bf16.gmra.mxu0 %v599
  %v1264 = vpop.f32.mrf.mxu0
  %v1265 = vadd.f32 %v1216, %v1264
  %v1266 = vpop.f32.mrf.mxu0
  %v1267 = vadd.f32 %v1218, %v1266
  %1268 = vmatmul.bf16.gmra.mxu0 %v608
  %v1269 = vpop.f32.mrf.mxu0
  %v1270 = vadd.f32 %v1221, %v1269
  %v1271 = vpop.f32.mrf.mxu0
  %v1272 = vadd.f32 %v1223, %v1271
  %1273 = vmatmul.bf16.gmra.mxu0 %v617
  %v1274 = vpop.f32.mrf.mxu0
  %v1275 = vadd.f32 %v1226, %v1274
  %v1276 = vpop.f32.mrf.mxu0
  %v1277 = vadd.f32 %v1228, %v1276
  %1278 = vmatmul.bf16.gmra.mxu0 %v626
  %v1279 = vpop.f32.mrf.mxu0
  %v1280 = vadd.f32 %v1231, %v1279
  %v1281 = vpop.f32.mrf.mxu0
  %v1282 = vadd.f32 %v1233, %v1281
  %1283 = vdwg.mxu0
  %1284 = vmatpush.bf16.msra.mxu0 %v1024
  %1285 = vmatpush.bf16.msra.mxu0 %v1023
  %1286 = vmatpush.bf16.msra.mxu0 %v1022
  %1287 = vmatpush.bf16.msra.mxu0 %v1021
  %1288 = vmatpush.bf16.msra.mxu0 %v1020
  %1289 = vmatpush.bf16.msra.mxu0 %v1019
  %1290 = vmatpush.bf16.msra.mxu0 %v1018
  %1291 = vmatpush.bf16.msra.mxu0 %v1017
  %1292 = vmatmul.bf16.gmra.mxu0 %v564
  %v1293 = vpop.f32.mrf.mxu0
  %v1294 = vadd.f32 %v1245, %v1293
  %v1295 = vpop.f32.mrf.mxu0
  %v1296 = vadd.f32 %v1247, %v1295
  %1297 = vmatmul.bf16.gmra.mxu0 %v573
  %v1298 = vpop.f32.mrf.mxu0
  %v1299 = vadd.f32 %v1250, %v1298
  %v1300 = vpop.f32.mrf.mxu0
  %v1301 = vadd.f32 %v1252, %v1300
  %1302 = vmatmul.bf16.gmra.mxu0 %v582
  %v1303 = vpop.f32.mrf.mxu0
  %v1304 = vadd.f32 %v1255, %v1303
  %v1305 = vpop.f32.mrf.mxu0
  %v1306 = vadd.f32 %v1257, %v1305
  %1307 = vmatmul.bf16.gmra.mxu0 %v591
  %v1308 = vpop.f32.mrf.mxu0
  %v1309 = vadd.f32 %v1260, %v1308
  %v1310 = vpop.f32.mrf.mxu0
  %v1311 = vadd.f32 %v1262, %v1310
  %1312 = vmatmul.bf16.gmra.mxu0 %v600
  %v1313 = vpop.f32.mrf.mxu0
  %v1314 = vadd.f32 %v1265, %v1313
  %v1315 = vpop.f32.mrf.mxu0
  %v1316 = vadd.f32 %v1267, %v1315
  %1317 = vmatmul.bf16.gmra.mxu0 %v609
  %v1318 = vpop.f32.mrf.mxu0
  %v1319 = vadd.f32 %v1270, %v1318
  %v1320 = vpop.f32.mrf.mxu0
  %v1321 = vadd.f32 %v1272, %v1320
  %1322 = vmatmul.bf16.gmra.mxu0 %v618
  %v1323 = vpop.f32.mrf.mxu0
  %v1324 = vadd.f32 %v1275, %v1323
  %v1325 = vpop.f32.mrf.mxu0
  %v1326 = vadd.f32 %v1277, %v1325
  %1327 = vmatmul.bf16.gmra.mxu0 %v627
  %v1328 = vpop.f32.mrf.mxu0
  %v1329 = vadd.f32 %v1280, %v1328
  %v1330 = vpop.f32.mrf.mxu0
  %v1331 = vadd.f32 %v1282, %v1330
  %1332 = vdwg.mxu0
  %1333 = vmatpush.bf16.msra.mxu0 %v1032
  %1334 = vmatpush.bf16.msra.mxu0 %v1031
  %1335 = vmatpush.bf16.msra.mxu0 %v1030
  %1336 = vmatpush.bf16.msra.mxu0 %v1029
  %1337 = vmatpush.bf16.msra.mxu0 %v1028
  %1338 = vmatpush.bf16.msra.mxu0 %v1027
  %1339 = vmatpush.bf16.msra.mxu0 %v1026
  %1340 = vmatpush.bf16.msra.mxu0 %v1025
  %1341 = vmatmul.bf16.gmra.mxu0 %v565
  %v1342 = vpop.f32.mrf.mxu0
  %v1343 = vadd.f32 %v1294, %v1342
  %v1344 = vpop.f32.mrf.mxu0
  %v1345 = vadd.f32 %v1296, %v1344
  %1346 = vmatmul.bf16.gmra.mxu0 %v574
  %v1347 = vpop.f32.mrf.mxu0
  %v1348 = vadd.f32 %v1299, %v1347
  %v1349 = vpop.f32.mrf.mxu0
  %v1350 = vadd.f32 %v1301, %v1349
  %1351 = vmatmul.bf16.gmra.mxu0 %v583
  %v1352 = vpop.f32.mrf.mxu0
  %v1353 = vadd.f32 %v1304, %v1352
  %v1354 = vpop.f32.mrf.mxu0
  %v1355 = vadd.f32 %v1306, %v1354
  %1356 = vmatmul.bf16.gmra.mxu0 %v592
  %v1357 = vpop.f32.mrf.mxu0
  %v1358 = vadd.f32 %v1309, %v1357
  %v1359 = vpop.f32.mrf.mxu0
  %v1360 = vadd.f32 %v1311, %v1359
  %1361 = vmatmul.bf16.gmra.mxu0 %v601
  %v1362 = vpop.f32.mrf.mxu0
  %v1363 = vadd.f32 %v1314, %v1362
  %v1364 = vpop.f32.mrf.mxu0
  %v1365 = vadd.f32 %v1316, %v1364
  %1366 = vmatmul.bf16.gmra.mxu0 %v610
  %v1367 = vpop.f32.mrf.mxu0
  %v1368 = vadd.f32 %v1319, %v1367
  %v1369 = vpop.f32.mrf.mxu0
  %v1370 = vadd.f32 %v1321, %v1369
  %1371 = vmatmul.bf16.gmra.mxu0 %v619
  %v1372 = vpop.f32.mrf.mxu0
  %v1373 = vadd.f32 %v1324, %v1372
  %v1374 = vpop.f32.mrf.mxu0
  %v1375 = vadd.f32 %v1326, %v1374
  %1376 = vmatmul.bf16.gmra.mxu0 %v628
  %v1377 = vpop.f32.mrf.mxu0
  %v1378 = vadd.f32 %v1329, %v1377
  %v1379 = vpop.f32.mrf.mxu0
  %v1380 = vadd.f32 %v1331, %v1379
  %1381 = vdwg.mxu0
  %1382 = vmatpush.bf16.msra.mxu0 %v1040
  %1383 = vmatpush.bf16.msra.mxu0 %v1039
  %1384 = vmatpush.bf16.msra.mxu0 %v1038
  %1385 = vmatpush.bf16.msra.mxu0 %v1037
  %1386 = vmatpush.bf16.msra.mxu0 %v1036
  %1387 = vmatpush.bf16.msra.mxu0 %v1035
  %1388 = vmatpush.bf16.msra.mxu0 %v1034
  %1389 = vmatpush.bf16.msra.mxu0 %v1033
  %1390 = vmatmul.bf16.gmra.mxu0 %v566
  %v1391 = vpop.f32.mrf.mxu0
  %v1392 = vadd.f32 %v1343, %v1391
  %v1393 = vpop.f32.mrf.mxu0
  %v1394 = vadd.f32 %v1345, %v1393
  %1395 = vmatmul.bf16.gmra.mxu0 %v575
  %v1396 = vpop.f32.mrf.mxu0
  %v1397 = vadd.f32 %v1348, %v1396
  %v1398 = vpop.f32.mrf.mxu0
  %v1399 = vadd.f32 %v1350, %v1398
  %1400 = vmatmul.bf16.gmra.mxu0 %v584
  %v1401 = vpop.f32.mrf.mxu0
  %v1402 = vadd.f32 %v1353, %v1401
  %v1403 = vpop.f32.mrf.mxu0
  %v1404 = vadd.f32 %v1355, %v1403
  %1405 = vmatmul.bf16.gmra.mxu0 %v593
  %v1406 = vpop.f32.mrf.mxu0
  %v1407 = vadd.f32 %v1358, %v1406
  %v1408 = vpop.f32.mrf.mxu0
  %v1409 = vadd.f32 %v1360, %v1408
  %1410 = vmatmul.bf16.gmra.mxu0 %v602
  %v1411 = vpop.f32.mrf.mxu0
  %v1412 = vadd.f32 %v1363, %v1411
  %v1413 = vpop.f32.mrf.mxu0
  %v1414 = vadd.f32 %v1365, %v1413
  %1415 = vmatmul.bf16.gmra.mxu0 %v611
  %v1416 = vpop.f32.mrf.mxu0
  %v1417 = vadd.f32 %v1368, %v1416
  %v1418 = vpop.f32.mrf.mxu0
  %v1419 = vadd.f32 %v1370, %v1418
  %1420 = vmatmul.bf16.gmra.mxu0 %v620
  %v1421 = vpop.f32.mrf.mxu0
  %v1422 = vadd.f32 %v1373, %v1421
  %v1423 = vpop.f32.mrf.mxu0
  %v1424 = vadd.f32 %v1375, %v1423
  %1425 = vmatmul.bf16.gmra.mxu0 %v629
  %v1426 = vpop.f32.mrf.mxu0
  %v1427 = vadd.f32 %v1378, %v1426
  %v1428 = vpop.f32.mrf.mxu0
  %v1429 = vadd.f32 %v1380, %v1428
  %1430 = vdwg.mxu0
  %1431 = vmatpush.bf16.msra.mxu0 %v1048
  %1432 = vmatpush.bf16.msra.mxu0 %v1047
  %1433 = vmatpush.bf16.msra.mxu0 %v1046
  %1434 = vmatpush.bf16.msra.mxu0 %v1045
  %1435 = vmatpush.bf16.msra.mxu0 %v1044
  %1436 = vmatpush.bf16.msra.mxu0 %v1043
  %1437 = vmatpush.bf16.msra.mxu0 %v1042
  %1438 = vmatpush.bf16.msra.mxu0 %v1041
  %1439 = vmatmul.bf16.gmra.mxu0 %v567
  %v1440 = vpop.f32.mrf.mxu0
  %v1441 = vadd.f32 %v1392, %v1440
  %v1442 = vpop.f32.mrf.mxu0
  %v1443 = vadd.f32 %v1394, %v1442
  %1444 = vmatmul.bf16.gmra.mxu0 %v576
  %v1445 = vpop.f32.mrf.mxu0
  %v1446 = vadd.f32 %v1397, %v1445
  %v1447 = vpop.f32.mrf.mxu0
  %v1448 = vadd.f32 %v1399, %v1447
  %1449 = vmatmul.bf16.gmra.mxu0 %v585
  %v1450 = vpop.f32.mrf.mxu0
  %v1451 = vadd.f32 %v1402, %v1450
  %v1452 = vpop.f32.mrf.mxu0
  %v1453 = vadd.f32 %v1404, %v1452
  %1454 = vmatmul.bf16.gmra.mxu0 %v594
  %v1455 = vpop.f32.mrf.mxu0
  %v1456 = vadd.f32 %v1407, %v1455
  %v1457 = vpop.f32.mrf.mxu0
  %v1458 = vadd.f32 %v1409, %v1457
  %1459 = vmatmul.bf16.gmra.mxu0 %v603
  %v1460 = vpop.f32.mrf.mxu0
  %v1461 = vadd.f32 %v1412, %v1460
  %v1462 = vpop.f32.mrf.mxu0
  %v1463 = vadd.f32 %v1414, %v1462
  %1464 = vmatmul.bf16.gmra.mxu0 %v612
  %v1465 = vpop.f32.mrf.mxu0
  %v1466 = vadd.f32 %v1417, %v1465
  %v1467 = vpop.f32.mrf.mxu0
  %v1468 = vadd.f32 %v1419, %v1467
  %1469 = vmatmul.bf16.gmra.mxu0 %v621
  %v1470 = vpop.f32.mrf.mxu0
  %v1471 = vadd.f32 %v1422, %v1470
  %v1472 = vpop.f32.mrf.mxu0
  %v1473 = vadd.f32 %v1424, %v1472
  %1474 = vmatmul.bf16.gmra.mxu0 %v630
  %v1475 = vpop.f32.mrf.mxu0
  %v1476 = vadd.f32 %v1427, %v1475
  %v1477 = vpop.f32.mrf.mxu0
  %v1478 = vadd.f32 %v1429, %v1477
  %1479 = vdwg.mxu0
  %1480 = vmatpush.bf16.msra.mxu0 %v1056
  %1481 = vmatpush.bf16.msra.mxu0 %v1055
  %1482 = vmatpush.bf16.msra.mxu0 %v1054
  %1483 = vmatpush.bf16.msra.mxu0 %v1053
  %1484 = vmatpush.bf16.msra.mxu0 %v1052
  %1485 = vmatpush.bf16.msra.mxu0 %v1051
  %1486 = vmatpush.bf16.msra.mxu0 %v1050
  %1487 = vmatpush.bf16.msra.mxu0 %v1049
  %1488 = vmatmul.bf16.gmra.mxu0 %v568
  %v1489 = vpop.f32.mrf.mxu0
  %v1490 = vadd.f32 %v1441, %v1489
  %v1491 = vpop.f32.mrf.mxu0
  %v1492 = vadd.f32 %v1443, %v1491
  %1493 = vmatmul.bf16.gmra.mxu0 %v577
  %v1494 = vpop.f32.mrf.mxu0
  %v1495 = vadd.f32 %v1446, %v1494
  %v1496 = vpop.f32.mrf.mxu0
  %v1497 = vadd.f32 %v1448, %v1496
  %1498 = vmatmul.bf16.gmra.mxu0 %v586
  %v1499 = vpop.f32.mrf.mxu0
  %v1500 = vadd.f32 %v1451, %v1499
  %v1501 = vpop.f32.mrf.mxu0
  %v1502 = vadd.f32 %v1453, %v1501
  %1503 = vmatmul.bf16.gmra.mxu0 %v595
  %v1504 = vpop.f32.mrf.mxu0
  %v1505 = vadd.f32 %v1456, %v1504
  %v1506 = vpop.f32.mrf.mxu0
  %v1507 = vadd.f32 %v1458, %v1506
  %1508 = vmatmul.bf16.gmra.mxu0 %v604
  %v1509 = vpop.f32.mrf.mxu0
  %v1510 = vadd.f32 %v1461, %v1509
  %v1511 = vpop.f32.mrf.mxu0
  %v1512 = vadd.f32 %v1463, %v1511
  %1513 = vmatmul.bf16.gmra.mxu0 %v613
  %v1514 = vpop.f32.mrf.mxu0
  %v1515 = vadd.f32 %v1466, %v1514
  %v1516 = vpop.f32.mrf.mxu0
  %v1517 = vadd.f32 %v1468, %v1516
  %1518 = vmatmul.bf16.gmra.mxu0 %v622
  %v1519 = vpop.f32.mrf.mxu0
  %v1520 = vadd.f32 %v1471, %v1519
  %v1521 = vpop.f32.mrf.mxu0
  %v1522 = vadd.f32 %v1473, %v1521
  %1523 = vmatmul.bf16.gmra.mxu0 %v631
  %v1524 = vpop.f32.mrf.mxu0
  %v1525 = vadd.f32 %v1476, %v1524
  %v1526 = vpop.f32.mrf.mxu0
  %v1527 = vadd.f32 %v1478, %v1526
  %1528 = vdwg.mxu0
  %1529 = vmatpush.bf16.msra.mxu0 %v1064
  %1530 = vmatpush.bf16.msra.mxu0 %v1063
  %1531 = vmatpush.bf16.msra.mxu0 %v1062
  %1532 = vmatpush.bf16.msra.mxu0 %v1061
  %1533 = vmatpush.bf16.msra.mxu0 %v1060
  %1534 = vmatpush.bf16.msra.mxu0 %v1059
  %1535 = vmatpush.bf16.msra.mxu0 %v1058
  %1536 = vmatpush.bf16.msra.mxu0 %v1057
  %1537 = vmatmul.bf16.gmra.mxu0 %v569
  %v1538 = vpop.f32.mrf.mxu0
  %v1539 = vadd.f32 %v1490, %v1538
  %v1540 = vpop.f32.mrf.mxu0
  %v1541 = vadd.f32 %v1492, %v1540
  %1542 = vmatmul.bf16.gmra.mxu0 %v578
  %v1543 = vpop.f32.mrf.mxu0
  %v1544 = vadd.f32 %v1495, %v1543
  %v1545 = vpop.f32.mrf.mxu0
  %v1546 = vadd.f32 %v1497, %v1545
  %1547 = vmatmul.bf16.gmra.mxu0 %v587
  %v1548 = vpop.f32.mrf.mxu0
  %v1549 = vadd.f32 %v1500, %v1548
  %v1550 = vpop.f32.mrf.mxu0
  %v1551 = vadd.f32 %v1502, %v1550
  %1552 = vmatmul.bf16.gmra.mxu0 %v596
  %v1553 = vpop.f32.mrf.mxu0
  %v1554 = vadd.f32 %v1505, %v1553
  %v1555 = vpop.f32.mrf.mxu0
  %v1556 = vadd.f32 %v1507, %v1555
  %1557 = vmatmul.bf16.gmra.mxu0 %v605
  %v1558 = vpop.f32.mrf.mxu0
  %v1559 = vadd.f32 %v1510, %v1558
  %v1560 = vpop.f32.mrf.mxu0
  %v1561 = vadd.f32 %v1512, %v1560
  %1562 = vmatmul.bf16.gmra.mxu0 %v614
  %v1563 = vpop.f32.mrf.mxu0
  %v1564 = vadd.f32 %v1515, %v1563
  %v1565 = vpop.f32.mrf.mxu0
  %v1566 = vadd.f32 %v1517, %v1565
  %1567 = vmatmul.bf16.gmra.mxu0 %v623
  %v1568 = vpop.f32.mrf.mxu0
  %v1569 = vadd.f32 %v1520, %v1568
  %v1570 = vpop.f32.mrf.mxu0
  %v1571 = vadd.f32 %v1522, %v1570
  %1572 = vmatmul.bf16.gmra.mxu0 %v632
  %v1573 = vpop.f32.mrf.mxu0
  %v1574 = vadd.f32 %v1525, %v1573
  %v1575 = vpop.f32.mrf.mxu0
  %v1576 = vadd.f32 %v1527, %v1575
  %1577 = vdwg.mxu0
  %v1578 = vld [vmem:[%s3] sm:$0xff]
  %v1579 = vld [vmem:[%s3 + $0x8] sm:$0xff]
  %v1580 = vld [vmem:[%s3 + $0x10] sm:$0xff]
  %v1581 = vld [vmem:[%s3 + $0x18] sm:$0xff]
  %v1582 = vld [vmem:[%s3 + $0x20] sm:$0xff]
  %v1583 = vld [vmem:[%s3 + $0x28] sm:$0xff]
  %v1584 = vld [vmem:[%s3 + $0x30] sm:$0xff]
  %v1585 = vld [vmem:[%s3 + $0x38] sm:$0xff]
  %v1586 = vld [vmem:[%s3 + $0x40] sm:$0xff]
  %v1587 = vld [vmem:[%s3 + $0x48] sm:$0xff]
  %v1588 = vld [vmem:[%s3 + $0x50] sm:$0xff]
  %v1589 = vld [vmem:[%s3 + $0x58] sm:$0xff]
  %v1590 = vld [vmem:[%s3 + $0x60] sm:$0xff]
  %v1591 = vld [vmem:[%s3 + $0x68] sm:$0xff]
  %v1592 = vld [vmem:[%s3 + $0x70] sm:$0xff]
  %v1593 = vld [vmem:[%s3 + $0x78] sm:$0xff]
  %v1594 = vadd.f32 %v1539, %v1578
  %v1595 = vadd.f32 %v1541, %v1579
  %v1596 = vadd.f32 %v1544, %v1580
  %v1597 = vadd.f32 %v1546, %v1581
  %v1598 = vadd.f32 %v1549, %v1582
  %v1599 = vadd.f32 %v1551, %v1583
  %v1600 = vadd.f32 %v1554, %v1584
  %v1601 = vadd.f32 %v1556, %v1585
  %v1602 = vadd.f32 %v1559, %v1586
  %v1603 = vadd.f32 %v1561, %v1587
  %v1604 = vadd.f32 %v1564, %v1588
  %v1605 = vadd.f32 %v1566, %v1589
  %v1606 = vadd.f32 %v1569, %v1590
  %v1607 = vadd.f32 %v1571, %v1591
  %v1608 = vadd.f32 %v1574, %v1592
  %v1609 = vadd.f32 %v1576, %v1593
  %1610 = vst [vmem:[%s4] sm:$0xff] %v1594
  %1611 = vst [vmem:[%s4 + $0x8] sm:$0xff] %v1595
  %1612 = vst [vmem:[%s4 + $0x10] sm:$0xff] %v1596
  %1613 = vst [vmem:[%s4 + $0x18] sm:$0xff] %v1597
  %1614 = vst [vmem:[%s4 + $0x20] sm:$0xff] %v1598
  %1615 = vst [vmem:[%s4 + $0x28] sm:$0xff] %v1599
  %1616 = vst [vmem:[%s4 + $0x30] sm:$0xff] %v1600
  %1617 = vst [vmem:[%s4 + $0x38] sm:$0xff] %v1601
  %1618 = vst [vmem:[%s4 + $0x40] sm:$0xff] %v1602
  %1619 = vst [vmem:[%s4 + $0x48] sm:$0xff] %v1603
  %1620 = vst [vmem:[%s4 + $0x50] sm:$0xff] %v1604
  %1621 = vst [vmem:[%s4 + $0x58] sm:$0xff] %v1605
  %1622 = vst [vmem:[%s4 + $0x60] sm:$0xff] %v1606
  %1623 = vst [vmem:[%s4 + $0x68] sm:$0xff] %v1607
  %1624 = vst [vmem:[%s4 + $0x70] sm:$0xff] %v1608
  %1625 = vst [vmem:[%s4 + $0x78] sm:$0xff] %v1609
  // Predicated region
  $region18: #{feature_extraction_forward.68} parent=0 // pred_check
    _
  $region19: #{feature_extraction_forward.68} parent=0 // pred_check_branch
    %1627 = sbr.rel (0) target = $region21
  $region20: #{feature_extraction_forward.68} parent=0 // pred_region
    _
  $region21: #{feature_extraction_forward.68} parent=0 // pred_fallthru
    _
  // Predicated region
  $region22: #{feature_extraction_forward.68} parent=0 // pred_check
    _
  $region23: #{feature_extraction_forward.68} parent=0 // pred_check_branch
    %1629 = sbr.rel (0) target = $region25
  $region24: #{feature_extraction_forward.68} parent=0 // pred_region
    _
  $region25: #{feature_extraction_forward.68} parent=0 // pred_fallthru
    _

// kernel: feature_extraction_forward.55
$region0: #{feature_extraction_forward.55}
  #allocation0 [shape = 'u32[]', space=smem, size = 0x4, offset = 0x4, fixed_abs, tag = 'smem constant byte address 0x4 - core index']
  #allocation1 [shape = 'u32[72,128]{1,0:T(1,128)}', space=vmem, size = 0x9000, scoped, tag = 'internal scratch']
  %s0 = inlined_call_operand.vmem [shape: bf16[64,32], index: 0, kind: input, shape index: {}]
  %s1 = inlined_call_operand.vmem [shape: bf16[32,128], index: 1, kind: input, shape index: {}]
  %s2 = inlined_call_operand.vmem [shape: f32[64,1], index: 2, kind: input, shape index: {}]
  %s3 = inlined_call_operand.vmem [shape: f32[64,128], index: 3, kind: output, shape index: {}]
  %s4 = sld [smem:[#allocation0]]
  $region22: #{feature_extraction_forward.55} parent=0
    _
  %s6 = ssub.s32 1, %s4
  %s7 = scalar_select 0, %s6, %s4
  // Predicated region
  $region2: #{feature_extraction_forward.55} parent=0 // pred_check
    _
  $region3: #{feature_extraction_forward.55} parent=0 // pred_check_branch
    %9 = sbr.rel (0) target = $region5
  $region4: #{feature_extraction_forward.55} parent=0 // pred_region
    _
  $region5: #{feature_extraction_forward.55} parent=0 // pred_fallthru
    _
  // Predicated region
  $region6: #{feature_extraction_forward.55} parent=0 // pred_check
    _
  $region7: #{feature_extraction_forward.55} parent=0 // pred_check_branch
    %11 = sbr.rel (0) target = $region9
  $region8: #{feature_extraction_forward.55} parent=0 // pred_region
    _
  $region9: #{feature_extraction_forward.55} parent=0 // pred_fallthru
    _
  // Predicated region
  $region10: #{feature_extraction_forward.55} parent=0 // pred_check
    _
  $region11: #{feature_extraction_forward.55} parent=0 // pred_check_branch
    %13 = sbr.rel (0) target = $region13
  $region12: #{feature_extraction_forward.55} parent=0 // pred_region
    _
  $region13: #{feature_extraction_forward.55} parent=0 // pred_fallthru
    _
  %v15 = vld [vmem:[%s0] sm:$0xf]
  %v16 = vld [vmem:[%s0 + $0x4] sm:$0xf]
  %v17 = vld [vmem:[%s0 + $0x8] sm:$0xf]
  %v18 = vld [vmem:[%s0 + $0xc] sm:$0xf]
  %v19 = vld [vmem:[%s0 + $0x10] sm:$0xf]
  %v20 = vld [vmem:[%s0 + $0x14] sm:$0xf]
  %v21 = vld [vmem:[%s0 + $0x18] sm:$0xf]
  %v22 = vld [vmem:[%s0 + $0x1c] sm:$0xf]
  %v23 = vld [vmem:[%s1] sm:$0xf]
  %v24 = vld [vmem:[%s1 + $0x4] sm:$0xf]
  %v25 = vld [vmem:[%s1 + $0x8] sm:$0xf]
  %v26 = vld [vmem:[%s1 + $0xc] sm:$0xf]
  %v27 = vld [vmem:[%s2] sm:$0xff]
  %v28 = vld [vmem:[%s2 + $0x8] sm:$0xff]
  %v29 = vld [vmem:[%s2 + $0x10] sm:$0xff]
  %v30 = vld [vmem:[%s2 + $0x18] sm:$0xff]
  %v31 = vld [vmem:[%s2 + $0x20] sm:$0xff]
  %v32 = vld [vmem:[%s2 + $0x28] sm:$0xff]
  %v33 = vld [vmem:[%s2 + $0x30] sm:$0xff]
  %v34 = vld [vmem:[%s2 + $0x38] sm:$0xff]
  %36 = vset.pattern.permute.xlu0 0
  %37 = vperm.xlu0 %36, %v27
  %v38 = vpop.permute.xlu0 %37
  %41 = vset.pattern.permute.xlu0 0
  %42 = vperm.xlu0 %41, %v28
  %v43 = vpop.permute.xlu0 %42
  %46 = vset.pattern.permute.xlu0 0
  %47 = vperm.xlu0 %46, %v29
  %v48 = vpop.permute.xlu0 %47
  %51 = vset.pattern.permute.xlu0 0
  %52 = vperm.xlu0 %51, %v30
  %v53 = vpop.permute.xlu0 %52
  %56 = vset.pattern.permute.xlu0 0
  %57 = vperm.xlu0 %56, %v31
  %v58 = vpop.permute.xlu0 %57
  %61 = vset.pattern.permute.xlu0 0
  %62 = vperm.xlu0 %61, %v32
  %v63 = vpop.permute.xlu0 %62
  %66 = vset.pattern.permute.xlu0 0
  %67 = vperm.xlu0 %66, %v33
  %v68 = vpop.permute.xlu0 %67
  %71 = vset.pattern.permute.xlu0 0
  %72 = vperm.xlu0 %71, %v34
  %v73 = vpop.permute.xlu0 %72
  %v83 = vunpack.c.l.b16 %v15
  %v84 = vunpack.c.l.b16 %v16
  %v85 = vunpack.c.l.b16 %v17
  %v86 = vunpack.c.l.b16 %v18
  %v87 = vunpack.c.l.b16 %v19
  %v88 = vunpack.c.l.b16 %v20
  %v89 = vunpack.c.l.b16 %v21
  %v90 = vunpack.c.l.b16 %v22
  %v91 = vpack.c.b16 %v84, %v83
  %v92 = vpack.c.b16 %v86, %v85
  %v93 = vpack.c.b16 %v88, %v87
  %v94 = vpack.c.b16 %v90, %v89
  %v99 = vunpack.c.l.b16 %v23
  %v100 = vunpack.c.l.b16 %v24
  %v101 = vunpack.c.l.b16 %v25
  %v102 = vunpack.c.l.b16 %v26
  %v103 = vpack.c.b16 %v100, %v99
  %v104 = vpack.c.b16 %v102, %v101
  %vm107 = vcmask 261120
  %v109 = vsel %vm107, %v91, 0
  %v112 = vsel %vm107, %v92, 0
  %v115 = vsel %vm107, %v93, 0
  %v118 = vsel %vm107, %v94, 0
  %120 = vmatpush.bf16.msra.mxu0 0
  %121 = vmatpush.bf16.msra.mxu0 0
  %122 = vmatpush.bf16.msra.mxu0 0
  %123 = vmatpush.bf16.msra.mxu0 0
  %124 = vmatpush.bf16.msra.mxu0 0
  %125 = vmatpush.bf16.msra.mxu0 0
  %126 = vmatpush.bf16.msra.mxu0 %v104
  %127 = vmatpush.bf16.msra.mxu0 %v103
  %128 = vmatmul.bf16.gmra.mxu0 %v109
  %v129 = vpop.f32.mrf.mxu0
  %v130 = vadd.f32 %v38, %v129
  %v131 = vpop.f32.mrf.mxu0
  %v132 = vadd.f32 %v43, %v131
  %133 = vmatmul.bf16.gmra.mxu0 %v112
  %v134 = vpop.f32.mrf.mxu0
  %v135 = vadd.f32 %v48, %v134
  %v136 = vpop.f32.mrf.mxu0
  %v137 = vadd.f32 %v53, %v136
  %138 = vmatmul.bf16.gmra.mxu0 %v115
  %v139 = vpop.f32.mrf.mxu0
  %v140 = vadd.f32 %v58, %v139
  %v141 = vpop.f32.mrf.mxu0
  %v142 = vadd.f32 %v63, %v141
  %143 = vmatmul.bf16.gmra.mxu0 %v118
  %v144 = vpop.f32.mrf.mxu0
  %v145 = vadd.f32 %v68, %v144
  %v146 = vpop.f32.mrf.mxu0
  %v147 = vadd.f32 %v73, %v146
  %148 = vdwg.mxu0
  %v149 = vmax.f32 %v130, 0.0
  %v150 = vmax.f32 %v132, 0.0
  %v151 = vmax.f32 %v135, 0.0
  %v152 = vmax.f32 %v137, 0.0
  %v153 = vmax.f32 %v140, 0.0
  %v154 = vmax.f32 %v142, 0.0
  %v155 = vmax.f32 %v145, 0.0
  %v156 = vmax.f32 %v147, 0.0
  %157 = vst [vmem:[%s3] sm:$0xff] %v149
  %158 = vst [vmem:[%s3 + $0x8] sm:$0xff] %v150
  %159 = vst [vmem:[%s3 + $0x10] sm:$0xff] %v151
  %160 = vst [vmem:[%s3 + $0x18] sm:$0xff] %v152
  %161 = vst [vmem:[%s3 + $0x20] sm:$0xff] %v153
  %162 = vst [vmem:[%s3 + $0x28] sm:$0xff] %v154
  %163 = vst [vmem:[%s3 + $0x30] sm:$0xff] %v155
  %164 = vst [vmem:[%s3 + $0x38] sm:$0xff] %v156
  // Predicated region
  $region14: #{feature_extraction_forward.55} parent=0 // pred_check
    _
  $region15: #{feature_extraction_forward.55} parent=0 // pred_check_branch
    %166 = sbr.rel (0) target = $region17
  $region16: #{feature_extraction_forward.55} parent=0 // pred_region
    _
  $region17: #{feature_extraction_forward.55} parent=0 // pred_fallthru
    _
  // Predicated region
  $region18: #{feature_extraction_forward.55} parent=0 // pred_check
    _
  $region19: #{feature_extraction_forward.55} parent=0 // pred_check_branch
    %168 = sbr.rel (0) target = $region21
  $region20: #{feature_extraction_forward.55} parent=0 // pred_region
    _
  $region21: #{feature_extraction_forward.55} parent=0 // pred_fallthru
    _

// kernel: feature_extraction_forward.69
$region0: #{feature_extraction_forward.69}
  #allocation0 [shape = 'u32[]', space=smem, size = 0x4, offset = 0x4, fixed_abs, tag = 'smem constant byte address 0x4 - core index']
  #allocation1 [shape = 'u32[72,128]{1,0:T(1,128)}', space=vmem, size = 0x9000, scoped, tag = 'internal scratch']
  %s0 = inlined_call_operand.vmem [shape: bf16[128,1152], index: 0, kind: input, shape index: {}]
  %s1 = inlined_call_operand.vmem [shape: bf16[1152,128], index: 1, kind: input, shape index: {}]
  %s2 = inlined_call_operand.vmem [shape: f32[128,1], index: 2, kind: input, shape index: {}]
  %s3 = inlined_call_operand.vmem [shape: f32[128,128], index: 3, kind: output, shape index: {}]
  %s4 = sld [smem:[#allocation0]]
  $region22: #{feature_extraction_forward.69} parent=0
    _
  %s6 = ssub.s32 1, %s4
  %s7 = scalar_select 0, %s6, %s4
  // Predicated region
  $region2: #{feature_extraction_forward.69} parent=0 // pred_check
    _
  $region3: #{feature_extraction_forward.69} parent=0 // pred_check_branch
    %9 = sbr.rel (0) target = $region5
  $region4: #{feature_extraction_forward.69} parent=0 // pred_region
    _
  $region5: #{feature_extraction_forward.69} parent=0 // pred_fallthru
    _
  // Predicated region
  $region6: #{feature_extraction_forward.69} parent=0 // pred_check
    _
  $region7: #{feature_extraction_forward.69} parent=0 // pred_check_branch
    %11 = sbr.rel (0) target = $region9
  $region8: #{feature_extraction_forward.69} parent=0 // pred_region
    _
  $region9: #{feature_extraction_forward.69} parent=0 // pred_fallthru
    _
  // Predicated region
  $region10: #{feature_extraction_forward.69} parent=0 // pred_check
    _
  $region11: #{feature_extraction_forward.69} parent=0 // pred_check_branch
    %13 = sbr.rel (0) target = $region13
  $region12: #{feature_extraction_forward.69} parent=0 // pred_region
    _
  $region13: #{feature_extraction_forward.69} parent=0 // pred_fallthru
    _
  %v14 = vld [vmem:[%s0] sm:$0xff]
  %v15 = vld [vmem:[%s0 + $0x8] sm:$0xff]
  %v16 = vld [vmem:[%s0 + $0x10] sm:$0xff]
  %v17 = vld [vmem:[%s0 + $0x18] sm:$0xff]
  %v18 = vld [vmem:[%s0 + $0x20] sm:$0xf]
  %v19 = vld [vmem:[%s0 + $0x24] sm:$0xff]
  %v20 = vld [vmem:[%s0 + $0x2c] sm:$0xff]
  %v21 = vld [vmem:[%s0 + $0x34] sm:$0xff]
  %v22 = vld [vmem:[%s0 + $0x3c] sm:$0xff]
  %v23 = vld [vmem:[%s0 + $0x44] sm:$0xf]
  %v24 = vld [vmem:[%s0 + $0x48] sm:$0xff]
  %v25 = vld [vmem:[%s0 + $0x50] sm:$0xff]
  %v26 = vld [vmem:[%s0 + $0x58] sm:$0xff]
  %v27 = vld [vmem:[%s0 + $0x60] sm:$0xff]
  %v28 = vld [vmem:[%s0 + $0x68] sm:$0xf]
  %v29 = vld [vmem:[%s0 + $0x6c] sm:$0xff]
  %v30 = vld [vmem:[%s0 + $0x74] sm:$0xff]
  %v31 = vld [vmem:[%s0 + $0x7c] sm:$0xff]
  %v32 = vld [vmem:[%s0 + $0x84] sm:$0xff]
  %v33 = vld [vmem:[%s0 + $0x8c] sm:$0xf]
  %v34 = vld [vmem:[%s0 + $0x90] sm:$0xff]
  %v35 = vld [vmem:[%s0 + $0x98] sm:$0xff]
  %v36 = vld [vmem:[%s0 + $0xa0] sm:$0xff]
  %v37 = vld [vmem:[%s0 + $0xa8] sm:$0xff]
  %v38 = vld [vmem:[%s0 + $0xb0] sm:$0xf]
  %v39 = vld [vmem:[%s0 + $0xb4] sm:$0xff]
  %v40 = vld [vmem:[%s0 + $0xbc] sm:$0xff]
  %v41 = vld [vmem:[%s0 + $0xc4] sm:$0xff]
  %v42 = vld [vmem:[%s0 + $0xcc] sm:$0xff]
  %v43 = vld [vmem:[%s0 + $0xd4] sm:$0xf]
  %v44 = vld [vmem:[%s0 + $0xd8] sm:$0xff]
  %v45 = vld [vmem:[%s0 + $0xe0] sm:$0xff]
  %v46 = vld [vmem:[%s0 + $0xe8] sm:$0xff]
  %v47 = vld [vmem:[%s0 + $0xf0] sm:$0xff]
  %v48 = vld [vmem:[%s0 + $0xf8] sm:$0xf]
  %v49 = vld [vmem:[%s0 + $0xfc] sm:$0xff]
  %v50 = vld [vmem:[%s0 + $0x104] sm:$0xff]
  %v51 = vld [vmem:[%s0 + $0x10c] sm:$0xff]
  %v52 = vld [vmem:[%s0 + $0x114] sm:$0xff]
  %v53 = vld [vmem:[%s0 + $0x11c] sm:$0xf]
  %v54 = vld [vmem:[%s0 + $0x120] sm:$0xff]
  %v55 = vld [vmem:[%s0 + $0x128] sm:$0xff]
  %v56 = vld [vmem:[%s0 + $0x130] sm:$0xff]
  %v57 = vld [vmem:[%s0 + $0x138] sm:$0xff]
  %v58 = vld [vmem:[%s0 + $0x140] sm:$0xf]
  %v59 = vld [vmem:[%s0 + $0x144] sm:$0xff]
  %v60 = vld [vmem:[%s0 + $0x14c] sm:$0xff]
  %v61 = vld [vmem:[%s0 + $0x154] sm:$0xff]
  %v62 = vld [vmem:[%s0 + $0x15c] sm:$0xff]
  %v63 = vld [vmem:[%s0 + $0x164] sm:$0xf]
  %v64 = vld [vmem:[%s0 + $0x168] sm:$0xff]
  %v65 = vld [vmem:[%s0 + $0x170] sm:$0xff]
  %v66 = vld [vmem:[%s0 + $0x178] sm:$0xff]
  %v67 = vld [vmem:[%s0 + $0x180] sm:$0xff]
  %v68 = vld [vmem:[%s0 + $0x188] sm:$0xf]
  %v69 = vld [vmem:[%s0 + $0x18c] sm:$0xff]
  %v70 = vld [vmem:[%s0 + $0x194] sm:$0xff]
  %v71 = vld [vmem:[%s0 + $0x19c] sm:$0xff]
  %v72 = vld [vmem:[%s0 + $0x1a4] sm:$0xff]
  %v73 = vld [vmem:[%s0 + $0x1ac] sm:$0xf]
  %v74 = vld [vmem:[%s0 + $0x1b0] sm:$0xff]
  %v75 = vld [vmem:[%s0 + $0x1b8] sm:$0xff]
  %v76 = vld [vmem:[%s0 + $0x1c0] sm:$0xff]
  %v77 = vld [vmem:[%s0 + $0x1c8] sm:$0xff]
  %v78 = vld [vmem:[%s0 + $0x1d0] sm:$0xf]
  %v79 = vld [vmem:[%s0 + $0x1d4] sm:$0xff]
  %v80 = vld [vmem:[%s0 + $0x1dc] sm:$0xff]
  %v81 = vld [vmem:[%s0 + $0x1e4] sm:$0xff]
  %v82 = vld [vmem:[%s0 + $0x1ec] sm:$0xff]
  %v83 = vld [vmem:[%s0 + $0x1f4] sm:$0xf]
  %v84 = vld [vmem:[%s0 + $0x1f8] sm:$0xff]
  %v85 = vld [vmem:[%s0 + $0x200] sm:$0xff]
  %v86 = vld [vmem:[%s0 + $0x208] sm:$0xff]
  %v87 = vld [vmem:[%s0 + $0x210] sm:$0xff]
  %v88 = vld [vmem:[%s0 + $0x218] sm:$0xf]
  %v89 = vld [vmem:[%s0 + $0x21c] sm:$0xff]
  %v90 = vld [vmem:[%s0 + $0x224] sm:$0xff]
  %v91 = vld [vmem:[%s0 + $0x22c] sm:$0xff]
  %v92 = vld [vmem:[%s0 + $0x234] sm:$0xff]
  %v93 = vld [vmem:[%s0 + $0x23c] sm:$0xf]
  %v94 = vld [vmem:[%s1] sm:$0xf]
  %v95 = vld [vmem:[%s1 + $0x4] sm:$0xf]
  %v96 = vld [vmem:[%s1 + $0x8] sm:$0xf]
  %v97 = vld [vmem:[%s1 + $0xc] sm:$0xf]
  %v98 = vld [vmem:[%s1 + $0x10] sm:$0xf]
  %v99 = vld [vmem:[%s1 + $0x14] sm:$0xf]
  %v100 = vld [vmem:[%s1 + $0x18] sm:$0xf]
  %v101 = vld [vmem:[%s1 + $0x1c] sm:$0xf]
  %v102 = vld [vmem:[%s1 + $0x20] sm:$0xf]
  %v103 = vld [vmem:[%s1 + $0x24] sm:$0xf]
  %v104 = vld [vmem:[%s1 + $0x28] sm:$0xf]
  %v105 = vld [vmem:[%s1 + $0x2c] sm:$0xf]
  %v106 = vld [vmem:[%s1 + $0x30] sm:$0xf]
  %v107 = vld [vmem:[%s1 + $0x34] sm:$0xf]
  %v108 = vld [vmem:[%s1 + $0x38] sm:$0xf]
  %v109 = vld [vmem:[%s1 + $0x3c] sm:$0xf]
  %v110 = vld [vmem:[%s1 + $0x40] sm:$0xf]
  %v111 = vld [vmem:[%s1 + $0x44] sm:$0xf]
  %v112 = vld [vmem:[%s1 + $0x48] sm:$0xf]
  %v113 = vld [vmem:[%s1 + $0x4c] sm:$0xf]
  %v114 = vld [vmem:[%s1 + $0x50] sm:$0xf]
  %v115 = vld [vmem:[%s1 + $0x54] sm:$0xf]
  %v116 = vld [vmem:[%s1 + $0x58] sm:$0xf]
  %v117 = vld [vmem:[%s1 + $0x5c] sm:$0xf]
  %v118 = vld [vmem:[%s1 + $0x60] sm:$0xf]
  %v119 = vld [vmem:[%s1 + $0x64] sm:$0xf]
  %v120 = vld [vmem:[%s1 + $0x68] sm:$0xf]
  %v121 = vld [vmem:[%s1 + $0x6c] sm:$0xf]
  %v122 = vld [vmem:[%s1 + $0x70] sm:$0xf]
  %v123 = vld [vmem:[%s1 + $0x74] sm:$0xf]
  %v124 = vld [vmem:[%s1 + $0x78] sm:$0xf]
  %v125 = vld [vmem:[%s1 + $0x7c] sm:$0xf]
  %v126 = vld [vmem:[%s1 + $0x80] sm:$0xf]
  %v127 = vld [vmem:[%s1 + $0x84] sm:$0xf]
  %v128 = vld [vmem:[%s1 + $0x88] sm:$0xf]
  %v129 = vld [vmem:[%s1 + $0x8c] sm:$0xf]
  %v130 = vld [vmem:[%s1 + $0x90] sm:$0xf]
  %v131 = vld [vmem:[%s1 + $0x94] sm:$0xf]
  %v132 = vld [vmem:[%s1 + $0x98] sm:$0xf]
  %v133 = vld [vmem:[%s1 + $0x9c] sm:$0xf]
  %v134 = vld [vmem:[%s1 + $0xa0] sm:$0xf]
  %v135 = vld [vmem:[%s1 + $0xa4] sm:$0xf]
  %v136 = vld [vmem:[%s1 + $0xa8] sm:$0xf]
  %v137 = vld [vmem:[%s1 + $0xac] sm:$0xf]
  %v138 = vld [vmem:[%s1 + $0xb0] sm:$0xf]
  %v139 = vld [vmem:[%s1 + $0xb4] sm:$0xf]
  %v140 = vld [vmem:[%s1 + $0xb8] sm:$0xf]
  %v141 = vld [vmem:[%s1 + $0xbc] sm:$0xf]
  %v142 = vld [vmem:[%s1 + $0xc0] sm:$0xf]
  %v143 = vld [vmem:[%s1 + $0xc4] sm:$0xf]
  %v144 = vld [vmem:[%s1 + $0xc8] sm:$0xf]
  %v145 = vld [vmem:[%s1 + $0xcc] sm:$0xf]
  %v146 = vld [vmem:[%s1 + $0xd0] sm:$0xf]
  %v147 = vld [vmem:[%s1 + $0xd4] sm:$0xf]
  %v148 = vld [vmem:[%s1 + $0xd8] sm:$0xf]
  %v149 = vld [vmem:[%s1 + $0xdc] sm:$0xf]
  %v150 = vld [vmem:[%s1 + $0xe0] sm:$0xf]
  %v151 = vld [vmem:[%s1 + $0xe4] sm:$0xf]
  %v152 = vld [vmem:[%s1 + $0xe8] sm:$0xf]
  %v153 = vld [vmem:[%s1 + $0xec] sm:$0xf]
  %v154 = vld [vmem:[%s1 + $0xf0] sm:$0xf]
  %v155 = vld [vmem:[%s1 + $0xf4] sm:$0xf]
  %v156 = vld [vmem:[%s1 + $0xf8] sm:$0xf]
  %v157 = vld [vmem:[%s1 + $0xfc] sm:$0xf]
  %v158 = vld [vmem:[%s1 + $0x100] sm:$0xf]
  %v159 = vld [vmem:[%s1 + $0x104] sm:$0xf]
  %v160 = vld [vmem:[%s1 + $0x108] sm:$0xf]
  %v161 = vld [vmem:[%s1 + $0x10c] sm:$0xf]
  %v162 = vld [vmem:[%s1 + $0x110] sm:$0xf]
  %v163 = vld [vmem:[%s1 + $0x114] sm:$0xf]
  %v164 = vld [vmem:[%s1 + $0x118] sm:$0xf]
  %v165 = vld [vmem:[%s1 + $0x11c] sm:$0xf]
  %v166 = vld [vmem:[%s1 + $0x120] sm:$0xf]
  %v167 = vld [vmem:[%s1 + $0x124] sm:$0xf]
  %v168 = vld [vmem:[%s1 + $0x128] sm:$0xf]
  %v169 = vld [vmem:[%s1 + $0x12c] sm:$0xf]
  %v170 = vld [vmem:[%s1 + $0x130] sm:$0xf]
  %v171 = vld [vmem:[%s1 + $0x134] sm:$0xf]
  %v172 = vld [vmem:[%s1 + $0x138] sm:$0xf]
  %v173 = vld [vmem:[%s1 + $0x13c] sm:$0xf]
  %v174 = vld [vmem:[%s1 + $0x140] sm:$0xf]
  %v175 = vld [vmem:[%s1 + $0x144] sm:$0xf]
  %v176 = vld [vmem:[%s1 + $0x148] sm:$0xf]
  %v177 = vld [vmem:[%s1 + $0x14c] sm:$0xf]
  %v178 = vld [vmem:[%s1 + $0x150] sm:$0xf]
  %v179 = vld [vmem:[%s1 + $0x154] sm:$0xf]
  %v180 = vld [vmem:[%s1 + $0x158] sm:$0xf]
  %v181 = vld [vmem:[%s1 + $0x15c] sm:$0xf]
  %v182 = vld [vmem:[%s1 + $0x160] sm:$0xf]
  %v183 = vld [vmem:[%s1 + $0x164] sm:$0xf]
  %v184 = vld [vmem:[%s1 + $0x168] sm:$0xf]
  %v185 = vld [vmem:[%s1 + $0x16c] sm:$0xf]
  %v186 = vld [vmem:[%s1 + $0x170] sm:$0xf]
  %v187 = vld [vmem:[%s1 + $0x174] sm:$0xf]
  %v188 = vld [vmem:[%s1 + $0x178] sm:$0xf]
  %v189 = vld [vmem:[%s1 + $0x17c] sm:$0xf]
  %v190 = vld [vmem:[%s1 + $0x180] sm:$0xf]
  %v191 = vld [vmem:[%s1 + $0x184] sm:$0xf]
  %v192 = vld [vmem:[%s1 + $0x188] sm:$0xf]
  %v193 = vld [vmem:[%s1 + $0x18c] sm:$0xf]
  %v194 = vld [vmem:[%s1 + $0x190] sm:$0xf]
  %v195 = vld [vmem:[%s1 + $0x194] sm:$0xf]
  %v196 = vld [vmem:[%s1 + $0x198] sm:$0xf]
  %v197 = vld [vmem:[%s1 + $0x19c] sm:$0xf]
  %v198 = vld [vmem:[%s1 + $0x1a0] sm:$0xf]
  %v199 = vld [vmem:[%s1 + $0x1a4] sm:$0xf]
  %v200 = vld [vmem:[%s1 + $0x1a8] sm:$0xf]
  %v201 = vld [vmem:[%s1 + $0x1ac] sm:$0xf]
  %v202 = vld [vmem:[%s1 + $0x1b0] sm:$0xf]
  %v203 = vld [vmem:[%s1 + $0x1b4] sm:$0xf]
  %v204 = vld [vmem:[%s1 + $0x1b8] sm:$0xf]
  %v205 = vld [vmem:[%s1 + $0x1bc] sm:$0xf]
  %v206 = vld [vmem:[%s1 + $0x1c0] sm:$0xf]
  %v207 = vld [vmem:[%s1 + $0x1c4] sm:$0xf]
  %v208 = vld [vmem:[%s1 + $0x1c8] sm:$0xf]
  %v209 = vld [vmem:[%s1 + $0x1cc] sm:$0xf]
  %v210 = vld [vmem:[%s1 + $0x1d0] sm:$0xf]
  %v211 = vld [vmem:[%s1 + $0x1d4] sm:$0xf]
  %v212 = vld [vmem:[%s1 + $0x1d8] sm:$0xf]
  %v213 = vld [vmem:[%s1 + $0x1dc] sm:$0xf]
  %v214 = vld [vmem:[%s1 + $0x1e0] sm:$0xf]
  %v215 = vld [vmem:[%s1 + $0x1e4] sm:$0xf]
  %v216 = vld [vmem:[%s1 + $0x1e8] sm:$0xf]
  %v217 = vld [vmem:[%s1 + $0x1ec] sm:$0xf]
  %v218 = vld [vmem:[%s1 + $0x1f0] sm:$0xf]
  %v219 = vld [vmem:[%s1 + $0x1f4] sm:$0xf]
  %v220 = vld [vmem:[%s1 + $0x1f8] sm:$0xf]
  %v221 = vld [vmem:[%s1 + $0x1fc] sm:$0xf]
  %v222 = vld [vmem:[%s1 + $0x200] sm:$0xf]
  %v223 = vld [vmem:[%s1 + $0x204] sm:$0xf]
  %v224 = vld [vmem:[%s1 + $0x208] sm:$0xf]
  %v225 = vld [vmem:[%s1 + $0x20c] sm:$0xf]
  %v226 = vld [vmem:[%s1 + $0x210] sm:$0xf]
  %v227 = vld [vmem:[%s1 + $0x214] sm:$0xf]
  %v228 = vld [vmem:[%s1 + $0x218] sm:$0xf]
  %v229 = vld [vmem:[%s1 + $0x21c] sm:$0xf]
  %v230 = vld [vmem:[%s1 + $0x220] sm:$0xf]
  %v231 = vld [vmem:[%s1 + $0x224] sm:$0xf]
  %v232 = vld [vmem:[%s1 + $0x228] sm:$0xf]
  %v233 = vld [vmem:[%s1 + $0x22c] sm:$0xf]
  %v234 = vld [vmem:[%s1 + $0x230] sm:$0xf]
  %v235 = vld [vmem:[%s1 + $0x234] sm:$0xf]
  %v236 = vld [vmem:[%s1 + $0x238] sm:$0xf]
  %v237 = vld [vmem:[%s1 + $0x23c] sm:$0xf]
  %v238 = vld [vmem:[%s2] sm:$0xff]
  %v239 = vld [vmem:[%s2 + $0x8] sm:$0xff]
  %v240 = vld [vmem:[%s2 + $0x10] sm:$0xff]
  %v241 = vld [vmem:[%s2 + $0x18] sm:$0xff]
  %v242 = vld [vmem:[%s2 + $0x20] sm:$0xff]
  %v243 = vld [vmem:[%s2 + $0x28] sm:$0xff]
  %v244 = vld [vmem:[%s2 + $0x30] sm:$0xff]
  %v245 = vld [vmem:[%s2 + $0x38] sm:$0xff]
  %v246 = vld [vmem:[%s2 + $0x40] sm:$0xff]
  %v247 = vld [vmem:[%s2 + $0x48] sm:$0xff]
  %v248 = vld [vmem:[%s2 + $0x50] sm:$0xff]
  %v249 = vld [vmem:[%s2 + $0x58] sm:$0xff]
  %v250 = vld [vmem:[%s2 + $0x60] sm:$0xff]
  %v251 = vld [vmem:[%s2 + $0x68] sm:$0xff]
  %v252 = vld [vmem:[%s2 + $0x70] sm:$0xff]
  %v253 = vld [vmem:[%s2 + $0x78] sm:$0xff]
  %255 = vset.pattern.permute.xlu0 0
  %256 = vperm.xlu0 %255, %v238
  %v257 = vpop.permute.xlu0 %256
  %260 = vset.pattern.permute.xlu0 0
  %261 = vperm.xlu0 %260, %v239
  %v262 = vpop.permute.xlu0 %261
  %265 = vset.pattern.permute.xlu0 0
  %266 = vperm.xlu0 %265, %v240
  %v267 = vpop.permute.xlu0 %266
  %270 = vset.pattern.permute.xlu0 0
  %271 = vperm.xlu0 %270, %v241
  %v272 = vpop.permute.xlu0 %271
  %275 = vset.pattern.permute.xlu0 0
  %276 = vperm.xlu0 %275, %v242
  %v277 = vpop.permute.xlu0 %276
  %280 = vset.pattern.permute.xlu0 0
  %281 = vperm.xlu0 %280, %v243
  %v282 = vpop.permute.xlu0 %281
  %285 = vset.pattern.permute.xlu0 0
  %286 = vperm.xlu0 %285, %v244
  %v287 = vpop.permute.xlu0 %286
  %290 = vset.pattern.permute.xlu0 0
  %291 = vperm.xlu0 %290, %v245
  %v292 = vpop.permute.xlu0 %291
  %295 = vset.pattern.permute.xlu0 0
  %296 = vperm.xlu0 %295, %v246
  %v297 = vpop.permute.xlu0 %296
  %300 = vset.pattern.permute.xlu0 0
  %301 = vperm.xlu0 %300, %v247
  %v302 = vpop.permute.xlu0 %301
  %305 = vset.pattern.permute.xlu0 0
  %306 = vperm.xlu0 %305, %v248
  %v307 = vpop.permute.xlu0 %306
  %310 = vset.pattern.permute.xlu0 0
  %311 = vperm.xlu0 %310, %v249
  %v312 = vpop.permute.xlu0 %311
  %315 = vset.pattern.permute.xlu0 0
  %316 = vperm.xlu0 %315, %v250
  %v317 = vpop.permute.xlu0 %316
  %320 = vset.pattern.permute.xlu0 0
  %321 = vperm.xlu0 %320, %v251
  %v322 = vpop.permute.xlu0 %321
  %325 = vset.pattern.permute.xlu0 0
  %326 = vperm.xlu0 %325, %v252
  %v327 = vpop.permute.xlu0 %326
  %330 = vset.pattern.permute.xlu0 0
  %331 = vperm.xlu0 %330, %v253
  %v332 = vpop.permute.xlu0 %331
  %v414 = vunpack.c.l.b16 %v14
  %v415 = vunpack.c.h.b16 %v14
  %v416 = vunpack.c.l.b16 %v15
  %v417 = vunpack.c.h.b16 %v15
  %v418 = vunpack.c.l.b16 %v16
  %v419 = vunpack.c.h.b16 %v16
  %v420 = vunpack.c.l.b16 %v17
  %v421 = vunpack.c.h.b16 %v17
  %v422 = vunpack.c.l.b16 %v18
  %v423 = vunpack.c.l.b16 %v19
  %v424 = vunpack.c.h.b16 %v19
  %v425 = vunpack.c.l.b16 %v20
  %v426 = vunpack.c.h.b16 %v20
  %v427 = vunpack.c.l.b16 %v21
  %v428 = vunpack.c.h.b16 %v21
  %v429 = vunpack.c.l.b16 %v22
  %v430 = vunpack.c.h.b16 %v22
  %v431 = vunpack.c.l.b16 %v23
  %v432 = vunpack.c.l.b16 %v24
  %v433 = vunpack.c.h.b16 %v24
  %v434 = vunpack.c.l.b16 %v25
  %v435 = vunpack.c.h.b16 %v25
  %v436 = vunpack.c.l.b16 %v26
  %v437 = vunpack.c.h.b16 %v26
  %v438 = vunpack.c.l.b16 %v27
  %v439 = vunpack.c.h.b16 %v27
  %v440 = vunpack.c.l.b16 %v28
  %v441 = vunpack.c.l.b16 %v29
  %v442 = vunpack.c.h.b16 %v29
  %v443 = vunpack.c.l.b16 %v30
  %v444 = vunpack.c.h.b16 %v30
  %v445 = vunpack.c.l.b16 %v31
  %v446 = vunpack.c.h.b16 %v31
  %v447 = vunpack.c.l.b16 %v32
  %v448 = vunpack.c.h.b16 %v32
  %v449 = vunpack.c.l.b16 %v33
  %v450 = vunpack.c.l.b16 %v34
  %v451 = vunpack.c.h.b16 %v34
  %v452 = vunpack.c.l.b16 %v35
  %v453 = vunpack.c.h.b16 %v35
  %v454 = vunpack.c.l.b16 %v36
  %v455 = vunpack.c.h.b16 %v36
  %v456 = vunpack.c.l.b16 %v37
  %v457 = vunpack.c.h.b16 %v37
  %v458 = vunpack.c.l.b16 %v38
  %v459 = vunpack.c.l.b16 %v39
  %v460 = vunpack.c.h.b16 %v39
  %v461 = vunpack.c.l.b16 %v40
  %v462 = vunpack.c.h.b16 %v40
  %v463 = vunpack.c.l.b16 %v41
  %v464 = vunpack.c.h.b16 %v41
  %v465 = vunpack.c.l.b16 %v42
  %v466 = vunpack.c.h.b16 %v42
  %v467 = vunpack.c.l.b16 %v43
  %v468 = vunpack.c.l.b16 %v44
  %v469 = vunpack.c.h.b16 %v44
  %v470 = vunpack.c.l.b16 %v45
  %v471 = vunpack.c.h.b16 %v45
  %v472 = vunpack.c.l.b16 %v46
  %v473 = vunpack.c.h.b16 %v46
  %v474 = vunpack.c.l.b16 %v47
  %v475 = vunpack.c.h.b16 %v47
  %v476 = vunpack.c.l.b16 %v48
  %v477 = vunpack.c.l.b16 %v49
  %v478 = vunpack.c.h.b16 %v49
  %v479 = vunpack.c.l.b16 %v50
  %v480 = vunpack.c.h.b16 %v50
  %v481 = vunpack.c.l.b16 %v51
  %v482 = vunpack.c.h.b16 %v51
  %v483 = vunpack.c.l.b16 %v52
  %v484 = vunpack.c.h.b16 %v52
  %v485 = vunpack.c.l.b16 %v53
  %v486 = vunpack.c.l.b16 %v54
  %v487 = vunpack.c.h.b16 %v54
  %v488 = vunpack.c.l.b16 %v55
  %v489 = vunpack.c.h.b16 %v55
  %v490 = vunpack.c.l.b16 %v56
  %v491 = vunpack.c.h.b16 %v56
  %v492 = vunpack.c.l.b16 %v57
  %v493 = vunpack.c.h.b16 %v57
  %v494 = vunpack.c.l.b16 %v58
  %v495 = vunpack.c.l.b16 %v59
  %v496 = vunpack.c.h.b16 %v59
  %v497 = vunpack.c.l.b16 %v60
  %v498 = vunpack.c.h.b16 %v60
  %v499 = vunpack.c.l.b16 %v61
  %v500 = vunpack.c.h.b16 %v61
  %v501 = vunpack.c.l.b16 %v62
  %v502 = vunpack.c.h.b16 %v62
  %v503 = vunpack.c.l.b16 %v63
  %v504 = vunpack.c.l.b16 %v64
  %v505 = vunpack.c.h.b16 %v64
  %v506 = vunpack.c.l.b16 %v65
  %v507 = vunpack.c.h.b16 %v65
  %v508 = vunpack.c.l.b16 %v66
  %v509 = vunpack.c.h.b16 %v66
  %v510 = vunpack.c.l.b16 %v67
  %v511 = vunpack.c.h.b16 %v67
  %v512 = vunpack.c.l.b16 %v68
  %v513 = vunpack.c.l.b16 %v69
  %v514 = vunpack.c.h.b16 %v69
  %v515 = vunpack.c.l.b16 %v70
  %v516 = vunpack.c.h.b16 %v70
  %v517 = vunpack.c.l.b16 %v71
  %v518 = vunpack.c.h.b16 %v71
  %v519 = vunpack.c.l.b16 %v72
  %v520 = vunpack.c.h.b16 %v72
  %v521 = vunpack.c.l.b16 %v73
  %v522 = vunpack.c.l.b16 %v74
  %v523 = vunpack.c.h.b16 %v74
  %v524 = vunpack.c.l.b16 %v75
  %v525 = vunpack.c.h.b16 %v75
  %v526 = vunpack.c.l.b16 %v76
  %v527 = vunpack.c.h.b16 %v76
  %v528 = vunpack.c.l.b16 %v77
  %v529 = vunpack.c.h.b16 %v77
  %v530 = vunpack.c.l.b16 %v78
  %v531 = vunpack.c.l.b16 %v79
  %v532 = vunpack.c.h.b16 %v79
  %v533 = vunpack.c.l.b16 %v80
  %v534 = vunpack.c.h.b16 %v80
  %v535 = vunpack.c.l.b16 %v81
  %v536 = vunpack.c.h.b16 %v81
  %v537 = vunpack.c.l.b16 %v82
  %v538 = vunpack.c.h.b16 %v82
  %v539 = vunpack.c.l.b16 %v83
  %v540 = vunpack.c.l.b16 %v84
  %v541 = vunpack.c.h.b16 %v84
  %v542 = vunpack.c.l.b16 %v85
  %v543 = vunpack.c.h.b16 %v85
  %v544 = vunpack.c.l.b16 %v86
  %v545 = vunpack.c.h.b16 %v86
  %v546 = vunpack.c.l.b16 %v87
  %v547 = vunpack.c.h.b16 %v87
  %v548 = vunpack.c.l.b16 %v88
  %v549 = vunpack.c.l.b16 %v89
  %v550 = vunpack.c.h.b16 %v89
  %v551 = vunpack.c.l.b16 %v90
  %v552 = vunpack.c.h.b16 %v90
  %v553 = vunpack.c.l.b16 %v91
  %v554 = vunpack.c.h.b16 %v91
  %v555 = vunpack.c.l.b16 %v92
  %v556 = vunpack.c.h.b16 %v92
  %v557 = vunpack.c.l.b16 %v93
  %v558 = vpack.c.b16 %v423, %v414
  %v559 = vpack.c.b16 %v424, %v415
  %v560 = vpack.c.b16 %v425, %v416
  %v561 = vpack.c.b16 %v426, %v417
  %v562 = vpack.c.b16 %v427, %v418
  %v563 = vpack.c.b16 %v428, %v419
  %v564 = vpack.c.b16 %v429, %v420
  %v565 = vpack.c.b16 %v430, %v421
  %v566 = vpack.c.b16 %v431, %v422
  %v567 = vpack.c.b16 %v441, %v432
  %v568 = vpack.c.b16 %v442, %v433
  %v569 = vpack.c.b16 %v443, %v434
  %v570 = vpack.c.b16 %v444, %v435
  %v571 = vpack.c.b16 %v445, %v436
  %v572 = vpack.c.b16 %v446, %v437
  %v573 = vpack.c.b16 %v447, %v438
  %v574 = vpack.c.b16 %v448, %v439
  %v575 = vpack.c.b16 %v449, %v440
  %v576 = vpack.c.b16 %v459, %v450
  %v577 = vpack.c.b16 %v460, %v451
  %v578 = vpack.c.b16 %v461, %v452
  %v579 = vpack.c.b16 %v462, %v453
  %v580 = vpack.c.b16 %v463, %v454
  %v581 = vpack.c.b16 %v464, %v455
  %v582 = vpack.c.b16 %v465, %v456
  %v583 = vpack.c.b16 %v466, %v457
  %v584 = vpack.c.b16 %v467, %v458
  %v585 = vpack.c.b16 %v477, %v468
  %v586 = vpack.c.b16 %v478, %v469
  %v587 = vpack.c.b16 %v479, %v470
  %v588 = vpack.c.b16 %v480, %v471
  %v589 = vpack.c.b16 %v481, %v472
  %v590 = vpack.c.b16 %v482, %v473
  %v591 = vpack.c.b16 %v483, %v474
  %v592 = vpack.c.b16 %v484, %v475
  %v593 = vpack.c.b16 %v485, %v476
  %v594 = vpack.c.b16 %v495, %v486
  %v595 = vpack.c.b16 %v496, %v487
  %v596 = vpack.c.b16 %v497, %v488
  %v597 = vpack.c.b16 %v498, %v489
  %v598 = vpack.c.b16 %v499, %v490
  %v599 = vpack.c.b16 %v500, %v491
  %v600 = vpack.c.b16 %v501, %v492
  %v601 = vpack.c.b16 %v502, %v493
  %v602 = vpack.c.b16 %v503, %v494
  %v603 = vpack.c.b16 %v513, %v504
  %v604 = vpack.c.b16 %v514, %v505
  %v605 = vpack.c.b16 %v515, %v506
  %v606 = vpack.c.b16 %v516, %v507
  %v607 = vpack.c.b16 %v517, %v508
  %v608 = vpack.c.b16 %v518, %v509
  %v609 = vpack.c.b16 %v519, %v510
  %v610 = vpack.c.b16 %v520, %v511
  %v611 = vpack.c.b16 %v521, %v512
  %v612 = vpack.c.b16 %v531, %v522
  %v613 = vpack.c.b16 %v532, %v523
  %v614 = vpack.c.b16 %v533, %v524
  %v615 = vpack.c.b16 %v534, %v525
  %v616 = vpack.c.b16 %v535, %v526
  %v617 = vpack.c.b16 %v536, %v527
  %v618 = vpack.c.b16 %v537, %v528
  %v619 = vpack.c.b16 %v538, %v529
  %v620 = vpack.c.b16 %v539, %v530
  %v621 = vpack.c.b16 %v549, %v540
  %v622 = vpack.c.b16 %v550, %v541
  %v623 = vpack.c.b16 %v551, %v542
  %v624 = vpack.c.b16 %v552, %v543
  %v625 = vpack.c.b16 %v553, %v544
  %v626 = vpack.c.b16 %v554, %v545
  %v627 = vpack.c.b16 %v555, %v546
  %v628 = vpack.c.b16 %v556, %v547
  %v629 = vpack.c.b16 %v557, %v548
  %v846 = vunpack.c.l.b16 %v94
  %v847 = vunpack.c.l.b16 %v95
  %v848 = vunpack.c.l.b16 %v96
  %v849 = vunpack.c.l.b16 %v97
  %v850 = vunpack.c.l.b16 %v98
  %v851 = vunpack.c.l.b16 %v99
  %v852 = vunpack.c.l.b16 %v100
  %v853 = vunpack.c.l.b16 %v101
  %v854 = vunpack.c.l.b16 %v102
  %v855 = vunpack.c.l.b16 %v103
  %v856 = vunpack.c.l.b16 %v104
  %v857 = vunpack.c.l.b16 %v105
  %v858 = vunpack.c.l.b16 %v106
  %v859 = vunpack.c.l.b16 %v107
  %v860 = vunpack.c.l.b16 %v108
  %v861 = vunpack.c.l.b16 %v109
  %v862 = vunpack.c.l.b16 %v110
  %v863 = vunpack.c.l.b16 %v111
  %v864 = vunpack.c.l.b16 %v112
  %v865 = vunpack.c.l.b16 %v113
  %v866 = vunpack.c.l.b16 %v114
  %v867 = vunpack.c.l.b16 %v115
  %v868 = vunpack.c.l.b16 %v116
  %v869 = vunpack.c.l.b16 %v117
  %v870 = vunpack.c.l.b16 %v118
  %v871 = vunpack.c.l.b16 %v119
  %v872 = vunpack.c.l.b16 %v120
  %v873 = vunpack.c.l.b16 %v121
  %v874 = vunpack.c.l.b16 %v122
  %v875 = vunpack.c.l.b16 %v123
  %v876 = vunpack.c.l.b16 %v124
  %v877 = vunpack.c.l.b16 %v125
  %v878 = vunpack.c.l.b16 %v126
  %v879 = vunpack.c.l.b16 %v127
  %v880 = vunpack.c.l.b16 %v128
  %v881 = vunpack.c.l.b16 %v129
  %v882 = vunpack.c.l.b16 %v130
  %v883 = vunpack.c.l.b16 %v131
  %v884 = vunpack.c.l.b16 %v132
  %v885 = vunpack.c.l.b16 %v133
  %v886 = vunpack.c.l.b16 %v134
  %v887 = vunpack.c.l.b16 %v135
  %v888 = vunpack.c.l.b16 %v136
  %v889 = vunpack.c.l.b16 %v137
  %v890 = vunpack.c.l.b16 %v138
  %v891 = vunpack.c.l.b16 %v139
  %v892 = vunpack.c.l.b16 %v140
  %v893 = vunpack.c.l.b16 %v141
  %v894 = vunpack.c.l.b16 %v142
  %v895 = vunpack.c.l.b16 %v143
  %v896 = vunpack.c.l.b16 %v144
  %v897 = vunpack.c.l.b16 %v145
  %v898 = vunpack.c.l.b16 %v146
  %v899 = vunpack.c.l.b16 %v147
  %v900 = vunpack.c.l.b16 %v148
  %v901 = vunpack.c.l.b16 %v149
  %v902 = vunpack.c.l.b16 %v150
  %v903 = vunpack.c.l.b16 %v151
  %v904 = vunpack.c.l.b16 %v152
  %v905 = vunpack.c.l.b16 %v153
  %v906 = vunpack.c.l.b16 %v154
  %v907 = vunpack.c.l.b16 %v155
  %v908 = vunpack.c.l.b16 %v156
  %v909 = vunpack.c.l.b16 %v157
  %v910 = vunpack.c.l.b16 %v158
  %v911 = vunpack.c.l.b16 %v159
  %v912 = vunpack.c.l.b16 %v160
  %v913 = vunpack.c.l.b16 %v161
  %v914 = vunpack.c.l.b16 %v162
  %v915 = vunpack.c.l.b16 %v163
  %v916 = vunpack.c.l.b16 %v164
  %v917 = vunpack.c.l.b16 %v165
  %v918 = vunpack.c.l.b16 %v166
  %v919 = vunpack.c.l.b16 %v167
  %v920 = vunpack.c.l.b16 %v168
  %v921 = vunpack.c.l.b16 %v169
  %v922 = vunpack.c.l.b16 %v170
  %v923 = vunpack.c.l.b16 %v171
  %v924 = vunpack.c.l.b16 %v172
  %v925 = vunpack.c.l.b16 %v173
  %v926 = vunpack.c.l.b16 %v174
  %v927 = vunpack.c.l.b16 %v175
  %v928 = vunpack.c.l.b16 %v176
  %v929 = vunpack.c.l.b16 %v177
  %v930 = vunpack.c.l.b16 %v178
  %v931 = vunpack.c.l.b16 %v179
  %v932 = vunpack.c.l.b16 %v180
  %v933 = vunpack.c.l.b16 %v181
  %v934 = vunpack.c.l.b16 %v182
  %v935 = vunpack.c.l.b16 %v183
  %v936 = vunpack.c.l.b16 %v184
  %v937 = vunpack.c.l.b16 %v185
  %v938 = vunpack.c.l.b16 %v186
  %v939 = vunpack.c.l.b16 %v187
  %v940 = vunpack.c.l.b16 %v188
  %v941 = vunpack.c.l.b16 %v189
  %v942 = vunpack.c.l.b16 %v190
  %v943 = vunpack.c.l.b16 %v191
  %v944 = vunpack.c.l.b16 %v192
  %v945 = vunpack.c.l.b16 %v193
  %v946 = vunpack.c.l.b16 %v194
  %v947 = vunpack.c.l.b16 %v195
  %v948 = vunpack.c.l.b16 %v196
  %v949 = vunpack.c.l.b16 %v197
  %v950 = vunpack.c.l.b16 %v198
  %v951 = vunpack.c.l.b16 %v199
  %v952 = vunpack.c.l.b16 %v200
  %v953 = vunpack.c.l.b16 %v201
  %v954 = vunpack.c.l.b16 %v202
  %v955 = vunpack.c.l.b16 %v203
  %v956 = vunpack.c.l.b16 %v204
  %v957 = vunpack.c.l.b16 %v205
  %v958 = vunpack.c.l.b16 %v206
  %v959 = vunpack.c.l.b16 %v207
  %v960 = vunpack.c.l.b16 %v208
  %v961 = vunpack.c.l.b16 %v209
  %v962 = vunpack.c.l.b16 %v210
  %v963 = vunpack.c.l.b16 %v211
  %v964 = vunpack.c.l.b16 %v212
  %v965 = vunpack.c.l.b16 %v213
  %v966 = vunpack.c.l.b16 %v214
  %v967 = vunpack.c.l.b16 %v215
  %v968 = vunpack.c.l.b16 %v216
  %v969 = vunpack.c.l.b16 %v217
  %v970 = vunpack.c.l.b16 %v218
  %v971 = vunpack.c.l.b16 %v219
  %v972 = vunpack.c.l.b16 %v220
  %v973 = vunpack.c.l.b16 %v221
  %v974 = vunpack.c.l.b16 %v222
  %v975 = vunpack.c.l.b16 %v223
  %v976 = vunpack.c.l.b16 %v224
  %v977 = vunpack.c.l.b16 %v225
  %v978 = vunpack.c.l.b16 %v226
  %v979 = vunpack.c.l.b16 %v227
  %v980 = vunpack.c.l.b16 %v228
  %v981 = vunpack.c.l.b16 %v229
  %v982 = vunpack.c.l.b16 %v230
  %v983 = vunpack.c.l.b16 %v231
  %v984 = vunpack.c.l.b16 %v232
  %v985 = vunpack.c.l.b16 %v233
  %v986 = vunpack.c.l.b16 %v234
  %v987 = vunpack.c.l.b16 %v235
  %v988 = vunpack.c.l.b16 %v236
  %v989 = vunpack.c.l.b16 %v237
  %v990 = vpack.c.b16 %v847, %v846
  %v991 = vpack.c.b16 %v849, %v848
  %v992 = vpack.c.b16 %v851, %v850
  %v993 = vpack.c.b16 %v853, %v852
  %v994 = vpack.c.b16 %v855, %v854
  %v995 = vpack.c.b16 %v857, %v856
  %v996 = vpack.c.b16 %v859, %v858
  %v997 = vpack.c.b16 %v861, %v860
  %v998 = vpack.c.b16 %v863, %v862
  %v999 = vpack.c.b16 %v865, %v864
  %v1000 = vpack.c.b16 %v867, %v866
  %v1001 = vpack.c.b16 %v869, %v868
  %v1002 = vpack.c.b16 %v871, %v870
  %v1003 = vpack.c.b16 %v873, %v872
  %v1004 = vpack.c.b16 %v875, %v874
  %v1005 = vpack.c.b16 %v877, %v876
  %v1006 = vpack.c.b16 %v879, %v878
  %v1007 = vpack.c.b16 %v881, %v880
  %v1008 = vpack.c.b16 %v883, %v882
  %v1009 = vpack.c.b16 %v885, %v884
  %v1010 = vpack.c.b16 %v887, %v886
  %v1011 = vpack.c.b16 %v889, %v888
  %v1012 = vpack.c.b16 %v891, %v890
  %v1013 = vpack.c.b16 %v893, %v892
  %v1014 = vpack.c.b16 %v895, %v894
  %v1015 = vpack.c.b16 %v897, %v896
  %v1016 = vpack.c.b16 %v899, %v898
  %v1017 = vpack.c.b16 %v901, %v900
  %v1018 = vpack.c.b16 %v903, %v902
  %v1019 = vpack.c.b16 %v905, %v904
  %v1020 = vpack.c.b16 %v907, %v906
  %v1021 = vpack.c.b16 %v909, %v908
  %v1022 = vpack.c.b16 %v911, %v910
  %v1023 = vpack.c.b16 %v913, %v912
  %v1024 = vpack.c.b16 %v915, %v914
  %v1025 = vpack.c.b16 %v917, %v916
  %v1026 = vpack.c.b16 %v919, %v918
  %v1027 = vpack.c.b16 %v921, %v920
  %v1028 = vpack.c.b16 %v923, %v922
  %v1029 = vpack.c.b16 %v925, %v924
  %v1030 = vpack.c.b16 %v927, %v926
  %v1031 = vpack.c.b16 %v929, %v928
  %v1032 = vpack.c.b16 %v931, %v930
  %v1033 = vpack.c.b16 %v933, %v932
  %v1034 = vpack.c.b16 %v935, %v934
  %v1035 = vpack.c.b16 %v937, %v936
  %v1036 = vpack.c.b16 %v939, %v938
  %v1037 = vpack.c.b16 %v941, %v940
  %v1038 = vpack.c.b16 %v943, %v942
  %v1039 = vpack.c.b16 %v945, %v944
  %v1040 = vpack.c.b16 %v947, %v946
  %v1041 = vpack.c.b16 %v949, %v948
  %v1042 = vpack.c.b16 %v951, %v950
  %v1043 = vpack.c.b16 %v953, %v952
  %v1044 = vpack.c.b16 %v955, %v954
  %v1045 = vpack.c.b16 %v957, %v956
  %v1046 = vpack.c.b16 %v959, %v958
  %v1047 = vpack.c.b16 %v961, %v960
  %v1048 = vpack.c.b16 %v963, %v962
  %v1049 = vpack.c.b16 %v965, %v964
  %v1050 = vpack.c.b16 %v967, %v966
  %v1051 = vpack.c.b16 %v969, %v968
  %v1052 = vpack.c.b16 %v971, %v970
  %v1053 = vpack.c.b16 %v973, %v972
  %v1054 = vpack.c.b16 %v975, %v974
  %v1055 = vpack.c.b16 %v977, %v976
  %v1056 = vpack.c.b16 %v979, %v978
  %v1057 = vpack.c.b16 %v981, %v980
  %v1058 = vpack.c.b16 %v983, %v982
  %v1059 = vpack.c.b16 %v985, %v984
  %v1060 = vpack.c.b16 %v987, %v986
  %v1061 = vpack.c.b16 %v989, %v988
  %1134 = vmatpush.bf16.msra.mxu0 %v997
  %1135 = vmatpush.bf16.msra.mxu0 %v996
  %1136 = vmatpush.bf16.msra.mxu0 %v995
  %1137 = vmatpush.bf16.msra.mxu0 %v994
  %1138 = vmatpush.bf16.msra.mxu0 %v993
  %1139 = vmatpush.bf16.msra.mxu0 %v992
  %1140 = vmatpush.bf16.msra.mxu0 %v991
  %1141 = vmatpush.bf16.msra.mxu0 %v990
  %1142 = vmatmul.bf16.gmra.mxu0 %v558
  %v1143 = vpop.f32.mrf.mxu0
  %v1144 = vadd.f32 %v257, %v1143
  %v1145 = vpop.f32.mrf.mxu0
  %v1146 = vadd.f32 %v262, %v1145
  %1147 = vmatmul.bf16.gmra.mxu0 %v567
  %v1148 = vpop.f32.mrf.mxu0
  %v1149 = vadd.f32 %v267, %v1148
  %v1150 = vpop.f32.mrf.mxu0
  %v1151 = vadd.f32 %v272, %v1150
  %1152 = vmatmul.bf16.gmra.mxu0 %v576
  %v1153 = vpop.f32.mrf.mxu0
  %v1154 = vadd.f32 %v277, %v1153
  %v1155 = vpop.f32.mrf.mxu0
  %v1156 = vadd.f32 %v282, %v1155
  %1157 = vmatmul.bf16.gmra.mxu0 %v585
  %v1158 = vpop.f32.mrf.mxu0
  %v1159 = vadd.f32 %v287, %v1158
  %v1160 = vpop.f32.mrf.mxu0
  %v1161 = vadd.f32 %v292, %v1160
  %1162 = vmatmul.bf16.gmra.mxu0 %v594
  %v1163 = vpop.f32.mrf.mxu0
  %v1164 = vadd.f32 %v297, %v1163
  %v1165 = vpop.f32.mrf.mxu0
  %v1166 = vadd.f32 %v302, %v1165
  %1167 = vmatmul.bf16.gmra.mxu0 %v603
  %v1168 = vpop.f32.mrf.mxu0
  %v1169 = vadd.f32 %v307, %v1168
  %v1170 = vpop.f32.mrf.mxu0
  %v1171 = vadd.f32 %v312, %v1170
  %1172 = vmatmul.bf16.gmra.mxu0 %v612
  %v1173 = vpop.f32.mrf.mxu0
  %v1174 = vadd.f32 %v317, %v1173
  %v1175 = vpop.f32.mrf.mxu0
  %v1176 = vadd.f32 %v322, %v1175
  %1177 = vmatmul.bf16.gmra.mxu0 %v621
  %v1178 = vpop.f32.mrf.mxu0
  %v1179 = vadd.f32 %v327, %v1178
  %v1180 = vpop.f32.mrf.mxu0
  %v1181 = vadd.f32 %v332, %v1180
  %1182 = vdwg.mxu0
  %1183 = vmatpush.bf16.msra.mxu0 %v1005
  %1184 = vmatpush.bf16.msra.mxu0 %v1004
  %1185 = vmatpush.bf16.msra.mxu0 %v1003
  %1186 = vmatpush.bf16.msra.mxu0 %v1002
  %1187 = vmatpush.bf16.msra.mxu0 %v1001
  %1188 = vmatpush.bf16.msra.mxu0 %v1000
  %1189 = vmatpush.bf16.msra.mxu0 %v999
  %1190 = vmatpush.bf16.msra.mxu0 %v998
  %1191 = vmatmul.bf16.gmra.mxu0 %v559
  %v1192 = vpop.f32.mrf.mxu0
  %v1193 = vadd.f32 %v1144, %v1192
  %v1194 = vpop.f32.mrf.mxu0
  %v1195 = vadd.f32 %v1146, %v1194
  %1196 = vmatmul.bf16.gmra.mxu0 %v568
  %v1197 = vpop.f32.mrf.mxu0
  %v1198 = vadd.f32 %v1149, %v1197
  %v1199 = vpop.f32.mrf.mxu0
  %v1200 = vadd.f32 %v1151, %v1199
  %1201 = vmatmul.bf16.gmra.mxu0 %v577
  %v1202 = vpop.f32.mrf.mxu0
  %v1203 = vadd.f32 %v1154, %v1202
  %v1204 = vpop.f32.mrf.mxu0
  %v1205 = vadd.f32 %v1156, %v1204
  %1206 = vmatmul.bf16.gmra.mxu0 %v586
  %v1207 = vpop.f32.mrf.mxu0
  %v1208 = vadd.f32 %v1159, %v1207
  %v1209 = vpop.f32.mrf.mxu0
  %v1210 = vadd.f32 %v1161, %v1209
  %1211 = vmatmul.bf16.gmra.mxu0 %v595
  %v1212 = vpop.f32.mrf.mxu0
  %v1213 = vadd.f32 %v1164, %v1212
  %v1214 = vpop.f32.mrf.mxu0
  %v1215 = vadd.f32 %v1166, %v1214
  %1216 = vmatmul.bf16.gmra.mxu0 %v604
  %v1217 = vpop.f32.mrf.mxu0
  %v1218 = vadd.f32 %v1169, %v1217
  %v1219 = vpop.f32.mrf.mxu0
  %v1220 = vadd.f32 %v1171, %v1219
  %1221 = vmatmul.bf16.gmra.mxu0 %v613
  %v1222 = vpop.f32.mrf.mxu0
  %v1223 = vadd.f32 %v1174, %v1222
  %v1224 = vpop.f32.mrf.mxu0
  %v1225 = vadd.f32 %v1176, %v1224
  %1226 = vmatmul.bf16.gmra.mxu0 %v622
  %v1227 = vpop.f32.mrf.mxu0
  %v1228 = vadd.f32 %v1179, %v1227
  %v1229 = vpop.f32.mrf.mxu0
  %v1230 = vadd.f32 %v1181, %v1229
  %1231 = vdwg.mxu0
  %1232 = vmatpush.bf16.msra.mxu0 %v1013
  %1233 = vmatpush.bf16.msra.mxu0 %v1012
  %1234 = vmatpush.bf16.msra.mxu0 %v1011
  %1235 = vmatpush.bf16.msra.mxu0 %v1010
  %1236 = vmatpush.bf16.msra.mxu0 %v1009
  %1237 = vmatpush.bf16.msra.mxu0 %v1008
  %1238 = vmatpush.bf16.msra.mxu0 %v1007
  %1239 = vmatpush.bf16.msra.mxu0 %v1006
  %1240 = vmatmul.bf16.gmra.mxu0 %v560
  %v1241 = vpop.f32.mrf.mxu0
  %v1242 = vadd.f32 %v1193, %v1241
  %v1243 = vpop.f32.mrf.mxu0
  %v1244 = vadd.f32 %v1195, %v1243
  %1245 = vmatmul.bf16.gmra.mxu0 %v569
  %v1246 = vpop.f32.mrf.mxu0
  %v1247 = vadd.f32 %v1198, %v1246
  %v1248 = vpop.f32.mrf.mxu0
  %v1249 = vadd.f32 %v1200, %v1248
  %1250 = vmatmul.bf16.gmra.mxu0 %v578
  %v1251 = vpop.f32.mrf.mxu0
  %v1252 = vadd.f32 %v1203, %v1251
  %v1253 = vpop.f32.mrf.mxu0
  %v1254 = vadd.f32 %v1205, %v1253
  %1255 = vmatmul.bf16.gmra.mxu0 %v587
  %v1256 = vpop.f32.mrf.mxu0
  %v1257 = vadd.f32 %v1208, %v1256
  %v1258 = vpop.f32.mrf.mxu0
  %v1259 = vadd.f32 %v1210, %v1258
  %1260 = vmatmul.bf16.gmra.mxu0 %v596
  %v1261 = vpop.f32.mrf.mxu0
  %v1262 = vadd.f32 %v1213, %v1261
  %v1263 = vpop.f32.mrf.mxu0
  %v1264 = vadd.f32 %v1215, %v1263
  %1265 = vmatmul.bf16.gmra.mxu0 %v605
  %v1266 = vpop.f32.mrf.mxu0
  %v1267 = vadd.f32 %v1218, %v1266
  %v1268 = vpop.f32.mrf.mxu0
  %v1269 = vadd.f32 %v1220, %v1268
  %1270 = vmatmul.bf16.gmra.mxu0 %v614
  %v1271 = vpop.f32.mrf.mxu0
  %v1272 = vadd.f32 %v1223, %v1271
  %v1273 = vpop.f32.mrf.mxu0
  %v1274 = vadd.f32 %v1225, %v1273
  %1275 = vmatmul.bf16.gmra.mxu0 %v623
  %v1276 = vpop.f32.mrf.mxu0
  %v1277 = vadd.f32 %v1228, %v1276
  %v1278 = vpop.f32.mrf.mxu0
  %v1279 = vadd.f32 %v1230, %v1278
  %1280 = vdwg.mxu0
  %1281 = vmatpush.bf16.msra.mxu0 %v1021
  %1282 = vmatpush.bf16.msra.mxu0 %v1020
  %1283 = vmatpush.bf16.msra.mxu0 %v1019
  %1284 = vmatpush.bf16.msra.mxu0 %v1018
  %1285 = vmatpush.bf16.msra.mxu0 %v1017
  %1286 = vmatpush.bf16.msra.mxu0 %v1016
  %1287 = vmatpush.bf16.msra.mxu0 %v1015
  %1288 = vmatpush.bf16.msra.mxu0 %v1014
  %1289 = vmatmul.bf16.gmra.mxu0 %v561
  %v1290 = vpop.f32.mrf.mxu0
  %v1291 = vadd.f32 %v1242, %v1290
  %v1292 = vpop.f32.mrf.mxu0
  %v1293 = vadd.f32 %v1244, %v1292
  %1294 = vmatmul.bf16.gmra.mxu0 %v570
  %v1295 = vpop.f32.mrf.mxu0
  %v1296 = vadd.f32 %v1247, %v1295
  %v1297 = vpop.f32.mrf.mxu0
  %v1298 = vadd.f32 %v1249, %v1297
  %1299 = vmatmul.bf16.gmra.mxu0 %v579
  %v1300 = vpop.f32.mrf.mxu0
  %v1301 = vadd.f32 %v1252, %v1300
  %v1302 = vpop.f32.mrf.mxu0
  %v1303 = vadd.f32 %v1254, %v1302
  %1304 = vmatmul.bf16.gmra.mxu0 %v588
  %v1305 = vpop.f32.mrf.mxu0
  %v1306 = vadd.f32 %v1257, %v1305
  %v1307 = vpop.f32.mrf.mxu0
  %v1308 = vadd.f32 %v1259, %v1307
  %1309 = vmatmul.bf16.gmra.mxu0 %v597
  %v1310 = vpop.f32.mrf.mxu0
  %v1311 = vadd.f32 %v1262, %v1310
  %v1312 = vpop.f32.mrf.mxu0
  %v1313 = vadd.f32 %v1264, %v1312
  %1314 = vmatmul.bf16.gmra.mxu0 %v606
  %v1315 = vpop.f32.mrf.mxu0
  %v1316 = vadd.f32 %v1267, %v1315
  %v1317 = vpop.f32.mrf.mxu0
  %v1318 = vadd.f32 %v1269, %v1317
  %1319 = vmatmul.bf16.gmra.mxu0 %v615
  %v1320 = vpop.f32.mrf.mxu0
  %v1321 = vadd.f32 %v1272, %v1320
  %v1322 = vpop.f32.mrf.mxu0
  %v1323 = vadd.f32 %v1274, %v1322
  %1324 = vmatmul.bf16.gmra.mxu0 %v624
  %v1325 = vpop.f32.mrf.mxu0
  %v1326 = vadd.f32 %v1277, %v1325
  %v1327 = vpop.f32.mrf.mxu0
  %v1328 = vadd.f32 %v1279, %v1327
  %1329 = vdwg.mxu0
  %1330 = vmatpush.bf16.msra.mxu0 %v1029
  %1331 = vmatpush.bf16.msra.mxu0 %v1028
  %1332 = vmatpush.bf16.msra.mxu0 %v1027
  %1333 = vmatpush.bf16.msra.mxu0 %v1026
  %1334 = vmatpush.bf16.msra.mxu0 %v1025
  %1335 = vmatpush.bf16.msra.mxu0 %v1024
  %1336 = vmatpush.bf16.msra.mxu0 %v1023
  %1337 = vmatpush.bf16.msra.mxu0 %v1022
  %1338 = vmatmul.bf16.gmra.mxu0 %v562
  %v1339 = vpop.f32.mrf.mxu0
  %v1340 = vadd.f32 %v1291, %v1339
  %v1341 = vpop.f32.mrf.mxu0
  %v1342 = vadd.f32 %v1293, %v1341
  %1343 = vmatmul.bf16.gmra.mxu0 %v571
  %v1344 = vpop.f32.mrf.mxu0
  %v1345 = vadd.f32 %v1296, %v1344
  %v1346 = vpop.f32.mrf.mxu0
  %v1347 = vadd.f32 %v1298, %v1346
  %1348 = vmatmul.bf16.gmra.mxu0 %v580
  %v1349 = vpop.f32.mrf.mxu0
  %v1350 = vadd.f32 %v1301, %v1349
  %v1351 = vpop.f32.mrf.mxu0
  %v1352 = vadd.f32 %v1303, %v1351
  %1353 = vmatmul.bf16.gmra.mxu0 %v589
  %v1354 = vpop.f32.mrf.mxu0
  %v1355 = vadd.f32 %v1306, %v1354
  %v1356 = vpop.f32.mrf.mxu0
  %v1357 = vadd.f32 %v1308, %v1356
  %1358 = vmatmul.bf16.gmra.mxu0 %v598
  %v1359 = vpop.f32.mrf.mxu0
  %v1360 = vadd.f32 %v1311, %v1359
  %v1361 = vpop.f32.mrf.mxu0
  %v1362 = vadd.f32 %v1313, %v1361
  %1363 = vmatmul.bf16.gmra.mxu0 %v607
  %v1364 = vpop.f32.mrf.mxu0
  %v1365 = vadd.f32 %v1316, %v1364
  %v1366 = vpop.f32.mrf.mxu0
  %v1367 = vadd.f32 %v1318, %v1366
  %1368 = vmatmul.bf16.gmra.mxu0 %v616
  %v1369 = vpop.f32.mrf.mxu0
  %v1370 = vadd.f32 %v1321, %v1369
  %v1371 = vpop.f32.mrf.mxu0
  %v1372 = vadd.f32 %v1323, %v1371
  %1373 = vmatmul.bf16.gmra.mxu0 %v625
  %v1374 = vpop.f32.mrf.mxu0
  %v1375 = vadd.f32 %v1326, %v1374
  %v1376 = vpop.f32.mrf.mxu0
  %v1377 = vadd.f32 %v1328, %v1376
  %1378 = vdwg.mxu0
  %1379 = vmatpush.bf16.msra.mxu0 %v1037
  %1380 = vmatpush.bf16.msra.mxu0 %v1036
  %1381 = vmatpush.bf16.msra.mxu0 %v1035
  %1382 = vmatpush.bf16.msra.mxu0 %v1034
  %1383 = vmatpush.bf16.msra.mxu0 %v1033
  %1384 = vmatpush.bf16.msra.mxu0 %v1032
  %1385 = vmatpush.bf16.msra.mxu0 %v1031
  %1386 = vmatpush.bf16.msra.mxu0 %v1030
  %1387 = vmatmul.bf16.gmra.mxu0 %v563
  %v1388 = vpop.f32.mrf.mxu0
  %v1389 = vadd.f32 %v1340, %v1388
  %v1390 = vpop.f32.mrf.mxu0
  %v1391 = vadd.f32 %v1342, %v1390
  %1392 = vmatmul.bf16.gmra.mxu0 %v572
  %v1393 = vpop.f32.mrf.mxu0
  %v1394 = vadd.f32 %v1345, %v1393
  %v1395 = vpop.f32.mrf.mxu0
  %v1396 = vadd.f32 %v1347, %v1395
  %1397 = vmatmul.bf16.gmra.mxu0 %v581
  %v1398 = vpop.f32.mrf.mxu0
  %v1399 = vadd.f32 %v1350, %v1398
  %v1400 = vpop.f32.mrf.mxu0
  %v1401 = vadd.f32 %v1352, %v1400
  %1402 = vmatmul.bf16.gmra.mxu0 %v590
  %v1403 = vpop.f32.mrf.mxu0
  %v1404 = vadd.f32 %v1355, %v1403
  %v1405 = vpop.f32.mrf.mxu0
  %v1406 = vadd.f32 %v1357, %v1405
  %1407 = vmatmul.bf16.gmra.mxu0 %v599
  %v1408 = vpop.f32.mrf.mxu0
  %v1409 = vadd.f32 %v1360, %v1408
  %v1410 = vpop.f32.mrf.mxu0
  %v1411 = vadd.f32 %v1362, %v1410
  %1412 = vmatmul.bf16.gmra.mxu0 %v608
  %v1413 = vpop.f32.mrf.mxu0
  %v1414 = vadd.f32 %v1365, %v1413
  %v1415 = vpop.f32.mrf.mxu0
  %v1416 = vadd.f32 %v1367, %v1415
  %1417 = vmatmul.bf16.gmra.mxu0 %v617
  %v1418 = vpop.f32.mrf.mxu0
  %v1419 = vadd.f32 %v1370, %v1418
  %v1420 = vpop.f32.mrf.mxu0
  %v1421 = vadd.f32 %v1372, %v1420
  %1422 = vmatmul.bf16.gmra.mxu0 %v626
  %v1423 = vpop.f32.mrf.mxu0
  %v1424 = vadd.f32 %v1375, %v1423
  %v1425 = vpop.f32.mrf.mxu0
  %v1426 = vadd.f32 %v1377, %v1425
  %1427 = vdwg.mxu0
  %1428 = vmatpush.bf16.msra.mxu0 %v1045
  %1429 = vmatpush.bf16.msra.mxu0 %v1044
  %1430 = vmatpush.bf16.msra.mxu0 %v1043
  %1431 = vmatpush.bf16.msra.mxu0 %v1042
  %1432 = vmatpush.bf16.msra.mxu0 %v1041
  %1433 = vmatpush.bf16.msra.mxu0 %v1040
  %1434 = vmatpush.bf16.msra.mxu0 %v1039
  %1435 = vmatpush.bf16.msra.mxu0 %v1038
  %1436 = vmatmul.bf16.gmra.mxu0 %v564
  %v1437 = vpop.f32.mrf.mxu0
  %v1438 = vadd.f32 %v1389, %v1437
  %v1439 = vpop.f32.mrf.mxu0
  %v1440 = vadd.f32 %v1391, %v1439
  %1441 = vmatmul.bf16.gmra.mxu0 %v573
  %v1442 = vpop.f32.mrf.mxu0
  %v1443 = vadd.f32 %v1394, %v1442
  %v1444 = vpop.f32.mrf.mxu0
  %v1445 = vadd.f32 %v1396, %v1444
  %1446 = vmatmul.bf16.gmra.mxu0 %v582
  %v1447 = vpop.f32.mrf.mxu0
  %v1448 = vadd.f32 %v1399, %v1447
  %v1449 = vpop.f32.mrf.mxu0
  %v1450 = vadd.f32 %v1401, %v1449
  %1451 = vmatmul.bf16.gmra.mxu0 %v591
  %v1452 = vpop.f32.mrf.mxu0
  %v1453 = vadd.f32 %v1404, %v1452
  %v1454 = vpop.f32.mrf.mxu0
  %v1455 = vadd.f32 %v1406, %v1454
  %1456 = vmatmul.bf16.gmra.mxu0 %v600
  %v1457 = vpop.f32.mrf.mxu0
  %v1458 = vadd.f32 %v1409, %v1457
  %v1459 = vpop.f32.mrf.mxu0
  %v1460 = vadd.f32 %v1411, %v1459
  %1461 = vmatmul.bf16.gmra.mxu0 %v609
  %v1462 = vpop.f32.mrf.mxu0
  %v1463 = vadd.f32 %v1414, %v1462
  %v1464 = vpop.f32.mrf.mxu0
  %v1465 = vadd.f32 %v1416, %v1464
  %1466 = vmatmul.bf16.gmra.mxu0 %v618
  %v1467 = vpop.f32.mrf.mxu0
  %v1468 = vadd.f32 %v1419, %v1467
  %v1469 = vpop.f32.mrf.mxu0
  %v1470 = vadd.f32 %v1421, %v1469
  %1471 = vmatmul.bf16.gmra.mxu0 %v627
  %v1472 = vpop.f32.mrf.mxu0
  %v1473 = vadd.f32 %v1424, %v1472
  %v1474 = vpop.f32.mrf.mxu0
  %v1475 = vadd.f32 %v1426, %v1474
  %1476 = vdwg.mxu0
  %1477 = vmatpush.bf16.msra.mxu0 %v1053
  %1478 = vmatpush.bf16.msra.mxu0 %v1052
  %1479 = vmatpush.bf16.msra.mxu0 %v1051
  %1480 = vmatpush.bf16.msra.mxu0 %v1050
  %1481 = vmatpush.bf16.msra.mxu0 %v1049
  %1482 = vmatpush.bf16.msra.mxu0 %v1048
  %1483 = vmatpush.bf16.msra.mxu0 %v1047
  %1484 = vmatpush.bf16.msra.mxu0 %v1046
  %1485 = vmatmul.bf16.gmra.mxu0 %v565
  %v1486 = vpop.f32.mrf.mxu0
  %v1487 = vadd.f32 %v1438, %v1486
  %v1488 = vpop.f32.mrf.mxu0
  %v1489 = vadd.f32 %v1440, %v1488
  %1490 = vmatmul.bf16.gmra.mxu0 %v574
  %v1491 = vpop.f32.mrf.mxu0
  %v1492 = vadd.f32 %v1443, %v1491
  %v1493 = vpop.f32.mrf.mxu0
  %v1494 = vadd.f32 %v1445, %v1493
  %1495 = vmatmul.bf16.gmra.mxu0 %v583
  %v1496 = vpop.f32.mrf.mxu0
  %v1497 = vadd.f32 %v1448, %v1496
  %v1498 = vpop.f32.mrf.mxu0
  %v1499 = vadd.f32 %v1450, %v1498
  %1500 = vmatmul.bf16.gmra.mxu0 %v592
  %v1501 = vpop.f32.mrf.mxu0
  %v1502 = vadd.f32 %v1453, %v1501
  %v1503 = vpop.f32.mrf.mxu0
  %v1504 = vadd.f32 %v1455, %v1503
  %1505 = vmatmul.bf16.gmra.mxu0 %v601
  %v1506 = vpop.f32.mrf.mxu0
  %v1507 = vadd.f32 %v1458, %v1506
  %v1508 = vpop.f32.mrf.mxu0
  %v1509 = vadd.f32 %v1460, %v1508
  %1510 = vmatmul.bf16.gmra.mxu0 %v610
  %v1511 = vpop.f32.mrf.mxu0
  %v1512 = vadd.f32 %v1463, %v1511
  %v1513 = vpop.f32.mrf.mxu0
  %v1514 = vadd.f32 %v1465, %v1513
  %1515 = vmatmul.bf16.gmra.mxu0 %v619
  %v1516 = vpop.f32.mrf.mxu0
  %v1517 = vadd.f32 %v1468, %v1516
  %v1518 = vpop.f32.mrf.mxu0
  %v1519 = vadd.f32 %v1470, %v1518
  %1520 = vmatmul.bf16.gmra.mxu0 %v628
  %v1521 = vpop.f32.mrf.mxu0
  %v1522 = vadd.f32 %v1473, %v1521
  %v1523 = vpop.f32.mrf.mxu0
  %v1524 = vadd.f32 %v1475, %v1523
  %1525 = vdwg.mxu0
  %1526 = vmatpush.bf16.msra.mxu0 %v1061
  %1527 = vmatpush.bf16.msra.mxu0 %v1060
  %1528 = vmatpush.bf16.msra.mxu0 %v1059
  %1529 = vmatpush.bf16.msra.mxu0 %v1058
  %1530 = vmatpush.bf16.msra.mxu0 %v1057
  %1531 = vmatpush.bf16.msra.mxu0 %v1056
  %1532 = vmatpush.bf16.msra.mxu0 %v1055
  %1533 = vmatpush.bf16.msra.mxu0 %v1054
  %1534 = vmatmul.bf16.gmra.mxu0 %v566
  %v1535 = vpop.f32.mrf.mxu0
  %v1536 = vadd.f32 %v1487, %v1535
  %v1537 = vpop.f32.mrf.mxu0
  %v1538 = vadd.f32 %v1489, %v1537
  %1539 = vmatmul.bf16.gmra.mxu0 %v575
  %v1540 = vpop.f32.mrf.mxu0
  %v1541 = vadd.f32 %v1492, %v1540
  %v1542 = vpop.f32.mrf.mxu0
  %v1543 = vadd.f32 %v1494, %v1542
  %1544 = vmatmul.bf16.gmra.mxu0 %v584
  %v1545 = vpop.f32.mrf.mxu0
  %v1546 = vadd.f32 %v1497, %v1545
  %v1547 = vpop.f32.mrf.mxu0
  %v1548 = vadd.f32 %v1499, %v1547
  %1549 = vmatmul.bf16.gmra.mxu0 %v593
  %v1550 = vpop.f32.mrf.mxu0
  %v1551 = vadd.f32 %v1502, %v1550
  %v1552 = vpop.f32.mrf.mxu0
  %v1553 = vadd.f32 %v1504, %v1552
  %1554 = vmatmul.bf16.gmra.mxu0 %v602
  %v1555 = vpop.f32.mrf.mxu0
  %v1556 = vadd.f32 %v1507, %v1555
  %v1557 = vpop.f32.mrf.mxu0
  %v1558 = vadd.f32 %v1509, %v1557
  %1559 = vmatmul.bf16.gmra.mxu0 %v611
  %v1560 = vpop.f32.mrf.mxu0
  %v1561 = vadd.f32 %v1512, %v1560
  %v1562 = vpop.f32.mrf.mxu0
  %v1563 = vadd.f32 %v1514, %v1562
  %1564 = vmatmul.bf16.gmra.mxu0 %v620
  %v1565 = vpop.f32.mrf.mxu0
  %v1566 = vadd.f32 %v1517, %v1565
  %v1567 = vpop.f32.mrf.mxu0
  %v1568 = vadd.f32 %v1519, %v1567
  %1569 = vmatmul.bf16.gmra.mxu0 %v629
  %v1570 = vpop.f32.mrf.mxu0
  %v1571 = vadd.f32 %v1522, %v1570
  %v1572 = vpop.f32.mrf.mxu0
  %v1573 = vadd.f32 %v1524, %v1572
  %1574 = vdwg.mxu0
  %v1575 = vmax.f32 %v1536, 0.0
  %v1576 = vmax.f32 %v1538, 0.0
  %v1577 = vmax.f32 %v1541, 0.0
  %v1578 = vmax.f32 %v1543, 0.0
  %v1579 = vmax.f32 %v1546, 0.0
  %v1580 = vmax.f32 %v1548, 0.0
  %v1581 = vmax.f32 %v1551, 0.0
  %v1582 = vmax.f32 %v1553, 0.0
  %v1583 = vmax.f32 %v1556, 0.0
  %v1584 = vmax.f32 %v1558, 0.0
  %v1585 = vmax.f32 %v1561, 0.0
  %v1586 = vmax.f32 %v1563, 0.0
  %v1587 = vmax.f32 %v1566, 0.0
  %v1588 = vmax.f32 %v1568, 0.0
  %v1589 = vmax.f32 %v1571, 0.0
  %v1590 = vmax.f32 %v1573, 0.0
  %1591 = vst [vmem:[%s3] sm:$0xff] %v1575
  %1592 = vst [vmem:[%s3 + $0x8] sm:$0xff] %v1576
  %1593 = vst [vmem:[%s3 + $0x10] sm:$0xff] %v1577
  %1594 = vst [vmem:[%s3 + $0x18] sm:$0xff] %v1578
  %1595 = vst [vmem:[%s3 + $0x20] sm:$0xff] %v1579
  %1596 = vst [vmem:[%s3 + $0x28] sm:$0xff] %v1580
  %1597 = vst [vmem:[%s3 + $0x30] sm:$0xff] %v1581
  %1598 = vst [vmem:[%s3 + $0x38] sm:$0xff] %v1582
  %1599 = vst [vmem:[%s3 + $0x40] sm:$0xff] %v1583
  %1600 = vst [vmem:[%s3 + $0x48] sm:$0xff] %v1584
  %1601 = vst [vmem:[%s3 + $0x50] sm:$0xff] %v1585
  %1602 = vst [vmem:[%s3 + $0x58] sm:$0xff] %v1586
  %1603 = vst [vmem:[%s3 + $0x60] sm:$0xff] %v1587
  %1604 = vst [vmem:[%s3 + $0x68] sm:$0xff] %v1588
  %1605 = vst [vmem:[%s3 + $0x70] sm:$0xff] %v1589
  %1606 = vst [vmem:[%s3 + $0x78] sm:$0xff] %v1590
  // Predicated region
  $region14: #{feature_extraction_forward.69} parent=0 // pred_check
    _
  $region15: #{feature_extraction_forward.69} parent=0 // pred_check_branch
    %1608 = sbr.rel (0) target = $region17
  $region16: #{feature_extraction_forward.69} parent=0 // pred_region
    _
  $region17: #{feature_extraction_forward.69} parent=0 // pred_fallthru
    _
  // Predicated region
  $region18: #{feature_extraction_forward.69} parent=0 // pred_check
    _
  $region19: #{feature_extraction_forward.69} parent=0 // pred_check_branch
    %1610 = sbr.rel (0) target = $region21
  $region20: #{feature_extraction_forward.69} parent=0 // pred_region
    _
  $region21: #{feature_extraction_forward.69} parent=0 // pred_fallthru
    _

// kernel: feature_extraction_forward.56
$region0: #{feature_extraction_forward.56}
  #allocation0 [shape = 'u32[]', space=smem, size = 0x4, offset = 0x4, fixed_abs, tag = 'smem constant byte address 0x4 - core index']
  #allocation1 [shape = 'u32[72,128]{1,0:T(1,128)}', space=vmem, size = 0x9000, scoped, tag = 'internal scratch']
  %s0 = inlined_call_operand.vmem [shape: bf16[64,64], index: 0, kind: input, shape index: {}]
  %s1 = inlined_call_operand.vmem [shape: bf16[64,128], index: 1, kind: input, shape index: {}]
  %s2 = inlined_call_operand.vmem [shape: f32[64,1], index: 2, kind: input, shape index: {}]
  %s3 = inlined_call_operand.vmem [shape: f32[64,128], index: 3, kind: output, shape index: {}]
  %s4 = sld [smem:[#allocation0]]
  $region22: #{feature_extraction_forward.56} parent=0
    _
  %s6 = ssub.s32 1, %s4
  %s7 = scalar_select 0, %s6, %s4
  // Predicated region
  $region2: #{feature_extraction_forward.56} parent=0 // pred_check
    _
  $region3: #{feature_extraction_forward.56} parent=0 // pred_check_branch
    %9 = sbr.rel (0) target = $region5
  $region4: #{feature_extraction_forward.56} parent=0 // pred_region
    _
  $region5: #{feature_extraction_forward.56} parent=0 // pred_fallthru
    _
  // Predicated region
  $region6: #{feature_extraction_forward.56} parent=0 // pred_check
    _
  $region7: #{feature_extraction_forward.56} parent=0 // pred_check_branch
    %11 = sbr.rel (0) target = $region9
  $region8: #{feature_extraction_forward.56} parent=0 // pred_region
    _
  $region9: #{feature_extraction_forward.56} parent=0 // pred_fallthru
    _
  // Predicated region
  $region10: #{feature_extraction_forward.56} parent=0 // pred_check
    _
  $region11: #{feature_extraction_forward.56} parent=0 // pred_check_branch
    %13 = sbr.rel (0) target = $region13
  $region12: #{feature_extraction_forward.56} parent=0 // pred_region
    _
  $region13: #{feature_extraction_forward.56} parent=0 // pred_fallthru
    _
  %v15 = vld [vmem:[%s0] sm:$0xf]
  %v16 = vld [vmem:[%s0 + $0x4] sm:$0xf]
  %v17 = vld [vmem:[%s0 + $0x8] sm:$0xf]
  %v18 = vld [vmem:[%s0 + $0xc] sm:$0xf]
  %v19 = vld [vmem:[%s0 + $0x10] sm:$0xf]
  %v20 = vld [vmem:[%s0 + $0x14] sm:$0xf]
  %v21 = vld [vmem:[%s0 + $0x18] sm:$0xf]
  %v22 = vld [vmem:[%s0 + $0x1c] sm:$0xf]
  %v23 = vld [vmem:[%s1] sm:$0xf]
  %v24 = vld [vmem:[%s1 + $0x4] sm:$0xf]
  %v25 = vld [vmem:[%s1 + $0x8] sm:$0xf]
  %v26 = vld [vmem:[%s1 + $0xc] sm:$0xf]
  %v27 = vld [vmem:[%s1 + $0x10] sm:$0xf]
  %v28 = vld [vmem:[%s1 + $0x14] sm:$0xf]
  %v29 = vld [vmem:[%s1 + $0x18] sm:$0xf]
  %v30 = vld [vmem:[%s1 + $0x1c] sm:$0xf]
  %v31 = vld [vmem:[%s2] sm:$0xff]
  %v32 = vld [vmem:[%s2 + $0x8] sm:$0xff]
  %v33 = vld [vmem:[%s2 + $0x10] sm:$0xff]
  %v34 = vld [vmem:[%s2 + $0x18] sm:$0xff]
  %v35 = vld [vmem:[%s2 + $0x20] sm:$0xff]
  %v36 = vld [vmem:[%s2 + $0x28] sm:$0xff]
  %v37 = vld [vmem:[%s2 + $0x30] sm:$0xff]
  %v38 = vld [vmem:[%s2 + $0x38] sm:$0xff]
  %40 = vset.pattern.permute.xlu0 0
  %41 = vperm.xlu0 %40, %v31
  %v42 = vpop.permute.xlu0 %41
  %45 = vset.pattern.permute.xlu0 0
  %46 = vperm.xlu0 %45, %v32
  %v47 = vpop.permute.xlu0 %46
  %50 = vset.pattern.permute.xlu0 0
  %51 = vperm.xlu0 %50, %v33
  %v52 = vpop.permute.xlu0 %51
  %55 = vset.pattern.permute.xlu0 0
  %56 = vperm.xlu0 %55, %v34
  %v57 = vpop.permute.xlu0 %56
  %60 = vset.pattern.permute.xlu0 0
  %61 = vperm.xlu0 %60, %v35
  %v62 = vpop.permute.xlu0 %61
  %65 = vset.pattern.permute.xlu0 0
  %66 = vperm.xlu0 %65, %v36
  %v67 = vpop.permute.xlu0 %66
  %70 = vset.pattern.permute.xlu0 0
  %71 = vperm.xlu0 %70, %v37
  %v72 = vpop.permute.xlu0 %71
  %75 = vset.pattern.permute.xlu0 0
  %76 = vperm.xlu0 %75, %v38
  %v77 = vpop.permute.xlu0 %76
  %v87 = vunpack.c.l.b16 %v15
  %v88 = vunpack.c.l.b16 %v16
  %v89 = vunpack.c.l.b16 %v17
  %v90 = vunpack.c.l.b16 %v18
  %v91 = vunpack.c.l.b16 %v19
  %v92 = vunpack.c.l.b16 %v20
  %v93 = vunpack.c.l.b16 %v21
  %v94 = vunpack.c.l.b16 %v22
  %v95 = vpack.c.b16 %v88, %v87
  %v96 = vpack.c.b16 %v90, %v89
  %v97 = vpack.c.b16 %v92, %v91
  %v98 = vpack.c.b16 %v94, %v93
  %v107 = vunpack.c.l.b16 %v23
  %v108 = vunpack.c.l.b16 %v24
  %v109 = vunpack.c.l.b16 %v25
  %v110 = vunpack.c.l.b16 %v26
  %v111 = vunpack.c.l.b16 %v27
  %v112 = vunpack.c.l.b16 %v28
  %v113 = vunpack.c.l.b16 %v29
  %v114 = vunpack.c.l.b16 %v30
  %v115 = vpack.c.b16 %v108, %v107
  %v116 = vpack.c.b16 %v110, %v109
  %v117 = vpack.c.b16 %v112, %v111
  %v118 = vpack.c.b16 %v114, %v113
  %vm123 = vcmask 523264
  %v125 = vsel %vm123, %v95, 0
  %v128 = vsel %vm123, %v96, 0
  %v131 = vsel %vm123, %v97, 0
  %v134 = vsel %vm123, %v98, 0
  %136 = vmatpush.bf16.msra.mxu0 0
  %137 = vmatpush.bf16.msra.mxu0 0
  %138 = vmatpush.bf16.msra.mxu0 0
  %139 = vmatpush.bf16.msra.mxu0 0
  %140 = vmatpush.bf16.msra.mxu0 %v118
  %141 = vmatpush.bf16.msra.mxu0 %v117
  %142 = vmatpush.bf16.msra.mxu0 %v116
  %143 = vmatpush.bf16.msra.mxu0 %v115
  %144 = vmatmul.bf16.gmra.mxu0 %v125
  %v145 = vpop.f32.mrf.mxu0
  %v146 = vadd.f32 %v42, %v145
  %v147 = vpop.f32.mrf.mxu0
  %v148 = vadd.f32 %v47, %v147
  %149 = vmatmul.bf16.gmra.mxu0 %v128
  %v150 = vpop.f32.mrf.mxu0
  %v151 = vadd.f32 %v52, %v150
  %v152 = vpop.f32.mrf.mxu0
  %v153 = vadd.f32 %v57, %v152
  %154 = vmatmul.bf16.gmra.mxu0 %v131
  %v155 = vpop.f32.mrf.mxu0
  %v156 = vadd.f32 %v62, %v155
  %v157 = vpop.f32.mrf.mxu0
  %v158 = vadd.f32 %v67, %v157
  %159 = vmatmul.bf16.gmra.mxu0 %v134
  %v160 = vpop.f32.mrf.mxu0
  %v161 = vadd.f32 %v72, %v160
  %v162 = vpop.f32.mrf.mxu0
  %v163 = vadd.f32 %v77, %v162
  %164 = vdwg.mxu0
  %v165 = vmax.f32 %v146, 0.0
  %v166 = vmax.f32 %v148, 0.0
  %v167 = vmax.f32 %v151, 0.0
  %v168 = vmax.f32 %v153, 0.0
  %v169 = vmax.f32 %v156, 0.0
  %v170 = vmax.f32 %v158, 0.0
  %v171 = vmax.f32 %v161, 0.0
  %v172 = vmax.f32 %v163, 0.0
  %173 = vst [vmem:[%s3] sm:$0xff] %v165
  %174 = vst [vmem:[%s3 + $0x8] sm:$0xff] %v166
  %175 = vst [vmem:[%s3 + $0x10] sm:$0xff] %v167
  %176 = vst [vmem:[%s3 + $0x18] sm:$0xff] %v168
  %177 = vst [vmem:[%s3 + $0x20] sm:$0xff] %v169
  %178 = vst [vmem:[%s3 + $0x28] sm:$0xff] %v170
  %179 = vst [vmem:[%s3 + $0x30] sm:$0xff] %v171
  %180 = vst [vmem:[%s3 + $0x38] sm:$0xff] %v172
  // Predicated region
  $region14: #{feature_extraction_forward.56} parent=0 // pred_check
    _
  $region15: #{feature_extraction_forward.56} parent=0 // pred_check_branch
    %182 = sbr.rel (0) target = $region17
  $region16: #{feature_extraction_forward.56} parent=0 // pred_region
    _
  $region17: #{feature_extraction_forward.56} parent=0 // pred_fallthru
    _
  // Predicated region
  $region18: #{feature_extraction_forward.56} parent=0 // pred_check
    _
  $region19: #{feature_extraction_forward.56} parent=0 // pred_check_branch
    %184 = sbr.rel (0) target = $region21
  $region20: #{feature_extraction_forward.56} parent=0 // pred_region
    _
  $region21: #{feature_extraction_forward.56} parent=0 // pred_fallthru
    _

// kernel: feature_extraction_forward.85
$region0: #{feature_extraction_forward.85}
  #allocation0 [shape = 'u32[]', space=smem, size = 0x4, offset = 0x4, fixed_abs, tag = 'smem constant byte address 0x4 - core index']
  #allocation1 [shape = 'u32[72,128]{1,0:T(1,128)}', space=vmem, size = 0x9000, scoped, tag = 'internal scratch']
  %s0 = inlined_call_operand.vmem [shape: bf16[32,128], index: 0, kind: input, shape index: {}]
  %s1 = inlined_call_operand.vmem [shape: bf16[128,128], index: 1, kind: input, shape index: {}]
  %s2 = inlined_call_operand.vmem [shape: f32[32,1], index: 2, kind: input, shape index: {}]
  %s3 = inlined_call_operand.vmem [shape: f32[32,128], index: 3, kind: output, shape index: {}]
  %s4 = sld [smem:[#allocation0]]
  $region22: #{feature_extraction_forward.85} parent=0
    _
  %s6 = ssub.s32 1, %s4
  %s7 = scalar_select 0, %s6, %s4
  // Predicated region
  $region2: #{feature_extraction_forward.85} parent=0 // pred_check
    _
  $region3: #{feature_extraction_forward.85} parent=0 // pred_check_branch
    %9 = sbr.rel (0) target = $region5
  $region4: #{feature_extraction_forward.85} parent=0 // pred_region
    _
  $region5: #{feature_extraction_forward.85} parent=0 // pred_fallthru
    _
  // Predicated region
  $region6: #{feature_extraction_forward.85} parent=0 // pred_check
    _
  $region7: #{feature_extraction_forward.85} parent=0 // pred_check_branch
    %11 = sbr.rel (0) target = $region9
  $region8: #{feature_extraction_forward.85} parent=0 // pred_region
    _
  $region9: #{feature_extraction_forward.85} parent=0 // pred_fallthru
    _
  // Predicated region
  $region10: #{feature_extraction_forward.85} parent=0 // pred_check
    _
  $region11: #{feature_extraction_forward.85} parent=0 // pred_check_branch
    %13 = sbr.rel (0) target = $region13
  $region12: #{feature_extraction_forward.85} parent=0 // pred_region
    _
  $region13: #{feature_extraction_forward.85} parent=0 // pred_fallthru
    _
  %v14 = vld [vmem:[%s0] sm:$0xf]
  %v15 = vld [vmem:[%s0 + $0x4] sm:$0xf]
  %v16 = vld [vmem:[%s0 + $0x8] sm:$0xf]
  %v17 = vld [vmem:[%s0 + $0xc] sm:$0xf]
  %v18 = vld [vmem:[%s1] sm:$0xf]
  %v19 = vld [vmem:[%s1 + $0x4] sm:$0xf]
  %v20 = vld [vmem:[%s1 + $0x8] sm:$0xf]
  %v21 = vld [vmem:[%s1 + $0xc] sm:$0xf]
  %v22 = vld [vmem:[%s1 + $0x10] sm:$0xf]
  %v23 = vld [vmem:[%s1 + $0x14] sm:$0xf]
  %v24 = vld [vmem:[%s1 + $0x18] sm:$0xf]
  %v25 = vld [vmem:[%s1 + $0x1c] sm:$0xf]
  %v26 = vld [vmem:[%s1 + $0x20] sm:$0xf]
  %v27 = vld [vmem:[%s1 + $0x24] sm:$0xf]
  %v28 = vld [vmem:[%s1 + $0x28] sm:$0xf]
  %v29 = vld [vmem:[%s1 + $0x2c] sm:$0xf]
  %v30 = vld [vmem:[%s1 + $0x30] sm:$0xf]
  %v31 = vld [vmem:[%s1 + $0x34] sm:$0xf]
  %v32 = vld [vmem:[%s1 + $0x38] sm:$0xf]
  %v33 = vld [vmem:[%s1 + $0x3c] sm:$0xf]
  %v34 = vld [vmem:[%s2] sm:$0xff]
  %v35 = vld [vmem:[%s2 + $0x8] sm:$0xff]
  %v36 = vld [vmem:[%s2 + $0x10] sm:$0xff]
  %v37 = vld [vmem:[%s2 + $0x18] sm:$0xff]
  %39 = vset.pattern.permute.xlu0 0
  %40 = vperm.xlu0 %39, %v34
  %v41 = vpop.permute.xlu0 %40
  %44 = vset.pattern.permute.xlu0 0
  %45 = vperm.xlu0 %44, %v35
  %v46 = vpop.permute.xlu0 %45
  %49 = vset.pattern.permute.xlu0 0
  %50 = vperm.xlu0 %49, %v36
  %v51 = vpop.permute.xlu0 %50
  %54 = vset.pattern.permute.xlu0 0
  %55 = vperm.xlu0 %54, %v37
  %v56 = vpop.permute.xlu0 %55
  %v62 = vunpack.c.l.b16 %v14
  %v63 = vunpack.c.l.b16 %v15
  %v64 = vunpack.c.l.b16 %v16
  %v65 = vunpack.c.l.b16 %v17
  %v66 = vpack.c.b16 %v63, %v62
  %v67 = vpack.c.b16 %v65, %v64
  %v86 = vunpack.c.l.b16 %v18
  %v87 = vunpack.c.l.b16 %v19
  %v88 = vunpack.c.l.b16 %v20
  %v89 = vunpack.c.l.b16 %v21
  %v90 = vunpack.c.l.b16 %v22
  %v91 = vunpack.c.l.b16 %v23
  %v92 = vunpack.c.l.b16 %v24
  %v93 = vunpack.c.l.b16 %v25
  %v94 = vunpack.c.l.b16 %v26
  %v95 = vunpack.c.l.b16 %v27
  %v96 = vunpack.c.l.b16 %v28
  %v97 = vunpack.c.l.b16 %v29
  %v98 = vunpack.c.l.b16 %v30
  %v99 = vunpack.c.l.b16 %v31
  %v100 = vunpack.c.l.b16 %v32
  %v101 = vunpack.c.l.b16 %v33
  %v102 = vpack.c.b16 %v87, %v86
  %v103 = vpack.c.b16 %v89, %v88
  %v104 = vpack.c.b16 %v91, %v90
  %v105 = vpack.c.b16 %v93, %v92
  %v106 = vpack.c.b16 %v95, %v94
  %v107 = vpack.c.b16 %v97, %v96
  %v108 = vpack.c.b16 %v99, %v98
  %v109 = vpack.c.b16 %v101, %v100
  %118 = vmatpush.bf16.msra.mxu0 %v109
  %119 = vmatpush.bf16.msra.mxu0 %v108
  %120 = vmatpush.bf16.msra.mxu0 %v107
  %121 = vmatpush.bf16.msra.mxu0 %v106
  %122 = vmatpush.bf16.msra.mxu0 %v105
  %123 = vmatpush.bf16.msra.mxu0 %v104
  %124 = vmatpush.bf16.msra.mxu0 %v103
  %125 = vmatpush.bf16.msra.mxu0 %v102
  %126 = vmatmul.bf16.gmra.mxu0 %v66
  %v127 = vpop.f32.mrf.mxu0
  %v128 = vadd.f32 %v41, %v127
  %v129 = vpop.f32.mrf.mxu0
  %v130 = vadd.f32 %v46, %v129
  %131 = vmatmul.bf16.gmra.mxu0 %v67
  %v132 = vpop.f32.mrf.mxu0
  %v133 = vadd.f32 %v51, %v132
  %v134 = vpop.f32.mrf.mxu0
  %v135 = vadd.f32 %v56, %v134
  %136 = vdwg.mxu0
  %137 = vst [vmem:[%s3] sm:$0xff] %v128
  %138 = vst [vmem:[%s3 + $0x8] sm:$0xff] %v130
  %139 = vst [vmem:[%s3 + $0x10] sm:$0xff] %v133
  %140 = vst [vmem:[%s3 + $0x18] sm:$0xff] %v135
  // Predicated region
  $region14: #{feature_extraction_forward.85} parent=0 // pred_check
    _
  $region15: #{feature_extraction_forward.85} parent=0 // pred_check_branch
    %142 = sbr.rel (0) target = $region17
  $region16: #{feature_extraction_forward.85} parent=0 // pred_region
    _
  $region17: #{feature_extraction_forward.85} parent=0 // pred_fallthru
    _
  // Predicated region
  $region18: #{feature_extraction_forward.85} parent=0 // pred_check
    _
  $region19: #{feature_extraction_forward.85} parent=0 // pred_check_branch
    %144 = sbr.rel (0) target = $region21
  $region20: #{feature_extraction_forward.85} parent=0 // pred_region
    _
  $region21: #{feature_extraction_forward.85} parent=0 // pred_fallthru
    _

// kernel: feature_extraction_forward.84
$region0: #{feature_extraction_forward.84}
  #allocation0 [shape = 'u32[]', space=smem, size = 0x4, offset = 0x4, fixed_abs, tag = 'smem constant byte address 0x4 - core index']
  #allocation1 [shape = 'u32[72,128]{1,0:T(1,128)}', space=vmem, size = 0x9000, scoped, tag = 'internal scratch']
  %s0 = inlined_call_operand.vmem [shape: bf16[128,3456], index: 0, kind: input, shape index: {}]
  %s1 = inlined_call_operand.vmem [shape: bf16[3456,128], index: 1, kind: input, shape index: {}]
  %s2 = inlined_call_operand.vmem [shape: f32[128,1], index: 2, kind: input, shape index: {}]
  %s3 = inlined_call_operand.vmem [shape: f32[128,128], index: 3, kind: output, shape index: {}]
  %s4 = sld [smem:[#allocation0]]
  $region22: #{feature_extraction_forward.84} parent=0
    _
  %s6 = ssub.s32 1, %s4
  %s7 = scalar_select 0, %s6, %s4
  // Predicated region
  $region2: #{feature_extraction_forward.84} parent=0 // pred_check
    _
  $region3: #{feature_extraction_forward.84} parent=0 // pred_check_branch
    %9 = sbr.rel (0) target = $region5
  $region4: #{feature_extraction_forward.84} parent=0 // pred_region
    _
  $region5: #{feature_extraction_forward.84} parent=0 // pred_fallthru
    _
  // Predicated region
  $region6: #{feature_extraction_forward.84} parent=0 // pred_check
    _
  $region7: #{feature_extraction_forward.84} parent=0 // pred_check_branch
    %11 = sbr.rel (0) target = $region9
  $region8: #{feature_extraction_forward.84} parent=0 // pred_region
    _
  $region9: #{feature_extraction_forward.84} parent=0 // pred_fallthru
    _
  // Predicated region
  $region10: #{feature_extraction_forward.84} parent=0 // pred_check
    _
  $region11: #{feature_extraction_forward.84} parent=0 // pred_check_branch
    %13 = sbr.rel (0) target = $region13
  $region12: #{feature_extraction_forward.84} parent=0 // pred_region
    _
  $region13: #{feature_extraction_forward.84} parent=0 // pred_fallthru
    _
  %v14 = vld [vmem:[%s0] sm:$0xff]
  %v15 = vld [vmem:[%s0 + $0x8] sm:$0xff]
  %v16 = vld [vmem:[%s0 + $0x10] sm:$0xff]
  %v17 = vld [vmem:[%s0 + $0x18] sm:$0xff]
  %v18 = vld [vmem:[%s0 + $0x20] sm:$0xff]
  %v19 = vld [vmem:[%s0 + $0x28] sm:$0xff]
  %v20 = vld [vmem:[%s0 + $0x30] sm:$0xff]
  %v21 = vld [vmem:[%s0 + $0x38] sm:$0xff]
  %v22 = vld [vmem:[%s0 + $0x40] sm:$0xff]
  %v23 = vld [vmem:[%s0 + $0x48] sm:$0xff]
  %v24 = vld [vmem:[%s0 + $0x50] sm:$0xff]
  %v25 = vld [vmem:[%s0 + $0x58] sm:$0xff]
  %v26 = vld [vmem:[%s0 + $0x60] sm:$0xff]
  %v27 = vld [vmem:[%s0 + $0x68] sm:$0xf]
  %v28 = vld [vmem:[%s0 + $0x6c] sm:$0xff]
  %v29 = vld [vmem:[%s0 + $0x74] sm:$0xff]
  %v30 = vld [vmem:[%s0 + $0x7c] sm:$0xff]
  %v31 = vld [vmem:[%s0 + $0x84] sm:$0xff]
  %v32 = vld [vmem:[%s0 + $0x8c] sm:$0xff]
  %v33 = vld [vmem:[%s0 + $0x94] sm:$0xff]
  %v34 = vld [vmem:[%s0 + $0x9c] sm:$0xff]
  %v35 = vld [vmem:[%s0 + $0xa4] sm:$0xff]
  %v36 = vld [vmem:[%s0 + $0xac] sm:$0xff]
  %v37 = vld [vmem:[%s0 + $0xb4] sm:$0xff]
  %v38 = vld [vmem:[%s0 + $0xbc] sm:$0xff]
  %v39 = vld [vmem:[%s0 + $0xc4] sm:$0xff]
  %v40 = vld [vmem:[%s0 + $0xcc] sm:$0xff]
  %v41 = vld [vmem:[%s0 + $0xd4] sm:$0xf]
  %v42 = vld [vmem:[%s0 + $0xd8] sm:$0xff]
  %v43 = vld [vmem:[%s0 + $0xe0] sm:$0xff]
  %v44 = vld [vmem:[%s0 + $0xe8] sm:$0xff]
  %v45 = vld [vmem:[%s0 + $0xf0] sm:$0xff]
  %v46 = vld [vmem:[%s0 + $0xf8] sm:$0xff]
  %v47 = vld [vmem:[%s0 + $0x100] sm:$0xff]
  %v48 = vld [vmem:[%s0 + $0x108] sm:$0xff]
  %v49 = vld [vmem:[%s0 + $0x110] sm:$0xff]
  %v50 = vld [vmem:[%s0 + $0x118] sm:$0xff]
  %v51 = vld [vmem:[%s0 + $0x120] sm:$0xff]
  %v52 = vld [vmem:[%s0 + $0x128] sm:$0xff]
  %v53 = vld [vmem:[%s0 + $0x130] sm:$0xff]
  %v54 = vld [vmem:[%s0 + $0x138] sm:$0xff]
  %v55 = vld [vmem:[%s0 + $0x140] sm:$0xf]
  %v56 = vld [vmem:[%s0 + $0x144] sm:$0xff]
  %v57 = vld [vmem:[%s0 + $0x14c] sm:$0xff]
  %v58 = vld [vmem:[%s0 + $0x154] sm:$0xff]
  %v59 = vld [vmem:[%s0 + $0x15c] sm:$0xff]
  %v60 = vld [vmem:[%s0 + $0x164] sm:$0xff]
  %v61 = vld [vmem:[%s0 + $0x16c] sm:$0xff]
  %v62 = vld [vmem:[%s0 + $0x174] sm:$0xff]
  %v63 = vld [vmem:[%s0 + $0x17c] sm:$0xff]
  %v64 = vld [vmem:[%s0 + $0x184] sm:$0xff]
  %v65 = vld [vmem:[%s0 + $0x18c] sm:$0xff]
  %v66 = vld [vmem:[%s0 + $0x194] sm:$0xff]
  %v67 = vld [vmem:[%s0 + $0x19c] sm:$0xff]
  %v68 = vld [vmem:[%s0 + $0x1a4] sm:$0xff]
  %v69 = vld [vmem:[%s0 + $0x1ac] sm:$0xf]
  %v70 = vld [vmem:[%s0 + $0x1b0] sm:$0xff]
  %v71 = vld [vmem:[%s0 + $0x1b8] sm:$0xff]
  %v72 = vld [vmem:[%s0 + $0x1c0] sm:$0xff]
  %v73 = vld [vmem:[%s0 + $0x1c8] sm:$0xff]
  %v74 = vld [vmem:[%s0 + $0x1d0] sm:$0xff]
  %v75 = vld [vmem:[%s0 + $0x1d8] sm:$0xff]
  %v76 = vld [vmem:[%s0 + $0x1e0] sm:$0xff]
  %v77 = vld [vmem:[%s0 + $0x1e8] sm:$0xff]
  %v78 = vld [vmem:[%s0 + $0x1f0] sm:$0xff]
  %v79 = vld [vmem:[%s0 + $0x1f8] sm:$0xff]
  %v80 = vld [vmem:[%s0 + $0x200] sm:$0xff]
  %v81 = vld [vmem:[%s0 + $0x208] sm:$0xff]
  %v82 = vld [vmem:[%s0 + $0x210] sm:$0xff]
  %v83 = vld [vmem:[%s0 + $0x218] sm:$0xf]
  %v84 = vld [vmem:[%s0 + $0x21c] sm:$0xff]
  %v85 = vld [vmem:[%s0 + $0x224] sm:$0xff]
  %v86 = vld [vmem:[%s0 + $0x22c] sm:$0xff]
  %v87 = vld [vmem:[%s0 + $0x234] sm:$0xff]
  %v88 = vld [vmem:[%s0 + $0x23c] sm:$0xff]
  %v89 = vld [vmem:[%s0 + $0x244] sm:$0xff]
  %v90 = vld [vmem:[%s0 + $0x24c] sm:$0xff]
  %v91 = vld [vmem:[%s0 + $0x254] sm:$0xff]
  %v92 = vld [vmem:[%s0 + $0x25c] sm:$0xff]
  %v93 = vld [vmem:[%s0 + $0x264] sm:$0xff]
  %v94 = vld [vmem:[%s0 + $0x26c] sm:$0xff]
  %v95 = vld [vmem:[%s0 + $0x274] sm:$0xff]
  %v96 = vld [vmem:[%s0 + $0x27c] sm:$0xff]
  %v97 = vld [vmem:[%s0 + $0x284] sm:$0xf]
  %v98 = vld [vmem:[%s0 + $0x288] sm:$0xff]
  %v99 = vld [vmem:[%s0 + $0x290] sm:$0xff]
  %v100 = vld [vmem:[%s0 + $0x298] sm:$0xff]
  %v101 = vld [vmem:[%s0 + $0x2a0] sm:$0xff]
  %v102 = vld [vmem:[%s0 + $0x2a8] sm:$0xff]
  %v103 = vld [vmem:[%s0 + $0x2b0] sm:$0xff]
  %v104 = vld [vmem:[%s0 + $0x2b8] sm:$0xff]
  %v105 = vld [vmem:[%s0 + $0x2c0] sm:$0xff]
  %v106 = vld [vmem:[%s0 + $0x2c8] sm:$0xff]
  %v107 = vld [vmem:[%s0 + $0x2d0] sm:$0xff]
  %v108 = vld [vmem:[%s0 + $0x2d8] sm:$0xff]
  %v109 = vld [vmem:[%s0 + $0x2e0] sm:$0xff]
  %v110 = vld [vmem:[%s0 + $0x2e8] sm:$0xff]
  %v111 = vld [vmem:[%s0 + $0x2f0] sm:$0xf]
  %v112 = vld [vmem:[%s0 + $0x2f4] sm:$0xff]
  %v113 = vld [vmem:[%s0 + $0x2fc] sm:$0xff]
  %v114 = vld [vmem:[%s0 + $0x304] sm:$0xff]
  %v115 = vld [vmem:[%s0 + $0x30c] sm:$0xff]
  %v116 = vld [vmem:[%s0 + $0x314] sm:$0xff]
  %v117 = vld [vmem:[%s0 + $0x31c] sm:$0xff]
  %v118 = vld [vmem:[%s0 + $0x324] sm:$0xff]
  %v119 = vld [vmem:[%s0 + $0x32c] sm:$0xff]
  %v120 = vld [vmem:[%s0 + $0x334] sm:$0xff]
  %v121 = vld [vmem:[%s0 + $0x33c] sm:$0xff]
  %v122 = vld [vmem:[%s0 + $0x344] sm:$0xff]
  %v123 = vld [vmem:[%s0 + $0x34c] sm:$0xff]
  %v124 = vld [vmem:[%s0 + $0x354] sm:$0xff]
  %v125 = vld [vmem:[%s0 + $0x35c] sm:$0xf]
  %v126 = vld [vmem:[%s0 + $0x360] sm:$0xff]
  %v127 = vld [vmem:[%s0 + $0x368] sm:$0xff]
  %v128 = vld [vmem:[%s0 + $0x370] sm:$0xff]
  %v129 = vld [vmem:[%s0 + $0x378] sm:$0xff]
  %v130 = vld [vmem:[%s0 + $0x380] sm:$0xff]
  %v131 = vld [vmem:[%s0 + $0x388] sm:$0xff]
  %v132 = vld [vmem:[%s0 + $0x390] sm:$0xff]
  %v133 = vld [vmem:[%s0 + $0x398] sm:$0xff]
  %v134 = vld [vmem:[%s0 + $0x3a0] sm:$0xff]
  %v135 = vld [vmem:[%s0 + $0x3a8] sm:$0xff]
  %v136 = vld [vmem:[%s0 + $0x3b0] sm:$0xff]
  %v137 = vld [vmem:[%s0 + $0x3b8] sm:$0xff]
  %v138 = vld [vmem:[%s0 + $0x3c0] sm:$0xff]
  %v139 = vld [vmem:[%s0 + $0x3c8] sm:$0xf]
  %v140 = vld [vmem:[%s0 + $0x3cc] sm:$0xff]
  %v141 = vld [vmem:[%s0 + $0x3d4] sm:$0xff]
  %v142 = vld [vmem:[%s0 + $0x3dc] sm:$0xff]
  %v143 = vld [vmem:[%s0 + $0x3e4] sm:$0xff]
  %v144 = vld [vmem:[%s0 + $0x3ec] sm:$0xff]
  %v145 = vld [vmem:[%s0 + $0x3f4] sm:$0xff]
  %v146 = vld [vmem:[%s0 + $0x3fc] sm:$0xff]
  %v147 = vld [vmem:[%s0 + $0x404] sm:$0xff]
  %v148 = vld [vmem:[%s0 + $0x40c] sm:$0xff]
  %v149 = vld [vmem:[%s0 + $0x414] sm:$0xff]
  %v150 = vld [vmem:[%s0 + $0x41c] sm:$0xff]
  %v151 = vld [vmem:[%s0 + $0x424] sm:$0xff]
  %v152 = vld [vmem:[%s0 + $0x42c] sm:$0xff]
  %v153 = vld [vmem:[%s0 + $0x434] sm:$0xf]
  %v154 = vld [vmem:[%s0 + $0x438] sm:$0xff]
  %v155 = vld [vmem:[%s0 + $0x440] sm:$0xff]
  %v156 = vld [vmem:[%s0 + $0x448] sm:$0xff]
  %v157 = vld [vmem:[%s0 + $0x450] sm:$0xff]
  %v158 = vld [vmem:[%s0 + $0x458] sm:$0xff]
  %v159 = vld [vmem:[%s0 + $0x460] sm:$0xff]
  %v160 = vld [vmem:[%s0 + $0x468] sm:$0xff]
  %v161 = vld [vmem:[%s0 + $0x470] sm:$0xff]
  %v162 = vld [vmem:[%s0 + $0x478] sm:$0xff]
  %v163 = vld [vmem:[%s0 + $0x480] sm:$0xff]
  %v164 = vld [vmem:[%s0 + $0x488] sm:$0xff]
  %v165 = vld [vmem:[%s0 + $0x490] sm:$0xff]
  %v166 = vld [vmem:[%s0 + $0x498] sm:$0xff]
  %v167 = vld [vmem:[%s0 + $0x4a0] sm:$0xf]
  %v168 = vld [vmem:[%s0 + $0x4a4] sm:$0xff]
  %v169 = vld [vmem:[%s0 + $0x4ac] sm:$0xff]
  %v170 = vld [vmem:[%s0 + $0x4b4] sm:$0xff]
  %v171 = vld [vmem:[%s0 + $0x4bc] sm:$0xff]
  %v172 = vld [vmem:[%s0 + $0x4c4] sm:$0xff]
  %v173 = vld [vmem:[%s0 + $0x4cc] sm:$0xff]
  %v174 = vld [vmem:[%s0 + $0x4d4] sm:$0xff]
  %v175 = vld [vmem:[%s0 + $0x4dc] sm:$0xff]
  %v176 = vld [vmem:[%s0 + $0x4e4] sm:$0xff]
  %v177 = vld [vmem:[%s0 + $0x4ec] sm:$0xff]
  %v178 = vld [vmem:[%s0 + $0x4f4] sm:$0xff]
  %v179 = vld [vmem:[%s0 + $0x4fc] sm:$0xff]
  %v180 = vld [vmem:[%s0 + $0x504] sm:$0xff]
  %v181 = vld [vmem:[%s0 + $0x50c] sm:$0xf]
  %v182 = vld [vmem:[%s0 + $0x510] sm:$0xff]
  %v183 = vld [vmem:[%s0 + $0x518] sm:$0xff]
  %v184 = vld [vmem:[%s0 + $0x520] sm:$0xff]
  %v185 = vld [vmem:[%s0 + $0x528] sm:$0xff]
  %v186 = vld [vmem:[%s0 + $0x530] sm:$0xff]
  %v187 = vld [vmem:[%s0 + $0x538] sm:$0xff]
  %v188 = vld [vmem:[%s0 + $0x540] sm:$0xff]
  %v189 = vld [vmem:[%s0 + $0x548] sm:$0xff]
  %v190 = vld [vmem:[%s0 + $0x550] sm:$0xff]
  %v191 = vld [vmem:[%s0 + $0x558] sm:$0xff]
  %v192 = vld [vmem:[%s0 + $0x560] sm:$0xff]
  %v193 = vld [vmem:[%s0 + $0x568] sm:$0xff]
  %v194 = vld [vmem:[%s0 + $0x570] sm:$0xff]
  %v195 = vld [vmem:[%s0 + $0x578] sm:$0xf]
  %v196 = vld [vmem:[%s0 + $0x57c] sm:$0xff]
  %v197 = vld [vmem:[%s0 + $0x584] sm:$0xff]
  %v198 = vld [vmem:[%s0 + $0x58c] sm:$0xff]
  %v199 = vld [vmem:[%s0 + $0x594] sm:$0xff]
  %v200 = vld [vmem:[%s0 + $0x59c] sm:$0xff]
  %v201 = vld [vmem:[%s0 + $0x5a4] sm:$0xff]
  %v202 = vld [vmem:[%s0 + $0x5ac] sm:$0xff]
  %v203 = vld [vmem:[%s0 + $0x5b4] sm:$0xff]
  %v204 = vld [vmem:[%s0 + $0x5bc] sm:$0xff]
  %v205 = vld [vmem:[%s0 + $0x5c4] sm:$0xff]
  %v206 = vld [vmem:[%s0 + $0x5cc] sm:$0xff]
  %v207 = vld [vmem:[%s0 + $0x5d4] sm:$0xff]
  %v208 = vld [vmem:[%s0 + $0x5dc] sm:$0xff]
  %v209 = vld [vmem:[%s0 + $0x5e4] sm:$0xf]
  %v210 = vld [vmem:[%s0 + $0x5e8] sm:$0xff]
  %v211 = vld [vmem:[%s0 + $0x5f0] sm:$0xff]
  %v212 = vld [vmem:[%s0 + $0x5f8] sm:$0xff]
  %v213 = vld [vmem:[%s0 + $0x600] sm:$0xff]
  %v214 = vld [vmem:[%s0 + $0x608] sm:$0xff]
  %v215 = vld [vmem:[%s0 + $0x610] sm:$0xff]
  %v216 = vld [vmem:[%s0 + $0x618] sm:$0xff]
  %v217 = vld [vmem:[%s0 + $0x620] sm:$0xff]
  %v218 = vld [vmem:[%s0 + $0x628] sm:$0xff]
  %v219 = vld [vmem:[%s0 + $0x630] sm:$0xff]
  %v220 = vld [vmem:[%s0 + $0x638] sm:$0xff]
  %v221 = vld [vmem:[%s0 + $0x640] sm:$0xff]
  %v222 = vld [vmem:[%s0 + $0x648] sm:$0xff]
  %v223 = vld [vmem:[%s0 + $0x650] sm:$0xf]
  %v224 = vld [vmem:[%s0 + $0x654] sm:$0xff]
  %v225 = vld [vmem:[%s0 + $0x65c] sm:$0xff]
  %v226 = vld [vmem:[%s0 + $0x664] sm:$0xff]
  %v227 = vld [vmem:[%s0 + $0x66c] sm:$0xff]
  %v228 = vld [vmem:[%s0 + $0x674] sm:$0xff]
  %v229 = vld [vmem:[%s0 + $0x67c] sm:$0xff]
  %v230 = vld [vmem:[%s0 + $0x684] sm:$0xff]
  %v231 = vld [vmem:[%s0 + $0x68c] sm:$0xff]
  %v232 = vld [vmem:[%s0 + $0x694] sm:$0xff]
  %v233 = vld [vmem:[%s0 + $0x69c] sm:$0xff]
  %v234 = vld [vmem:[%s0 + $0x6a4] sm:$0xff]
  %v235 = vld [vmem:[%s0 + $0x6ac] sm:$0xff]
  %v236 = vld [vmem:[%s0 + $0x6b4] sm:$0xff]
  %v237 = vld [vmem:[%s0 + $0x6bc] sm:$0xf]
  %v238 = vld [vmem:[%s1] sm:$0xf]
  %v239 = vld [vmem:[%s1 + $0x4] sm:$0xf]
  %v240 = vld [vmem:[%s1 + $0x8] sm:$0xf]
  %v241 = vld [vmem:[%s1 + $0xc] sm:$0xf]
  %v242 = vld [vmem:[%s1 + $0x10] sm:$0xf]
  %v243 = vld [vmem:[%s1 + $0x14] sm:$0xf]
  %v244 = vld [vmem:[%s1 + $0x18] sm:$0xf]
  %v245 = vld [vmem:[%s1 + $0x1c] sm:$0xf]
  %v246 = vld [vmem:[%s1 + $0x20] sm:$0xf]
  %v247 = vld [vmem:[%s1 + $0x24] sm:$0xf]
  %v248 = vld [vmem:[%s1 + $0x28] sm:$0xf]
  %v249 = vld [vmem:[%s1 + $0x2c] sm:$0xf]
  %v250 = vld [vmem:[%s1 + $0x30] sm:$0xf]
  %v251 = vld [vmem:[%s1 + $0x34] sm:$0xf]
  %v252 = vld [vmem:[%s1 + $0x38] sm:$0xf]
  %v253 = vld [vmem:[%s1 + $0x3c] sm:$0xf]
  %v254 = vld [vmem:[%s1 + $0x40] sm:$0xf]
  %v255 = vld [vmem:[%s1 + $0x44] sm:$0xf]
  %v256 = vld [vmem:[%s1 + $0x48] sm:$0xf]
  %v257 = vld [vmem:[%s1 + $0x4c] sm:$0xf]
  %v258 = vld [vmem:[%s1 + $0x50] sm:$0xf]
  %v259 = vld [vmem:[%s1 + $0x54] sm:$0xf]
  %v260 = vld [vmem:[%s1 + $0x58] sm:$0xf]
  %v261 = vld [vmem:[%s1 + $0x5c] sm:$0xf]
  %v262 = vld [vmem:[%s1 + $0x60] sm:$0xf]
  %v263 = vld [vmem:[%s1 + $0x64] sm:$0xf]
  %v264 = vld [vmem:[%s1 + $0x68] sm:$0xf]
  %v265 = vld [vmem:[%s1 + $0x6c] sm:$0xf]
  %v266 = vld [vmem:[%s1 + $0x70] sm:$0xf]
  %v267 = vld [vmem:[%s1 + $0x74] sm:$0xf]
  %v268 = vld [vmem:[%s1 + $0x78] sm:$0xf]
  %v269 = vld [vmem:[%s1 + $0x7c] sm:$0xf]
  %v270 = vld [vmem:[%s1 + $0x80] sm:$0xf]
  %v271 = vld [vmem:[%s1 + $0x84] sm:$0xf]
  %v272 = vld [vmem:[%s1 + $0x88] sm:$0xf]
  %v273 = vld [vmem:[%s1 + $0x8c] sm:$0xf]
  %v274 = vld [vmem:[%s1 + $0x90] sm:$0xf]
  %v275 = vld [vmem:[%s1 + $0x94] sm:$0xf]
  %v276 = vld [vmem:[%s1 + $0x98] sm:$0xf]
  %v277 = vld [vmem:[%s1 + $0x9c] sm:$0xf]
  %v278 = vld [vmem:[%s1 + $0xa0] sm:$0xf]
  %v279 = vld [vmem:[%s1 + $0xa4] sm:$0xf]
  %v280 = vld [vmem:[%s1 + $0xa8] sm:$0xf]
  %v281 = vld [vmem:[%s1 + $0xac] sm:$0xf]
  %v282 = vld [vmem:[%s1 + $0xb0] sm:$0xf]
  %v283 = vld [vmem:[%s1 + $0xb4] sm:$0xf]
  %v284 = vld [vmem:[%s1 + $0xb8] sm:$0xf]
  %v285 = vld [vmem:[%s1 + $0xbc] sm:$0xf]
  %v286 = vld [vmem:[%s1 + $0xc0] sm:$0xf]
  %v287 = vld [vmem:[%s1 + $0xc4] sm:$0xf]
  %v288 = vld [vmem:[%s1 + $0xc8] sm:$0xf]
  %v289 = vld [vmem:[%s1 + $0xcc] sm:$0xf]
  %v290 = vld [vmem:[%s1 + $0xd0] sm:$0xf]
  %v291 = vld [vmem:[%s1 + $0xd4] sm:$0xf]
  %v292 = vld [vmem:[%s1 + $0xd8] sm:$0xf]
  %v293 = vld [vmem:[%s1 + $0xdc] sm:$0xf]
  %v294 = vld [vmem:[%s1 + $0xe0] sm:$0xf]
  %v295 = vld [vmem:[%s1 + $0xe4] sm:$0xf]
  %v296 = vld [vmem:[%s1 + $0xe8] sm:$0xf]
  %v297 = vld [vmem:[%s1 + $0xec] sm:$0xf]
  %v298 = vld [vmem:[%s1 + $0xf0] sm:$0xf]
  %v299 = vld [vmem:[%s1 + $0xf4] sm:$0xf]
  %v300 = vld [vmem:[%s1 + $0xf8] sm:$0xf]
  %v301 = vld [vmem:[%s1 + $0xfc] sm:$0xf]
  %v302 = vld [vmem:[%s1 + $0x100] sm:$0xf]
  %v303 = vld [vmem:[%s1 + $0x104] sm:$0xf]
  %v304 = vld [vmem:[%s1 + $0x108] sm:$0xf]
  %v305 = vld [vmem:[%s1 + $0x10c] sm:$0xf]
  %v306 = vld [vmem:[%s1 + $0x110] sm:$0xf]
  %v307 = vld [vmem:[%s1 + $0x114] sm:$0xf]
  %v308 = vld [vmem:[%s1 + $0x118] sm:$0xf]
  %v309 = vld [vmem:[%s1 + $0x11c] sm:$0xf]
  %v310 = vld [vmem:[%s1 + $0x120] sm:$0xf]
  %v311 = vld [vmem:[%s1 + $0x124] sm:$0xf]
  %v312 = vld [vmem:[%s1 + $0x128] sm:$0xf]
  %v313 = vld [vmem:[%s1 + $0x12c] sm:$0xf]
  %v314 = vld [vmem:[%s1 + $0x130] sm:$0xf]
  %v315 = vld [vmem:[%s1 + $0x134] sm:$0xf]
  %v316 = vld [vmem:[%s1 + $0x138] sm:$0xf]
  %v317 = vld [vmem:[%s1 + $0x13c] sm:$0xf]
  %v318 = vld [vmem:[%s1 + $0x140] sm:$0xf]
  %v319 = vld [vmem:[%s1 + $0x144] sm:$0xf]
  %v320 = vld [vmem:[%s1 + $0x148] sm:$0xf]
  %v321 = vld [vmem:[%s1 + $0x14c] sm:$0xf]
  %v322 = vld [vmem:[%s1 + $0x150] sm:$0xf]
  %v323 = vld [vmem:[%s1 + $0x154] sm:$0xf]
  %v324 = vld [vmem:[%s1 + $0x158] sm:$0xf]
  %v325 = vld [vmem:[%s1 + $0x15c] sm:$0xf]
  %v326 = vld [vmem:[%s1 + $0x160] sm:$0xf]
  %v327 = vld [vmem:[%s1 + $0x164] sm:$0xf]
  %v328 = vld [vmem:[%s1 + $0x168] sm:$0xf]
  %v329 = vld [vmem:[%s1 + $0x16c] sm:$0xf]
  %v330 = vld [vmem:[%s1 + $0x170] sm:$0xf]
  %v331 = vld [vmem:[%s1 + $0x174] sm:$0xf]
  %v332 = vld [vmem:[%s1 + $0x178] sm:$0xf]
  %v333 = vld [vmem:[%s1 + $0x17c] sm:$0xf]
  %v334 = vld [vmem:[%s1 + $0x180] sm:$0xf]
  %v335 = vld [vmem:[%s1 + $0x184] sm:$0xf]
  %v336 = vld [vmem:[%s1 + $0x188] sm:$0xf]
  %v337 = vld [vmem:[%s1 + $0x18c] sm:$0xf]
  %v338 = vld [vmem:[%s1 + $0x190] sm:$0xf]
  %v339 = vld [vmem:[%s1 + $0x194] sm:$0xf]
  %v340 = vld [vmem:[%s1 + $0x198] sm:$0xf]
  %v341 = vld [vmem:[%s1 + $0x19c] sm:$0xf]
  %v342 = vld [vmem:[%s1 + $0x1a0] sm:$0xf]
  %v343 = vld [vmem:[%s1 + $0x1a4] sm:$0xf]
  %v344 = vld [vmem:[%s1 + $0x1a8] sm:$0xf]
  %v345 = vld [vmem:[%s1 + $0x1ac] sm:$0xf]
  %v346 = vld [vmem:[%s1 + $0x1b0] sm:$0xf]
  %v347 = vld [vmem:[%s1 + $0x1b4] sm:$0xf]
  %v348 = vld [vmem:[%s1 + $0x1b8] sm:$0xf]
  %v349 = vld [vmem:[%s1 + $0x1bc] sm:$0xf]
  %v350 = vld [vmem:[%s1 + $0x1c0] sm:$0xf]
  %v351 = vld [vmem:[%s1 + $0x1c4] sm:$0xf]
  %v352 = vld [vmem:[%s1 + $0x1c8] sm:$0xf]
  %v353 = vld [vmem:[%s1 + $0x1cc] sm:$0xf]
  %v354 = vld [vmem:[%s1 + $0x1d0] sm:$0xf]
  %v355 = vld [vmem:[%s1 + $0x1d4] sm:$0xf]
  %v356 = vld [vmem:[%s1 + $0x1d8] sm:$0xf]
  %v357 = vld [vmem:[%s1 + $0x1dc] sm:$0xf]
  %v358 = vld [vmem:[%s1 + $0x1e0] sm:$0xf]
  %v359 = vld [vmem:[%s1 + $0x1e4] sm:$0xf]
  %v360 = vld [vmem:[%s1 + $0x1e8] sm:$0xf]
  %v361 = vld [vmem:[%s1 + $0x1ec] sm:$0xf]
  %v362 = vld [vmem:[%s1 + $0x1f0] sm:$0xf]
  %v363 = vld [vmem:[%s1 + $0x1f4] sm:$0xf]
  %v364 = vld [vmem:[%s1 + $0x1f8] sm:$0xf]
  %v365 = vld [vmem:[%s1 + $0x1fc] sm:$0xf]
  %v366 = vld [vmem:[%s1 + $0x200] sm:$0xf]
  %v367 = vld [vmem:[%s1 + $0x204] sm:$0xf]
  %v368 = vld [vmem:[%s1 + $0x208] sm:$0xf]
  %v369 = vld [vmem:[%s1 + $0x20c] sm:$0xf]
  %v370 = vld [vmem:[%s1 + $0x210] sm:$0xf]
  %v371 = vld [vmem:[%s1 + $0x214] sm:$0xf]
  %v372 = vld [vmem:[%s1 + $0x218] sm:$0xf]
  %v373 = vld [vmem:[%s1 + $0x21c] sm:$0xf]
  %v374 = vld [vmem:[%s1 + $0x220] sm:$0xf]
  %v375 = vld [vmem:[%s1 + $0x224] sm:$0xf]
  %v376 = vld [vmem:[%s1 + $0x228] sm:$0xf]
  %v377 = vld [vmem:[%s1 + $0x22c] sm:$0xf]
  %v378 = vld [vmem:[%s1 + $0x230] sm:$0xf]
  %v379 = vld [vmem:[%s1 + $0x234] sm:$0xf]
  %v380 = vld [vmem:[%s1 + $0x238] sm:$0xf]
  %v381 = vld [vmem:[%s1 + $0x23c] sm:$0xf]
  %v382 = vld [vmem:[%s1 + $0x240] sm:$0xf]
  %v383 = vld [vmem:[%s1 + $0x244] sm:$0xf]
  %v384 = vld [vmem:[%s1 + $0x248] sm:$0xf]
  %v385 = vld [vmem:[%s1 + $0x24c] sm:$0xf]
  %v386 = vld [vmem:[%s1 + $0x250] sm:$0xf]
  %v387 = vld [vmem:[%s1 + $0x254] sm:$0xf]
  %v388 = vld [vmem:[%s1 + $0x258] sm:$0xf]
  %v389 = vld [vmem:[%s1 + $0x25c] sm:$0xf]
  %v390 = vld [vmem:[%s1 + $0x260] sm:$0xf]
  %v391 = vld [vmem:[%s1 + $0x264] sm:$0xf]
  %v392 = vld [vmem:[%s1 + $0x268] sm:$0xf]
  %v393 = vld [vmem:[%s1 + $0x26c] sm:$0xf]
  %v394 = vld [vmem:[%s1 + $0x270] sm:$0xf]
  %v395 = vld [vmem:[%s1 + $0x274] sm:$0xf]
  %v396 = vld [vmem:[%s1 + $0x278] sm:$0xf]
  %v397 = vld [vmem:[%s1 + $0x27c] sm:$0xf]
  %v398 = vld [vmem:[%s1 + $0x280] sm:$0xf]
  %v399 = vld [vmem:[%s1 + $0x284] sm:$0xf]
  %v400 = vld [vmem:[%s1 + $0x288] sm:$0xf]
  %v401 = vld [vmem:[%s1 + $0x28c] sm:$0xf]
  %v402 = vld [vmem:[%s1 + $0x290] sm:$0xf]
  %v403 = vld [vmem:[%s1 + $0x294] sm:$0xf]
  %v404 = vld [vmem:[%s1 + $0x298] sm:$0xf]
  %v405 = vld [vmem:[%s1 + $0x29c] sm:$0xf]
  %v406 = vld [vmem:[%s1 + $0x2a0] sm:$0xf]
  %v407 = vld [vmem:[%s1 + $0x2a4] sm:$0xf]
  %v408 = vld [vmem:[%s1 + $0x2a8] sm:$0xf]
  %v409 = vld [vmem:[%s1 + $0x2ac] sm:$0xf]
  %v410 = vld [vmem:[%s1 + $0x2b0] sm:$0xf]
  %v411 = vld [vmem:[%s1 + $0x2b4] sm:$0xf]
  %v412 = vld [vmem:[%s1 + $0x2b8] sm:$0xf]
  %v413 = vld [vmem:[%s1 + $0x2bc] sm:$0xf]
  %v414 = vld [vmem:[%s1 + $0x2c0] sm:$0xf]
  %v415 = vld [vmem:[%s1 + $0x2c4] sm:$0xf]
  %v416 = vld [vmem:[%s1 + $0x2c8] sm:$0xf]
  %v417 = vld [vmem:[%s1 + $0x2cc] sm:$0xf]
  %v418 = vld [vmem:[%s1 + $0x2d0] sm:$0xf]
  %v419 = vld [vmem:[%s1 + $0x2d4] sm:$0xf]
  %v420 = vld [vmem:[%s1 + $0x2d8] sm:$0xf]
  %v421 = vld [vmem:[%s1 + $0x2dc] sm:$0xf]
  %v422 = vld [vmem:[%s1 + $0x2e0] sm:$0xf]
  %v423 = vld [vmem:[%s1 + $0x2e4] sm:$0xf]
  %v424 = vld [vmem:[%s1 + $0x2e8] sm:$0xf]
  %v425 = vld [vmem:[%s1 + $0x2ec] sm:$0xf]
  %v426 = vld [vmem:[%s1 + $0x2f0] sm:$0xf]
  %v427 = vld [vmem:[%s1 + $0x2f4] sm:$0xf]
  %v428 = vld [vmem:[%s1 + $0x2f8] sm:$0xf]
  %v429 = vld [vmem:[%s1 + $0x2fc] sm:$0xf]
  %v430 = vld [vmem:[%s1 + $0x300] sm:$0xf]
  %v431 = vld [vmem:[%s1 + $0x304] sm:$0xf]
  %v432 = vld [vmem:[%s1 + $0x308] sm:$0xf]
  %v433 = vld [vmem:[%s1 + $0x30c] sm:$0xf]
  %v434 = vld [vmem:[%s1 + $0x310] sm:$0xf]
  %v435 = vld [vmem:[%s1 + $0x314] sm:$0xf]
  %v436 = vld [vmem:[%s1 + $0x318] sm:$0xf]
  %v437 = vld [vmem:[%s1 + $0x31c] sm:$0xf]
  %v438 = vld [vmem:[%s1 + $0x320] sm:$0xf]
  %v439 = vld [vmem:[%s1 + $0x324] sm:$0xf]
  %v440 = vld [vmem:[%s1 + $0x328] sm:$0xf]
  %v441 = vld [vmem:[%s1 + $0x32c] sm:$0xf]
  %v442 = vld [vmem:[%s1 + $0x330] sm:$0xf]
  %v443 = vld [vmem:[%s1 + $0x334] sm:$0xf]
  %v444 = vld [vmem:[%s1 + $0x338] sm:$0xf]
  %v445 = vld [vmem:[%s1 + $0x33c] sm:$0xf]
  %v446 = vld [vmem:[%s1 + $0x340] sm:$0xf]
  %v447 = vld [vmem:[%s1 + $0x344] sm:$0xf]
  %v448 = vld [vmem:[%s1 + $0x348] sm:$0xf]
  %v449 = vld [vmem:[%s1 + $0x34c] sm:$0xf]
  %v450 = vld [vmem:[%s1 + $0x350] sm:$0xf]
  %v451 = vld [vmem:[%s1 + $0x354] sm:$0xf]
  %v452 = vld [vmem:[%s1 + $0x358] sm:$0xf]
  %v453 = vld [vmem:[%s1 + $0x35c] sm:$0xf]
  %v454 = vld [vmem:[%s1 + $0x360] sm:$0xf]
  %v455 = vld [vmem:[%s1 + $0x364] sm:$0xf]
  %v456 = vld [vmem:[%s1 + $0x368] sm:$0xf]
  %v457 = vld [vmem:[%s1 + $0x36c] sm:$0xf]
  %v458 = vld [vmem:[%s1 + $0x370] sm:$0xf]
  %v459 = vld [vmem:[%s1 + $0x374] sm:$0xf]
  %v460 = vld [vmem:[%s1 + $0x378] sm:$0xf]
  %v461 = vld [vmem:[%s1 + $0x37c] sm:$0xf]
  %v462 = vld [vmem:[%s1 + $0x380] sm:$0xf]
  %v463 = vld [vmem:[%s1 + $0x384] sm:$0xf]
  %v464 = vld [vmem:[%s1 + $0x388] sm:$0xf]
  %v465 = vld [vmem:[%s1 + $0x38c] sm:$0xf]
  %v466 = vld [vmem:[%s1 + $0x390] sm:$0xf]
  %v467 = vld [vmem:[%s1 + $0x394] sm:$0xf]
  %v468 = vld [vmem:[%s1 + $0x398] sm:$0xf]
  %v469 = vld [vmem:[%s1 + $0x39c] sm:$0xf]
  %v470 = vld [vmem:[%s1 + $0x3a0] sm:$0xf]
  %v471 = vld [vmem:[%s1 + $0x3a4] sm:$0xf]
  %v472 = vld [vmem:[%s1 + $0x3a8] sm:$0xf]
  %v473 = vld [vmem:[%s1 + $0x3ac] sm:$0xf]
  %v474 = vld [vmem:[%s1 + $0x3b0] sm:$0xf]
  %v475 = vld [vmem:[%s1 + $0x3b4] sm:$0xf]
  %v476 = vld [vmem:[%s1 + $0x3b8] sm:$0xf]
  %v477 = vld [vmem:[%s1 + $0x3bc] sm:$0xf]
  %v478 = vld [vmem:[%s1 + $0x3c0] sm:$0xf]
  %v479 = vld [vmem:[%s1 + $0x3c4] sm:$0xf]
  %v480 = vld [vmem:[%s1 + $0x3c8] sm:$0xf]
  %v481 = vld [vmem:[%s1 + $0x3cc] sm:$0xf]
  %v482 = vld [vmem:[%s1 + $0x3d0] sm:$0xf]
  %v483 = vld [vmem:[%s1 + $0x3d4] sm:$0xf]
  %v484 = vld [vmem:[%s1 + $0x3d8] sm:$0xf]
  %v485 = vld [vmem:[%s1 + $0x3dc] sm:$0xf]
  %v486 = vld [vmem:[%s1 + $0x3e0] sm:$0xf]
  %v487 = vld [vmem:[%s1 + $0x3e4] sm:$0xf]
  %v488 = vld [vmem:[%s1 + $0x3e8] sm:$0xf]
  %v489 = vld [vmem:[%s1 + $0x3ec] sm:$0xf]
  %v490 = vld [vmem:[%s1 + $0x3f0] sm:$0xf]
  %v491 = vld [vmem:[%s1 + $0x3f4] sm:$0xf]
  %v492 = vld [vmem:[%s1 + $0x3f8] sm:$0xf]
  %v493 = vld [vmem:[%s1 + $0x3fc] sm:$0xf]
  %v494 = vld [vmem:[%s1 + $0x400] sm:$0xf]
  %v495 = vld [vmem:[%s1 + $0x404] sm:$0xf]
  %v496 = vld [vmem:[%s1 + $0x408] sm:$0xf]
  %v497 = vld [vmem:[%s1 + $0x40c] sm:$0xf]
  %v498 = vld [vmem:[%s1 + $0x410] sm:$0xf]
  %v499 = vld [vmem:[%s1 + $0x414] sm:$0xf]
  %v500 = vld [vmem:[%s1 + $0x418] sm:$0xf]
  %v501 = vld [vmem:[%s1 + $0x41c] sm:$0xf]
  %v502 = vld [vmem:[%s1 + $0x420] sm:$0xf]
  %v503 = vld [vmem:[%s1 + $0x424] sm:$0xf]
  %v504 = vld [vmem:[%s1 + $0x428] sm:$0xf]
  %v505 = vld [vmem:[%s1 + $0x42c] sm:$0xf]
  %v506 = vld [vmem:[%s1 + $0x430] sm:$0xf]
  %v507 = vld [vmem:[%s1 + $0x434] sm:$0xf]
  %v508 = vld [vmem:[%s1 + $0x438] sm:$0xf]
  %v509 = vld [vmem:[%s1 + $0x43c] sm:$0xf]
  %v510 = vld [vmem:[%s1 + $0x440] sm:$0xf]
  %v511 = vld [vmem:[%s1 + $0x444] sm:$0xf]
  %v512 = vld [vmem:[%s1 + $0x448] sm:$0xf]
  %v513 = vld [vmem:[%s1 + $0x44c] sm:$0xf]
  %v514 = vld [vmem:[%s1 + $0x450] sm:$0xf]
  %v515 = vld [vmem:[%s1 + $0x454] sm:$0xf]
  %v516 = vld [vmem:[%s1 + $0x458] sm:$0xf]
  %v517 = vld [vmem:[%s1 + $0x45c] sm:$0xf]
  %v518 = vld [vmem:[%s1 + $0x460] sm:$0xf]
  %v519 = vld [vmem:[%s1 + $0x464] sm:$0xf]
  %v520 = vld [vmem:[%s1 + $0x468] sm:$0xf]
  %v521 = vld [vmem:[%s1 + $0x46c] sm:$0xf]
  %v522 = vld [vmem:[%s1 + $0x470] sm:$0xf]
  %v523 = vld [vmem:[%s1 + $0x474] sm:$0xf]
  %v524 = vld [vmem:[%s1 + $0x478] sm:$0xf]
  %v525 = vld [vmem:[%s1 + $0x47c] sm:$0xf]
  %v526 = vld [vmem:[%s1 + $0x480] sm:$0xf]
  %v527 = vld [vmem:[%s1 + $0x484] sm:$0xf]
  %v528 = vld [vmem:[%s1 + $0x488] sm:$0xf]
  %v529 = vld [vmem:[%s1 + $0x48c] sm:$0xf]
  %v530 = vld [vmem:[%s1 + $0x490] sm:$0xf]
  %v531 = vld [vmem:[%s1 + $0x494] sm:$0xf]
  %v532 = vld [vmem:[%s1 + $0x498] sm:$0xf]
  %v533 = vld [vmem:[%s1 + $0x49c] sm:$0xf]
  %v534 = vld [vmem:[%s1 + $0x4a0] sm:$0xf]
  %v535 = vld [vmem:[%s1 + $0x4a4] sm:$0xf]
  %v536 = vld [vmem:[%s1 + $0x4a8] sm:$0xf]
  %v537 = vld [vmem:[%s1 + $0x4ac] sm:$0xf]
  %v538 = vld [vmem:[%s1 + $0x4b0] sm:$0xf]
  %v539 = vld [vmem:[%s1 + $0x4b4] sm:$0xf]
  %v540 = vld [vmem:[%s1 + $0x4b8] sm:$0xf]
  %v541 = vld [vmem:[%s1 + $0x4bc] sm:$0xf]
  %v542 = vld [vmem:[%s1 + $0x4c0] sm:$0xf]
  %v543 = vld [vmem:[%s1 + $0x4c4] sm:$0xf]
  %v544 = vld [vmem:[%s1 + $0x4c8] sm:$0xf]
  %v545 = vld [vmem:[%s1 + $0x4cc] sm:$0xf]
  %v546 = vld [vmem:[%s1 + $0x4d0] sm:$0xf]
  %v547 = vld [vmem:[%s1 + $0x4d4] sm:$0xf]
  %v548 = vld [vmem:[%s1 + $0x4d8] sm:$0xf]
  %v549 = vld [vmem:[%s1 + $0x4dc] sm:$0xf]
  %v550 = vld [vmem:[%s1 + $0x4e0] sm:$0xf]
  %v551 = vld [vmem:[%s1 + $0x4e4] sm:$0xf]
  %v552 = vld [vmem:[%s1 + $0x4e8] sm:$0xf]
  %v553 = vld [vmem:[%s1 + $0x4ec] sm:$0xf]
  %v554 = vld [vmem:[%s1 + $0x4f0] sm:$0xf]
  %v555 = vld [vmem:[%s1 + $0x4f4] sm:$0xf]
  %v556 = vld [vmem:[%s1 + $0x4f8] sm:$0xf]
  %v557 = vld [vmem:[%s1 + $0x4fc] sm:$0xf]
  %v558 = vld [vmem:[%s1 + $0x500] sm:$0xf]
  %v559 = vld [vmem:[%s1 + $0x504] sm:$0xf]
  %v560 = vld [vmem:[%s1 + $0x508] sm:$0xf]
  %v561 = vld [vmem:[%s1 + $0x50c] sm:$0xf]
  %v562 = vld [vmem:[%s1 + $0x510] sm:$0xf]
  %v563 = vld [vmem:[%s1 + $0x514] sm:$0xf]
  %v564 = vld [vmem:[%s1 + $0x518] sm:$0xf]
  %v565 = vld [vmem:[%s1 + $0x51c] sm:$0xf]
  %v566 = vld [vmem:[%s1 + $0x520] sm:$0xf]
  %v567 = vld [vmem:[%s1 + $0x524] sm:$0xf]
  %v568 = vld [vmem:[%s1 + $0x528] sm:$0xf]
  %v569 = vld [vmem:[%s1 + $0x52c] sm:$0xf]
  %v570 = vld [vmem:[%s1 + $0x530] sm:$0xf]
  %v571 = vld [vmem:[%s1 + $0x534] sm:$0xf]
  %v572 = vld [vmem:[%s1 + $0x538] sm:$0xf]
  %v573 = vld [vmem:[%s1 + $0x53c] sm:$0xf]
  %v574 = vld [vmem:[%s1 + $0x540] sm:$0xf]
  %v575 = vld [vmem:[%s1 + $0x544] sm:$0xf]
  %v576 = vld [vmem:[%s1 + $0x548] sm:$0xf]
  %v577 = vld [vmem:[%s1 + $0x54c] sm:$0xf]
  %v578 = vld [vmem:[%s1 + $0x550] sm:$0xf]
  %v579 = vld [vmem:[%s1 + $0x554] sm:$0xf]
  %v580 = vld [vmem:[%s1 + $0x558] sm:$0xf]
  %v581 = vld [vmem:[%s1 + $0x55c] sm:$0xf]
  %v582 = vld [vmem:[%s1 + $0x560] sm:$0xf]
  %v583 = vld [vmem:[%s1 + $0x564] sm:$0xf]
  %v584 = vld [vmem:[%s1 + $0x568] sm:$0xf]
  %v585 = vld [vmem:[%s1 + $0x56c] sm:$0xf]
  %v586 = vld [vmem:[%s1 + $0x570] sm:$0xf]
  %v587 = vld [vmem:[%s1 + $0x574] sm:$0xf]
  %v588 = vld [vmem:[%s1 + $0x578] sm:$0xf]
  %v589 = vld [vmem:[%s1 + $0x57c] sm:$0xf]
  %v590 = vld [vmem:[%s1 + $0x580] sm:$0xf]
  %v591 = vld [vmem:[%s1 + $0x584] sm:$0xf]
  %v592 = vld [vmem:[%s1 + $0x588] sm:$0xf]
  %v593 = vld [vmem:[%s1 + $0x58c] sm:$0xf]
  %v594 = vld [vmem:[%s1 + $0x590] sm:$0xf]
  %v595 = vld [vmem:[%s1 + $0x594] sm:$0xf]
  %v596 = vld [vmem:[%s1 + $0x598] sm:$0xf]
  %v597 = vld [vmem:[%s1 + $0x59c] sm:$0xf]
  %v598 = vld [vmem:[%s1 + $0x5a0] sm:$0xf]
  %v599 = vld [vmem:[%s1 + $0x5a4] sm:$0xf]
  %v600 = vld [vmem:[%s1 + $0x5a8] sm:$0xf]
  %v601 = vld [vmem:[%s1 + $0x5ac] sm:$0xf]
  %v602 = vld [vmem:[%s1 + $0x5b0] sm:$0xf]
  %v603 = vld [vmem:[%s1 + $0x5b4] sm:$0xf]
  %v604 = vld [vmem:[%s1 + $0x5b8] sm:$0xf]
  %v605 = vld [vmem:[%s1 + $0x5bc] sm:$0xf]
  %v606 = vld [vmem:[%s1 + $0x5c0] sm:$0xf]
  %v607 = vld [vmem:[%s1 + $0x5c4] sm:$0xf]
  %v608 = vld [vmem:[%s1 + $0x5c8] sm:$0xf]
  %v609 = vld [vmem:[%s1 + $0x5cc] sm:$0xf]
  %v610 = vld [vmem:[%s1 + $0x5d0] sm:$0xf]
  %v611 = vld [vmem:[%s1 + $0x5d4] sm:$0xf]
  %v612 = vld [vmem:[%s1 + $0x5d8] sm:$0xf]
  %v613 = vld [vmem:[%s1 + $0x5dc] sm:$0xf]
  %v614 = vld [vmem:[%s1 + $0x5e0] sm:$0xf]
  %v615 = vld [vmem:[%s1 + $0x5e4] sm:$0xf]
  %v616 = vld [vmem:[%s1 + $0x5e8] sm:$0xf]
  %v617 = vld [vmem:[%s1 + $0x5ec] sm:$0xf]
  %v618 = vld [vmem:[%s1 + $0x5f0] sm:$0xf]
  %v619 = vld [vmem:[%s1 + $0x5f4] sm:$0xf]
  %v620 = vld [vmem:[%s1 + $0x5f8] sm:$0xf]
  %v621 = vld [vmem:[%s1 + $0x5fc] sm:$0xf]
  %v622 = vld [vmem:[%s1 + $0x600] sm:$0xf]
  %v623 = vld [vmem:[%s1 + $0x604] sm:$0xf]
  %v624 = vld [vmem:[%s1 + $0x608] sm:$0xf]
  %v625 = vld [vmem:[%s1 + $0x60c] sm:$0xf]
  %v626 = vld [vmem:[%s1 + $0x610] sm:$0xf]
  %v627 = vld [vmem:[%s1 + $0x614] sm:$0xf]
  %v628 = vld [vmem:[%s1 + $0x618] sm:$0xf]
  %v629 = vld [vmem:[%s1 + $0x61c] sm:$0xf]
  %v630 = vld [vmem:[%s1 + $0x620] sm:$0xf]
  %v631 = vld [vmem:[%s1 + $0x624] sm:$0xf]
  %v632 = vld [vmem:[%s1 + $0x628] sm:$0xf]
  %v633 = vld [vmem:[%s1 + $0x62c] sm:$0xf]
  %v634 = vld [vmem:[%s1 + $0x630] sm:$0xf]
  %v635 = vld [vmem:[%s1 + $0x634] sm:$0xf]
  %v636 = vld [vmem:[%s1 + $0x638] sm:$0xf]
  %v637 = vld [vmem:[%s1 + $0x63c] sm:$0xf]
  %v638 = vld [vmem:[%s1 + $0x640] sm:$0xf]
  %v639 = vld [vmem:[%s1 + $0x644] sm:$0xf]
  %v640 = vld [vmem:[%s1 + $0x648] sm:$0xf]
  %v641 = vld [vmem:[%s1 + $0x64c] sm:$0xf]
  %v642 = vld [vmem:[%s1 + $0x650] sm:$0xf]
  %v643 = vld [vmem:[%s1 + $0x654] sm:$0xf]
  %v644 = vld [vmem:[%s1 + $0x658] sm:$0xf]
  %v645 = vld [vmem:[%s1 + $0x65c] sm:$0xf]
  %v646 = vld [vmem:[%s1 + $0x660] sm:$0xf]
  %v647 = vld [vmem:[%s1 + $0x664] sm:$0xf]
  %v648 = vld [vmem:[%s1 + $0x668] sm:$0xf]
  %v649 = vld [vmem:[%s1 + $0x66c] sm:$0xf]
  %v650 = vld [vmem:[%s1 + $0x670] sm:$0xf]
  %v651 = vld [vmem:[%s1 + $0x674] sm:$0xf]
  %v652 = vld [vmem:[%s1 + $0x678] sm:$0xf]
  %v653 = vld [vmem:[%s1 + $0x67c] sm:$0xf]
  %v654 = vld [vmem:[%s1 + $0x680] sm:$0xf]
  %v655 = vld [vmem:[%s1 + $0x684] sm:$0xf]
  %v656 = vld [vmem:[%s1 + $0x688] sm:$0xf]
  %v657 = vld [vmem:[%s1 + $0x68c] sm:$0xf]
  %v658 = vld [vmem:[%s1 + $0x690] sm:$0xf]
  %v659 = vld [vmem:[%s1 + $0x694] sm:$0xf]
  %v660 = vld [vmem:[%s1 + $0x698] sm:$0xf]
  %v661 = vld [vmem:[%s1 + $0x69c] sm:$0xf]
  %v662 = vld [vmem:[%s1 + $0x6a0] sm:$0xf]
  %v663 = vld [vmem:[%s1 + $0x6a4] sm:$0xf]
  %v664 = vld [vmem:[%s1 + $0x6a8] sm:$0xf]
  %v665 = vld [vmem:[%s1 + $0x6ac] sm:$0xf]
  %v666 = vld [vmem:[%s1 + $0x6b0] sm:$0xf]
  %v667 = vld [vmem:[%s1 + $0x6b4] sm:$0xf]
  %v668 = vld [vmem:[%s1 + $0x6b8] sm:$0xf]
  %v669 = vld [vmem:[%s1 + $0x6bc] sm:$0xf]
  %v670 = vld [vmem:[%s2] sm:$0xff]
  %v671 = vld [vmem:[%s2 + $0x8] sm:$0xff]
  %v672 = vld [vmem:[%s2 + $0x10] sm:$0xff]
  %v673 = vld [vmem:[%s2 + $0x18] sm:$0xff]
  %v674 = vld [vmem:[%s2 + $0x20] sm:$0xff]
  %v675 = vld [vmem:[%s2 + $0x28] sm:$0xff]
  %v676 = vld [vmem:[%s2 + $0x30] sm:$0xff]
  %v677 = vld [vmem:[%s2 + $0x38] sm:$0xff]
  %v678 = vld [vmem:[%s2 + $0x40] sm:$0xff]
  %v679 = vld [vmem:[%s2 + $0x48] sm:$0xff]
  %v680 = vld [vmem:[%s2 + $0x50] sm:$0xff]
  %v681 = vld [vmem:[%s2 + $0x58] sm:$0xff]
  %v682 = vld [vmem:[%s2 + $0x60] sm:$0xff]
  %v683 = vld [vmem:[%s2 + $0x68] sm:$0xff]
  %v684 = vld [vmem:[%s2 + $0x70] sm:$0xff]
  %v685 = vld [vmem:[%s2 + $0x78] sm:$0xff]
  %687 = vset.pattern.permute.xlu0 0
  %688 = vperm.xlu0 %687, %v670
  %v689 = vpop.permute.xlu0 %688
  %692 = vset.pattern.permute.xlu0 0
  %693 = vperm.xlu0 %692, %v671
  %v694 = vpop.permute.xlu0 %693
  %697 = vset.pattern.permute.xlu0 0
  %698 = vperm.xlu0 %697, %v672
  %v699 = vpop.permute.xlu0 %698
  %702 = vset.pattern.permute.xlu0 0
  %703 = vperm.xlu0 %702, %v673
  %v704 = vpop.permute.xlu0 %703
  %707 = vset.pattern.permute.xlu0 0
  %708 = vperm.xlu0 %707, %v674
  %v709 = vpop.permute.xlu0 %708
  %712 = vset.pattern.permute.xlu0 0
  %713 = vperm.xlu0 %712, %v675
  %v714 = vpop.permute.xlu0 %713
  %717 = vset.pattern.permute.xlu0 0
  %718 = vperm.xlu0 %717, %v676
  %v719 = vpop.permute.xlu0 %718
  %722 = vset.pattern.permute.xlu0 0
  %723 = vperm.xlu0 %722, %v677
  %v724 = vpop.permute.xlu0 %723
  %727 = vset.pattern.permute.xlu0 0
  %728 = vperm.xlu0 %727, %v678
  %v729 = vpop.permute.xlu0 %728
  %732 = vset.pattern.permute.xlu0 0
  %733 = vperm.xlu0 %732, %v679
  %v734 = vpop.permute.xlu0 %733
  %737 = vset.pattern.permute.xlu0 0
  %738 = vperm.xlu0 %737, %v680
  %v739 = vpop.permute.xlu0 %738
  %742 = vset.pattern.permute.xlu0 0
  %743 = vperm.xlu0 %742, %v681
  %v744 = vpop.permute.xlu0 %743
  %747 = vset.pattern.permute.xlu0 0
  %748 = vperm.xlu0 %747, %v682
  %v749 = vpop.permute.xlu0 %748
  %752 = vset.pattern.permute.xlu0 0
  %753 = vperm.xlu0 %752, %v683
  %v754 = vpop.permute.xlu0 %753
  %757 = vset.pattern.permute.xlu0 0
  %758 = vperm.xlu0 %757, %v684
  %v759 = vpop.permute.xlu0 %758
  %762 = vset.pattern.permute.xlu0 0
  %763 = vperm.xlu0 %762, %v685
  %v764 = vpop.permute.xlu0 %763
  %v990 = vunpack.c.l.b16 %v14
  %v991 = vunpack.c.h.b16 %v14
  %v992 = vunpack.c.l.b16 %v15
  %v993 = vunpack.c.h.b16 %v15
  %v994 = vunpack.c.l.b16 %v16
  %v995 = vunpack.c.h.b16 %v16
  %v996 = vunpack.c.l.b16 %v17
  %v997 = vunpack.c.h.b16 %v17
  %v998 = vunpack.c.l.b16 %v18
  %v999 = vunpack.c.h.b16 %v18
  %v1000 = vunpack.c.l.b16 %v19
  %v1001 = vunpack.c.h.b16 %v19
  %v1002 = vunpack.c.l.b16 %v20
  %v1003 = vunpack.c.h.b16 %v20
  %v1004 = vunpack.c.l.b16 %v21
  %v1005 = vunpack.c.h.b16 %v21
  %v1006 = vunpack.c.l.b16 %v22
  %v1007 = vunpack.c.h.b16 %v22
  %v1008 = vunpack.c.l.b16 %v23
  %v1009 = vunpack.c.h.b16 %v23
  %v1010 = vunpack.c.l.b16 %v24
  %v1011 = vunpack.c.h.b16 %v24
  %v1012 = vunpack.c.l.b16 %v25
  %v1013 = vunpack.c.h.b16 %v25
  %v1014 = vunpack.c.l.b16 %v26
  %v1015 = vunpack.c.h.b16 %v26
  %v1016 = vunpack.c.l.b16 %v27
  %v1017 = vunpack.c.l.b16 %v28
  %v1018 = vunpack.c.h.b16 %v28
  %v1019 = vunpack.c.l.b16 %v29
  %v1020 = vunpack.c.h.b16 %v29
  %v1021 = vunpack.c.l.b16 %v30
  %v1022 = vunpack.c.h.b16 %v30
  %v1023 = vunpack.c.l.b16 %v31
  %v1024 = vunpack.c.h.b16 %v31
  %v1025 = vunpack.c.l.b16 %v32
  %v1026 = vunpack.c.h.b16 %v32
  %v1027 = vunpack.c.l.b16 %v33
  %v1028 = vunpack.c.h.b16 %v33
  %v1029 = vunpack.c.l.b16 %v34
  %v1030 = vunpack.c.h.b16 %v34
  %v1031 = vunpack.c.l.b16 %v35
  %v1032 = vunpack.c.h.b16 %v35
  %v1033 = vunpack.c.l.b16 %v36
  %v1034 = vunpack.c.h.b16 %v36
  %v1035 = vunpack.c.l.b16 %v37
  %v1036 = vunpack.c.h.b16 %v37
  %v1037 = vunpack.c.l.b16 %v38
  %v1038 = vunpack.c.h.b16 %v38
  %v1039 = vunpack.c.l.b16 %v39
  %v1040 = vunpack.c.h.b16 %v39
  %v1041 = vunpack.c.l.b16 %v40
  %v1042 = vunpack.c.h.b16 %v40
  %v1043 = vunpack.c.l.b16 %v41
  %v1044 = vunpack.c.l.b16 %v42
  %v1045 = vunpack.c.h.b16 %v42
  %v1046 = vunpack.c.l.b16 %v43
  %v1047 = vunpack.c.h.b16 %v43
  %v1048 = vunpack.c.l.b16 %v44
  %v1049 = vunpack.c.h.b16 %v44
  %v1050 = vunpack.c.l.b16 %v45
  %v1051 = vunpack.c.h.b16 %v45
  %v1052 = vunpack.c.l.b16 %v46
  %v1053 = vunpack.c.h.b16 %v46
  %v1054 = vunpack.c.l.b16 %v47
  %v1055 = vunpack.c.h.b16 %v47
  %v1056 = vunpack.c.l.b16 %v48
  %v1057 = vunpack.c.h.b16 %v48
  %v1058 = vunpack.c.l.b16 %v49
  %v1059 = vunpack.c.h.b16 %v49
  %v1060 = vunpack.c.l.b16 %v50
  %v1061 = vunpack.c.h.b16 %v50
  %v1062 = vunpack.c.l.b16 %v51
  %v1063 = vunpack.c.h.b16 %v51
  %v1064 = vunpack.c.l.b16 %v52
  %v1065 = vunpack.c.h.b16 %v52
  %v1066 = vunpack.c.l.b16 %v53
  %v1067 = vunpack.c.h.b16 %v53
  %v1068 = vunpack.c.l.b16 %v54
  %v1069 = vunpack.c.h.b16 %v54
  %v1070 = vunpack.c.l.b16 %v55
  %v1071 = vunpack.c.l.b16 %v56
  %v1072 = vunpack.c.h.b16 %v56
  %v1073 = vunpack.c.l.b16 %v57
  %v1074 = vunpack.c.h.b16 %v57
  %v1075 = vunpack.c.l.b16 %v58
  %v1076 = vunpack.c.h.b16 %v58
  %v1077 = vunpack.c.l.b16 %v59
  %v1078 = vunpack.c.h.b16 %v59
  %v1079 = vunpack.c.l.b16 %v60
  %v1080 = vunpack.c.h.b16 %v60
  %v1081 = vunpack.c.l.b16 %v61
  %v1082 = vunpack.c.h.b16 %v61
  %v1083 = vunpack.c.l.b16 %v62
  %v1084 = vunpack.c.h.b16 %v62
  %v1085 = vunpack.c.l.b16 %v63
  %v1086 = vunpack.c.h.b16 %v63
  %v1087 = vunpack.c.l.b16 %v64
  %v1088 = vunpack.c.h.b16 %v64
  %v1089 = vunpack.c.l.b16 %v65
  %v1090 = vunpack.c.h.b16 %v65
  %v1091 = vunpack.c.l.b16 %v66
  %v1092 = vunpack.c.h.b16 %v66
  %v1093 = vunpack.c.l.b16 %v67
  %v1094 = vunpack.c.h.b16 %v67
  %v1095 = vunpack.c.l.b16 %v68
  %v1096 = vunpack.c.h.b16 %v68
  %v1097 = vunpack.c.l.b16 %v69
  %v1098 = vunpack.c.l.b16 %v70
  %v1099 = vunpack.c.h.b16 %v70
  %v1100 = vunpack.c.l.b16 %v71
  %v1101 = vunpack.c.h.b16 %v71
  %v1102 = vunpack.c.l.b16 %v72
  %v1103 = vunpack.c.h.b16 %v72
  %v1104 = vunpack.c.l.b16 %v73
  %v1105 = vunpack.c.h.b16 %v73
  %v1106 = vunpack.c.l.b16 %v74
  %v1107 = vunpack.c.h.b16 %v74
  %v1108 = vunpack.c.l.b16 %v75
  %v1109 = vunpack.c.h.b16 %v75
  %v1110 = vunpack.c.l.b16 %v76
  %v1111 = vunpack.c.h.b16 %v76
  %v1112 = vunpack.c.l.b16 %v77
  %v1113 = vunpack.c.h.b16 %v77
  %v1114 = vunpack.c.l.b16 %v78
  %v1115 = vunpack.c.h.b16 %v78
  %v1116 = vunpack.c.l.b16 %v79
  %v1117 = vunpack.c.h.b16 %v79
  %v1118 = vunpack.c.l.b16 %v80
  %v1119 = vunpack.c.h.b16 %v80
  %v1120 = vunpack.c.l.b16 %v81
  %v1121 = vunpack.c.h.b16 %v81
  %v1122 = vunpack.c.l.b16 %v82
  %v1123 = vunpack.c.h.b16 %v82
  %v1124 = vunpack.c.l.b16 %v83
  %v1125 = vunpack.c.l.b16 %v84
  %v1126 = vunpack.c.h.b16 %v84
  %v1127 = vunpack.c.l.b16 %v85
  %v1128 = vunpack.c.h.b16 %v85
  %v1129 = vunpack.c.l.b16 %v86
  %v1130 = vunpack.c.h.b16 %v86
  %v1131 = vunpack.c.l.b16 %v87
  %v1132 = vunpack.c.h.b16 %v87
  %v1133 = vunpack.c.l.b16 %v88
  %v1134 = vunpack.c.h.b16 %v88
  %v1135 = vunpack.c.l.b16 %v89
  %v1136 = vunpack.c.h.b16 %v89
  %v1137 = vunpack.c.l.b16 %v90
  %v1138 = vunpack.c.h.b16 %v90
  %v1139 = vunpack.c.l.b16 %v91
  %v1140 = vunpack.c.h.b16 %v91
  %v1141 = vunpack.c.l.b16 %v92
  %v1142 = vunpack.c.h.b16 %v92
  %v1143 = vunpack.c.l.b16 %v93
  %v1144 = vunpack.c.h.b16 %v93
  %v1145 = vunpack.c.l.b16 %v94
  %v1146 = vunpack.c.h.b16 %v94
  %v1147 = vunpack.c.l.b16 %v95
  %v1148 = vunpack.c.h.b16 %v95
  %v1149 = vunpack.c.l.b16 %v96
  %v1150 = vunpack.c.h.b16 %v96
  %v1151 = vunpack.c.l.b16 %v97
  %v1152 = vunpack.c.l.b16 %v98
  %v1153 = vunpack.c.h.b16 %v98
  %v1154 = vunpack.c.l.b16 %v99
  %v1155 = vunpack.c.h.b16 %v99
  %v1156 = vunpack.c.l.b16 %v100
  %v1157 = vunpack.c.h.b16 %v100
  %v1158 = vunpack.c.l.b16 %v101
  %v1159 = vunpack.c.h.b16 %v101
  %v1160 = vunpack.c.l.b16 %v102
  %v1161 = vunpack.c.h.b16 %v102
  %v1162 = vunpack.c.l.b16 %v103
  %v1163 = vunpack.c.h.b16 %v103
  %v1164 = vunpack.c.l.b16 %v104
  %v1165 = vunpack.c.h.b16 %v104
  %v1166 = vunpack.c.l.b16 %v105
  %v1167 = vunpack.c.h.b16 %v105
  %v1168 = vunpack.c.l.b16 %v106
  %v1169 = vunpack.c.h.b16 %v106
  %v1170 = vunpack.c.l.b16 %v107
  %v1171 = vunpack.c.h.b16 %v107
  %v1172 = vunpack.c.l.b16 %v108
  %v1173 = vunpack.c.h.b16 %v108
  %v1174 = vunpack.c.l.b16 %v109
  %v1175 = vunpack.c.h.b16 %v109
  %v1176 = vunpack.c.l.b16 %v110
  %v1177 = vunpack.c.h.b16 %v110
  %v1178 = vunpack.c.l.b16 %v111
  %v1179 = vunpack.c.l.b16 %v112
  %v1180 = vunpack.c.h.b16 %v112
  %v1181 = vunpack.c.l.b16 %v113
  %v1182 = vunpack.c.h.b16 %v113
  %v1183 = vunpack.c.l.b16 %v114
  %v1184 = vunpack.c.h.b16 %v114
  %v1185 = vunpack.c.l.b16 %v115
  %v1186 = vunpack.c.h.b16 %v115
  %v1187 = vunpack.c.l.b16 %v116
  %v1188 = vunpack.c.h.b16 %v116
  %v1189 = vunpack.c.l.b16 %v117
  %v1190 = vunpack.c.h.b16 %v117
  %v1191 = vunpack.c.l.b16 %v118
  %v1192 = vunpack.c.h.b16 %v118
  %v1193 = vunpack.c.l.b16 %v119
  %v1194 = vunpack.c.h.b16 %v119
  %v1195 = vunpack.c.l.b16 %v120
  %v1196 = vunpack.c.h.b16 %v120
  %v1197 = vunpack.c.l.b16 %v121
  %v1198 = vunpack.c.h.b16 %v121
  %v1199 = vunpack.c.l.b16 %v122
  %v1200 = vunpack.c.h.b16 %v122
  %v1201 = vunpack.c.l.b16 %v123
  %v1202 = vunpack.c.h.b16 %v123
  %v1203 = vunpack.c.l.b16 %v124
  %v1204 = vunpack.c.h.b16 %v124
  %v1205 = vunpack.c.l.b16 %v125
  %v1206 = vunpack.c.l.b16 %v126
  %v1207 = vunpack.c.h.b16 %v126
  %v1208 = vunpack.c.l.b16 %v127
  %v1209 = vunpack.c.h.b16 %v127
  %v1210 = vunpack.c.l.b16 %v128
  %v1211 = vunpack.c.h.b16 %v128
  %v1212 = vunpack.c.l.b16 %v129
  %v1213 = vunpack.c.h.b16 %v129
  %v1214 = vunpack.c.l.b16 %v130
  %v1215 = vunpack.c.h.b16 %v130
  %v1216 = vunpack.c.l.b16 %v131
  %v1217 = vunpack.c.h.b16 %v131
  %v1218 = vunpack.c.l.b16 %v132
  %v1219 = vunpack.c.h.b16 %v132
  %v1220 = vunpack.c.l.b16 %v133
  %v1221 = vunpack.c.h.b16 %v133
  %v1222 = vunpack.c.l.b16 %v134
  %v1223 = vunpack.c.h.b16 %v134
  %v1224 = vunpack.c.l.b16 %v135
  %v1225 = vunpack.c.h.b16 %v135
  %v1226 = vunpack.c.l.b16 %v136
  %v1227 = vunpack.c.h.b16 %v136
  %v1228 = vunpack.c.l.b16 %v137
  %v1229 = vunpack.c.h.b16 %v137
  %v1230 = vunpack.c.l.b16 %v138
  %v1231 = vunpack.c.h.b16 %v138
  %v1232 = vunpack.c.l.b16 %v139
  %v1233 = vunpack.c.l.b16 %v140
  %v1234 = vunpack.c.h.b16 %v140
  %v1235 = vunpack.c.l.b16 %v141
  %v1236 = vunpack.c.h.b16 %v141
  %v1237 = vunpack.c.l.b16 %v142
  %v1238 = vunpack.c.h.b16 %v142
  %v1239 = vunpack.c.l.b16 %v143
  %v1240 = vunpack.c.h.b16 %v143
  %v1241 = vunpack.c.l.b16 %v144
  %v1242 = vunpack.c.h.b16 %v144
  %v1243 = vunpack.c.l.b16 %v145
  %v1244 = vunpack.c.h.b16 %v145
  %v1245 = vunpack.c.l.b16 %v146
  %v1246 = vunpack.c.h.b16 %v146
  %v1247 = vunpack.c.l.b16 %v147
  %v1248 = vunpack.c.h.b16 %v147
  %v1249 = vunpack.c.l.b16 %v148
  %v1250 = vunpack.c.h.b16 %v148
  %v1251 = vunpack.c.l.b16 %v149
  %v1252 = vunpack.c.h.b16 %v149
  %v1253 = vunpack.c.l.b16 %v150
  %v1254 = vunpack.c.h.b16 %v150
  %v1255 = vunpack.c.l.b16 %v151
  %v1256 = vunpack.c.h.b16 %v151
  %v1257 = vunpack.c.l.b16 %v152
  %v1258 = vunpack.c.h.b16 %v152
  %v1259 = vunpack.c.l.b16 %v153
  %v1260 = vunpack.c.l.b16 %v154
  %v1261 = vunpack.c.h.b16 %v154
  %v1262 = vunpack.c.l.b16 %v155
  %v1263 = vunpack.c.h.b16 %v155
  %v1264 = vunpack.c.l.b16 %v156
  %v1265 = vunpack.c.h.b16 %v156
  %v1266 = vunpack.c.l.b16 %v157
  %v1267 = vunpack.c.h.b16 %v157
  %v1268 = vunpack.c.l.b16 %v158
  %v1269 = vunpack.c.h.b16 %v158
  %v1270 = vunpack.c.l.b16 %v159
  %v1271 = vunpack.c.h.b16 %v159
  %v1272 = vunpack.c.l.b16 %v160
  %v1273 = vunpack.c.h.b16 %v160
  %v1274 = vunpack.c.l.b16 %v161
  %v1275 = vunpack.c.h.b16 %v161
  %v1276 = vunpack.c.l.b16 %v162
  %v1277 = vunpack.c.h.b16 %v162
  %v1278 = vunpack.c.l.b16 %v163
  %v1279 = vunpack.c.h.b16 %v163
  %v1280 = vunpack.c.l.b16 %v164
  %v1281 = vunpack.c.h.b16 %v164
  %v1282 = vunpack.c.l.b16 %v165
  %v1283 = vunpack.c.h.b16 %v165
  %v1284 = vunpack.c.l.b16 %v166
  %v1285 = vunpack.c.h.b16 %v166
  %v1286 = vunpack.c.l.b16 %v167
  %v1287 = vunpack.c.l.b16 %v168
  %v1288 = vunpack.c.h.b16 %v168
  %v1289 = vunpack.c.l.b16 %v169
  %v1290 = vunpack.c.h.b16 %v169
  %v1291 = vunpack.c.l.b16 %v170
  %v1292 = vunpack.c.h.b16 %v170
  %v1293 = vunpack.c.l.b16 %v171
  %v1294 = vunpack.c.h.b16 %v171
  %v1295 = vunpack.c.l.b16 %v172
  %v1296 = vunpack.c.h.b16 %v172
  %v1297 = vunpack.c.l.b16 %v173
  %v1298 = vunpack.c.h.b16 %v173
  %v1299 = vunpack.c.l.b16 %v174
  %v1300 = vunpack.c.h.b16 %v174
  %v1301 = vunpack.c.l.b16 %v175
  %v1302 = vunpack.c.h.b16 %v175
  %v1303 = vunpack.c.l.b16 %v176
  %v1304 = vunpack.c.h.b16 %v176
  %v1305 = vunpack.c.l.b16 %v177
  %v1306 = vunpack.c.h.b16 %v177
  %v1307 = vunpack.c.l.b16 %v178
  %v1308 = vunpack.c.h.b16 %v178
  %v1309 = vunpack.c.l.b16 %v179
  %v1310 = vunpack.c.h.b16 %v179
  %v1311 = vunpack.c.l.b16 %v180
  %v1312 = vunpack.c.h.b16 %v180
  %v1313 = vunpack.c.l.b16 %v181
  %v1314 = vunpack.c.l.b16 %v182
  %v1315 = vunpack.c.h.b16 %v182
  %v1316 = vunpack.c.l.b16 %v183
  %v1317 = vunpack.c.h.b16 %v183
  %v1318 = vunpack.c.l.b16 %v184
  %v1319 = vunpack.c.h.b16 %v184
  %v1320 = vunpack.c.l.b16 %v185
  %v1321 = vunpack.c.h.b16 %v185
  %v1322 = vunpack.c.l.b16 %v186
  %v1323 = vunpack.c.h.b16 %v186
  %v1324 = vunpack.c.l.b16 %v187
  %v1325 = vunpack.c.h.b16 %v187
  %v1326 = vunpack.c.l.b16 %v188
  %v1327 = vunpack.c.h.b16 %v188
  %v1328 = vunpack.c.l.b16 %v189
  %v1329 = vunpack.c.h.b16 %v189
  %v1330 = vunpack.c.l.b16 %v190
  %v1331 = vunpack.c.h.b16 %v190
  %v1332 = vunpack.c.l.b16 %v191
  %v1333 = vunpack.c.h.b16 %v191
  %v1334 = vunpack.c.l.b16 %v192
  %v1335 = vunpack.c.h.b16 %v192
  %v1336 = vunpack.c.l.b16 %v193
  %v1337 = vunpack.c.h.b16 %v193
  %v1338 = vunpack.c.l.b16 %v194
  %v1339 = vunpack.c.h.b16 %v194
  %v1340 = vunpack.c.l.b16 %v195
  %v1341 = vunpack.c.l.b16 %v196
  %v1342 = vunpack.c.h.b16 %v196
  %v1343 = vunpack.c.l.b16 %v197
  %v1344 = vunpack.c.h.b16 %v197
  %v1345 = vunpack.c.l.b16 %v198
  %v1346 = vunpack.c.h.b16 %v198
  %v1347 = vunpack.c.l.b16 %v199
  %v1348 = vunpack.c.h.b16 %v199
  %v1349 = vunpack.c.l.b16 %v200
  %v1350 = vunpack.c.h.b16 %v200
  %v1351 = vunpack.c.l.b16 %v201
  %v1352 = vunpack.c.h.b16 %v201
  %v1353 = vunpack.c.l.b16 %v202
  %v1354 = vunpack.c.h.b16 %v202
  %v1355 = vunpack.c.l.b16 %v203
  %v1356 = vunpack.c.h.b16 %v203
  %v1357 = vunpack.c.l.b16 %v204
  %v1358 = vunpack.c.h.b16 %v204
  %v1359 = vunpack.c.l.b16 %v205
  %v1360 = vunpack.c.h.b16 %v205
  %v1361 = vunpack.c.l.b16 %v206
  %v1362 = vunpack.c.h.b16 %v206
  %v1363 = vunpack.c.l.b16 %v207
  %v1364 = vunpack.c.h.b16 %v207
  %v1365 = vunpack.c.l.b16 %v208
  %v1366 = vunpack.c.h.b16 %v208
  %v1367 = vunpack.c.l.b16 %v209
  %v1368 = vunpack.c.l.b16 %v210
  %v1369 = vunpack.c.h.b16 %v210
  %v1370 = vunpack.c.l.b16 %v211
  %v1371 = vunpack.c.h.b16 %v211
  %v1372 = vunpack.c.l.b16 %v212
  %v1373 = vunpack.c.h.b16 %v212
  %v1374 = vunpack.c.l.b16 %v213
  %v1375 = vunpack.c.h.b16 %v213
  %v1376 = vunpack.c.l.b16 %v214
  %v1377 = vunpack.c.h.b16 %v214
  %v1378 = vunpack.c.l.b16 %v215
  %v1379 = vunpack.c.h.b16 %v215
  %v1380 = vunpack.c.l.b16 %v216
  %v1381 = vunpack.c.h.b16 %v216
  %v1382 = vunpack.c.l.b16 %v217
  %v1383 = vunpack.c.h.b16 %v217
  %v1384 = vunpack.c.l.b16 %v218
  %v1385 = vunpack.c.h.b16 %v218
  %v1386 = vunpack.c.l.b16 %v219
  %v1387 = vunpack.c.h.b16 %v219
  %v1388 = vunpack.c.l.b16 %v220
  %v1389 = vunpack.c.h.b16 %v220
  %v1390 = vunpack.c.l.b16 %v221
  %v1391 = vunpack.c.h.b16 %v221
  %v1392 = vunpack.c.l.b16 %v222
  %v1393 = vunpack.c.h.b16 %v222
  %v1394 = vunpack.c.l.b16 %v223
  %v1395 = vunpack.c.l.b16 %v224
  %v1396 = vunpack.c.h.b16 %v224
  %v1397 = vunpack.c.l.b16 %v225
  %v1398 = vunpack.c.h.b16 %v225
  %v1399 = vunpack.c.l.b16 %v226
  %v1400 = vunpack.c.h.b16 %v226
  %v1401 = vunpack.c.l.b16 %v227
  %v1402 = vunpack.c.h.b16 %v227
  %v1403 = vunpack.c.l.b16 %v228
  %v1404 = vunpack.c.h.b16 %v228
  %v1405 = vunpack.c.l.b16 %v229
  %v1406 = vunpack.c.h.b16 %v229
  %v1407 = vunpack.c.l.b16 %v230
  %v1408 = vunpack.c.h.b16 %v230
  %v1409 = vunpack.c.l.b16 %v231
  %v1410 = vunpack.c.h.b16 %v231
  %v1411 = vunpack.c.l.b16 %v232
  %v1412 = vunpack.c.h.b16 %v232
  %v1413 = vunpack.c.l.b16 %v233
  %v1414 = vunpack.c.h.b16 %v233
  %v1415 = vunpack.c.l.b16 %v234
  %v1416 = vunpack.c.h.b16 %v234
  %v1417 = vunpack.c.l.b16 %v235
  %v1418 = vunpack.c.h.b16 %v235
  %v1419 = vunpack.c.l.b16 %v236
  %v1420 = vunpack.c.h.b16 %v236
  %v1421 = vunpack.c.l.b16 %v237
  %v1422 = vpack.c.b16 %v1017, %v990
  %v1423 = vpack.c.b16 %v1018, %v991
  %v1424 = vpack.c.b16 %v1019, %v992
  %v1425 = vpack.c.b16 %v1020, %v993
  %v1426 = vpack.c.b16 %v1021, %v994
  %v1427 = vpack.c.b16 %v1022, %v995
  %v1428 = vpack.c.b16 %v1023, %v996
  %v1429 = vpack.c.b16 %v1024, %v997
  %v1430 = vpack.c.b16 %v1025, %v998
  %v1431 = vpack.c.b16 %v1026, %v999
  %v1432 = vpack.c.b16 %v1027, %v1000
  %v1433 = vpack.c.b16 %v1028, %v1001
  %v1434 = vpack.c.b16 %v1029, %v1002
  %v1435 = vpack.c.b16 %v1030, %v1003
  %v1436 = vpack.c.b16 %v1031, %v1004
  %v1437 = vpack.c.b16 %v1032, %v1005
  %v1438 = vpack.c.b16 %v1033, %v1006
  %v1439 = vpack.c.b16 %v1034, %v1007
  %v1440 = vpack.c.b16 %v1035, %v1008
  %v1441 = vpack.c.b16 %v1036, %v1009
  %v1442 = vpack.c.b16 %v1037, %v1010
  %v1443 = vpack.c.b16 %v1038, %v1011
  %v1444 = vpack.c.b16 %v1039, %v1012
  %v1445 = vpack.c.b16 %v1040, %v1013
  %v1446 = vpack.c.b16 %v1041, %v1014
  %v1447 = vpack.c.b16 %v1042, %v1015
  %v1448 = vpack.c.b16 %v1043, %v1016
  %v1449 = vpack.c.b16 %v1071, %v1044
  %v1450 = vpack.c.b16 %v1072, %v1045
  %v1451 = vpack.c.b16 %v1073, %v1046
  %v1452 = vpack.c.b16 %v1074, %v1047
  %v1453 = vpack.c.b16 %v1075, %v1048
  %v1454 = vpack.c.b16 %v1076, %v1049
  %v1455 = vpack.c.b16 %v1077, %v1050
  %v1456 = vpack.c.b16 %v1078, %v1051
  %v1457 = vpack.c.b16 %v1079, %v1052
  %v1458 = vpack.c.b16 %v1080, %v1053
  %v1459 = vpack.c.b16 %v1081, %v1054
  %v1460 = vpack.c.b16 %v1082, %v1055
  %v1461 = vpack.c.b16 %v1083, %v1056
  %v1462 = vpack.c.b16 %v1084, %v1057
  %v1463 = vpack.c.b16 %v1085, %v1058
  %v1464 = vpack.c.b16 %v1086, %v1059
  %v1465 = vpack.c.b16 %v1087, %v1060
  %v1466 = vpack.c.b16 %v1088, %v1061
  %v1467 = vpack.c.b16 %v1089, %v1062
  %v1468 = vpack.c.b16 %v1090, %v1063
  %v1469 = vpack.c.b16 %v1091, %v1064
  %v1470 = vpack.c.b16 %v1092, %v1065
  %v1471 = vpack.c.b16 %v1093, %v1066
  %v1472 = vpack.c.b16 %v1094, %v1067
  %v1473 = vpack.c.b16 %v1095, %v1068
  %v1474 = vpack.c.b16 %v1096, %v1069
  %v1475 = vpack.c.b16 %v1097, %v1070
  %v1476 = vpack.c.b16 %v1125, %v1098
  %v1477 = vpack.c.b16 %v1126, %v1099
  %v1478 = vpack.c.b16 %v1127, %v1100
  %v1479 = vpack.c.b16 %v1128, %v1101
  %v1480 = vpack.c.b16 %v1129, %v1102
  %v1481 = vpack.c.b16 %v1130, %v1103
  %v1482 = vpack.c.b16 %v1131, %v1104
  %v1483 = vpack.c.b16 %v1132, %v1105
  %v1484 = vpack.c.b16 %v1133, %v1106
  %v1485 = vpack.c.b16 %v1134, %v1107
  %v1486 = vpack.c.b16 %v1135, %v1108
  %v1487 = vpack.c.b16 %v1136, %v1109
  %v1488 = vpack.c.b16 %v1137, %v1110
  %v1489 = vpack.c.b16 %v1138, %v1111
  %v1490 = vpack.c.b16 %v1139, %v1112
  %v1491 = vpack.c.b16 %v1140, %v1113
  %v1492 = vpack.c.b16 %v1141, %v1114
  %v1493 = vpack.c.b16 %v1142, %v1115
  %v1494 = vpack.c.b16 %v1143, %v1116
  %v1495 = vpack.c.b16 %v1144, %v1117
  %v1496 = vpack.c.b16 %v1145, %v1118
  %v1497 = vpack.c.b16 %v1146, %v1119
  %v1498 = vpack.c.b16 %v1147, %v1120
  %v1499 = vpack.c.b16 %v1148, %v1121
  %v1500 = vpack.c.b16 %v1149, %v1122
  %v1501 = vpack.c.b16 %v1150, %v1123
  %v1502 = vpack.c.b16 %v1151, %v1124
  %v1503 = vpack.c.b16 %v1179, %v1152
  %v1504 = vpack.c.b16 %v1180, %v1153
  %v1505 = vpack.c.b16 %v1181, %v1154
  %v1506 = vpack.c.b16 %v1182, %v1155
  %v1507 = vpack.c.b16 %v1183, %v1156
  %v1508 = vpack.c.b16 %v1184, %v1157
  %v1509 = vpack.c.b16 %v1185, %v1158
  %v1510 = vpack.c.b16 %v1186, %v1159
  %v1511 = vpack.c.b16 %v1187, %v1160
  %v1512 = vpack.c.b16 %v1188, %v1161
  %v1513 = vpack.c.b16 %v1189, %v1162
  %v1514 = vpack.c.b16 %v1190, %v1163
  %v1515 = vpack.c.b16 %v1191, %v1164
  %v1516 = vpack.c.b16 %v1192, %v1165
  %v1517 = vpack.c.b16 %v1193, %v1166
  %v1518 = vpack.c.b16 %v1194, %v1167
  %v1519 = vpack.c.b16 %v1195, %v1168
  %v1520 = vpack.c.b16 %v1196, %v1169
  %v1521 = vpack.c.b16 %v1197, %v1170
  %v1522 = vpack.c.b16 %v1198, %v1171
  %v1523 = vpack.c.b16 %v1199, %v1172
  %v1524 = vpack.c.b16 %v1200, %v1173
  %v1525 = vpack.c.b16 %v1201, %v1174
  %v1526 = vpack.c.b16 %v1202, %v1175
  %v1527 = vpack.c.b16 %v1203, %v1176
  %v1528 = vpack.c.b16 %v1204, %v1177
  %v1529 = vpack.c.b16 %v1205, %v1178
  %v1530 = vpack.c.b16 %v1233, %v1206
  %v1531 = vpack.c.b16 %v1234, %v1207
  %v1532 = vpack.c.b16 %v1235, %v1208
  %v1533 = vpack.c.b16 %v1236, %v1209
  %v1534 = vpack.c.b16 %v1237, %v1210
  %v1535 = vpack.c.b16 %v1238, %v1211
  %v1536 = vpack.c.b16 %v1239, %v1212
  %v1537 = vpack.c.b16 %v1240, %v1213
  %v1538 = vpack.c.b16 %v1241, %v1214
  %v1539 = vpack.c.b16 %v1242, %v1215
  %v1540 = vpack.c.b16 %v1243, %v1216
  %v1541 = vpack.c.b16 %v1244, %v1217
  %v1542 = vpack.c.b16 %v1245, %v1218
  %v1543 = vpack.c.b16 %v1246, %v1219
  %v1544 = vpack.c.b16 %v1247, %v1220
  %v1545 = vpack.c.b16 %v1248, %v1221
  %v1546 = vpack.c.b16 %v1249, %v1222
  %v1547 = vpack.c.b16 %v1250, %v1223
  %v1548 = vpack.c.b16 %v1251, %v1224
  %v1549 = vpack.c.b16 %v1252, %v1225
  %v1550 = vpack.c.b16 %v1253, %v1226
  %v1551 = vpack.c.b16 %v1254, %v1227
  %v1552 = vpack.c.b16 %v1255, %v1228
  %v1553 = vpack.c.b16 %v1256, %v1229
  %v1554 = vpack.c.b16 %v1257, %v1230
  %v1555 = vpack.c.b16 %v1258, %v1231
  %v1556 = vpack.c.b16 %v1259, %v1232
  %v1557 = vpack.c.b16 %v1287, %v1260
  %v1558 = vpack.c.b16 %v1288, %v1261
  %v1559 = vpack.c.b16 %v1289, %v1262
  %v1560 = vpack.c.b16 %v1290, %v1263
  %v1561 = vpack.c.b16 %v1291, %v1264
  %v1562 = vpack.c.b16 %v1292, %v1265
  %v1563 = vpack.c.b16 %v1293, %v1266
  %v1564 = vpack.c.b16 %v1294, %v1267
  %v1565 = vpack.c.b16 %v1295, %v1268
  %v1566 = vpack.c.b16 %v1296, %v1269
  %v1567 = vpack.c.b16 %v1297, %v1270
  %v1568 = vpack.c.b16 %v1298, %v1271
  %v1569 = vpack.c.b16 %v1299, %v1272
  %v1570 = vpack.c.b16 %v1300, %v1273
  %v1571 = vpack.c.b16 %v1301, %v1274
  %v1572 = vpack.c.b16 %v1302, %v1275
  %v1573 = vpack.c.b16 %v1303, %v1276
  %v1574 = vpack.c.b16 %v1304, %v1277
  %v1575 = vpack.c.b16 %v1305, %v1278
  %v1576 = vpack.c.b16 %v1306, %v1279
  %v1577 = vpack.c.b16 %v1307, %v1280
  %v1578 = vpack.c.b16 %v1308, %v1281
  %v1579 = vpack.c.b16 %v1309, %v1282
  %v1580 = vpack.c.b16 %v1310, %v1283
  %v1581 = vpack.c.b16 %v1311, %v1284
  %v1582 = vpack.c.b16 %v1312, %v1285
  %v1583 = vpack.c.b16 %v1313, %v1286
  %v1584 = vpack.c.b16 %v1341, %v1314
  %v1585 = vpack.c.b16 %v1342, %v1315
  %v1586 = vpack.c.b16 %v1343, %v1316
  %v1587 = vpack.c.b16 %v1344, %v1317
  %v1588 = vpack.c.b16 %v1345, %v1318
  %v1589 = vpack.c.b16 %v1346, %v1319
  %v1590 = vpack.c.b16 %v1347, %v1320
  %v1591 = vpack.c.b16 %v1348, %v1321
  %v1592 = vpack.c.b16 %v1349, %v1322
  %v1593 = vpack.c.b16 %v1350, %v1323
  %v1594 = vpack.c.b16 %v1351, %v1324
  %v1595 = vpack.c.b16 %v1352, %v1325
  %v1596 = vpack.c.b16 %v1353, %v1326
  %v1597 = vpack.c.b16 %v1354, %v1327
  %v1598 = vpack.c.b16 %v1355, %v1328
  %v1599 = vpack.c.b16 %v1356, %v1329
  %v1600 = vpack.c.b16 %v1357, %v1330
  %v1601 = vpack.c.b16 %v1358, %v1331
  %v1602 = vpack.c.b16 %v1359, %v1332
  %v1603 = vpack.c.b16 %v1360, %v1333
  %v1604 = vpack.c.b16 %v1361, %v1334
  %v1605 = vpack.c.b16 %v1362, %v1335
  %v1606 = vpack.c.b16 %v1363, %v1336
  %v1607 = vpack.c.b16 %v1364, %v1337
  %v1608 = vpack.c.b16 %v1365, %v1338
  %v1609 = vpack.c.b16 %v1366, %v1339
  %v1610 = vpack.c.b16 %v1367, %v1340
  %v1611 = vpack.c.b16 %v1395, %v1368
  %v1612 = vpack.c.b16 %v1396, %v1369
  %v1613 = vpack.c.b16 %v1397, %v1370
  %v1614 = vpack.c.b16 %v1398, %v1371
  %v1615 = vpack.c.b16 %v1399, %v1372
  %v1616 = vpack.c.b16 %v1400, %v1373
  %v1617 = vpack.c.b16 %v1401, %v1374
  %v1618 = vpack.c.b16 %v1402, %v1375
  %v1619 = vpack.c.b16 %v1403, %v1376
  %v1620 = vpack.c.b16 %v1404, %v1377
  %v1621 = vpack.c.b16 %v1405, %v1378
  %v1622 = vpack.c.b16 %v1406, %v1379
  %v1623 = vpack.c.b16 %v1407, %v1380
  %v1624 = vpack.c.b16 %v1408, %v1381
  %v1625 = vpack.c.b16 %v1409, %v1382
  %v1626 = vpack.c.b16 %v1410, %v1383
  %v1627 = vpack.c.b16 %v1411, %v1384
  %v1628 = vpack.c.b16 %v1412, %v1385
  %v1629 = vpack.c.b16 %v1413, %v1386
  %v1630 = vpack.c.b16 %v1414, %v1387
  %v1631 = vpack.c.b16 %v1415, %v1388
  %v1632 = vpack.c.b16 %v1416, %v1389
  %v1633 = vpack.c.b16 %v1417, %v1390
  %v1634 = vpack.c.b16 %v1418, %v1391
  %v1635 = vpack.c.b16 %v1419, %v1392
  %v1636 = vpack.c.b16 %v1420, %v1393
  %v1637 = vpack.c.b16 %v1421, %v1394
  %v2286 = vunpack.c.l.b16 %v238
  %v2287 = vunpack.c.l.b16 %v239
  %v2288 = vunpack.c.l.b16 %v240
  %v2289 = vunpack.c.l.b16 %v241
  %v2290 = vunpack.c.l.b16 %v242
  %v2291 = vunpack.c.l.b16 %v243
  %v2292 = vunpack.c.l.b16 %v244
  %v2293 = vunpack.c.l.b16 %v245
  %v2294 = vunpack.c.l.b16 %v246
  %v2295 = vunpack.c.l.b16 %v247
  %v2296 = vunpack.c.l.b16 %v248
  %v2297 = vunpack.c.l.b16 %v249
  %v2298 = vunpack.c.l.b16 %v250
  %v2299 = vunpack.c.l.b16 %v251
  %v2300 = vunpack.c.l.b16 %v252
  %v2301 = vunpack.c.l.b16 %v253
  %v2302 = vunpack.c.l.b16 %v254
  %v2303 = vunpack.c.l.b16 %v255
  %v2304 = vunpack.c.l.b16 %v256
  %v2305 = vunpack.c.l.b16 %v257
  %v2306 = vunpack.c.l.b16 %v258
  %v2307 = vunpack.c.l.b16 %v259
  %v2308 = vunpack.c.l.b16 %v260
  %v2309 = vunpack.c.l.b16 %v261
  %v2310 = vunpack.c.l.b16 %v262
  %v2311 = vunpack.c.l.b16 %v263
  %v2312 = vunpack.c.l.b16 %v264
  %v2313 = vunpack.c.l.b16 %v265
  %v2314 = vunpack.c.l.b16 %v266
  %v2315 = vunpack.c.l.b16 %v267
  %v2316 = vunpack.c.l.b16 %v268
  %v2317 = vunpack.c.l.b16 %v269
  %v2318 = vunpack.c.l.b16 %v270
  %v2319 = vunpack.c.l.b16 %v271
  %v2320 = vunpack.c.l.b16 %v272
  %v2321 = vunpack.c.l.b16 %v273
  %v2322 = vunpack.c.l.b16 %v274
  %v2323 = vunpack.c.l.b16 %v275
  %v2324 = vunpack.c.l.b16 %v276
  %v2325 = vunpack.c.l.b16 %v277
  %v2326 = vunpack.c.l.b16 %v278
  %v2327 = vunpack.c.l.b16 %v279
  %v2328 = vunpack.c.l.b16 %v280
  %v2329 = vunpack.c.l.b16 %v281
  %v2330 = vunpack.c.l.b16 %v282
  %v2331 = vunpack.c.l.b16 %v283
  %v2332 = vunpack.c.l.b16 %v284
  %v2333 = vunpack.c.l.b16 %v285
  %v2334 = vunpack.c.l.b16 %v286
  %v2335 = vunpack.c.l.b16 %v287
  %v2336 = vunpack.c.l.b16 %v288
  %v2337 = vunpack.c.l.b16 %v289
  %v2338 = vunpack.c.l.b16 %v290
  %v2339 = vunpack.c.l.b16 %v291
  %v2340 = vunpack.c.l.b16 %v292
  %v2341 = vunpack.c.l.b16 %v293
  %v2342 = vunpack.c.l.b16 %v294
  %v2343 = vunpack.c.l.b16 %v295
  %v2344 = vunpack.c.l.b16 %v296
  %v2345 = vunpack.c.l.b16 %v297
  %v2346 = vunpack.c.l.b16 %v298
  %v2347 = vunpack.c.l.b16 %v299
  %v2348 = vunpack.c.l.b16 %v300
  %v2349 = vunpack.c.l.b16 %v301
  %v2350 = vunpack.c.l.b16 %v302
  %v2351 = vunpack.c.l.b16 %v303
  %v2352 = vunpack.c.l.b16 %v304
  %v2353 = vunpack.c.l.b16 %v305
  %v2354 = vunpack.c.l.b16 %v306
  %v2355 = vunpack.c.l.b16 %v307
  %v2356 = vunpack.c.l.b16 %v308
  %v2357 = vunpack.c.l.b16 %v309
  %v2358 = vunpack.c.l.b16 %v310
  %v2359 = vunpack.c.l.b16 %v311
  %v2360 = vunpack.c.l.b16 %v312
  %v2361 = vunpack.c.l.b16 %v313
  %v2362 = vunpack.c.l.b16 %v314
  %v2363 = vunpack.c.l.b16 %v315
  %v2364 = vunpack.c.l.b16 %v316
  %v2365 = vunpack.c.l.b16 %v317
  %v2366 = vunpack.c.l.b16 %v318
  %v2367 = vunpack.c.l.b16 %v319
  %v2368 = vunpack.c.l.b16 %v320
  %v2369 = vunpack.c.l.b16 %v321
  %v2370 = vunpack.c.l.b16 %v322
  %v2371 = vunpack.c.l.b16 %v323
  %v2372 = vunpack.c.l.b16 %v324
  %v2373 = vunpack.c.l.b16 %v325
  %v2374 = vunpack.c.l.b16 %v326
  %v2375 = vunpack.c.l.b16 %v327
  %v2376 = vunpack.c.l.b16 %v328
  %v2377 = vunpack.c.l.b16 %v329
  %v2378 = vunpack.c.l.b16 %v330
  %v2379 = vunpack.c.l.b16 %v331
  %v2380 = vunpack.c.l.b16 %v332
  %v2381 = vunpack.c.l.b16 %v333
  %v2382 = vunpack.c.l.b16 %v334
  %v2383 = vunpack.c.l.b16 %v335
  %v2384 = vunpack.c.l.b16 %v336
  %v2385 = vunpack.c.l.b16 %v337
  %v2386 = vunpack.c.l.b16 %v338
  %v2387 = vunpack.c.l.b16 %v339
  %v2388 = vunpack.c.l.b16 %v340
  %v2389 = vunpack.c.l.b16 %v341
  %v2390 = vunpack.c.l.b16 %v342
  %v2391 = vunpack.c.l.b16 %v343
  %v2392 = vunpack.c.l.b16 %v344
  %v2393 = vunpack.c.l.b16 %v345
  %v2394 = vunpack.c.l.b16 %v346
  %v2395 = vunpack.c.l.b16 %v347
  %v2396 = vunpack.c.l.b16 %v348
  %v2397 = vunpack.c.l.b16 %v349
  %v2398 = vunpack.c.l.b16 %v350
  %v2399 = vunpack.c.l.b16 %v351
  %v2400 = vunpack.c.l.b16 %v352
  %v2401 = vunpack.c.l.b16 %v353
  %v2402 = vunpack.c.l.b16 %v354
  %v2403 = vunpack.c.l.b16 %v355
  %v2404 = vunpack.c.l.b16 %v356
  %v2405 = vunpack.c.l.b16 %v357
  %v2406 = vunpack.c.l.b16 %v358
  %v2407 = vunpack.c.l.b16 %v359
  %v2408 = vunpack.c.l.b16 %v360
  %v2409 = vunpack.c.l.b16 %v361
  %v2410 = vunpack.c.l.b16 %v362
  %v2411 = vunpack.c.l.b16 %v363
  %v2412 = vunpack.c.l.b16 %v364
  %v2413 = vunpack.c.l.b16 %v365
  %v2414 = vunpack.c.l.b16 %v366
  %v2415 = vunpack.c.l.b16 %v367
  %v2416 = vunpack.c.l.b16 %v368
  %v2417 = vunpack.c.l.b16 %v369
  %v2418 = vunpack.c.l.b16 %v370
  %v2419 = vunpack.c.l.b16 %v371
  %v2420 = vunpack.c.l.b16 %v372
  %v2421 = vunpack.c.l.b16 %v373
  %v2422 = vunpack.c.l.b16 %v374
  %v2423 = vunpack.c.l.b16 %v375
  %v2424 = vunpack.c.l.b16 %v376
  %v2425 = vunpack.c.l.b16 %v377
  %v2426 = vunpack.c.l.b16 %v378
  %v2427 = vunpack.c.l.b16 %v379
  %v2428 = vunpack.c.l.b16 %v380
  %v2429 = vunpack.c.l.b16 %v381
  %v2430 = vunpack.c.l.b16 %v382
  %v2431 = vunpack.c.l.b16 %v383
  %v2432 = vunpack.c.l.b16 %v384
  %v2433 = vunpack.c.l.b16 %v385
  %v2434 = vunpack.c.l.b16 %v386
  %v2435 = vunpack.c.l.b16 %v387
  %v2436 = vunpack.c.l.b16 %v388
  %v2437 = vunpack.c.l.b16 %v389
  %v2438 = vunpack.c.l.b16 %v390
  %v2439 = vunpack.c.l.b16 %v391
  %v2440 = vunpack.c.l.b16 %v392
  %v2441 = vunpack.c.l.b16 %v393
  %v2442 = vunpack.c.l.b16 %v394
  %v2443 = vunpack.c.l.b16 %v395
  %v2444 = vunpack.c.l.b16 %v396
  %v2445 = vunpack.c.l.b16 %v397
  %v2446 = vunpack.c.l.b16 %v398
  %v2447 = vunpack.c.l.b16 %v399
  %v2448 = vunpack.c.l.b16 %v400
  %v2449 = vunpack.c.l.b16 %v401
  %v2450 = vunpack.c.l.b16 %v402
  %v2451 = vunpack.c.l.b16 %v403
  %v2452 = vunpack.c.l.b16 %v404
  %v2453 = vunpack.c.l.b16 %v405
  %v2454 = vunpack.c.l.b16 %v406
  %v2455 = vunpack.c.l.b16 %v407
  %v2456 = vunpack.c.l.b16 %v408
  %v2457 = vunpack.c.l.b16 %v409
  %v2458 = vunpack.c.l.b16 %v410
  %v2459 = vunpack.c.l.b16 %v411
  %v2460 = vunpack.c.l.b16 %v412
  %v2461 = vunpack.c.l.b16 %v413
  %v2462 = vunpack.c.l.b16 %v414
  %v2463 = vunpack.c.l.b16 %v415
  %v2464 = vunpack.c.l.b16 %v416
  %v2465 = vunpack.c.l.b16 %v417
  %v2466 = vunpack.c.l.b16 %v418
  %v2467 = vunpack.c.l.b16 %v419
  %v2468 = vunpack.c.l.b16 %v420
  %v2469 = vunpack.c.l.b16 %v421
  %v2470 = vunpack.c.l.b16 %v422
  %v2471 = vunpack.c.l.b16 %v423
  %v2472 = vunpack.c.l.b16 %v424
  %v2473 = vunpack.c.l.b16 %v425
  %v2474 = vunpack.c.l.b16 %v426
  %v2475 = vunpack.c.l.b16 %v427
  %v2476 = vunpack.c.l.b16 %v428
  %v2477 = vunpack.c.l.b16 %v429
  %v2478 = vunpack.c.l.b16 %v430
  %v2479 = vunpack.c.l.b16 %v431
  %v2480 = vunpack.c.l.b16 %v432
  %v2481 = vunpack.c.l.b16 %v433
  %v2482 = vunpack.c.l.b16 %v434
  %v2483 = vunpack.c.l.b16 %v435
  %v2484 = vunpack.c.l.b16 %v436
  %v2485 = vunpack.c.l.b16 %v437
  %v2486 = vunpack.c.l.b16 %v438
  %v2487 = vunpack.c.l.b16 %v439
  %v2488 = vunpack.c.l.b16 %v440
  %v2489 = vunpack.c.l.b16 %v441
  %v2490 = vunpack.c.l.b16 %v442
  %v2491 = vunpack.c.l.b16 %v443
  %v2492 = vunpack.c.l.b16 %v444
  %v2493 = vunpack.c.l.b16 %v445
  %v2494 = vunpack.c.l.b16 %v446
  %v2495 = vunpack.c.l.b16 %v447
  %v2496 = vunpack.c.l.b16 %v448
  %v2497 = vunpack.c.l.b16 %v449
  %v2498 = vunpack.c.l.b16 %v450
  %v2499 = vunpack.c.l.b16 %v451
  %v2500 = vunpack.c.l.b16 %v452
  %v2501 = vunpack.c.l.b16 %v453
  %v2502 = vunpack.c.l.b16 %v454
  %v2503 = vunpack.c.l.b16 %v455
  %v2504 = vunpack.c.l.b16 %v456
  %v2505 = vunpack.c.l.b16 %v457
  %v2506 = vunpack.c.l.b16 %v458
  %v2507 = vunpack.c.l.b16 %v459
  %v2508 = vunpack.c.l.b16 %v460
  %v2509 = vunpack.c.l.b16 %v461
  %v2510 = vunpack.c.l.b16 %v462
  %v2511 = vunpack.c.l.b16 %v463
  %v2512 = vunpack.c.l.b16 %v464
  %v2513 = vunpack.c.l.b16 %v465
  %v2514 = vunpack.c.l.b16 %v466
  %v2515 = vunpack.c.l.b16 %v467
  %v2516 = vunpack.c.l.b16 %v468
  %v2517 = vunpack.c.l.b16 %v469
  %v2518 = vunpack.c.l.b16 %v470
  %v2519 = vunpack.c.l.b16 %v471
  %v2520 = vunpack.c.l.b16 %v472
  %v2521 = vunpack.c.l.b16 %v473
  %v2522 = vunpack.c.l.b16 %v474
  %v2523 = vunpack.c.l.b16 %v475
  %v2524 = vunpack.c.l.b16 %v476
  %v2525 = vunpack.c.l.b16 %v477
  %v2526 = vunpack.c.l.b16 %v478
  %v2527 = vunpack.c.l.b16 %v479
  %v2528 = vunpack.c.l.b16 %v480
  %v2529 = vunpack.c.l.b16 %v481
  %v2530 = vunpack.c.l.b16 %v482
  %v2531 = vunpack.c.l.b16 %v483
  %v2532 = vunpack.c.l.b16 %v484
  %v2533 = vunpack.c.l.b16 %v485
  %v2534 = vunpack.c.l.b16 %v486
  %v2535 = vunpack.c.l.b16 %v487
  %v2536 = vunpack.c.l.b16 %v488
  %v2537 = vunpack.c.l.b16 %v489
  %v2538 = vunpack.c.l.b16 %v490
  %v2539 = vunpack.c.l.b16 %v491
  %v2540 = vunpack.c.l.b16 %v492
  %v2541 = vunpack.c.l.b16 %v493
  %v2542 = vunpack.c.l.b16 %v494
  %v2543 = vunpack.c.l.b16 %v495
  %v2544 = vunpack.c.l.b16 %v496
  %v2545 = vunpack.c.l.b16 %v497
  %v2546 = vunpack.c.l.b16 %v498
  %v2547 = vunpack.c.l.b16 %v499
  %v2548 = vunpack.c.l.b16 %v500
  %v2549 = vunpack.c.l.b16 %v501
  %v2550 = vunpack.c.l.b16 %v502
  %v2551 = vunpack.c.l.b16 %v503
  %v2552 = vunpack.c.l.b16 %v504
  %v2553 = vunpack.c.l.b16 %v505
  %v2554 = vunpack.c.l.b16 %v506
  %v2555 = vunpack.c.l.b16 %v507
  %v2556 = vunpack.c.l.b16 %v508
  %v2557 = vunpack.c.l.b16 %v509
  %v2558 = vunpack.c.l.b16 %v510
  %v2559 = vunpack.c.l.b16 %v511
  %v2560 = vunpack.c.l.b16 %v512
  %v2561 = vunpack.c.l.b16 %v513
  %v2562 = vunpack.c.l.b16 %v514
  %v2563 = vunpack.c.l.b16 %v515
  %v2564 = vunpack.c.l.b16 %v516
  %v2565 = vunpack.c.l.b16 %v517
  %v2566 = vunpack.c.l.b16 %v518
  %v2567 = vunpack.c.l.b16 %v519
  %v2568 = vunpack.c.l.b16 %v520
  %v2569 = vunpack.c.l.b16 %v521
  %v2570 = vunpack.c.l.b16 %v522
  %v2571 = vunpack.c.l.b16 %v523
  %v2572 = vunpack.c.l.b16 %v524
  %v2573 = vunpack.c.l.b16 %v525
  %v2574 = vunpack.c.l.b16 %v526
  %v2575 = vunpack.c.l.b16 %v527
  %v2576 = vunpack.c.l.b16 %v528
  %v2577 = vunpack.c.l.b16 %v529
  %v2578 = vunpack.c.l.b16 %v530
  %v2579 = vunpack.c.l.b16 %v531
  %v2580 = vunpack.c.l.b16 %v532
  %v2581 = vunpack.c.l.b16 %v533
  %v2582 = vunpack.c.l.b16 %v534
  %v2583 = vunpack.c.l.b16 %v535
  %v2584 = vunpack.c.l.b16 %v536
  %v2585 = vunpack.c.l.b16 %v537
  %v2586 = vunpack.c.l.b16 %v538
  %v2587 = vunpack.c.l.b16 %v539
  %v2588 = vunpack.c.l.b16 %v540
  %v2589 = vunpack.c.l.b16 %v541
  %v2590 = vunpack.c.l.b16 %v542
  %v2591 = vunpack.c.l.b16 %v543
  %v2592 = vunpack.c.l.b16 %v544
  %v2593 = vunpack.c.l.b16 %v545
  %v2594 = vunpack.c.l.b16 %v546
  %v2595 = vunpack.c.l.b16 %v547
  %v2596 = vunpack.c.l.b16 %v548
  %v2597 = vunpack.c.l.b16 %v549
  %v2598 = vunpack.c.l.b16 %v550
  %v2599 = vunpack.c.l.b16 %v551
  %v2600 = vunpack.c.l.b16 %v552
  %v2601 = vunpack.c.l.b16 %v553
  %v2602 = vunpack.c.l.b16 %v554
  %v2603 = vunpack.c.l.b16 %v555
  %v2604 = vunpack.c.l.b16 %v556
  %v2605 = vunpack.c.l.b16 %v557
  %v2606 = vunpack.c.l.b16 %v558
  %v2607 = vunpack.c.l.b16 %v559
  %v2608 = vunpack.c.l.b16 %v560
  %v2609 = vunpack.c.l.b16 %v561
  %v2610 = vunpack.c.l.b16 %v562
  %v2611 = vunpack.c.l.b16 %v563
  %v2612 = vunpack.c.l.b16 %v564
  %v2613 = vunpack.c.l.b16 %v565
  %v2614 = vunpack.c.l.b16 %v566
  %v2615 = vunpack.c.l.b16 %v567
  %v2616 = vunpack.c.l.b16 %v568
  %v2617 = vunpack.c.l.b16 %v569
  %v2618 = vunpack.c.l.b16 %v570
  %v2619 = vunpack.c.l.b16 %v571
  %v2620 = vunpack.c.l.b16 %v572
  %v2621 = vunpack.c.l.b16 %v573
  %v2622 = vunpack.c.l.b16 %v574
  %v2623 = vunpack.c.l.b16 %v575
  %v2624 = vunpack.c.l.b16 %v576
  %v2625 = vunpack.c.l.b16 %v577
  %v2626 = vunpack.c.l.b16 %v578
  %v2627 = vunpack.c.l.b16 %v579
  %v2628 = vunpack.c.l.b16 %v580
  %v2629 = vunpack.c.l.b16 %v581
  %v2630 = vunpack.c.l.b16 %v582
  %v2631 = vunpack.c.l.b16 %v583
  %v2632 = vunpack.c.l.b16 %v584
  %v2633 = vunpack.c.l.b16 %v585
  %v2634 = vunpack.c.l.b16 %v586
  %v2635 = vunpack.c.l.b16 %v587
  %v2636 = vunpack.c.l.b16 %v588
  %v2637 = vunpack.c.l.b16 %v589
  %v2638 = vunpack.c.l.b16 %v590
  %v2639 = vunpack.c.l.b16 %v591
  %v2640 = vunpack.c.l.b16 %v592
  %v2641 = vunpack.c.l.b16 %v593
  %v2642 = vunpack.c.l.b16 %v594
  %v2643 = vunpack.c.l.b16 %v595
  %v2644 = vunpack.c.l.b16 %v596
  %v2645 = vunpack.c.l.b16 %v597
  %v2646 = vunpack.c.l.b16 %v598
  %v2647 = vunpack.c.l.b16 %v599
  %v2648 = vunpack.c.l.b16 %v600
  %v2649 = vunpack.c.l.b16 %v601
  %v2650 = vunpack.c.l.b16 %v602
  %v2651 = vunpack.c.l.b16 %v603
  %v2652 = vunpack.c.l.b16 %v604
  %v2653 = vunpack.c.l.b16 %v605
  %v2654 = vunpack.c.l.b16 %v606
  %v2655 = vunpack.c.l.b16 %v607
  %v2656 = vunpack.c.l.b16 %v608
  %v2657 = vunpack.c.l.b16 %v609
  %v2658 = vunpack.c.l.b16 %v610
  %v2659 = vunpack.c.l.b16 %v611
  %v2660 = vunpack.c.l.b16 %v612
  %v2661 = vunpack.c.l.b16 %v613
  %v2662 = vunpack.c.l.b16 %v614
  %v2663 = vunpack.c.l.b16 %v615
  %v2664 = vunpack.c.l.b16 %v616
  %v2665 = vunpack.c.l.b16 %v617
  %v2666 = vunpack.c.l.b16 %v618
  %v2667 = vunpack.c.l.b16 %v619
  %v2668 = vunpack.c.l.b16 %v620
  %v2669 = vunpack.c.l.b16 %v621
  %v2670 = vunpack.c.l.b16 %v622
  %v2671 = vunpack.c.l.b16 %v623
  %v2672 = vunpack.c.l.b16 %v624
  %v2673 = vunpack.c.l.b16 %v625
  %v2674 = vunpack.c.l.b16 %v626
  %v2675 = vunpack.c.l.b16 %v627
  %v2676 = vunpack.c.l.b16 %v628
  %v2677 = vunpack.c.l.b16 %v629
  %v2678 = vunpack.c.l.b16 %v630
  %v2679 = vunpack.c.l.b16 %v631
  %v2680 = vunpack.c.l.b16 %v632
  %v2681 = vunpack.c.l.b16 %v633
  %v2682 = vunpack.c.l.b16 %v634
  %v2683 = vunpack.c.l.b16 %v635
  %v2684 = vunpack.c.l.b16 %v636
  %v2685 = vunpack.c.l.b16 %v637
  %v2686 = vunpack.c.l.b16 %v638
  %v2687 = vunpack.c.l.b16 %v639
  %v2688 = vunpack.c.l.b16 %v640
  %v2689 = vunpack.c.l.b16 %v641
  %v2690 = vunpack.c.l.b16 %v642
  %v2691 = vunpack.c.l.b16 %v643
  %v2692 = vunpack.c.l.b16 %v644
  %v2693 = vunpack.c.l.b16 %v645
  %v2694 = vunpack.c.l.b16 %v646
  %v2695 = vunpack.c.l.b16 %v647
  %v2696 = vunpack.c.l.b16 %v648
  %v2697 = vunpack.c.l.b16 %v649
  %v2698 = vunpack.c.l.b16 %v650
  %v2699 = vunpack.c.l.b16 %v651
  %v2700 = vunpack.c.l.b16 %v652
  %v2701 = vunpack.c.l.b16 %v653
  %v2702 = vunpack.c.l.b16 %v654
  %v2703 = vunpack.c.l.b16 %v655
  %v2704 = vunpack.c.l.b16 %v656
  %v2705 = vunpack.c.l.b16 %v657
  %v2706 = vunpack.c.l.b16 %v658
  %v2707 = vunpack.c.l.b16 %v659
  %v2708 = vunpack.c.l.b16 %v660
  %v2709 = vunpack.c.l.b16 %v661
  %v2710 = vunpack.c.l.b16 %v662
  %v2711 = vunpack.c.l.b16 %v663
  %v2712 = vunpack.c.l.b16 %v664
  %v2713 = vunpack.c.l.b16 %v665
  %v2714 = vunpack.c.l.b16 %v666
  %v2715 = vunpack.c.l.b16 %v667
  %v2716 = vunpack.c.l.b16 %v668
  %v2717 = vunpack.c.l.b16 %v669
  %v2718 = vpack.c.b16 %v2287, %v2286
  %v2719 = vpack.c.b16 %v2289, %v2288
  %v2720 = vpack.c.b16 %v2291, %v2290
  %v2721 = vpack.c.b16 %v2293, %v2292
  %v2722 = vpack.c.b16 %v2295, %v2294
  %v2723 = vpack.c.b16 %v2297, %v2296
  %v2724 = vpack.c.b16 %v2299, %v2298
  %v2725 = vpack.c.b16 %v2301, %v2300
  %v2726 = vpack.c.b16 %v2303, %v2302
  %v2727 = vpack.c.b16 %v2305, %v2304
  %v2728 = vpack.c.b16 %v2307, %v2306
  %v2729 = vpack.c.b16 %v2309, %v2308
  %v2730 = vpack.c.b16 %v2311, %v2310
  %v2731 = vpack.c.b16 %v2313, %v2312
  %v2732 = vpack.c.b16 %v2315, %v2314
  %v2733 = vpack.c.b16 %v2317, %v2316
  %v2734 = vpack.c.b16 %v2319, %v2318
  %v2735 = vpack.c.b16 %v2321, %v2320
  %v2736 = vpack.c.b16 %v2323, %v2322
  %v2737 = vpack.c.b16 %v2325, %v2324
  %v2738 = vpack.c.b16 %v2327, %v2326
  %v2739 = vpack.c.b16 %v2329, %v2328
  %v2740 = vpack.c.b16 %v2331, %v2330
  %v2741 = vpack.c.b16 %v2333, %v2332
  %v2742 = vpack.c.b16 %v2335, %v2334
  %v2743 = vpack.c.b16 %v2337, %v2336
  %v2744 = vpack.c.b16 %v2339, %v2338
  %v2745 = vpack.c.b16 %v2341, %v2340
  %v2746 = vpack.c.b16 %v2343, %v2342
  %v2747 = vpack.c.b16 %v2345, %v2344
  %v2748 = vpack.c.b16 %v2347, %v2346
  %v2749 = vpack.c.b16 %v2349, %v2348
  %v2750 = vpack.c.b16 %v2351, %v2350
  %v2751 = vpack.c.b16 %v2353, %v2352
  %v2752 = vpack.c.b16 %v2355, %v2354
  %v2753 = vpack.c.b16 %v2357, %v2356
  %v2754 = vpack.c.b16 %v2359, %v2358
  %v2755 = vpack.c.b16 %v2361, %v2360
  %v2756 = vpack.c.b16 %v2363, %v2362
  %v2757 = vpack.c.b16 %v2365, %v2364
  %v2758 = vpack.c.b16 %v2367, %v2366
  %v2759 = vpack.c.b16 %v2369, %v2368
  %v2760 = vpack.c.b16 %v2371, %v2370
  %v2761 = vpack.c.b16 %v2373, %v2372
  %v2762 = vpack.c.b16 %v2375, %v2374
  %v2763 = vpack.c.b16 %v2377, %v2376
  %v2764 = vpack.c.b16 %v2379, %v2378
  %v2765 = vpack.c.b16 %v2381, %v2380
  %v2766 = vpack.c.b16 %v2383, %v2382
  %v2767 = vpack.c.b16 %v2385, %v2384
  %v2768 = vpack.c.b16 %v2387, %v2386
  %v2769 = vpack.c.b16 %v2389, %v2388
  %v2770 = vpack.c.b16 %v2391, %v2390
  %v2771 = vpack.c.b16 %v2393, %v2392
  %v2772 = vpack.c.b16 %v2395, %v2394
  %v2773 = vpack.c.b16 %v2397, %v2396
  %v2774 = vpack.c.b16 %v2399, %v2398
  %v2775 = vpack.c.b16 %v2401, %v2400
  %v2776 = vpack.c.b16 %v2403, %v2402
  %v2777 = vpack.c.b16 %v2405, %v2404
  %v2778 = vpack.c.b16 %v2407, %v2406
  %v2779 = vpack.c.b16 %v2409, %v2408
  %v2780 = vpack.c.b16 %v2411, %v2410
  %v2781 = vpack.c.b16 %v2413, %v2412
  %v2782 = vpack.c.b16 %v2415, %v2414
  %v2783 = vpack.c.b16 %v2417, %v2416
  %v2784 = vpack.c.b16 %v2419, %v2418
  %v2785 = vpack.c.b16 %v2421, %v2420
  %v2786 = vpack.c.b16 %v2423, %v2422
  %v2787 = vpack.c.b16 %v2425, %v2424
  %v2788 = vpack.c.b16 %v2427, %v2426
  %v2789 = vpack.c.b16 %v2429, %v2428
  %v2790 = vpack.c.b16 %v2431, %v2430
  %v2791 = vpack.c.b16 %v2433, %v2432
  %v2792 = vpack.c.b16 %v2435, %v2434
  %v2793 = vpack.c.b16 %v2437, %v2436
  %v2794 = vpack.c.b16 %v2439, %v2438
  %v2795 = vpack.c.b16 %v2441, %v2440
  %v2796 = vpack.c.b16 %v2443, %v2442
  %v2797 = vpack.c.b16 %v2445, %v2444
  %v2798 = vpack.c.b16 %v2447, %v2446
  %v2799 = vpack.c.b16 %v2449, %v2448
  %v2800 = vpack.c.b16 %v2451, %v2450
  %v2801 = vpack.c.b16 %v2453, %v2452
  %v2802 = vpack.c.b16 %v2455, %v2454
  %v2803 = vpack.c.b16 %v2457, %v2456
  %v2804 = vpack.c.b16 %v2459, %v2458
  %v2805 = vpack.c.b16 %v2461, %v2460
  %v2806 = vpack.c.b16 %v2463, %v2462
  %v2807 = vpack.c.b16 %v2465, %v2464
  %v2808 = vpack.c.b16 %v2467, %v2466
  %v2809 = vpack.c.b16 %v2469, %v2468
  %v2810 = vpack.c.b16 %v2471, %v2470
  %v2811 = vpack.c.b16 %v2473, %v2472
  %v2812 = vpack.c.b16 %v2475, %v2474
  %v2813 = vpack.c.b16 %v2477, %v2476
  %v2814 = vpack.c.b16 %v2479, %v2478
  %v2815 = vpack.c.b16 %v2481, %v2480
  %v2816 = vpack.c.b16 %v2483, %v2482
  %v2817 = vpack.c.b16 %v2485, %v2484
  %v2818 = vpack.c.b16 %v2487, %v2486
  %v2819 = vpack.c.b16 %v2489, %v2488
  %v2820 = vpack.c.b16 %v2491, %v2490
  %v2821 = vpack.c.b16 %v2493, %v2492
  %v2822 = vpack.c.b16 %v2495, %v2494
  %v2823 = vpack.c.b16 %v2497, %v2496
  %v2824 = vpack.c.b16 %v2499, %v2498
  %v2825 = vpack.c.b16 %v2501, %v2500
  %v2826 = vpack.c.b16 %v2503, %v2502
  %v2827 = vpack.c.b16 %v2505, %v2504
  %v2828 = vpack.c.b16 %v2507, %v2506
  %v2829 = vpack.c.b16 %v2509, %v2508
  %v2830 = vpack.c.b16 %v2511, %v2510
  %v2831 = vpack.c.b16 %v2513, %v2512
  %v2832 = vpack.c.b16 %v2515, %v2514
  %v2833 = vpack.c.b16 %v2517, %v2516
  %v2834 = vpack.c.b16 %v2519, %v2518
  %v2835 = vpack.c.b16 %v2521, %v2520
  %v2836 = vpack.c.b16 %v2523, %v2522
  %v2837 = vpack.c.b16 %v2525, %v2524
  %v2838 = vpack.c.b16 %v2527, %v2526
  %v2839 = vpack.c.b16 %v2529, %v2528
  %v2840 = vpack.c.b16 %v2531, %v2530
  %v2841 = vpack.c.b16 %v2533, %v2532
  %v2842 = vpack.c.b16 %v2535, %v2534
  %v2843 = vpack.c.b16 %v2537, %v2536
  %v2844 = vpack.c.b16 %v2539, %v2538
  %v2845 = vpack.c.b16 %v2541, %v2540
  %v2846 = vpack.c.b16 %v2543, %v2542
  %v2847 = vpack.c.b16 %v2545, %v2544
  %v2848 = vpack.c.b16 %v2547, %v2546
  %v2849 = vpack.c.b16 %v2549, %v2548
  %v2850 = vpack.c.b16 %v2551, %v2550
  %v2851 = vpack.c.b16 %v2553, %v2552
  %v2852 = vpack.c.b16 %v2555, %v2554
  %v2853 = vpack.c.b16 %v2557, %v2556
  %v2854 = vpack.c.b16 %v2559, %v2558
  %v2855 = vpack.c.b16 %v2561, %v2560
  %v2856 = vpack.c.b16 %v2563, %v2562
  %v2857 = vpack.c.b16 %v2565, %v2564
  %v2858 = vpack.c.b16 %v2567, %v2566
  %v2859 = vpack.c.b16 %v2569, %v2568
  %v2860 = vpack.c.b16 %v2571, %v2570
  %v2861 = vpack.c.b16 %v2573, %v2572
  %v2862 = vpack.c.b16 %v2575, %v2574
  %v2863 = vpack.c.b16 %v2577, %v2576
  %v2864 = vpack.c.b16 %v2579, %v2578
  %v2865 = vpack.c.b16 %v2581, %v2580
  %v2866 = vpack.c.b16 %v2583, %v2582
  %v2867 = vpack.c.b16 %v2585, %v2584
  %v2868 = vpack.c.b16 %v2587, %v2586
  %v2869 = vpack.c.b16 %v2589, %v2588
  %v2870 = vpack.c.b16 %v2591, %v2590
  %v2871 = vpack.c.b16 %v2593, %v2592
  %v2872 = vpack.c.b16 %v2595, %v2594
  %v2873 = vpack.c.b16 %v2597, %v2596
  %v2874 = vpack.c.b16 %v2599, %v2598
  %v2875 = vpack.c.b16 %v2601, %v2600
  %v2876 = vpack.c.b16 %v2603, %v2602
  %v2877 = vpack.c.b16 %v2605, %v2604
  %v2878 = vpack.c.b16 %v2607, %v2606
  %v2879 = vpack.c.b16 %v2609, %v2608
  %v2880 = vpack.c.b16 %v2611, %v2610
  %v2881 = vpack.c.b16 %v2613, %v2612
  %v2882 = vpack.c.b16 %v2615, %v2614
  %v2883 = vpack.c.b16 %v2617, %v2616
  %v2884 = vpack.c.b16 %v2619, %v2618
  %v2885 = vpack.c.b16 %v2621, %v2620
  %v2886 = vpack.c.b16 %v2623, %v2622
  %v2887 = vpack.c.b16 %v2625, %v2624
  %v2888 = vpack.c.b16 %v2627, %v2626
  %v2889 = vpack.c.b16 %v2629, %v2628
  %v2890 = vpack.c.b16 %v2631, %v2630
  %v2891 = vpack.c.b16 %v2633, %v2632
  %v2892 = vpack.c.b16 %v2635, %v2634
  %v2893 = vpack.c.b16 %v2637, %v2636
  %v2894 = vpack.c.b16 %v2639, %v2638
  %v2895 = vpack.c.b16 %v2641, %v2640
  %v2896 = vpack.c.b16 %v2643, %v2642
  %v2897 = vpack.c.b16 %v2645, %v2644
  %v2898 = vpack.c.b16 %v2647, %v2646
  %v2899 = vpack.c.b16 %v2649, %v2648
  %v2900 = vpack.c.b16 %v2651, %v2650
  %v2901 = vpack.c.b16 %v2653, %v2652
  %v2902 = vpack.c.b16 %v2655, %v2654
  %v2903 = vpack.c.b16 %v2657, %v2656
  %v2904 = vpack.c.b16 %v2659, %v2658
  %v2905 = vpack.c.b16 %v2661, %v2660
  %v2906 = vpack.c.b16 %v2663, %v2662
  %v2907 = vpack.c.b16 %v2665, %v2664
  %v2908 = vpack.c.b16 %v2667, %v2666
  %v2909 = vpack.c.b16 %v2669, %v2668
  %v2910 = vpack.c.b16 %v2671, %v2670
  %v2911 = vpack.c.b16 %v2673, %v2672
  %v2912 = vpack.c.b16 %v2675, %v2674
  %v2913 = vpack.c.b16 %v2677, %v2676
  %v2914 = vpack.c.b16 %v2679, %v2678
  %v2915 = vpack.c.b16 %v2681, %v2680
  %v2916 = vpack.c.b16 %v2683, %v2682
  %v2917 = vpack.c.b16 %v2685, %v2684
  %v2918 = vpack.c.b16 %v2687, %v2686
  %v2919 = vpack.c.b16 %v2689, %v2688
  %v2920 = vpack.c.b16 %v2691, %v2690
  %v2921 = vpack.c.b16 %v2693, %v2692
  %v2922 = vpack.c.b16 %v2695, %v2694
  %v2923 = vpack.c.b16 %v2697, %v2696
  %v2924 = vpack.c.b16 %v2699, %v2698
  %v2925 = vpack.c.b16 %v2701, %v2700
  %v2926 = vpack.c.b16 %v2703, %v2702
  %v2927 = vpack.c.b16 %v2705, %v2704
  %v2928 = vpack.c.b16 %v2707, %v2706
  %v2929 = vpack.c.b16 %v2709, %v2708
  %v2930 = vpack.c.b16 %v2711, %v2710
  %v2931 = vpack.c.b16 %v2713, %v2712
  %v2932 = vpack.c.b16 %v2715, %v2714
  %v2933 = vpack.c.b16 %v2717, %v2716
  %3150 = vmatpush.bf16.msra.mxu0 %v2725
  %3151 = vmatpush.bf16.msra.mxu0 %v2724
  %3152 = vmatpush.bf16.msra.mxu0 %v2723
  %3153 = vmatpush.bf16.msra.mxu0 %v2722
  %3154 = vmatpush.bf16.msra.mxu0 %v2721
  %3155 = vmatpush.bf16.msra.mxu0 %v2720
  %3156 = vmatpush.bf16.msra.mxu0 %v2719
  %3157 = vmatpush.bf16.msra.mxu0 %v2718
  %3158 = vmatmul.bf16.gmra.mxu0 %v1422
  %v3159 = vpop.f32.mrf.mxu0
  %v3160 = vadd.f32 %v689, %v3159
  %v3161 = vpop.f32.mrf.mxu0
  %v3162 = vadd.f32 %v694, %v3161
  %3163 = vmatmul.bf16.gmra.mxu0 %v1449
  %v3164 = vpop.f32.mrf.mxu0
  %v3165 = vadd.f32 %v699, %v3164
  %v3166 = vpop.f32.mrf.mxu0
  %v3167 = vadd.f32 %v704, %v3166
  %3168 = vmatmul.bf16.gmra.mxu0 %v1476
  %v3169 = vpop.f32.mrf.mxu0
  %v3170 = vadd.f32 %v709, %v3169
  %v3171 = vpop.f32.mrf.mxu0
  %v3172 = vadd.f32 %v714, %v3171
  %3173 = vmatmul.bf16.gmra.mxu0 %v1503
  %v3174 = vpop.f32.mrf.mxu0
  %v3175 = vadd.f32 %v719, %v3174
  %v3176 = vpop.f32.mrf.mxu0
  %v3177 = vadd.f32 %v724, %v3176
  %3178 = vmatmul.bf16.gmra.mxu0 %v1530
  %v3179 = vpop.f32.mrf.mxu0
  %v3180 = vadd.f32 %v729, %v3179
  %v3181 = vpop.f32.mrf.mxu0
  %v3182 = vadd.f32 %v734, %v3181
  %3183 = vmatmul.bf16.gmra.mxu0 %v1557
  %v3184 = vpop.f32.mrf.mxu0
  %v3185 = vadd.f32 %v739, %v3184
  %v3186 = vpop.f32.mrf.mxu0
  %v3187 = vadd.f32 %v744, %v3186
  %3188 = vmatmul.bf16.gmra.mxu0 %v1584
  %v3189 = vpop.f32.mrf.mxu0
  %v3190 = vadd.f32 %v749, %v3189
  %v3191 = vpop.f32.mrf.mxu0
  %v3192 = vadd.f32 %v754, %v3191
  %3193 = vmatmul.bf16.gmra.mxu0 %v1611
  %v3194 = vpop.f32.mrf.mxu0
  %v3195 = vadd.f32 %v759, %v3194
  %v3196 = vpop.f32.mrf.mxu0
  %v3197 = vadd.f32 %v764, %v3196
  %3198 = vdwg.mxu0
  %3199 = vmatpush.bf16.msra.mxu0 %v2733
  %3200 = vmatpush.bf16.msra.mxu0 %v2732
  %3201 = vmatpush.bf16.msra.mxu0 %v2731
  %3202 = vmatpush.bf16.msra.mxu0 %v2730
  %3203 = vmatpush.bf16.msra.mxu0 %v2729
  %3204 = vmatpush.bf16.msra.mxu0 %v2728
  %3205 = vmatpush.bf16.msra.mxu0 %v2727
  %3206 = vmatpush.bf16.msra.mxu0 %v2726
  %3207 = vmatmul.bf16.gmra.mxu0 %v1423
  %v3208 = vpop.f32.mrf.mxu0
  %v3209 = vadd.f32 %v3160, %v3208
  %v3210 = vpop.f32.mrf.mxu0
  %v3211 = vadd.f32 %v3162, %v3210
  %3212 = vmatmul.bf16.gmra.mxu0 %v1450
  %v3213 = vpop.f32.mrf.mxu0
  %v3214 = vadd.f32 %v3165, %v3213
  %v3215 = vpop.f32.mrf.mxu0
  %v3216 = vadd.f32 %v3167, %v3215
  %3217 = vmatmul.bf16.gmra.mxu0 %v1477
  %v3218 = vpop.f32.mrf.mxu0
  %v3219 = vadd.f32 %v3170, %v3218
  %v3220 = vpop.f32.mrf.mxu0
  %v3221 = vadd.f32 %v3172, %v3220
  %3222 = vmatmul.bf16.gmra.mxu0 %v1504
  %v3223 = vpop.f32.mrf.mxu0
  %v3224 = vadd.f32 %v3175, %v3223
  %v3225 = vpop.f32.mrf.mxu0
  %v3226 = vadd.f32 %v3177, %v3225
  %3227 = vmatmul.bf16.gmra.mxu0 %v1531
  %v3228 = vpop.f32.mrf.mxu0
  %v3229 = vadd.f32 %v3180, %v3228
  %v3230 = vpop.f32.mrf.mxu0
  %v3231 = vadd.f32 %v3182, %v3230
  %3232 = vmatmul.bf16.gmra.mxu0 %v1558
  %v3233 = vpop.f32.mrf.mxu0
  %v3234 = vadd.f32 %v3185, %v3233
  %v3235 = vpop.f32.mrf.mxu0
  %v3236 = vadd.f32 %v3187, %v3235
  %3237 = vmatmul.bf16.gmra.mxu0 %v1585
  %v3238 = vpop.f32.mrf.mxu0
  %v3239 = vadd.f32 %v3190, %v3238
  %v3240 = vpop.f32.mrf.mxu0
  %v3241 = vadd.f32 %v3192, %v3240
  %3242 = vmatmul.bf16.gmra.mxu0 %v1612
  %v3243 = vpop.f32.mrf.mxu0
  %v3244 = vadd.f32 %v3195, %v3243
  %v3245 = vpop.f32.mrf.mxu0
  %v3246 = vadd.f32 %v3197, %v3245
  %3247 = vdwg.mxu0
  %3248 = vmatpush.bf16.msra.mxu0 %v2741
  %3249 = vmatpush.bf16.msra.mxu0 %v2740
  %3250 = vmatpush.bf16.msra.mxu0 %v2739
  %3251 = vmatpush.bf16.msra.mxu0 %v2738
  %3252 = vmatpush.bf16.msra.mxu0 %v2737
  %3253 = vmatpush.bf16.msra.mxu0 %v2736
  %3254 = vmatpush.bf16.msra.mxu0 %v2735
  %3255 = vmatpush.bf16.msra.mxu0 %v2734
  %3256 = vmatmul.bf16.gmra.mxu0 %v1424
  %v3257 = vpop.f32.mrf.mxu0
  %v3258 = vadd.f32 %v3209, %v3257
  %v3259 = vpop.f32.mrf.mxu0
  %v3260 = vadd.f32 %v3211, %v3259
  %3261 = vmatmul.bf16.gmra.mxu0 %v1451
  %v3262 = vpop.f32.mrf.mxu0
  %v3263 = vadd.f32 %v3214, %v3262
  %v3264 = vpop.f32.mrf.mxu0
  %v3265 = vadd.f32 %v3216, %v3264
  %3266 = vmatmul.bf16.gmra.mxu0 %v1478
  %v3267 = vpop.f32.mrf.mxu0
  %v3268 = vadd.f32 %v3219, %v3267
  %v3269 = vpop.f32.mrf.mxu0
  %v3270 = vadd.f32 %v3221, %v3269
  %3271 = vmatmul.bf16.gmra.mxu0 %v1505
  %v3272 = vpop.f32.mrf.mxu0
  %v3273 = vadd.f32 %v3224, %v3272
  %v3274 = vpop.f32.mrf.mxu0
  %v3275 = vadd.f32 %v3226, %v3274
  %3276 = vmatmul.bf16.gmra.mxu0 %v1532
  %v3277 = vpop.f32.mrf.mxu0
  %v3278 = vadd.f32 %v3229, %v3277
  %v3279 = vpop.f32.mrf.mxu0
  %v3280 = vadd.f32 %v3231, %v3279
  %3281 = vmatmul.bf16.gmra.mxu0 %v1559
  %v3282 = vpop.f32.mrf.mxu0
  %v3283 = vadd.f32 %v3234, %v3282
  %v3284 = vpop.f32.mrf.mxu0
  %v3285 = vadd.f32 %v3236, %v3284
  %3286 = vmatmul.bf16.gmra.mxu0 %v1586
  %v3287 = vpop.f32.mrf.mxu0
  %v3288 = vadd.f32 %v3239, %v3287
  %v3289 = vpop.f32.mrf.mxu0
  %v3290 = vadd.f32 %v3241, %v3289
  %3291 = vmatmul.bf16.gmra.mxu0 %v1613
  %v3292 = vpop.f32.mrf.mxu0
  %v3293 = vadd.f32 %v3244, %v3292
  %v3294 = vpop.f32.mrf.mxu0
  %v3295 = vadd.f32 %v3246, %v3294
  %3296 = vdwg.mxu0
  %3297 = vmatpush.bf16.msra.mxu0 %v2749
  %3298 = vmatpush.bf16.msra.mxu0 %v2748
  %3299 = vmatpush.bf16.msra.mxu0 %v2747
  %3300 = vmatpush.bf16.msra.mxu0 %v2746
  %3301 = vmatpush.bf16.msra.mxu0 %v2745
  %3302 = vmatpush.bf16.msra.mxu0 %v2744
  %3303 = vmatpush.bf16.msra.mxu0 %v2743
  %3304 = vmatpush.bf16.msra.mxu0 %v2742
  %3305 = vmatmul.bf16.gmra.mxu0 %v1425
  %v3306 = vpop.f32.mrf.mxu0
  %v3307 = vadd.f32 %v3258, %v3306
  %v3308 = vpop.f32.mrf.mxu0
  %v3309 = vadd.f32 %v3260, %v3308
  %3310 = vmatmul.bf16.gmra.mxu0 %v1452
  %v3311 = vpop.f32.mrf.mxu0
  %v3312 = vadd.f32 %v3263, %v3311
  %v3313 = vpop.f32.mrf.mxu0
  %v3314 = vadd.f32 %v3265, %v3313
  %3315 = vmatmul.bf16.gmra.mxu0 %v1479
  %v3316 = vpop.f32.mrf.mxu0
  %v3317 = vadd.f32 %v3268, %v3316
  %v3318 = vpop.f32.mrf.mxu0
  %v3319 = vadd.f32 %v3270, %v3318
  %3320 = vmatmul.bf16.gmra.mxu0 %v1506
  %v3321 = vpop.f32.mrf.mxu0
  %v3322 = vadd.f32 %v3273, %v3321
  %v3323 = vpop.f32.mrf.mxu0
  %v3324 = vadd.f32 %v3275, %v3323
  %3325 = vmatmul.bf16.gmra.mxu0 %v1533
  %v3326 = vpop.f32.mrf.mxu0
  %v3327 = vadd.f32 %v3278, %v3326
  %v3328 = vpop.f32.mrf.mxu0
  %v3329 = vadd.f32 %v3280, %v3328
  %3330 = vmatmul.bf16.gmra.mxu0 %v1560
  %v3331 = vpop.f32.mrf.mxu0
  %v3332 = vadd.f32 %v3283, %v3331
  %v3333 = vpop.f32.mrf.mxu0
  %v3334 = vadd.f32 %v3285, %v3333
  %3335 = vmatmul.bf16.gmra.mxu0 %v1587
  %v3336 = vpop.f32.mrf.mxu0
  %v3337 = vadd.f32 %v3288, %v3336
  %v3338 = vpop.f32.mrf.mxu0
  %v3339 = vadd.f32 %v3290, %v3338
  %3340 = vmatmul.bf16.gmra.mxu0 %v1614
  %v3341 = vpop.f32.mrf.mxu0
  %v3342 = vadd.f32 %v3293, %v3341
  %v3343 = vpop.f32.mrf.mxu0
  %v3344 = vadd.f32 %v3295, %v3343
  %3345 = vdwg.mxu0
  %3346 = vmatpush.bf16.msra.mxu0 %v2757
  %3347 = vmatpush.bf16.msra.mxu0 %v2756
  %3348 = vmatpush.bf16.msra.mxu0 %v2755
  %3349 = vmatpush.bf16.msra.mxu0 %v2754
  %3350 = vmatpush.bf16.msra.mxu0 %v2753
  %3351 = vmatpush.bf16.msra.mxu0 %v2752
  %3352 = vmatpush.bf16.msra.mxu0 %v2751
  %3353 = vmatpush.bf16.msra.mxu0 %v2750
  %3354 = vmatmul.bf16.gmra.mxu0 %v1426
  %v3355 = vpop.f32.mrf.mxu0
  %v3356 = vadd.f32 %v3307, %v3355
  %v3357 = vpop.f32.mrf.mxu0
  %v3358 = vadd.f32 %v3309, %v3357
  %3359 = vmatmul.bf16.gmra.mxu0 %v1453
  %v3360 = vpop.f32.mrf.mxu0
  %v3361 = vadd.f32 %v3312, %v3360
  %v3362 = vpop.f32.mrf.mxu0
  %v3363 = vadd.f32 %v3314, %v3362
  %3364 = vmatmul.bf16.gmra.mxu0 %v1480
  %v3365 = vpop.f32.mrf.mxu0
  %v3366 = vadd.f32 %v3317, %v3365
  %v3367 = vpop.f32.mrf.mxu0
  %v3368 = vadd.f32 %v3319, %v3367
  %3369 = vmatmul.bf16.gmra.mxu0 %v1507
  %v3370 = vpop.f32.mrf.mxu0
  %v3371 = vadd.f32 %v3322, %v3370
  %v3372 = vpop.f32.mrf.mxu0
  %v3373 = vadd.f32 %v3324, %v3372
  %3374 = vmatmul.bf16.gmra.mxu0 %v1534
  %v3375 = vpop.f32.mrf.mxu0
  %v3376 = vadd.f32 %v3327, %v3375
  %v3377 = vpop.f32.mrf.mxu0
  %v3378 = vadd.f32 %v3329, %v3377
  %3379 = vmatmul.bf16.gmra.mxu0 %v1561
  %v3380 = vpop.f32.mrf.mxu0
  %v3381 = vadd.f32 %v3332, %v3380
  %v3382 = vpop.f32.mrf.mxu0
  %v3383 = vadd.f32 %v3334, %v3382
  %3384 = vmatmul.bf16.gmra.mxu0 %v1588
  %v3385 = vpop.f32.mrf.mxu0
  %v3386 = vadd.f32 %v3337, %v3385
  %v3387 = vpop.f32.mrf.mxu0
  %v3388 = vadd.f32 %v3339, %v3387
  %3389 = vmatmul.bf16.gmra.mxu0 %v1615
  %v3390 = vpop.f32.mrf.mxu0
  %v3391 = vadd.f32 %v3342, %v3390
  %v3392 = vpop.f32.mrf.mxu0
  %v3393 = vadd.f32 %v3344, %v3392
  %3394 = vdwg.mxu0
  %3395 = vmatpush.bf16.msra.mxu0 %v2765
  %3396 = vmatpush.bf16.msra.mxu0 %v2764
  %3397 = vmatpush.bf16.msra.mxu0 %v2763
  %3398 = vmatpush.bf16.msra.mxu0 %v2762
  %3399 = vmatpush.bf16.msra.mxu0 %v2761
  %3400 = vmatpush.bf16.msra.mxu0 %v2760
  %3401 = vmatpush.bf16.msra.mxu0 %v2759
  %3402 = vmatpush.bf16.msra.mxu0 %v2758
  %3403 = vmatmul.bf16.gmra.mxu0 %v1427
  %v3404 = vpop.f32.mrf.mxu0
  %v3405 = vadd.f32 %v3356, %v3404
  %v3406 = vpop.f32.mrf.mxu0
  %v3407 = vadd.f32 %v3358, %v3406
  %3408 = vmatmul.bf16.gmra.mxu0 %v1454
  %v3409 = vpop.f32.mrf.mxu0
  %v3410 = vadd.f32 %v3361, %v3409
  %v3411 = vpop.f32.mrf.mxu0
  %v3412 = vadd.f32 %v3363, %v3411
  %3413 = vmatmul.bf16.gmra.mxu0 %v1481
  %v3414 = vpop.f32.mrf.mxu0
  %v3415 = vadd.f32 %v3366, %v3414
  %v3416 = vpop.f32.mrf.mxu0
  %v3417 = vadd.f32 %v3368, %v3416
  %3418 = vmatmul.bf16.gmra.mxu0 %v1508
  %v3419 = vpop.f32.mrf.mxu0
  %v3420 = vadd.f32 %v3371, %v3419
  %v3421 = vpop.f32.mrf.mxu0
  %v3422 = vadd.f32 %v3373, %v3421
  %3423 = vmatmul.bf16.gmra.mxu0 %v1535
  %v3424 = vpop.f32.mrf.mxu0
  %v3425 = vadd.f32 %v3376, %v3424
  %v3426 = vpop.f32.mrf.mxu0
  %v3427 = vadd.f32 %v3378, %v3426
  %3428 = vmatmul.bf16.gmra.mxu0 %v1562
  %v3429 = vpop.f32.mrf.mxu0
  %v3430 = vadd.f32 %v3381, %v3429
  %v3431 = vpop.f32.mrf.mxu0
  %v3432 = vadd.f32 %v3383, %v3431
  %3433 = vmatmul.bf16.gmra.mxu0 %v1589
  %v3434 = vpop.f32.mrf.mxu0
  %v3435 = vadd.f32 %v3386, %v3434
  %v3436 = vpop.f32.mrf.mxu0
  %v3437 = vadd.f32 %v3388, %v3436
  %3438 = vmatmul.bf16.gmra.mxu0 %v1616
  %v3439 = vpop.f32.mrf.mxu0
  %v3440 = vadd.f32 %v3391, %v3439
  %v3441 = vpop.f32.mrf.mxu0
  %v3442 = vadd.f32 %v3393, %v3441
  %3443 = vdwg.mxu0
  %3444 = vmatpush.bf16.msra.mxu0 %v2773
  %3445 = vmatpush.bf16.msra.mxu0 %v2772
  %3446 = vmatpush.bf16.msra.mxu0 %v2771
  %3447 = vmatpush.bf16.msra.mxu0 %v2770
  %3448 = vmatpush.bf16.msra.mxu0 %v2769
  %3449 = vmatpush.bf16.msra.mxu0 %v2768
  %3450 = vmatpush.bf16.msra.mxu0 %v2767
  %3451 = vmatpush.bf16.msra.mxu0 %v2766
  %3452 = vmatmul.bf16.gmra.mxu0 %v1428
  %v3453 = vpop.f32.mrf.mxu0
  %v3454 = vadd.f32 %v3405, %v3453
  %v3455 = vpop.f32.mrf.mxu0
  %v3456 = vadd.f32 %v3407, %v3455
  %3457 = vmatmul.bf16.gmra.mxu0 %v1455
  %v3458 = vpop.f32.mrf.mxu0
  %v3459 = vadd.f32 %v3410, %v3458
  %v3460 = vpop.f32.mrf.mxu0
  %v3461 = vadd.f32 %v3412, %v3460
  %3462 = vmatmul.bf16.gmra.mxu0 %v1482
  %v3463 = vpop.f32.mrf.mxu0
  %v3464 = vadd.f32 %v3415, %v3463
  %v3465 = vpop.f32.mrf.mxu0
  %v3466 = vadd.f32 %v3417, %v3465
  %3467 = vmatmul.bf16.gmra.mxu0 %v1509
  %v3468 = vpop.f32.mrf.mxu0
  %v3469 = vadd.f32 %v3420, %v3468
  %v3470 = vpop.f32.mrf.mxu0
  %v3471 = vadd.f32 %v3422, %v3470
  %3472 = vmatmul.bf16.gmra.mxu0 %v1536
  %v3473 = vpop.f32.mrf.mxu0
  %v3474 = vadd.f32 %v3425, %v3473
  %v3475 = vpop.f32.mrf.mxu0
  %v3476 = vadd.f32 %v3427, %v3475
  %3477 = vmatmul.bf16.gmra.mxu0 %v1563
  %v3478 = vpop.f32.mrf.mxu0
  %v3479 = vadd.f32 %v3430, %v3478
  %v3480 = vpop.f32.mrf.mxu0
  %v3481 = vadd.f32 %v3432, %v3480
  %3482 = vmatmul.bf16.gmra.mxu0 %v1590
  %v3483 = vpop.f32.mrf.mxu0
  %v3484 = vadd.f32 %v3435, %v3483
  %v3485 = vpop.f32.mrf.mxu0
  %v3486 = vadd.f32 %v3437, %v3485
  %3487 = vmatmul.bf16.gmra.mxu0 %v1617
  %v3488 = vpop.f32.mrf.mxu0
  %v3489 = vadd.f32 %v3440, %v3488
  %v3490 = vpop.f32.mrf.mxu0
  %v3491 = vadd.f32 %v3442, %v3490
  %3492 = vdwg.mxu0
  %3493 = vmatpush.bf16.msra.mxu0 %v2781
  %3494 = vmatpush.bf16.msra.mxu0 %v2780
  %3495 = vmatpush.bf16.msra.mxu0 %v2779
  %3496 = vmatpush.bf16.msra.mxu0 %v2778
  %3497 = vmatpush.bf16.msra.mxu0 %v2777
  %3498 = vmatpush.bf16.msra.mxu0 %v2776
  %3499 = vmatpush.bf16.msra.mxu0 %v2775
  %3500 = vmatpush.bf16.msra.mxu0 %v2774
  %3501 = vmatmul.bf16.gmra.mxu0 %v1429
  %v3502 = vpop.f32.mrf.mxu0
  %v3503 = vadd.f32 %v3454, %v3502
  %v3504 = vpop.f32.mrf.mxu0
  %v3505 = vadd.f32 %v3456, %v3504
  %3506 = vmatmul.bf16.gmra.mxu0 %v1456
  %v3507 = vpop.f32.mrf.mxu0
  %v3508 = vadd.f32 %v3459, %v3507
  %v3509 = vpop.f32.mrf.mxu0
  %v3510 = vadd.f32 %v3461, %v3509
  %3511 = vmatmul.bf16.gmra.mxu0 %v1483
  %v3512 = vpop.f32.mrf.mxu0
  %v3513 = vadd.f32 %v3464, %v3512
  %v3514 = vpop.f32.mrf.mxu0
  %v3515 = vadd.f32 %v3466, %v3514
  %3516 = vmatmul.bf16.gmra.mxu0 %v1510
  %v3517 = vpop.f32.mrf.mxu0
  %v3518 = vadd.f32 %v3469, %v3517
  %v3519 = vpop.f32.mrf.mxu0
  %v3520 = vadd.f32 %v3471, %v3519
  %3521 = vmatmul.bf16.gmra.mxu0 %v1537
  %v3522 = vpop.f32.mrf.mxu0
  %v3523 = vadd.f32 %v3474, %v3522
  %v3524 = vpop.f32.mrf.mxu0
  %v3525 = vadd.f32 %v3476, %v3524
  %3526 = vmatmul.bf16.gmra.mxu0 %v1564
  %v3527 = vpop.f32.mrf.mxu0
  %v3528 = vadd.f32 %v3479, %v3527
  %v3529 = vpop.f32.mrf.mxu0
  %v3530 = vadd.f32 %v3481, %v3529
  %3531 = vmatmul.bf16.gmra.mxu0 %v1591
  %v3532 = vpop.f32.mrf.mxu0
  %v3533 = vadd.f32 %v3484, %v3532
  %v3534 = vpop.f32.mrf.mxu0
  %v3535 = vadd.f32 %v3486, %v3534
  %3536 = vmatmul.bf16.gmra.mxu0 %v1618
  %v3537 = vpop.f32.mrf.mxu0
  %v3538 = vadd.f32 %v3489, %v3537
  %v3539 = vpop.f32.mrf.mxu0
  %v3540 = vadd.f32 %v3491, %v3539
  %3541 = vdwg.mxu0
  %3542 = vmatpush.bf16.msra.mxu0 %v2789
  %3543 = vmatpush.bf16.msra.mxu0 %v2788
  %3544 = vmatpush.bf16.msra.mxu0 %v2787
  %3545 = vmatpush.bf16.msra.mxu0 %v2786
  %3546 = vmatpush.bf16.msra.mxu0 %v2785
  %3547 = vmatpush.bf16.msra.mxu0 %v2784
  %3548 = vmatpush.bf16.msra.mxu0 %v2783
  %3549 = vmatpush.bf16.msra.mxu0 %v2782
  %3550 = vmatmul.bf16.gmra.mxu0 %v1430
  %v3551 = vpop.f32.mrf.mxu0
  %v3552 = vadd.f32 %v3503, %v3551
  %v3553 = vpop.f32.mrf.mxu0
  %v3554 = vadd.f32 %v3505, %v3553
  %3555 = vmatmul.bf16.gmra.mxu0 %v1457
  %v3556 = vpop.f32.mrf.mxu0
  %v3557 = vadd.f32 %v3508, %v3556
  %v3558 = vpop.f32.mrf.mxu0
  %v3559 = vadd.f32 %v3510, %v3558
  %3560 = vmatmul.bf16.gmra.mxu0 %v1484
  %v3561 = vpop.f32.mrf.mxu0
  %v3562 = vadd.f32 %v3513, %v3561
  %v3563 = vpop.f32.mrf.mxu0
  %v3564 = vadd.f32 %v3515, %v3563
  %3565 = vmatmul.bf16.gmra.mxu0 %v1511
  %v3566 = vpop.f32.mrf.mxu0
  %v3567 = vadd.f32 %v3518, %v3566
  %v3568 = vpop.f32.mrf.mxu0
  %v3569 = vadd.f32 %v3520, %v3568
  %3570 = vmatmul.bf16.gmra.mxu0 %v1538
  %v3571 = vpop.f32.mrf.mxu0
  %v3572 = vadd.f32 %v3523, %v3571
  %v3573 = vpop.f32.mrf.mxu0
  %v3574 = vadd.f32 %v3525, %v3573
  %3575 = vmatmul.bf16.gmra.mxu0 %v1565
  %v3576 = vpop.f32.mrf.mxu0
  %v3577 = vadd.f32 %v3528, %v3576
  %v3578 = vpop.f32.mrf.mxu0
  %v3579 = vadd.f32 %v3530, %v3578
  %3580 = vmatmul.bf16.gmra.mxu0 %v1592
  %v3581 = vpop.f32.mrf.mxu0
  %v3582 = vadd.f32 %v3533, %v3581
  %v3583 = vpop.f32.mrf.mxu0
  %v3584 = vadd.f32 %v3535, %v3583
  %3585 = vmatmul.bf16.gmra.mxu0 %v1619
  %v3586 = vpop.f32.mrf.mxu0
  %v3587 = vadd.f32 %v3538, %v3586
  %v3588 = vpop.f32.mrf.mxu0
  %v3589 = vadd.f32 %v3540, %v3588
  %3590 = vdwg.mxu0
  %3591 = vmatpush.bf16.msra.mxu0 %v2797
  %3592 = vmatpush.bf16.msra.mxu0 %v2796
  %3593 = vmatpush.bf16.msra.mxu0 %v2795
  %3594 = vmatpush.bf16.msra.mxu0 %v2794
  %3595 = vmatpush.bf16.msra.mxu0 %v2793
  %3596 = vmatpush.bf16.msra.mxu0 %v2792
  %3597 = vmatpush.bf16.msra.mxu0 %v2791
  %3598 = vmatpush.bf16.msra.mxu0 %v2790
  %3599 = vmatmul.bf16.gmra.mxu0 %v1431
  %v3600 = vpop.f32.mrf.mxu0
  %v3601 = vadd.f32 %v3552, %v3600
  %v3602 = vpop.f32.mrf.mxu0
  %v3603 = vadd.f32 %v3554, %v3602
  %3604 = vmatmul.bf16.gmra.mxu0 %v1458
  %v3605 = vpop.f32.mrf.mxu0
  %v3606 = vadd.f32 %v3557, %v3605
  %v3607 = vpop.f32.mrf.mxu0
  %v3608 = vadd.f32 %v3559, %v3607
  %3609 = vmatmul.bf16.gmra.mxu0 %v1485
  %v3610 = vpop.f32.mrf.mxu0
  %v3611 = vadd.f32 %v3562, %v3610
  %v3612 = vpop.f32.mrf.mxu0
  %v3613 = vadd.f32 %v3564, %v3612
  %3614 = vmatmul.bf16.gmra.mxu0 %v1512
  %v3615 = vpop.f32.mrf.mxu0
  %v3616 = vadd.f32 %v3567, %v3615
  %v3617 = vpop.f32.mrf.mxu0
  %v3618 = vadd.f32 %v3569, %v3617
  %3619 = vmatmul.bf16.gmra.mxu0 %v1539
  %v3620 = vpop.f32.mrf.mxu0
  %v3621 = vadd.f32 %v3572, %v3620
  %v3622 = vpop.f32.mrf.mxu0
  %v3623 = vadd.f32 %v3574, %v3622
  %3624 = vmatmul.bf16.gmra.mxu0 %v1566
  %v3625 = vpop.f32.mrf.mxu0
  %v3626 = vadd.f32 %v3577, %v3625
  %v3627 = vpop.f32.mrf.mxu0
  %v3628 = vadd.f32 %v3579, %v3627
  %3629 = vmatmul.bf16.gmra.mxu0 %v1593
  %v3630 = vpop.f32.mrf.mxu0
  %v3631 = vadd.f32 %v3582, %v3630
  %v3632 = vpop.f32.mrf.mxu0
  %v3633 = vadd.f32 %v3584, %v3632
  %3634 = vmatmul.bf16.gmra.mxu0 %v1620
  %v3635 = vpop.f32.mrf.mxu0
  %v3636 = vadd.f32 %v3587, %v3635
  %v3637 = vpop.f32.mrf.mxu0
  %v3638 = vadd.f32 %v3589, %v3637
  %3639 = vdwg.mxu0
  %3640 = vmatpush.bf16.msra.mxu0 %v2805
  %3641 = vmatpush.bf16.msra.mxu0 %v2804
  %3642 = vmatpush.bf16.msra.mxu0 %v2803
  %3643 = vmatpush.bf16.msra.mxu0 %v2802
  %3644 = vmatpush.bf16.msra.mxu0 %v2801
  %3645 = vmatpush.bf16.msra.mxu0 %v2800
  %3646 = vmatpush.bf16.msra.mxu0 %v2799
  %3647 = vmatpush.bf16.msra.mxu0 %v2798
  %3648 = vmatmul.bf16.gmra.mxu0 %v1432
  %v3649 = vpop.f32.mrf.mxu0
  %v3650 = vadd.f32 %v3601, %v3649
  %v3651 = vpop.f32.mrf.mxu0
  %v3652 = vadd.f32 %v3603, %v3651
  %3653 = vmatmul.bf16.gmra.mxu0 %v1459
  %v3654 = vpop.f32.mrf.mxu0
  %v3655 = vadd.f32 %v3606, %v3654
  %v3656 = vpop.f32.mrf.mxu0
  %v3657 = vadd.f32 %v3608, %v3656
  %3658 = vmatmul.bf16.gmra.mxu0 %v1486
  %v3659 = vpop.f32.mrf.mxu0
  %v3660 = vadd.f32 %v3611, %v3659
  %v3661 = vpop.f32.mrf.mxu0
  %v3662 = vadd.f32 %v3613, %v3661
  %3663 = vmatmul.bf16.gmra.mxu0 %v1513
  %v3664 = vpop.f32.mrf.mxu0
  %v3665 = vadd.f32 %v3616, %v3664
  %v3666 = vpop.f32.mrf.mxu0
  %v3667 = vadd.f32 %v3618, %v3666
  %3668 = vmatmul.bf16.gmra.mxu0 %v1540
  %v3669 = vpop.f32.mrf.mxu0
  %v3670 = vadd.f32 %v3621, %v3669
  %v3671 = vpop.f32.mrf.mxu0
  %v3672 = vadd.f32 %v3623, %v3671
  %3673 = vmatmul.bf16.gmra.mxu0 %v1567
  %v3674 = vpop.f32.mrf.mxu0
  %v3675 = vadd.f32 %v3626, %v3674
  %v3676 = vpop.f32.mrf.mxu0
  %v3677 = vadd.f32 %v3628, %v3676
  %3678 = vmatmul.bf16.gmra.mxu0 %v1594
  %v3679 = vpop.f32.mrf.mxu0
  %v3680 = vadd.f32 %v3631, %v3679
  %v3681 = vpop.f32.mrf.mxu0
  %v3682 = vadd.f32 %v3633, %v3681
  %3683 = vmatmul.bf16.gmra.mxu0 %v1621
  %v3684 = vpop.f32.mrf.mxu0
  %v3685 = vadd.f32 %v3636, %v3684
  %v3686 = vpop.f32.mrf.mxu0
  %v3687 = vadd.f32 %v3638, %v3686
  %3688 = vdwg.mxu0
  %3689 = vmatpush.bf16.msra.mxu0 %v2813
  %3690 = vmatpush.bf16.msra.mxu0 %v2812
  %3691 = vmatpush.bf16.msra.mxu0 %v2811
  %3692 = vmatpush.bf16.msra.mxu0 %v2810
  %3693 = vmatpush.bf16.msra.mxu0 %v2809
  %3694 = vmatpush.bf16.msra.mxu0 %v2808
  %3695 = vmatpush.bf16.msra.mxu0 %v2807
  %3696 = vmatpush.bf16.msra.mxu0 %v2806
  %3697 = vmatmul.bf16.gmra.mxu0 %v1433
  %v3698 = vpop.f32.mrf.mxu0
  %v3699 = vadd.f32 %v3650, %v3698
  %v3700 = vpop.f32.mrf.mxu0
  %v3701 = vadd.f32 %v3652, %v3700
  %3702 = vmatmul.bf16.gmra.mxu0 %v1460
  %v3703 = vpop.f32.mrf.mxu0
  %v3704 = vadd.f32 %v3655, %v3703
  %v3705 = vpop.f32.mrf.mxu0
  %v3706 = vadd.f32 %v3657, %v3705
  %3707 = vmatmul.bf16.gmra.mxu0 %v1487
  %v3708 = vpop.f32.mrf.mxu0
  %v3709 = vadd.f32 %v3660, %v3708
  %v3710 = vpop.f32.mrf.mxu0
  %v3711 = vadd.f32 %v3662, %v3710
  %3712 = vmatmul.bf16.gmra.mxu0 %v1514
  %v3713 = vpop.f32.mrf.mxu0
  %v3714 = vadd.f32 %v3665, %v3713
  %v3715 = vpop.f32.mrf.mxu0
  %v3716 = vadd.f32 %v3667, %v3715
  %3717 = vmatmul.bf16.gmra.mxu0 %v1541
  %v3718 = vpop.f32.mrf.mxu0
  %v3719 = vadd.f32 %v3670, %v3718
  %v3720 = vpop.f32.mrf.mxu0
  %v3721 = vadd.f32 %v3672, %v3720
  %3722 = vmatmul.bf16.gmra.mxu0 %v1568
  %v3723 = vpop.f32.mrf.mxu0
  %v3724 = vadd.f32 %v3675, %v3723
  %v3725 = vpop.f32.mrf.mxu0
  %v3726 = vadd.f32 %v3677, %v3725
  %3727 = vmatmul.bf16.gmra.mxu0 %v1595
  %v3728 = vpop.f32.mrf.mxu0
  %v3729 = vadd.f32 %v3680, %v3728
  %v3730 = vpop.f32.mrf.mxu0
  %v3731 = vadd.f32 %v3682, %v3730
  %3732 = vmatmul.bf16.gmra.mxu0 %v1622
  %v3733 = vpop.f32.mrf.mxu0
  %v3734 = vadd.f32 %v3685, %v3733
  %v3735 = vpop.f32.mrf.mxu0
  %v3736 = vadd.f32 %v3687, %v3735
  %3737 = vdwg.mxu0
  %3738 = vmatpush.bf16.msra.mxu0 %v2821
  %3739 = vmatpush.bf16.msra.mxu0 %v2820
  %3740 = vmatpush.bf16.msra.mxu0 %v2819
  %3741 = vmatpush.bf16.msra.mxu0 %v2818
  %3742 = vmatpush.bf16.msra.mxu0 %v2817
  %3743 = vmatpush.bf16.msra.mxu0 %v2816
  %3744 = vmatpush.bf16.msra.mxu0 %v2815
  %3745 = vmatpush.bf16.msra.mxu0 %v2814
  %3746 = vmatmul.bf16.gmra.mxu0 %v1434
  %v3747 = vpop.f32.mrf.mxu0
  %v3748 = vadd.f32 %v3699, %v3747
  %v3749 = vpop.f32.mrf.mxu0
  %v3750 = vadd.f32 %v3701, %v3749
  %3751 = vmatmul.bf16.gmra.mxu0 %v1461
  %v3752 = vpop.f32.mrf.mxu0
  %v3753 = vadd.f32 %v3704, %v3752
  %v3754 = vpop.f32.mrf.mxu0
  %v3755 = vadd.f32 %v3706, %v3754
  %3756 = vmatmul.bf16.gmra.mxu0 %v1488
  %v3757 = vpop.f32.mrf.mxu0
  %v3758 = vadd.f32 %v3709, %v3757
  %v3759 = vpop.f32.mrf.mxu0
  %v3760 = vadd.f32 %v3711, %v3759
  %3761 = vmatmul.bf16.gmra.mxu0 %v1515
  %v3762 = vpop.f32.mrf.mxu0
  %v3763 = vadd.f32 %v3714, %v3762
  %v3764 = vpop.f32.mrf.mxu0
  %v3765 = vadd.f32 %v3716, %v3764
  %3766 = vmatmul.bf16.gmra.mxu0 %v1542
  %v3767 = vpop.f32.mrf.mxu0
  %v3768 = vadd.f32 %v3719, %v3767
  %v3769 = vpop.f32.mrf.mxu0
  %v3770 = vadd.f32 %v3721, %v3769
  %3771 = vmatmul.bf16.gmra.mxu0 %v1569
  %v3772 = vpop.f32.mrf.mxu0
  %v3773 = vadd.f32 %v3724, %v3772
  %v3774 = vpop.f32.mrf.mxu0
  %v3775 = vadd.f32 %v3726, %v3774
  %3776 = vmatmul.bf16.gmra.mxu0 %v1596
  %v3777 = vpop.f32.mrf.mxu0
  %v3778 = vadd.f32 %v3729, %v3777
  %v3779 = vpop.f32.mrf.mxu0
  %v3780 = vadd.f32 %v3731, %v3779
  %3781 = vmatmul.bf16.gmra.mxu0 %v1623
  %v3782 = vpop.f32.mrf.mxu0
  %v3783 = vadd.f32 %v3734, %v3782
  %v3784 = vpop.f32.mrf.mxu0
  %v3785 = vadd.f32 %v3736, %v3784
  %3786 = vdwg.mxu0
  %3787 = vmatpush.bf16.msra.mxu0 %v2829
  %3788 = vmatpush.bf16.msra.mxu0 %v2828
  %3789 = vmatpush.bf16.msra.mxu0 %v2827
  %3790 = vmatpush.bf16.msra.mxu0 %v2826
  %3791 = vmatpush.bf16.msra.mxu0 %v2825
  %3792 = vmatpush.bf16.msra.mxu0 %v2824
  %3793 = vmatpush.bf16.msra.mxu0 %v2823
  %3794 = vmatpush.bf16.msra.mxu0 %v2822
  %3795 = vmatmul.bf16.gmra.mxu0 %v1435
  %v3796 = vpop.f32.mrf.mxu0
  %v3797 = vadd.f32 %v3748, %v3796
  %v3798 = vpop.f32.mrf.mxu0
  %v3799 = vadd.f32 %v3750, %v3798
  %3800 = vmatmul.bf16.gmra.mxu0 %v1462
  %v3801 = vpop.f32.mrf.mxu0
  %v3802 = vadd.f32 %v3753, %v3801
  %v3803 = vpop.f32.mrf.mxu0
  %v3804 = vadd.f32 %v3755, %v3803
  %3805 = vmatmul.bf16.gmra.mxu0 %v1489
  %v3806 = vpop.f32.mrf.mxu0
  %v3807 = vadd.f32 %v3758, %v3806
  %v3808 = vpop.f32.mrf.mxu0
  %v3809 = vadd.f32 %v3760, %v3808
  %3810 = vmatmul.bf16.gmra.mxu0 %v1516
  %v3811 = vpop.f32.mrf.mxu0
  %v3812 = vadd.f32 %v3763, %v3811
  %v3813 = vpop.f32.mrf.mxu0
  %v3814 = vadd.f32 %v3765, %v3813
  %3815 = vmatmul.bf16.gmra.mxu0 %v1543
  %v3816 = vpop.f32.mrf.mxu0
  %v3817 = vadd.f32 %v3768, %v3816
  %v3818 = vpop.f32.mrf.mxu0
  %v3819 = vadd.f32 %v3770, %v3818
  %3820 = vmatmul.bf16.gmra.mxu0 %v1570
  %v3821 = vpop.f32.mrf.mxu0
  %v3822 = vadd.f32 %v3773, %v3821
  %v3823 = vpop.f32.mrf.mxu0
  %v3824 = vadd.f32 %v3775, %v3823
  %3825 = vmatmul.bf16.gmra.mxu0 %v1597
  %v3826 = vpop.f32.mrf.mxu0
  %v3827 = vadd.f32 %v3778, %v3826
  %v3828 = vpop.f32.mrf.mxu0
  %v3829 = vadd.f32 %v3780, %v3828
  %3830 = vmatmul.bf16.gmra.mxu0 %v1624
  %v3831 = vpop.f32.mrf.mxu0
  %v3832 = vadd.f32 %v3783, %v3831
  %v3833 = vpop.f32.mrf.mxu0
  %v3834 = vadd.f32 %v3785, %v3833
  %3835 = vdwg.mxu0
  %3836 = vmatpush.bf16.msra.mxu0 %v2837
  %3837 = vmatpush.bf16.msra.mxu0 %v2836
  %3838 = vmatpush.bf16.msra.mxu0 %v2835
  %3839 = vmatpush.bf16.msra.mxu0 %v2834
  %3840 = vmatpush.bf16.msra.mxu0 %v2833
  %3841 = vmatpush.bf16.msra.mxu0 %v2832
  %3842 = vmatpush.bf16.msra.mxu0 %v2831
  %3843 = vmatpush.bf16.msra.mxu0 %v2830
  %3844 = vmatmul.bf16.gmra.mxu0 %v1436
  %v3845 = vpop.f32.mrf.mxu0
  %v3846 = vadd.f32 %v3797, %v3845
  %v3847 = vpop.f32.mrf.mxu0
  %v3848 = vadd.f32 %v3799, %v3847
  %3849 = vmatmul.bf16.gmra.mxu0 %v1463
  %v3850 = vpop.f32.mrf.mxu0
  %v3851 = vadd.f32 %v3802, %v3850
  %v3852 = vpop.f32.mrf.mxu0
  %v3853 = vadd.f32 %v3804, %v3852
  %3854 = vmatmul.bf16.gmra.mxu0 %v1490
  %v3855 = vpop.f32.mrf.mxu0
  %v3856 = vadd.f32 %v3807, %v3855
  %v3857 = vpop.f32.mrf.mxu0
  %v3858 = vadd.f32 %v3809, %v3857
  %3859 = vmatmul.bf16.gmra.mxu0 %v1517
  %v3860 = vpop.f32.mrf.mxu0
  %v3861 = vadd.f32 %v3812, %v3860
  %v3862 = vpop.f32.mrf.mxu0
  %v3863 = vadd.f32 %v3814, %v3862
  %3864 = vmatmul.bf16.gmra.mxu0 %v1544
  %v3865 = vpop.f32.mrf.mxu0
  %v3866 = vadd.f32 %v3817, %v3865
  %v3867 = vpop.f32.mrf.mxu0
  %v3868 = vadd.f32 %v3819, %v3867
  %3869 = vmatmul.bf16.gmra.mxu0 %v1571
  %v3870 = vpop.f32.mrf.mxu0
  %v3871 = vadd.f32 %v3822, %v3870
  %v3872 = vpop.f32.mrf.mxu0
  %v3873 = vadd.f32 %v3824, %v3872
  %3874 = vmatmul.bf16.gmra.mxu0 %v1598
  %v3875 = vpop.f32.mrf.mxu0
  %v3876 = vadd.f32 %v3827, %v3875
  %v3877 = vpop.f32.mrf.mxu0
  %v3878 = vadd.f32 %v3829, %v3877
  %3879 = vmatmul.bf16.gmra.mxu0 %v1625
  %v3880 = vpop.f32.mrf.mxu0
  %v3881 = vadd.f32 %v3832, %v3880
  %v3882 = vpop.f32.mrf.mxu0
  %v3883 = vadd.f32 %v3834, %v3882
  %3884 = vdwg.mxu0
  %3885 = vmatpush.bf16.msra.mxu0 %v2845
  %3886 = vmatpush.bf16.msra.mxu0 %v2844
  %3887 = vmatpush.bf16.msra.mxu0 %v2843
  %3888 = vmatpush.bf16.msra.mxu0 %v2842
  %3889 = vmatpush.bf16.msra.mxu0 %v2841
  %3890 = vmatpush.bf16.msra.mxu0 %v2840
  %3891 = vmatpush.bf16.msra.mxu0 %v2839
  %3892 = vmatpush.bf16.msra.mxu0 %v2838
  %3893 = vmatmul.bf16.gmra.mxu0 %v1437
  %v3894 = vpop.f32.mrf.mxu0
  %v3895 = vadd.f32 %v3846, %v3894
  %v3896 = vpop.f32.mrf.mxu0
  %v3897 = vadd.f32 %v3848, %v3896
  %3898 = vmatmul.bf16.gmra.mxu0 %v1464
  %v3899 = vpop.f32.mrf.mxu0
  %v3900 = vadd.f32 %v3851, %v3899
  %v3901 = vpop.f32.mrf.mxu0
  %v3902 = vadd.f32 %v3853, %v3901
  %3903 = vmatmul.bf16.gmra.mxu0 %v1491
  %v3904 = vpop.f32.mrf.mxu0
  %v3905 = vadd.f32 %v3856, %v3904
  %v3906 = vpop.f32.mrf.mxu0
  %v3907 = vadd.f32 %v3858, %v3906
  %3908 = vmatmul.bf16.gmra.mxu0 %v1518
  %v3909 = vpop.f32.mrf.mxu0
  %v3910 = vadd.f32 %v3861, %v3909
  %v3911 = vpop.f32.mrf.mxu0
  %v3912 = vadd.f32 %v3863, %v3911
  %3913 = vmatmul.bf16.gmra.mxu0 %v1545
  %v3914 = vpop.f32.mrf.mxu0
  %v3915 = vadd.f32 %v3866, %v3914
  %v3916 = vpop.f32.mrf.mxu0
  %v3917 = vadd.f32 %v3868, %v3916
  %3918 = vmatmul.bf16.gmra.mxu0 %v1572
  %v3919 = vpop.f32.mrf.mxu0
  %v3920 = vadd.f32 %v3871, %v3919
  %v3921 = vpop.f32.mrf.mxu0
  %v3922 = vadd.f32 %v3873, %v3921
  %3923 = vmatmul.bf16.gmra.mxu0 %v1599
  %v3924 = vpop.f32.mrf.mxu0
  %v3925 = vadd.f32 %v3876, %v3924
  %v3926 = vpop.f32.mrf.mxu0
  %v3927 = vadd.f32 %v3878, %v3926
  %3928 = vmatmul.bf16.gmra.mxu0 %v1626
  %v3929 = vpop.f32.mrf.mxu0
  %v3930 = vadd.f32 %v3881, %v3929
  %v3931 = vpop.f32.mrf.mxu0
  %v3932 = vadd.f32 %v3883, %v3931
  %3933 = vdwg.mxu0
  %3934 = vmatpush.bf16.msra.mxu0 %v2853
  %3935 = vmatpush.bf16.msra.mxu0 %v2852
  %3936 = vmatpush.bf16.msra.mxu0 %v2851
  %3937 = vmatpush.bf16.msra.mxu0 %v2850
  %3938 = vmatpush.bf16.msra.mxu0 %v2849
  %3939 = vmatpush.bf16.msra.mxu0 %v2848
  %3940 = vmatpush.bf16.msra.mxu0 %v2847
  %3941 = vmatpush.bf16.msra.mxu0 %v2846
  %3942 = vmatmul.bf16.gmra.mxu0 %v1438
  %v3943 = vpop.f32.mrf.mxu0
  %v3944 = vadd.f32 %v3895, %v3943
  %v3945 = vpop.f32.mrf.mxu0
  %v3946 = vadd.f32 %v3897, %v3945
  %3947 = vmatmul.bf16.gmra.mxu0 %v1465
  %v3948 = vpop.f32.mrf.mxu0
  %v3949 = vadd.f32 %v3900, %v3948
  %v3950 = vpop.f32.mrf.mxu0
  %v3951 = vadd.f32 %v3902, %v3950
  %3952 = vmatmul.bf16.gmra.mxu0 %v1492
  %v3953 = vpop.f32.mrf.mxu0
  %v3954 = vadd.f32 %v3905, %v3953
  %v3955 = vpop.f32.mrf.mxu0
  %v3956 = vadd.f32 %v3907, %v3955
  %3957 = vmatmul.bf16.gmra.mxu0 %v1519
  %v3958 = vpop.f32.mrf.mxu0
  %v3959 = vadd.f32 %v3910, %v3958
  %v3960 = vpop.f32.mrf.mxu0
  %v3961 = vadd.f32 %v3912, %v3960
  %3962 = vmatmul.bf16.gmra.mxu0 %v1546
  %v3963 = vpop.f32.mrf.mxu0
  %v3964 = vadd.f32 %v3915, %v3963
  %v3965 = vpop.f32.mrf.mxu0
  %v3966 = vadd.f32 %v3917, %v3965
  %3967 = vmatmul.bf16.gmra.mxu0 %v1573
  %v3968 = vpop.f32.mrf.mxu0
  %v3969 = vadd.f32 %v3920, %v3968
  %v3970 = vpop.f32.mrf.mxu0
  %v3971 = vadd.f32 %v3922, %v3970
  %3972 = vmatmul.bf16.gmra.mxu0 %v1600
  %v3973 = vpop.f32.mrf.mxu0
  %v3974 = vadd.f32 %v3925, %v3973
  %v3975 = vpop.f32.mrf.mxu0
  %v3976 = vadd.f32 %v3927, %v3975
  %3977 = vmatmul.bf16.gmra.mxu0 %v1627
  %v3978 = vpop.f32.mrf.mxu0
  %v3979 = vadd.f32 %v3930, %v3978
  %v3980 = vpop.f32.mrf.mxu0
  %v3981 = vadd.f32 %v3932, %v3980
  %3982 = vdwg.mxu0
  %3983 = vmatpush.bf16.msra.mxu0 %v2861
  %3984 = vmatpush.bf16.msra.mxu0 %v2860
  %3985 = vmatpush.bf16.msra.mxu0 %v2859
  %3986 = vmatpush.bf16.msra.mxu0 %v2858
  %3987 = vmatpush.bf16.msra.mxu0 %v2857
  %3988 = vmatpush.bf16.msra.mxu0 %v2856
  %3989 = vmatpush.bf16.msra.mxu0 %v2855
  %3990 = vmatpush.bf16.msra.mxu0 %v2854
  %3991 = vmatmul.bf16.gmra.mxu0 %v1439
  %v3992 = vpop.f32.mrf.mxu0
  %v3993 = vadd.f32 %v3944, %v3992
  %v3994 = vpop.f32.mrf.mxu0
  %v3995 = vadd.f32 %v3946, %v3994
  %3996 = vmatmul.bf16.gmra.mxu0 %v1466
  %v3997 = vpop.f32.mrf.mxu0
  %v3998 = vadd.f32 %v3949, %v3997
  %v3999 = vpop.f32.mrf.mxu0
  %v4000 = vadd.f32 %v3951, %v3999
  %4001 = vmatmul.bf16.gmra.mxu0 %v1493
  %v4002 = vpop.f32.mrf.mxu0
  %v4003 = vadd.f32 %v3954, %v4002
  %v4004 = vpop.f32.mrf.mxu0
  %v4005 = vadd.f32 %v3956, %v4004
  %4006 = vmatmul.bf16.gmra.mxu0 %v1520
  %v4007 = vpop.f32.mrf.mxu0
  %v4008 = vadd.f32 %v3959, %v4007
  %v4009 = vpop.f32.mrf.mxu0
  %v4010 = vadd.f32 %v3961, %v4009
  %4011 = vmatmul.bf16.gmra.mxu0 %v1547
  %v4012 = vpop.f32.mrf.mxu0
  %v4013 = vadd.f32 %v3964, %v4012
  %v4014 = vpop.f32.mrf.mxu0
  %v4015 = vadd.f32 %v3966, %v4014
  %4016 = vmatmul.bf16.gmra.mxu0 %v1574
  %v4017 = vpop.f32.mrf.mxu0
  %v4018 = vadd.f32 %v3969, %v4017
  %v4019 = vpop.f32.mrf.mxu0
  %v4020 = vadd.f32 %v3971, %v4019
  %4021 = vmatmul.bf16.gmra.mxu0 %v1601
  %v4022 = vpop.f32.mrf.mxu0
  %v4023 = vadd.f32 %v3974, %v4022
  %v4024 = vpop.f32.mrf.mxu0
  %v4025 = vadd.f32 %v3976, %v4024
  %4026 = vmatmul.bf16.gmra.mxu0 %v1628
  %v4027 = vpop.f32.mrf.mxu0
  %v4028 = vadd.f32 %v3979, %v4027
  %v4029 = vpop.f32.mrf.mxu0
  %v4030 = vadd.f32 %v3981, %v4029
  %4031 = vdwg.mxu0
  %4032 = vmatpush.bf16.msra.mxu0 %v2869
  %4033 = vmatpush.bf16.msra.mxu0 %v2868
  %4034 = vmatpush.bf16.msra.mxu0 %v2867
  %4035 = vmatpush.bf16.msra.mxu0 %v2866
  %4036 = vmatpush.bf16.msra.mxu0 %v2865
  %4037 = vmatpush.bf16.msra.mxu0 %v2864
  %4038 = vmatpush.bf16.msra.mxu0 %v2863
  %4039 = vmatpush.bf16.msra.mxu0 %v2862
  %4040 = vmatmul.bf16.gmra.mxu0 %v1440
  %v4041 = vpop.f32.mrf.mxu0
  %v4042 = vadd.f32 %v3993, %v4041
  %v4043 = vpop.f32.mrf.mxu0
  %v4044 = vadd.f32 %v3995, %v4043
  %4045 = vmatmul.bf16.gmra.mxu0 %v1467
  %v4046 = vpop.f32.mrf.mxu0
  %v4047 = vadd.f32 %v3998, %v4046
  %v4048 = vpop.f32.mrf.mxu0
  %v4049 = vadd.f32 %v4000, %v4048
  %4050 = vmatmul.bf16.gmra.mxu0 %v1494
  %v4051 = vpop.f32.mrf.mxu0
  %v4052 = vadd.f32 %v4003, %v4051
  %v4053 = vpop.f32.mrf.mxu0
  %v4054 = vadd.f32 %v4005, %v4053
  %4055 = vmatmul.bf16.gmra.mxu0 %v1521
  %v4056 = vpop.f32.mrf.mxu0
  %v4057 = vadd.f32 %v4008, %v4056
  %v4058 = vpop.f32.mrf.mxu0
  %v4059 = vadd.f32 %v4010, %v4058
  %4060 = vmatmul.bf16.gmra.mxu0 %v1548
  %v4061 = vpop.f32.mrf.mxu0
  %v4062 = vadd.f32 %v4013, %v4061
  %v4063 = vpop.f32.mrf.mxu0
  %v4064 = vadd.f32 %v4015, %v4063
  %4065 = vmatmul.bf16.gmra.mxu0 %v1575
  %v4066 = vpop.f32.mrf.mxu0
  %v4067 = vadd.f32 %v4018, %v4066
  %v4068 = vpop.f32.mrf.mxu0
  %v4069 = vadd.f32 %v4020, %v4068
  %4070 = vmatmul.bf16.gmra.mxu0 %v1602
  %v4071 = vpop.f32.mrf.mxu0
  %v4072 = vadd.f32 %v4023, %v4071
  %v4073 = vpop.f32.mrf.mxu0
  %v4074 = vadd.f32 %v4025, %v4073
  %4075 = vmatmul.bf16.gmra.mxu0 %v1629
  %v4076 = vpop.f32.mrf.mxu0
  %v4077 = vadd.f32 %v4028, %v4076
  %v4078 = vpop.f32.mrf.mxu0
  %v4079 = vadd.f32 %v4030, %v4078
  %4080 = vdwg.mxu0
  %4081 = vmatpush.bf16.msra.mxu0 %v2877
  %4082 = vmatpush.bf16.msra.mxu0 %v2876
  %4083 = vmatpush.bf16.msra.mxu0 %v2875
  %4084 = vmatpush.bf16.msra.mxu0 %v2874
  %4085 = vmatpush.bf16.msra.mxu0 %v2873
  %4086 = vmatpush.bf16.msra.mxu0 %v2872
  %4087 = vmatpush.bf16.msra.mxu0 %v2871
  %4088 = vmatpush.bf16.msra.mxu0 %v2870
  %4089 = vmatmul.bf16.gmra.mxu0 %v1441
  %v4090 = vpop.f32.mrf.mxu0
  %v4091 = vadd.f32 %v4042, %v4090
  %v4092 = vpop.f32.mrf.mxu0
  %v4093 = vadd.f32 %v4044, %v4092
  %4094 = vmatmul.bf16.gmra.mxu0 %v1468
  %v4095 = vpop.f32.mrf.mxu0
  %v4096 = vadd.f32 %v4047, %v4095
  %v4097 = vpop.f32.mrf.mxu0
  %v4098 = vadd.f32 %v4049, %v4097
  %4099 = vmatmul.bf16.gmra.mxu0 %v1495
  %v4100 = vpop.f32.mrf.mxu0
  %v4101 = vadd.f32 %v4052, %v4100
  %v4102 = vpop.f32.mrf.mxu0
  %v4103 = vadd.f32 %v4054, %v4102
  %4104 = vmatmul.bf16.gmra.mxu0 %v1522
  %v4105 = vpop.f32.mrf.mxu0
  %v4106 = vadd.f32 %v4057, %v4105
  %v4107 = vpop.f32.mrf.mxu0
  %v4108 = vadd.f32 %v4059, %v4107
  %4109 = vmatmul.bf16.gmra.mxu0 %v1549
  %v4110 = vpop.f32.mrf.mxu0
  %v4111 = vadd.f32 %v4062, %v4110
  %v4112 = vpop.f32.mrf.mxu0
  %v4113 = vadd.f32 %v4064, %v4112
  %4114 = vmatmul.bf16.gmra.mxu0 %v1576
  %v4115 = vpop.f32.mrf.mxu0
  %v4116 = vadd.f32 %v4067, %v4115
  %v4117 = vpop.f32.mrf.mxu0
  %v4118 = vadd.f32 %v4069, %v4117
  %4119 = vmatmul.bf16.gmra.mxu0 %v1603
  %v4120 = vpop.f32.mrf.mxu0
  %v4121 = vadd.f32 %v4072, %v4120
  %v4122 = vpop.f32.mrf.mxu0
  %v4123 = vadd.f32 %v4074, %v4122
  %4124 = vmatmul.bf16.gmra.mxu0 %v1630
  %v4125 = vpop.f32.mrf.mxu0
  %v4126 = vadd.f32 %v4077, %v4125
  %v4127 = vpop.f32.mrf.mxu0
  %v4128 = vadd.f32 %v4079, %v4127
  %4129 = vdwg.mxu0
  %4130 = vmatpush.bf16.msra.mxu0 %v2885
  %4131 = vmatpush.bf16.msra.mxu0 %v2884
  %4132 = vmatpush.bf16.msra.mxu0 %v2883
  %4133 = vmatpush.bf16.msra.mxu0 %v2882
  %4134 = vmatpush.bf16.msra.mxu0 %v2881
  %4135 = vmatpush.bf16.msra.mxu0 %v2880
  %4136 = vmatpush.bf16.msra.mxu0 %v2879
  %4137 = vmatpush.bf16.msra.mxu0 %v2878
  %4138 = vmatmul.bf16.gmra.mxu0 %v1442
  %v4139 = vpop.f32.mrf.mxu0
  %v4140 = vadd.f32 %v4091, %v4139
  %v4141 = vpop.f32.mrf.mxu0
  %v4142 = vadd.f32 %v4093, %v4141
  %4143 = vmatmul.bf16.gmra.mxu0 %v1469
  %v4144 = vpop.f32.mrf.mxu0
  %v4145 = vadd.f32 %v4096, %v4144
  %v4146 = vpop.f32.mrf.mxu0
  %v4147 = vadd.f32 %v4098, %v4146
  %4148 = vmatmul.bf16.gmra.mxu0 %v1496
  %v4149 = vpop.f32.mrf.mxu0
  %v4150 = vadd.f32 %v4101, %v4149
  %v4151 = vpop.f32.mrf.mxu0
  %v4152 = vadd.f32 %v4103, %v4151
  %4153 = vmatmul.bf16.gmra.mxu0 %v1523
  %v4154 = vpop.f32.mrf.mxu0
  %v4155 = vadd.f32 %v4106, %v4154
  %v4156 = vpop.f32.mrf.mxu0
  %v4157 = vadd.f32 %v4108, %v4156
  %4158 = vmatmul.bf16.gmra.mxu0 %v1550
  %v4159 = vpop.f32.mrf.mxu0
  %v4160 = vadd.f32 %v4111, %v4159
  %v4161 = vpop.f32.mrf.mxu0
  %v4162 = vadd.f32 %v4113, %v4161
  %4163 = vmatmul.bf16.gmra.mxu0 %v1577
  %v4164 = vpop.f32.mrf.mxu0
  %v4165 = vadd.f32 %v4116, %v4164
  %v4166 = vpop.f32.mrf.mxu0
  %v4167 = vadd.f32 %v4118, %v4166
  %4168 = vmatmul.bf16.gmra.mxu0 %v1604
  %v4169 = vpop.f32.mrf.mxu0
  %v4170 = vadd.f32 %v4121, %v4169
  %v4171 = vpop.f32.mrf.mxu0
  %v4172 = vadd.f32 %v4123, %v4171
  %4173 = vmatmul.bf16.gmra.mxu0 %v1631
  %v4174 = vpop.f32.mrf.mxu0
  %v4175 = vadd.f32 %v4126, %v4174
  %v4176 = vpop.f32.mrf.mxu0
  %v4177 = vadd.f32 %v4128, %v4176
  %4178 = vdwg.mxu0
  %4179 = vmatpush.bf16.msra.mxu0 %v2893
  %4180 = vmatpush.bf16.msra.mxu0 %v2892
  %4181 = vmatpush.bf16.msra.mxu0 %v2891
  %4182 = vmatpush.bf16.msra.mxu0 %v2890
  %4183 = vmatpush.bf16.msra.mxu0 %v2889
  %4184 = vmatpush.bf16.msra.mxu0 %v2888
  %4185 = vmatpush.bf16.msra.mxu0 %v2887
  %4186 = vmatpush.bf16.msra.mxu0 %v2886
  %4187 = vmatmul.bf16.gmra.mxu0 %v1443
  %v4188 = vpop.f32.mrf.mxu0
  %v4189 = vadd.f32 %v4140, %v4188
  %v4190 = vpop.f32.mrf.mxu0
  %v4191 = vadd.f32 %v4142, %v4190
  %4192 = vmatmul.bf16.gmra.mxu0 %v1470
  %v4193 = vpop.f32.mrf.mxu0
  %v4194 = vadd.f32 %v4145, %v4193
  %v4195 = vpop.f32.mrf.mxu0
  %v4196 = vadd.f32 %v4147, %v4195
  %4197 = vmatmul.bf16.gmra.mxu0 %v1497
  %v4198 = vpop.f32.mrf.mxu0
  %v4199 = vadd.f32 %v4150, %v4198
  %v4200 = vpop.f32.mrf.mxu0
  %v4201 = vadd.f32 %v4152, %v4200
  %4202 = vmatmul.bf16.gmra.mxu0 %v1524
  %v4203 = vpop.f32.mrf.mxu0
  %v4204 = vadd.f32 %v4155, %v4203
  %v4205 = vpop.f32.mrf.mxu0
  %v4206 = vadd.f32 %v4157, %v4205
  %4207 = vmatmul.bf16.gmra.mxu0 %v1551
  %v4208 = vpop.f32.mrf.mxu0
  %v4209 = vadd.f32 %v4160, %v4208
  %v4210 = vpop.f32.mrf.mxu0
  %v4211 = vadd.f32 %v4162, %v4210
  %4212 = vmatmul.bf16.gmra.mxu0 %v1578
  %v4213 = vpop.f32.mrf.mxu0
  %v4214 = vadd.f32 %v4165, %v4213
  %v4215 = vpop.f32.mrf.mxu0
  %v4216 = vadd.f32 %v4167, %v4215
  %4217 = vmatmul.bf16.gmra.mxu0 %v1605
  %v4218 = vpop.f32.mrf.mxu0
  %v4219 = vadd.f32 %v4170, %v4218
  %v4220 = vpop.f32.mrf.mxu0
  %v4221 = vadd.f32 %v4172, %v4220
  %4222 = vmatmul.bf16.gmra.mxu0 %v1632
  %v4223 = vpop.f32.mrf.mxu0
  %v4224 = vadd.f32 %v4175, %v4223
  %v4225 = vpop.f32.mrf.mxu0
  %v4226 = vadd.f32 %v4177, %v4225
  %4227 = vdwg.mxu0
  %4228 = vmatpush.bf16.msra.mxu0 %v2901
  %4229 = vmatpush.bf16.msra.mxu0 %v2900
  %4230 = vmatpush.bf16.msra.mxu0 %v2899
  %4231 = vmatpush.bf16.msra.mxu0 %v2898
  %4232 = vmatpush.bf16.msra.mxu0 %v2897
  %4233 = vmatpush.bf16.msra.mxu0 %v2896
  %4234 = vmatpush.bf16.msra.mxu0 %v2895
  %4235 = vmatpush.bf16.msra.mxu0 %v2894
  %4236 = vmatmul.bf16.gmra.mxu0 %v1444
  %v4237 = vpop.f32.mrf.mxu0
  %v4238 = vadd.f32 %v4189, %v4237
  %v4239 = vpop.f32.mrf.mxu0
  %v4240 = vadd.f32 %v4191, %v4239
  %4241 = vmatmul.bf16.gmra.mxu0 %v1471
  %v4242 = vpop.f32.mrf.mxu0
  %v4243 = vadd.f32 %v4194, %v4242
  %v4244 = vpop.f32.mrf.mxu0
  %v4245 = vadd.f32 %v4196, %v4244
  %4246 = vmatmul.bf16.gmra.mxu0 %v1498
  %v4247 = vpop.f32.mrf.mxu0
  %v4248 = vadd.f32 %v4199, %v4247
  %v4249 = vpop.f32.mrf.mxu0
  %v4250 = vadd.f32 %v4201, %v4249
  %4251 = vmatmul.bf16.gmra.mxu0 %v1525
  %v4252 = vpop.f32.mrf.mxu0
  %v4253 = vadd.f32 %v4204, %v4252
  %v4254 = vpop.f32.mrf.mxu0
  %v4255 = vadd.f32 %v4206, %v4254
  %4256 = vmatmul.bf16.gmra.mxu0 %v1552
  %v4257 = vpop.f32.mrf.mxu0
  %v4258 = vadd.f32 %v4209, %v4257
  %v4259 = vpop.f32.mrf.mxu0
  %v4260 = vadd.f32 %v4211, %v4259
  %4261 = vmatmul.bf16.gmra.mxu0 %v1579
  %v4262 = vpop.f32.mrf.mxu0
  %v4263 = vadd.f32 %v4214, %v4262
  %v4264 = vpop.f32.mrf.mxu0
  %v4265 = vadd.f32 %v4216, %v4264
  %4266 = vmatmul.bf16.gmra.mxu0 %v1606
  %v4267 = vpop.f32.mrf.mxu0
  %v4268 = vadd.f32 %v4219, %v4267
  %v4269 = vpop.f32.mrf.mxu0
  %v4270 = vadd.f32 %v4221, %v4269
  %4271 = vmatmul.bf16.gmra.mxu0 %v1633
  %v4272 = vpop.f32.mrf.mxu0
  %v4273 = vadd.f32 %v4224, %v4272
  %v4274 = vpop.f32.mrf.mxu0
  %v4275 = vadd.f32 %v4226, %v4274
  %4276 = vdwg.mxu0
  %4277 = vmatpush.bf16.msra.mxu0 %v2909
  %4278 = vmatpush.bf16.msra.mxu0 %v2908
  %4279 = vmatpush.bf16.msra.mxu0 %v2907
  %4280 = vmatpush.bf16.msra.mxu0 %v2906
  %4281 = vmatpush.bf16.msra.mxu0 %v2905
  %4282 = vmatpush.bf16.msra.mxu0 %v2904
  %4283 = vmatpush.bf16.msra.mxu0 %v2903
  %4284 = vmatpush.bf16.msra.mxu0 %v2902
  %4285 = vmatmul.bf16.gmra.mxu0 %v1445
  %v4286 = vpop.f32.mrf.mxu0
  %v4287 = vadd.f32 %v4238, %v4286
  %v4288 = vpop.f32.mrf.mxu0
  %v4289 = vadd.f32 %v4240, %v4288
  %4290 = vmatmul.bf16.gmra.mxu0 %v1472
  %v4291 = vpop.f32.mrf.mxu0
  %v4292 = vadd.f32 %v4243, %v4291
  %v4293 = vpop.f32.mrf.mxu0
  %v4294 = vadd.f32 %v4245, %v4293
  %4295 = vmatmul.bf16.gmra.mxu0 %v1499
  %v4296 = vpop.f32.mrf.mxu0
  %v4297 = vadd.f32 %v4248, %v4296
  %v4298 = vpop.f32.mrf.mxu0
  %v4299 = vadd.f32 %v4250, %v4298
  %4300 = vmatmul.bf16.gmra.mxu0 %v1526
  %v4301 = vpop.f32.mrf.mxu0
  %v4302 = vadd.f32 %v4253, %v4301
  %v4303 = vpop.f32.mrf.mxu0
  %v4304 = vadd.f32 %v4255, %v4303
  %4305 = vmatmul.bf16.gmra.mxu0 %v1553
  %v4306 = vpop.f32.mrf.mxu0
  %v4307 = vadd.f32 %v4258, %v4306
  %v4308 = vpop.f32.mrf.mxu0
  %v4309 = vadd.f32 %v4260, %v4308
  %4310 = vmatmul.bf16.gmra.mxu0 %v1580
  %v4311 = vpop.f32.mrf.mxu0
  %v4312 = vadd.f32 %v4263, %v4311
  %v4313 = vpop.f32.mrf.mxu0
  %v4314 = vadd.f32 %v4265, %v4313
  %4315 = vmatmul.bf16.gmra.mxu0 %v1607
  %v4316 = vpop.f32.mrf.mxu0
  %v4317 = vadd.f32 %v4268, %v4316
  %v4318 = vpop.f32.mrf.mxu0
  %v4319 = vadd.f32 %v4270, %v4318
  %4320 = vmatmul.bf16.gmra.mxu0 %v1634
  %v4321 = vpop.f32.mrf.mxu0
  %v4322 = vadd.f32 %v4273, %v4321
  %v4323 = vpop.f32.mrf.mxu0
  %v4324 = vadd.f32 %v4275, %v4323
  %4325 = vdwg.mxu0
  %4326 = vmatpush.bf16.msra.mxu0 %v2917
  %4327 = vmatpush.bf16.msra.mxu0 %v2916
  %4328 = vmatpush.bf16.msra.mxu0 %v2915
  %4329 = vmatpush.bf16.msra.mxu0 %v2914
  %4330 = vmatpush.bf16.msra.mxu0 %v2913
  %4331 = vmatpush.bf16.msra.mxu0 %v2912
  %4332 = vmatpush.bf16.msra.mxu0 %v2911
  %4333 = vmatpush.bf16.msra.mxu0 %v2910
  %4334 = vmatmul.bf16.gmra.mxu0 %v1446
  %v4335 = vpop.f32.mrf.mxu0
  %v4336 = vadd.f32 %v4287, %v4335
  %v4337 = vpop.f32.mrf.mxu0
  %v4338 = vadd.f32 %v4289, %v4337
  %4339 = vmatmul.bf16.gmra.mxu0 %v1473
  %v4340 = vpop.f32.mrf.mxu0
  %v4341 = vadd.f32 %v4292, %v4340
  %v4342 = vpop.f32.mrf.mxu0
  %v4343 = vadd.f32 %v4294, %v4342
  %4344 = vmatmul.bf16.gmra.mxu0 %v1500
  %v4345 = vpop.f32.mrf.mxu0
  %v4346 = vadd.f32 %v4297, %v4345
  %v4347 = vpop.f32.mrf.mxu0
  %v4348 = vadd.f32 %v4299, %v4347
  %4349 = vmatmul.bf16.gmra.mxu0 %v1527
  %v4350 = vpop.f32.mrf.mxu0
  %v4351 = vadd.f32 %v4302, %v4350
  %v4352 = vpop.f32.mrf.mxu0
  %v4353 = vadd.f32 %v4304, %v4352
  %4354 = vmatmul.bf16.gmra.mxu0 %v1554
  %v4355 = vpop.f32.mrf.mxu0
  %v4356 = vadd.f32 %v4307, %v4355
  %v4357 = vpop.f32.mrf.mxu0
  %v4358 = vadd.f32 %v4309, %v4357
  %4359 = vmatmul.bf16.gmra.mxu0 %v1581
  %v4360 = vpop.f32.mrf.mxu0
  %v4361 = vadd.f32 %v4312, %v4360
  %v4362 = vpop.f32.mrf.mxu0
  %v4363 = vadd.f32 %v4314, %v4362
  %4364 = vmatmul.bf16.gmra.mxu0 %v1608
  %v4365 = vpop.f32.mrf.mxu0
  %v4366 = vadd.f32 %v4317, %v4365
  %v4367 = vpop.f32.mrf.mxu0
  %v4368 = vadd.f32 %v4319, %v4367
  %4369 = vmatmul.bf16.gmra.mxu0 %v1635
  %v4370 = vpop.f32.mrf.mxu0
  %v4371 = vadd.f32 %v4322, %v4370
  %v4372 = vpop.f32.mrf.mxu0
  %v4373 = vadd.f32 %v4324, %v4372
  %4374 = vdwg.mxu0
  %4375 = vmatpush.bf16.msra.mxu0 %v2925
  %4376 = vmatpush.bf16.msra.mxu0 %v2924
  %4377 = vmatpush.bf16.msra.mxu0 %v2923
  %4378 = vmatpush.bf16.msra.mxu0 %v2922
  %4379 = vmatpush.bf16.msra.mxu0 %v2921
  %4380 = vmatpush.bf16.msra.mxu0 %v2920
  %4381 = vmatpush.bf16.msra.mxu0 %v2919
  %4382 = vmatpush.bf16.msra.mxu0 %v2918
  %4383 = vmatmul.bf16.gmra.mxu0 %v1447
  %v4384 = vpop.f32.mrf.mxu0
  %v4385 = vadd.f32 %v4336, %v4384
  %v4386 = vpop.f32.mrf.mxu0
  %v4387 = vadd.f32 %v4338, %v4386
  %4388 = vmatmul.bf16.gmra.mxu0 %v1474
  %v4389 = vpop.f32.mrf.mxu0
  %v4390 = vadd.f32 %v4341, %v4389
  %v4391 = vpop.f32.mrf.mxu0
  %v4392 = vadd.f32 %v4343, %v4391
  %4393 = vmatmul.bf16.gmra.mxu0 %v1501
  %v4394 = vpop.f32.mrf.mxu0
  %v4395 = vadd.f32 %v4346, %v4394
  %v4396 = vpop.f32.mrf.mxu0
  %v4397 = vadd.f32 %v4348, %v4396
  %4398 = vmatmul.bf16.gmra.mxu0 %v1528
  %v4399 = vpop.f32.mrf.mxu0
  %v4400 = vadd.f32 %v4351, %v4399
  %v4401 = vpop.f32.mrf.mxu0
  %v4402 = vadd.f32 %v4353, %v4401
  %4403 = vmatmul.bf16.gmra.mxu0 %v1555
  %v4404 = vpop.f32.mrf.mxu0
  %v4405 = vadd.f32 %v4356, %v4404
  %v4406 = vpop.f32.mrf.mxu0
  %v4407 = vadd.f32 %v4358, %v4406
  %4408 = vmatmul.bf16.gmra.mxu0 %v1582
  %v4409 = vpop.f32.mrf.mxu0
  %v4410 = vadd.f32 %v4361, %v4409
  %v4411 = vpop.f32.mrf.mxu0
  %v4412 = vadd.f32 %v4363, %v4411
  %4413 = vmatmul.bf16.gmra.mxu0 %v1609
  %v4414 = vpop.f32.mrf.mxu0
  %v4415 = vadd.f32 %v4366, %v4414
  %v4416 = vpop.f32.mrf.mxu0
  %v4417 = vadd.f32 %v4368, %v4416
  %4418 = vmatmul.bf16.gmra.mxu0 %v1636
  %v4419 = vpop.f32.mrf.mxu0
  %v4420 = vadd.f32 %v4371, %v4419
  %v4421 = vpop.f32.mrf.mxu0
  %v4422 = vadd.f32 %v4373, %v4421
  %4423 = vdwg.mxu0
  %4424 = vmatpush.bf16.msra.mxu0 %v2933
  %4425 = vmatpush.bf16.msra.mxu0 %v2932
  %4426 = vmatpush.bf16.msra.mxu0 %v2931
  %4427 = vmatpush.bf16.msra.mxu0 %v2930
  %4428 = vmatpush.bf16.msra.mxu0 %v2929
  %4429 = vmatpush.bf16.msra.mxu0 %v2928
  %4430 = vmatpush.bf16.msra.mxu0 %v2927
  %4431 = vmatpush.bf16.msra.mxu0 %v2926
  %4432 = vmatmul.bf16.gmra.mxu0 %v1448
  %v4433 = vpop.f32.mrf.mxu0
  %v4434 = vadd.f32 %v4385, %v4433
  %v4435 = vpop.f32.mrf.mxu0
  %v4436 = vadd.f32 %v4387, %v4435
  %4437 = vmatmul.bf16.gmra.mxu0 %v1475
  %v4438 = vpop.f32.mrf.mxu0
  %v4439 = vadd.f32 %v4390, %v4438
  %v4440 = vpop.f32.mrf.mxu0
  %v4441 = vadd.f32 %v4392, %v4440
  %4442 = vmatmul.bf16.gmra.mxu0 %v1502
  %v4443 = vpop.f32.mrf.mxu0
  %v4444 = vadd.f32 %v4395, %v4443
  %v4445 = vpop.f32.mrf.mxu0
  %v4446 = vadd.f32 %v4397, %v4445
  %4447 = vmatmul.bf16.gmra.mxu0 %v1529
  %v4448 = vpop.f32.mrf.mxu0
  %v4449 = vadd.f32 %v4400, %v4448
  %v4450 = vpop.f32.mrf.mxu0
  %v4451 = vadd.f32 %v4402, %v4450
  %4452 = vmatmul.bf16.gmra.mxu0 %v1556
  %v4453 = vpop.f32.mrf.mxu0
  %v4454 = vadd.f32 %v4405, %v4453
  %v4455 = vpop.f32.mrf.mxu0
  %v4456 = vadd.f32 %v4407, %v4455
  %4457 = vmatmul.bf16.gmra.mxu0 %v1583
  %v4458 = vpop.f32.mrf.mxu0
  %v4459 = vadd.f32 %v4410, %v4458
  %v4460 = vpop.f32.mrf.mxu0
  %v4461 = vadd.f32 %v4412, %v4460
  %4462 = vmatmul.bf16.gmra.mxu0 %v1610
  %v4463 = vpop.f32.mrf.mxu0
  %v4464 = vadd.f32 %v4415, %v4463
  %v4465 = vpop.f32.mrf.mxu0
  %v4466 = vadd.f32 %v4417, %v4465
  %4467 = vmatmul.bf16.gmra.mxu0 %v1637
  %v4468 = vpop.f32.mrf.mxu0
  %v4469 = vadd.f32 %v4420, %v4468
  %v4470 = vpop.f32.mrf.mxu0
  %v4471 = vadd.f32 %v4422, %v4470
  %4472 = vdwg.mxu0
  %v4473 = vmax.f32 %v4434, 0.0
  %v4474 = vmax.f32 %v4436, 0.0
  %v4475 = vmax.f32 %v4439, 0.0
  %v4476 = vmax.f32 %v4441, 0.0
  %v4477 = vmax.f32 %v4444, 0.0
  %v4478 = vmax.f32 %v4446, 0.0
  %v4479 = vmax.f32 %v4449, 0.0
  %v4480 = vmax.f32 %v4451, 0.0
  %v4481 = vmax.f32 %v4454, 0.0
  %v4482 = vmax.f32 %v4456, 0.0
  %v4483 = vmax.f32 %v4459, 0.0
  %v4484 = vmax.f32 %v4461, 0.0
  %v4485 = vmax.f32 %v4464, 0.0
  %v4486 = vmax.f32 %v4466, 0.0
  %v4487 = vmax.f32 %v4469, 0.0
  %v4488 = vmax.f32 %v4471, 0.0
  %4489 = vst [vmem:[%s3] sm:$0xff] %v4473
  %4490 = vst [vmem:[%s3 + $0x8] sm:$0xff] %v4474
  %4491 = vst [vmem:[%s3 + $0x10] sm:$0xff] %v4475
  %4492 = vst [vmem:[%s3 + $0x18] sm:$0xff] %v4476
  %4493 = vst [vmem:[%s3 + $0x20] sm:$0xff] %v4477
  %4494 = vst [vmem:[%s3 + $0x28] sm:$0xff] %v4478
  %4495 = vst [vmem:[%s3 + $0x30] sm:$0xff] %v4479
  %4496 = vst [vmem:[%s3 + $0x38] sm:$0xff] %v4480
  %4497 = vst [vmem:[%s3 + $0x40] sm:$0xff] %v4481
  %4498 = vst [vmem:[%s3 + $0x48] sm:$0xff] %v4482
  %4499 = vst [vmem:[%s3 + $0x50] sm:$0xff] %v4483
  %4500 = vst [vmem:[%s3 + $0x58] sm:$0xff] %v4484
  %4501 = vst [vmem:[%s3 + $0x60] sm:$0xff] %v4485
  %4502 = vst [vmem:[%s3 + $0x68] sm:$0xff] %v4486
  %4503 = vst [vmem:[%s3 + $0x70] sm:$0xff] %v4487
  %4504 = vst [vmem:[%s3 + $0x78] sm:$0xff] %v4488
  // Predicated region
  $region14: #{feature_extraction_forward.84} parent=0 // pred_check
    _
  $region15: #{feature_extraction_forward.84} parent=0 // pred_check_branch
    %4506 = sbr.rel (0) target = $region17
  $region16: #{feature_extraction_forward.84} parent=0 // pred_region
    _
  $region17: #{feature_extraction_forward.84} parent=0 // pred_fallthru
    _
  // Predicated region
  $region18: #{feature_extraction_forward.84} parent=0 // pred_check
    _
  $region19: #{feature_extraction_forward.84} parent=0 // pred_check_branch
    %4508 = sbr.rel (0) target = $region21
  $region20: #{feature_extraction_forward.84} parent=0 // pred_region
    _
  $region21: #{feature_extraction_forward.84} parent=0 // pred_fallthru
    _

</llo_original>
